<compile_context>
chip_gen: v7x
topology: tpu7x:2x2x1
jax: 0.10.0
libtpu: 0.0.40
codegen_flags: <defaults>
</compile_context>

<pallas_src>
import numpy as np
import jax
import jax.numpy as jnp
from jax.experimental import pallas as pl
from jax.experimental.pallas import tpu as pltpu


def _pick_tf(F):
    """Frequency bins per grid step: amortize the ~0.35us per-step overhead,
    but keep the grid length >= 2 so both v7x TensorCores get work."""
    if F <= 1:
        return 1
    for tf in (8, 4, 2):
        if F % tf == 0 and F // tf >= 2:
            return tf
    return 1


def _make_kernel(*, B, nCH, T, TF, wk, nPad, precision):
    KH0 = 2 * nCH                    # conv-1 input height (real mics + imag mics)
    N = B * T                        # lane extent: batch folded onto time
    offsets = [dw - nPad for dw in range(wk)]   # tap offsets, e.g. [-1, 0, 1]
    mask_row = {}                    # non-zero offset -> row of the fmask input
    for d in offsets:
        if d != 0:
            mask_row[d] = len(mask_row)

    def kernel(x0_ref, fm_ref, w1_ref, b1_ref, w2_ref, b2_ref, w3_ref, b3_ref,
               o_ref):
        # x0_ref : (TF, 2*nCH, B*T)   batch-folded input, TF freq bins per step
        # fm_ref : (nm, B*T)          precomputed zero-pad masks (grid-invariant)
        # w*_ref : (F, wk, Cout, Kin) full tap-major weight tables (VMEM-resident)
        # b*_ref : (F, Cout, 1)
        # o_ref  : (B, 2, TF*T)       [real-sum, imag-sum] block of (B, 2, F*T)
        g = pl.program_id(0)
        fm = fm_ref[...]                                       # (nm, N)

        def taps(h):
            # per-tap operands h[:, t + d] with per-batch-segment zero padding
            ops = []
            for d in offsets:
                if d == 0:
                    ops.append(h)
                else:
                    r = pltpu.roll(h, (-d) % N, 1)             # XLU lane rotate
                    row = mask_row[d]
                    ops.append(r * fm[row:row + 1, :])
            return ops

        def layer(h, w_all, b_all, f, relu):
            wf = w_all[f]                                      # (wk, Cout, Kin)
            z = b_all[f]                                       # (Cout, 1) bias
            for j, op in enumerate(taps(h)):                   # wk small dots
                z = z + jnp.dot(wf[j], op,
                                preferred_element_type=jnp.float32,
                                precision=precision)
            return jnp.maximum(z, 0.0) if relu else z

        for tf in range(TF):                                   # static bin loop
            f = g * TF + tf
            x0 = x0_ref[tf]                                    # (2*nCH, B*T)
            h1 = layer(x0, w1_ref, b1_ref, f, True)            # (H, B*T)
            h2 = layer(h1, w2_ref, b2_ref, f, True)            # (H, B*T)
            Wf = layer(h2, w3_ref, b3_ref, f, False)           # (2*nCH, B*T)

            y = x0 * Wf                                        # (2*nCH, B*T)
            ys = jnp.concatenate(
                [jnp.sum(y[0:nCH], axis=0, keepdims=True),     # real-mic sum
                 jnp.sum(y[nCH:KH0], axis=0, keepdims=True)],  # imag-mic sum
                axis=0)                                        # (2, B*T)
            for b in range(B):                                 # lane-dense (2,T)
                o_ref[b, :, tf * T:(tf + 1) * T] = ys[:, b * T:(b + 1) * T]

    return kernel


def real_deep_depthwise_cnn(x, params, *, w, use_pad=True,
                            precision=jax.lax.Precision.HIGHEST, tf_block=None):
    """x: (B, 2*F, nCH, T) float32.  Returns (B, 2*F, T) float32."""
    B, twoF, nCH, T = x.shape
    F = twoF // 2
    assert use_pad, "use_pad=False not implemented (reference shape-mismatches)"
    nPad = (w - 1) // 2
    H = params["w1"].shape[1]
    KH0 = 2 * nCH
    N = B * T

    TF = tf_block if tf_block is not None else _pick_tf(F)
    assert F % TF == 0
    assert T % 128 == 0, "this kernel expects T to be a multiple of 128"
    assert nPad < T and (w - 1 - nPad) < T

    # One-time wrapper relayout: each bin's activations become a contiguous
    # batch-folded (2*nCH, B*T) slab (negligible extra HBM pass in XLA).
    x0 = jnp.concatenate([x[:, :F], x[:, F:]], axis=2)          # (B, F, 2nCH, T)
    x0 = jnp.transpose(x0, (1, 2, 0, 3)).reshape(F, KH0, N)     # (F, 2nCH, B*T)

    # Grid-invariant zero-pad masks, one row per non-zero tap offset.
    offsets = [dw - nPad for dw in range(w)]
    rows = []
    for d in offsets:
        if d == 0:
            continue
        m = np.ones(N, np.float32)
        for b in range(B):
            if d < 0:       # first |d| frames of each batch segment are padded
                m[b * T: b * T - d] = 0.0
            else:           # last d frames of each batch segment are padded
                m[b * T + T - d: (b + 1) * T] = 0.0
        rows.append(m)
    if not rows:
        rows.append(np.ones(N, np.float32))
    fmask = jnp.asarray(np.stack(rows, axis=0))                 # (nm, B*T)

    # Tap-major weights: w*t[f, dw] is the (Cout, Kin) matrix of tap dw (tiny).
    w1t = jnp.transpose(params["w1"], (0, 3, 1, 2))             # (F, w, H, 2nCH)
    w2t = jnp.transpose(params["w2"], (0, 3, 1, 2))             # (F, w, H, H)
    w3t = jnp.transpose(params["w3"], (0, 3, 1, 2))             # (F, w, 2nCH, H)
    b1, b2, b3 = params["b1"], params["b2"], params["b3"]

    def full_spec(arr):
        # Whole array resident in VMEM, constant block index -> DMA'd once.
        n = arr.ndim
        return pl.BlockSpec(arr.shape, lambda g: (0,) * n)

    out_k = pl.pallas_call(
        _make_kernel(B=B, nCH=nCH, T=T, TF=TF, wk=w, nPad=nPad,
                     precision=precision),
        grid=(F // TF,),
        in_specs=[
            pl.BlockSpec((TF, KH0, N), lambda g: (g, 0, 0)),    # x0 per f-block
            full_spec(fmask),
            full_spec(w1t), full_spec(b1),
            full_spec(w2t), full_spec(b2),
            full_spec(w3t), full_spec(b3),
        ],
        out_specs=pl.BlockSpec((B, 2, TF * T), lambda g: (0, 0, g)),
        out_shape=jax.ShapeDtypeStruct((B, 2, F * T), jnp.float32),
        compiler_params=pltpu.CompilerParams(
            dimension_semantics=("parallel",)),
    )(x0, fmask, w1t, b1, w2t, b2, w3t, b3)

    # (B, 2, F*T) == (B, 2, F, T) row-major -> (B, 2F, T): contiguous, free.
    return out_k.reshape(B, 2, F, T).reshape(B, 2 * F, T)


def reference_forward(x, params, *, w, use_pad=True):
    """Pure-JAX reference of the same forward semantics (fp32 precision)."""
    B, twoF, nCH, T = x.shape
    F = twoF // 2
    nPad = (w - 1) // 2 if use_pad else 0
    x0 = jnp.concatenate([x[:, :F], x[:, F:]], axis=2)          # (B, F, 2*nCH, T)

    def conv(h, wgt, bias):
        hp = jnp.pad(h, ((0, 0), (0, 0), (0, 0), (nPad, nPad)))
        acc = jnp.zeros((B, F, wgt.shape[1], T), jnp.float32)
        for dw in range(w):
            acc = acc + jnp.einsum('fok,bfkt->bfot', wgt[..., dw],
                                   hp[..., dw:dw + T],
                                   precision=jax.lax.Precision.HIGHEST)
        return acc + bias[None, :, :, :]

    h1 = jax.nn.relu(conv(x0, params["w1"], params["b1"]))
    h2 = jax.nn.relu(conv(h1, params["w2"], params["b2"]))
    Wf = conv(h2, params["w3"], params["b3"])
    y = x0 * Wf
    # torch: cat((y[:,:,0:nCH].sum(2), y[:,:,nCH:].sum(2)), dim=1)
    return jnp.concatenate([y[:, :, :nCH].sum(2), y[:, :, nCH:].sum(2)], axis=1)


if __name__ == "__main__":
    # F=4 freq bins, nCH=2 mics, H=8 hidden, w=3 taps, L=3, B=2, T=128 frames
    # (T chosen so B*T = 256 lanes per matmul; TF=2 bins/step -> grid length 2).
    B, nCH, F, T = 2, 2, 4, 128
    H, wk = 8, 3

    key = jax.random.PRNGKey(0)
    kx, k1, k2, k3, kb1, kb2, kb3 = jax.random.split(key, 7)
    x = jax.random.normal(kx, (B, 2 * F, nCH, T), dtype=jnp.float32)

    def winit(k, shape):
        fan_in = shape[2] * shape[3]
        return (jax.random.normal(k, shape, dtype=jnp.float32)
                / np.sqrt(fan_in)).astype(jnp.float32)

    params = {
        "w1": winit(k1, (F, H, 2 * nCH, wk)),
        "b1": 0.01 * jax.random.normal(kb1, (F, H, 1), dtype=jnp.float32),
        "w2": winit(k2, (F, H, H, wk)),
        "b2": 0.01 * jax.random.normal(kb2, (F, H, 1), dtype=jnp.float32),
        "w3": winit(k3, (F, 2 * nCH, H, wk)),
        "b3": 0.01 * jax.random.normal(kb3, (F, 2 * nCH, 1), dtype=jnp.float32),
    }

    out = real_deep_depthwise_cnn(x, params, w=wk)
    out = jax.block_until_ready(out)
    assert out.shape == (B, 2 * F, T)

    ref = reference_forward(x, params, w=wk)
    np.testing.assert_allclose(np.asarray(out), np.asarray(ref),
                               rtol=1e-3, atol=1e-3)
    print("KERNEL_OK")
</pallas_src>

<mosaic_0001>
module attributes {stable_mosaic.version = 11 : i64} {
  func.func @kernel(%arg0: i32, %arg1: memref<2x4x256xf32, #tpu.memory_space<vmem>>, %arg2: memref<2x256xf32, #tpu.memory_space<vmem>>, %arg3: memref<4x3x8x4xf32, #tpu.memory_space<vmem>>, %arg4: memref<4x8x1xf32, #tpu.memory_space<vmem>>, %arg5: memref<4x3x8x8xf32, #tpu.memory_space<vmem>>, %arg6: memref<4x8x1xf32, #tpu.memory_space<vmem>>, %arg7: memref<4x3x4x8xf32, #tpu.memory_space<vmem>>, %arg8: memref<4x4x1xf32, #tpu.memory_space<vmem>>, %arg9: memref<2x2x256xf32, #tpu.memory_space<vmem>>) attributes {dimension_semantics = [#tpu.dimension_semantics<parallel>], iteration_bounds = array<i64: 2>, scalar_prefetch = 0 : i64, scratch_operands = 0 : i64, tpu.core_type = #tpu.core_type<tc>, window_params = [{transform_indices = @transform_0, window_bounds = array<i64: 2, 4, 256>}, {pipeline_mode = #tpu.pipeline_mode<synchronous>, transform_indices = @transform_1, window_bounds = array<i64: 2, 256>}, {pipeline_mode = #tpu.pipeline_mode<synchronous>, transform_indices = @transform_2, window_bounds = array<i64: 4, 3, 8, 4>}, {pipeline_mode = #tpu.pipeline_mode<synchronous>, transform_indices = @transform_3, window_bounds = array<i64: 4, 8, 1>}, {pipeline_mode = #tpu.pipeline_mode<synchronous>, transform_indices = @transform_4, window_bounds = array<i64: 4, 3, 8, 8>}, {pipeline_mode = #tpu.pipeline_mode<synchronous>, transform_indices = @transform_5, window_bounds = array<i64: 4, 8, 1>}, {pipeline_mode = #tpu.pipeline_mode<synchronous>, transform_indices = @transform_6, window_bounds = array<i64: 4, 3, 4, 8>}, {pipeline_mode = #tpu.pipeline_mode<synchronous>, transform_indices = @transform_7, window_bounds = array<i64: 4, 4, 1>}, {transform_indices = @transform_8, window_bounds = array<i64: 2, 2, 256>}]} {
    %c0 = arith.constant 0 : index
    %c0_0 = arith.constant 0 : index
    %0 = vector.load %arg2[%c0, %c0_0] : memref<2x256xf32, #tpu.memory_space<vmem>>, vector<2x256xf32>
    %c2_i32 = arith.constant 2 : i32
    %1 = arith.muli %arg0, %c2_i32 : i32
    %c0_i32 = arith.constant 0 : i32
    %2 = arith.addi %1, %c0_i32 : i32
    %c0_1 = arith.constant 0 : index
    %c0_2 = arith.constant 0 : index
    %c0_3 = arith.constant 0 : index
    %3 = vector.load %arg1[%c0_1, %c0_2, %c0_3] : memref<2x4x256xf32, #tpu.memory_space<vmem>>, vector<1x4x256xf32>
    %4 = vector.shape_cast %3 : vector<1x4x256xf32> to vector<4x256xf32>
    %5 = arith.index_cast %2 : i32 to index
    %c0_4 = arith.constant 0 : index
    %c0_5 = arith.constant 0 : index
    %c0_6 = arith.constant 0 : index
    %6 = vector.load %arg3[%5, %c0_4, %c0_5, %c0_6] : memref<4x3x8x4xf32, #tpu.memory_space<vmem>>, vector<1x3x8x4xf32>
    %7 = vector.shape_cast %6 : vector<1x3x8x4xf32> to vector<3x8x4xf32>
    %8 = arith.index_cast %2 : i32 to index
    %c0_7 = arith.constant 0 : index
    %c0_8 = arith.constant 0 : index
    %9 = vector.load %arg4[%8, %c0_7, %c0_8] : memref<4x8x1xf32, #tpu.memory_space<vmem>>, vector<1x8x1xf32>
    %10 = vector.shape_cast %9 : vector<1x8x1xf32> to vector<8x1xf32>
    %c1_i32 = arith.constant 1 : i32
    %11 = tpu.dynamic_rotate %4 by %c1_i32 dim 1 : vector<4x256xf32>, i32 -> vector<4x256xf32>
    %12 = vector.extract_strided_slice %0 {offsets = [0, 0], sizes = [1, 256], strides = [1, 1]} : vector<2x256xf32> to vector<1x256xf32>
    %13 = vector.broadcast %12 : vector<1x256xf32> to vector<4x256xf32>
    %14 = arith.mulf %11, %13 : vector<4x256xf32>
    %c255_i32 = arith.constant 255 : i32
    %15 = tpu.dynamic_rotate %4 by %c255_i32 dim 1 : vector<4x256xf32>, i32 -> vector<4x256xf32>
    %16 = vector.extract_strided_slice %0 {offsets = [1, 0], sizes = [1, 256], strides = [1, 1]} : vector<2x256xf32> to vector<1x256xf32>
    %17 = vector.broadcast %16 : vector<1x256xf32> to vector<4x256xf32>
    %18 = arith.mulf %15, %17 : vector<4x256xf32>
    %19 = vector.extract_strided_slice %7 {offsets = [0, 0, 0], sizes = [1, 8, 4], strides = [1, 1, 1]} : vector<3x8x4xf32> to vector<1x8x4xf32>
    %20 = vector.shape_cast %19 : vector<1x8x4xf32> to vector<8x4xf32>
    %cst = arith.constant dense<0.000000e+00> : vector<8x256xf32>
    %21 = tpu.matmul %20, %14, %cst {dimension_numbers = #tpu.dot_dimension_numbers<[1], [0], [0], [1], [0, 0, 1, 1], [], []>, precision = #tpu.contract_precision<fp32>} : vector<8x4xf32>, vector<4x256xf32>, vector<8x256xf32> -> vector<8x256xf32>
    %22 = vector.broadcast %10 : vector<8x1xf32> to vector<8x256xf32>
    %23 = arith.addf %22, %21 : vector<8x256xf32>
    %24 = vector.extract_strided_slice %7 {offsets = [1, 0, 0], sizes = [1, 8, 4], strides = [1, 1, 1]} : vector<3x8x4xf32> to vector<1x8x4xf32>
    %25 = vector.shape_cast %24 : vector<1x8x4xf32> to vector<8x4xf32>
    %cst_9 = arith.constant dense<0.000000e+00> : vector<8x256xf32>
    %26 = tpu.matmul %25, %4, %cst_9 {dimension_numbers = #tpu.dot_dimension_numbers<[1], [0], [0], [1], [0, 0, 1, 1], [], []>, precision = #tpu.contract_precision<fp32>} : vector<8x4xf32>, vector<4x256xf32>, vector<8x256xf32> -> vector<8x256xf32>
    %27 = arith.addf %23, %26 : vector<8x256xf32>
    %28 = vector.extract_strided_slice %7 {offsets = [2, 0, 0], sizes = [1, 8, 4], strides = [1, 1, 1]} : vector<3x8x4xf32> to vector<1x8x4xf32>
    %29 = vector.shape_cast %28 : vector<1x8x4xf32> to vector<8x4xf32>
    %cst_10 = arith.constant dense<0.000000e+00> : vector<8x256xf32>
    %30 = tpu.matmul %29, %18, %cst_10 {dimension_numbers = #tpu.dot_dimension_numbers<[1], [0], [0], [1], [0, 0, 1, 1], [], []>, precision = #tpu.contract_precision<fp32>} : vector<8x4xf32>, vector<4x256xf32>, vector<8x256xf32> -> vector<8x256xf32>
    %31 = arith.addf %27, %30 : vector<8x256xf32>
    %cst_11 = arith.constant 0.000000e+00 : f32
    %32 = vector.broadcast %cst_11 : f32 to vector<8x256xf32>
    %33 = arith.maximumf %31, %32 : vector<8x256xf32>
    %34 = arith.index_cast %2 : i32 to index
    %c0_12 = arith.constant 0 : index
    %c0_13 = arith.constant 0 : index
    %c0_14 = arith.constant 0 : index
    %35 = vector.load %arg5[%34, %c0_12, %c0_13, %c0_14] : memref<4x3x8x8xf32, #tpu.memory_space<vmem>>, vector<1x3x8x8xf32>
    %36 = vector.shape_cast %35 : vector<1x3x8x8xf32> to vector<3x8x8xf32>
    %37 = arith.index_cast %2 : i32 to index
    %c0_15 = arith.constant 0 : index
    %c0_16 = arith.constant 0 : index
    %38 = vector.load %arg6[%37, %c0_15, %c0_16] : memref<4x8x1xf32, #tpu.memory_space<vmem>>, vector<1x8x1xf32>
    %39 = vector.shape_cast %38 : vector<1x8x1xf32> to vector<8x1xf32>
    %c1_i32_17 = arith.constant 1 : i32
    %40 = tpu.dynamic_rotate %33 by %c1_i32_17 dim 1 : vector<8x256xf32>, i32 -> vector<8x256xf32>
    %41 = vector.extract_strided_slice %0 {offsets = [0, 0], sizes = [1, 256], strides = [1, 1]} : vector<2x256xf32> to vector<1x256xf32>
    %42 = vector.broadcast %41 : vector<1x256xf32> to vector<8x256xf32>
    %43 = arith.mulf %40, %42 : vector<8x256xf32>
    %c255_i32_18 = arith.constant 255 : i32
    %44 = tpu.dynamic_rotate %33 by %c255_i32_18 dim 1 : vector<8x256xf32>, i32 -> vector<8x256xf32>
    %45 = vector.extract_strided_slice %0 {offsets = [1, 0], sizes = [1, 256], strides = [1, 1]} : vector<2x256xf32> to vector<1x256xf32>
    %46 = vector.broadcast %45 : vector<1x256xf32> to vector<8x256xf32>
    %47 = arith.mulf %44, %46 : vector<8x256xf32>
    %48 = vector.extract_strided_slice %36 {offsets = [0, 0, 0], sizes = [1, 8, 8], strides = [1, 1, 1]} : vector<3x8x8xf32> to vector<1x8x8xf32>
    %49 = vector.shape_cast %48 : vector<1x8x8xf32> to vector<8x8xf32>
    %cst_19 = arith.constant dense<0.000000e+00> : vector<8x256xf32>
    %50 = tpu.matmul %49, %43, %cst_19 {dimension_numbers = #tpu.dot_dimension_numbers<[1], [0], [0], [1], [0, 0, 1, 1], [], []>, precision = #tpu.contract_precision<fp32>} : vector<8x8xf32>, vector<8x256xf32>, vector<8x256xf32> -> vector<8x256xf32>
    %51 = vector.broadcast %39 : vector<8x1xf32> to vector<8x256xf32>
    %52 = arith.addf %51, %50 : vector<8x256xf32>
    %53 = vector.extract_strided_slice %36 {offsets = [1, 0, 0], sizes = [1, 8, 8], strides = [1, 1, 1]} : vector<3x8x8xf32> to vector<1x8x8xf32>
    %54 = vector.shape_cast %53 : vector<1x8x8xf32> to vector<8x8xf32>
    %cst_20 = arith.constant dense<0.000000e+00> : vector<8x256xf32>
    %55 = tpu.matmul %54, %33, %cst_20 {dimension_numbers = #tpu.dot_dimension_numbers<[1], [0], [0], [1], [0, 0, 1, 1], [], []>, precision = #tpu.contract_precision<fp32>} : vector<8x8xf32>, vector<8x256xf32>, vector<8x256xf32> -> vector<8x256xf32>
    %56 = arith.addf %52, %55 : vector<8x256xf32>
    %57 = vector.extract_strided_slice %36 {offsets = [2, 0, 0], sizes = [1, 8, 8], strides = [1, 1, 1]} : vector<3x8x8xf32> to vector<1x8x8xf32>
    %58 = vector.shape_cast %57 : vector<1x8x8xf32> to vector<8x8xf32>
    %cst_21 = arith.constant dense<0.000000e+00> : vector<8x256xf32>
    %59 = tpu.matmul %58, %47, %cst_21 {dimension_numbers = #tpu.dot_dimension_numbers<[1], [0], [0], [1], [0, 0, 1, 1], [], []>, precision = #tpu.contract_precision<fp32>} : vector<8x8xf32>, vector<8x256xf32>, vector<8x256xf32> -> vector<8x256xf32>
    %60 = arith.addf %56, %59 : vector<8x256xf32>
    %cst_22 = arith.constant 0.000000e+00 : f32
    %61 = vector.broadcast %cst_22 : f32 to vector<8x256xf32>
    %62 = arith.maximumf %60, %61 : vector<8x256xf32>
    %63 = arith.index_cast %2 : i32 to index
    %c0_23 = arith.constant 0 : index
    %c0_24 = arith.constant 0 : index
    %c0_25 = arith.constant 0 : index
    %64 = vector.load %arg7[%63, %c0_23, %c0_24, %c0_25] : memref<4x3x4x8xf32, #tpu.memory_space<vmem>>, vector<1x3x4x8xf32>
    %65 = vector.shape_cast %64 : vector<1x3x4x8xf32> to vector<3x4x8xf32>
    %66 = arith.index_cast %2 : i32 to index
    %c0_26 = arith.constant 0 : index
    %c0_27 = arith.constant 0 : index
    %67 = vector.load %arg8[%66, %c0_26, %c0_27] : memref<4x4x1xf32, #tpu.memory_space<vmem>>, vector<1x4x1xf32>
    %68 = vector.shape_cast %67 : vector<1x4x1xf32> to vector<4x1xf32>
    %c1_i32_28 = arith.constant 1 : i32
    %69 = tpu.dynamic_rotate %62 by %c1_i32_28 dim 1 : vector<8x256xf32>, i32 -> vector<8x256xf32>
    %70 = vector.extract_strided_slice %0 {offsets = [0, 0], sizes = [1, 256], strides = [1, 1]} : vector<2x256xf32> to vector<1x256xf32>
    %71 = vector.broadcast %70 : vector<1x256xf32> to vector<8x256xf32>
    %72 = arith.mulf %69, %71 : vector<8x256xf32>
    %c255_i32_29 = arith.constant 255 : i32
    %73 = tpu.dynamic_rotate %62 by %c255_i32_29 dim 1 : vector<8x256xf32>, i32 -> vector<8x256xf32>
    %74 = vector.extract_strided_slice %0 {offsets = [1, 0], sizes = [1, 256], strides = [1, 1]} : vector<2x256xf32> to vector<1x256xf32>
    %75 = vector.broadcast %74 : vector<1x256xf32> to vector<8x256xf32>
    %76 = arith.mulf %73, %75 : vector<8x256xf32>
    %77 = vector.extract_strided_slice %65 {offsets = [0, 0, 0], sizes = [1, 4, 8], strides = [1, 1, 1]} : vector<3x4x8xf32> to vector<1x4x8xf32>
    %78 = vector.shape_cast %77 : vector<1x4x8xf32> to vector<4x8xf32>
    %cst_30 = arith.constant dense<0.000000e+00> : vector<4x256xf32>
    %79 = tpu.matmul %78, %72, %cst_30 {dimension_numbers = #tpu.dot_dimension_numbers<[1], [0], [0], [1], [0, 0, 1, 1], [], []>, precision = #tpu.contract_precision<fp32>} : vector<4x8xf32>, vector<8x256xf32>, vector<4x256xf32> -> vector<4x256xf32>
    %80 = vector.broadcast %68 : vector<4x1xf32> to vector<4x256xf32>
    %81 = arith.addf %80, %79 : vector<4x256xf32>
    %82 = vector.extract_strided_slice %65 {offsets = [1, 0, 0], sizes = [1, 4, 8], strides = [1, 1, 1]} : vector<3x4x8xf32> to vector<1x4x8xf32>
    %83 = vector.shape_cast %82 : vector<1x4x8xf32> to vector<4x8xf32>
    %cst_31 = arith.constant dense<0.000000e+00> : vector<4x256xf32>
    %84 = tpu.matmul %83, %62, %cst_31 {dimension_numbers = #tpu.dot_dimension_numbers<[1], [0], [0], [1], [0, 0, 1, 1], [], []>, precision = #tpu.contract_precision<fp32>} : vector<4x8xf32>, vector<8x256xf32>, vector<4x256xf32> -> vector<4x256xf32>
    %85 = arith.addf %81, %84 : vector<4x256xf32>
    %86 = vector.extract_strided_slice %65 {offsets = [2, 0, 0], sizes = [1, 4, 8], strides = [1, 1, 1]} : vector<3x4x8xf32> to vector<1x4x8xf32>
    %87 = vector.shape_cast %86 : vector<1x4x8xf32> to vector<4x8xf32>
    %cst_32 = arith.constant dense<0.000000e+00> : vector<4x256xf32>
    %88 = tpu.matmul %87, %76, %cst_32 {dimension_numbers = #tpu.dot_dimension_numbers<[1], [0], [0], [1], [0, 0, 1, 1], [], []>, precision = #tpu.contract_precision<fp32>} : vector<4x8xf32>, vector<8x256xf32>, vector<4x256xf32> -> vector<4x256xf32>
    %89 = arith.addf %85, %88 : vector<4x256xf32>
    %90 = arith.mulf %4, %89 : vector<4x256xf32>
    %91 = vector.extract_strided_slice %90 {offsets = [0, 0], sizes = [2, 256], strides = [1, 1]} : vector<4x256xf32> to vector<2x256xf32>
    %cst_33 = arith.constant dense<0.000000e+00> : vector<256xf32>
    %92 = vector.multi_reduction <add>, %91, %cst_33 [0] : vector<2x256xf32> to vector<256xf32>
    %93 = vector.shape_cast %92 : vector<256xf32> to vector<1x256xf32>
    %94 = vector.extract_strided_slice %90 {offsets = [2, 0], sizes = [2, 256], strides = [1, 1]} : vector<4x256xf32> to vector<2x256xf32>
    %cst_34 = arith.constant dense<0.000000e+00> : vector<256xf32>
    %95 = vector.multi_reduction <add>, %94, %cst_34 [0] : vector<2x256xf32> to vector<256xf32>
    %96 = vector.shape_cast %95 : vector<256xf32> to vector<1x256xf32>
    %97 = tpu.concatenate %93, %96 in 0 : vector<1x256xf32>, vector<1x256xf32> -> vector<2x256xf32>
    %98 = vector.extract_strided_slice %97 {offsets = [0, 0], sizes = [2, 128], strides = [1, 1]} : vector<2x256xf32> to vector<2x128xf32>
    %c0_35 = arith.constant 0 : index
    %c0_36 = arith.constant 0 : index
    %c0_37 = arith.constant 0 : index
    %99 = vector.load %arg9[%c0_35, %c0_36, %c0_37] : memref<2x2x256xf32, #tpu.memory_space<vmem>>, vector<1x2x128xf32>
    %100 = vector.shape_cast %99 : vector<1x2x128xf32> to vector<2x128xf32>
    %101 = vector.shape_cast %98 : vector<2x128xf32> to vector<1x2x128xf32>
    tpu.vector_store %arg9[%c0_35, %c0_36, %c0_37], %101 {strides = array<i32>} : memref<2x2x256xf32, #tpu.memory_space<vmem>>, vector<1x2x128xf32>,
    %102 = vector.extract_strided_slice %97 {offsets = [0, 128], sizes = [2, 128], strides = [1, 1]} : vector<2x256xf32> to vector<2x128xf32>
    %c1 = arith.constant 1 : index
    %c0_38 = arith.constant 0 : index
    %c0_39 = arith.constant 0 : index
    %103 = vector.load %arg9[%c1, %c0_38, %c0_39] : memref<2x2x256xf32, #tpu.memory_space<vmem>>, vector<1x2x128xf32>
    %104 = vector.shape_cast %103 : vector<1x2x128xf32> to vector<2x128xf32>
    %105 = vector.shape_cast %102 : vector<2x128xf32> to vector<1x2x128xf32>
    tpu.vector_store %arg9[%c1, %c0_38, %c0_39], %105 {strides = array<i32>} : memref<2x2x256xf32, #tpu.memory_space<vmem>>, vector<1x2x128xf32>,
    %c2_i32_40 = arith.constant 2 : i32
    %106 = arith.muli %arg0, %c2_i32_40 : i32
    %c1_i32_41 = arith.constant 1 : i32
    %107 = arith.addi %106, %c1_i32_41 : i32
    %c1_42 = arith.constant 1 : index
    %c0_43 = arith.constant 0 : index
    %c0_44 = arith.constant 0 : index
    %108 = vector.load %arg1[%c1_42, %c0_43, %c0_44] : memref<2x4x256xf32, #tpu.memory_space<vmem>>, vector<1x4x256xf32>
    %109 = vector.shape_cast %108 : vector<1x4x256xf32> to vector<4x256xf32>
    %110 = arith.index_cast %107 : i32 to index
    %c0_45 = arith.constant 0 : index
    %c0_46 = arith.constant 0 : index
    %c0_47 = arith.constant 0 : index
    %111 = vector.load %arg3[%110, %c0_45, %c0_46, %c0_47] : memref<4x3x8x4xf32, #tpu.memory_space<vmem>>, vector<1x3x8x4xf32>
    %112 = vector.shape_cast %111 : vector<1x3x8x4xf32> to vector<3x8x4xf32>
    %113 = arith.index_cast %107 : i32 to index
    %c0_48 = arith.constant 0 : index
    %c0_49 = arith.constant 0 : index
    %114 = vector.load %arg4[%113, %c0_48, %c0_49] : memref<4x8x1xf32, #tpu.memory_space<vmem>>, vector<1x8x1xf32>
    %115 = vector.shape_cast %114 : vector<1x8x1xf32> to vector<8x1xf32>
    %c1_i32_50 = arith.constant 1 : i32
    %116 = tpu.dynamic_rotate %109 by %c1_i32_50 dim 1 : vector<4x256xf32>, i32 -> vector<4x256xf32>
    %117 = vector.extract_strided_slice %0 {offsets = [0, 0], sizes = [1, 256], strides = [1, 1]} : vector<2x256xf32> to vector<1x256xf32>
    %118 = vector.broadcast %117 : vector<1x256xf32> to vector<4x256xf32>
    %119 = arith.mulf %116, %118 : vector<4x256xf32>
    %c255_i32_51 = arith.constant 255 : i32
    %120 = tpu.dynamic_rotate %109 by %c255_i32_51 dim 1 : vector<4x256xf32>, i32 -> vector<4x256xf32>
    %121 = vector.extract_strided_slice %0 {offsets = [1, 0], sizes = [1, 256], strides = [1, 1]} : vector<2x256xf32> to vector<1x256xf32>
    %122 = vector.broadcast %121 : vector<1x256xf32> to vector<4x256xf32>
    %123 = arith.mulf %120, %122 : vector<4x256xf32>
    %124 = vector.extract_strided_slice %112 {offsets = [0, 0, 0], sizes = [1, 8, 4], strides = [1, 1, 1]} : vector<3x8x4xf32> to vector<1x8x4xf32>
    %125 = vector.shape_cast %124 : vector<1x8x4xf32> to vector<8x4xf32>
    %cst_52 = arith.constant dense<0.000000e+00> : vector<8x256xf32>
    %126 = tpu.matmul %125, %119, %cst_52 {dimension_numbers = #tpu.dot_dimension_numbers<[1], [0], [0], [1], [0, 0, 1, 1], [], []>, precision = #tpu.contract_precision<fp32>} : vector<8x4xf32>, vector<4x256xf32>, vector<8x256xf32> -> vector<8x256xf32>
    %127 = vector.broadcast %115 : vector<8x1xf32> to vector<8x256xf32>
    %128 = arith.addf %127, %126 : vector<8x256xf32>
    %129 = vector.extract_strided_slice %112 {offsets = [1, 0, 0], sizes = [1, 8, 4], strides = [1, 1, 1]} : vector<3x8x4xf32> to vector<1x8x4xf32>
    %130 = vector.shape_cast %129 : vector<1x8x4xf32> to vector<8x4xf32>
    %cst_53 = arith.constant dense<0.000000e+00> : vector<8x256xf32>
    %131 = tpu.matmul %130, %109, %cst_53 {dimension_numbers = #tpu.dot_dimension_numbers<[1], [0], [0], [1], [0, 0, 1, 1], [], []>, precision = #tpu.contract_precision<fp32>} : vector<8x4xf32>, vector<4x256xf32>, vector<8x256xf32> -> vector<8x256xf32>
    %132 = arith.addf %128, %131 : vector<8x256xf32>
    %133 = vector.extract_strided_slice %112 {offsets = [2, 0, 0], sizes = [1, 8, 4], strides = [1, 1, 1]} : vector<3x8x4xf32> to vector<1x8x4xf32>
    %134 = vector.shape_cast %133 : vector<1x8x4xf32> to vector<8x4xf32>
    %cst_54 = arith.constant dense<0.000000e+00> : vector<8x256xf32>
    %135 = tpu.matmul %134, %123, %cst_54 {dimension_numbers = #tpu.dot_dimension_numbers<[1], [0], [0], [1], [0, 0, 1, 1], [], []>, precision = #tpu.contract_precision<fp32>} : vector<8x4xf32>, vector<4x256xf32>, vector<8x256xf32> -> vector<8x256xf32>
    %136 = arith.addf %132, %135 : vector<8x256xf32>
    %cst_55 = arith.constant 0.000000e+00 : f32
    %137 = vector.broadcast %cst_55 : f32 to vector<8x256xf32>
    %138 = arith.maximumf %136, %137 : vector<8x256xf32>
    %139 = arith.index_cast %107 : i32 to index
    %c0_56 = arith.constant 0 : index
    %c0_57 = arith.constant 0 : index
    %c0_58 = arith.constant 0 : index
    %140 = vector.load %arg5[%139, %c0_56, %c0_57, %c0_58] : memref<4x3x8x8xf32, #tpu.memory_space<vmem>>, vector<1x3x8x8xf32>
    %141 = vector.shape_cast %140 : vector<1x3x8x8xf32> to vector<3x8x8xf32>
    %142 = arith.index_cast %107 : i32 to index
    %c0_59 = arith.constant 0 : index
    %c0_60 = arith.constant 0 : index
    %143 = vector.load %arg6[%142, %c0_59, %c0_60] : memref<4x8x1xf32, #tpu.memory_space<vmem>>, vector<1x8x1xf32>
    %144 = vector.shape_cast %143 : vector<1x8x1xf32> to vector<8x1xf32>
    %c1_i32_61 = arith.constant 1 : i32
    %145 = tpu.dynamic_rotate %138 by %c1_i32_61 dim 1 : vector<8x256xf32>, i32 -> vector<8x256xf32>
    %146 = vector.extract_strided_slice %0 {offsets = [0, 0], sizes = [1, 256], strides = [1, 1]} : vector<2x256xf32> to vector<1x256xf32>
    %147 = vector.broadcast %146 : vector<1x256xf32> to vector<8x256xf32>
    %148 = arith.mulf %145, %147 : vector<8x256xf32>
    %c255_i32_62 = arith.constant 255 : i32
    %149 = tpu.dynamic_rotate %138 by %c255_i32_62 dim 1 : vector<8x256xf32>, i32 -> vector<8x256xf32>
    %150 = vector.extract_strided_slice %0 {offsets = [1, 0], sizes = [1, 256], strides = [1, 1]} : vector<2x256xf32> to vector<1x256xf32>
    %151 = vector.broadcast %150 : vector<1x256xf32> to vector<8x256xf32>
    %152 = arith.mulf %149, %151 : vector<8x256xf32>
    %153 = vector.extract_strided_slice %141 {offsets = [0, 0, 0], sizes = [1, 8, 8], strides = [1, 1, 1]} : vector<3x8x8xf32> to vector<1x8x8xf32>
    %154 = vector.shape_cast %153 : vector<1x8x8xf32> to vector<8x8xf32>
    %cst_63 = arith.constant dense<0.000000e+00> : vector<8x256xf32>
    %155 = tpu.matmul %154, %148, %cst_63 {dimension_numbers = #tpu.dot_dimension_numbers<[1], [0], [0], [1], [0, 0, 1, 1], [], []>, precision = #tpu.contract_precision<fp32>} : vector<8x8xf32>, vector<8x256xf32>, vector<8x256xf32> -> vector<8x256xf32>
    %156 = vector.broadcast %144 : vector<8x1xf32> to vector<8x256xf32>
    %157 = arith.addf %156, %155 : vector<8x256xf32>
    %158 = vector.extract_strided_slice %141 {offsets = [1, 0, 0], sizes = [1, 8, 8], strides = [1, 1, 1]} : vector<3x8x8xf32> to vector<1x8x8xf32>
    %159 = vector.shape_cast %158 : vector<1x8x8xf32> to vector<8x8xf32>
    %cst_64 = arith.constant dense<0.000000e+00> : vector<8x256xf32>
    %160 = tpu.matmul %159, %138, %cst_64 {dimension_numbers = #tpu.dot_dimension_numbers<[1], [0], [0], [1], [0, 0, 1, 1], [], []>, precision = #tpu.contract_precision<fp32>} : vector<8x8xf32>, vector<8x256xf32>, vector<8x256xf32> -> vector<8x256xf32>
    %161 = arith.addf %157, %160 : vector<8x256xf32>
    %162 = vector.extract_strided_slice %141 {offsets = [2, 0, 0], sizes = [1, 8, 8], strides = [1, 1, 1]} : vector<3x8x8xf32> to vector<1x8x8xf32>
    %163 = vector.shape_cast %162 : vector<1x8x8xf32> to vector<8x8xf32>
    %cst_65 = arith.constant dense<0.000000e+00> : vector<8x256xf32>
    %164 = tpu.matmul %163, %152, %cst_65 {dimension_numbers = #tpu.dot_dimension_numbers<[1], [0], [0], [1], [0, 0, 1, 1], [], []>, precision = #tpu.contract_precision<fp32>} : vector<8x8xf32>, vector<8x256xf32>, vector<8x256xf32> -> vector<8x256xf32>
    %165 = arith.addf %161, %164 : vector<8x256xf32>
    %cst_66 = arith.constant 0.000000e+00 : f32
    %166 = vector.broadcast %cst_66 : f32 to vector<8x256xf32>
    %167 = arith.maximumf %165, %166 : vector<8x256xf32>
    %168 = arith.index_cast %107 : i32 to index
    %c0_67 = arith.constant 0 : index
    %c0_68 = arith.constant 0 : index
    %c0_69 = arith.constant 0 : index
    %169 = vector.load %arg7[%168, %c0_67, %c0_68, %c0_69] : memref<4x3x4x8xf32, #tpu.memory_space<vmem>>, vector<1x3x4x8xf32>
    %170 = vector.shape_cast %169 : vector<1x3x4x8xf32> to vector<3x4x8xf32>
    %171 = arith.index_cast %107 : i32 to index
    %c0_70 = arith.constant 0 : index
    %c0_71 = arith.constant 0 : index
    %172 = vector.load %arg8[%171, %c0_70, %c0_71] : memref<4x4x1xf32, #tpu.memory_space<vmem>>, vector<1x4x1xf32>
    %173 = vector.shape_cast %172 : vector<1x4x1xf32> to vector<4x1xf32>
    %c1_i32_72 = arith.constant 1 : i32
    %174 = tpu.dynamic_rotate %167 by %c1_i32_72 dim 1 : vector<8x256xf32>, i32 -> vector<8x256xf32>
    %175 = vector.extract_strided_slice %0 {offsets = [0, 0], sizes = [1, 256], strides = [1, 1]} : vector<2x256xf32> to vector<1x256xf32>
    %176 = vector.broadcast %175 : vector<1x256xf32> to vector<8x256xf32>
    %177 = arith.mulf %174, %176 : vector<8x256xf32>
    %c255_i32_73 = arith.constant 255 : i32
    %178 = tpu.dynamic_rotate %167 by %c255_i32_73 dim 1 : vector<8x256xf32>, i32 -> vector<8x256xf32>
    %179 = vector.extract_strided_slice %0 {offsets = [1, 0], sizes = [1, 256], strides = [1, 1]} : vector<2x256xf32> to vector<1x256xf32>
    %180 = vector.broadcast %179 : vector<1x256xf32> to vector<8x256xf32>
    %181 = arith.mulf %178, %180 : vector<8x256xf32>
    %182 = vector.extract_strided_slice %170 {offsets = [0, 0, 0], sizes = [1, 4, 8], strides = [1, 1, 1]} : vector<3x4x8xf32> to vector<1x4x8xf32>
    %183 = vector.shape_cast %182 : vector<1x4x8xf32> to vector<4x8xf32>
    %cst_74 = arith.constant dense<0.000000e+00> : vector<4x256xf32>
    %184 = tpu.matmul %183, %177, %cst_74 {dimension_numbers = #tpu.dot_dimension_numbers<[1], [0], [0], [1], [0, 0, 1, 1], [], []>, precision = #tpu.contract_precision<fp32>} : vector<4x8xf32>, vector<8x256xf32>, vector<4x256xf32> -> vector<4x256xf32>
    %185 = vector.broadcast %173 : vector<4x1xf32> to vector<4x256xf32>
    %186 = arith.addf %185, %184 : vector<4x256xf32>
    %187 = vector.extract_strided_slice %170 {offsets = [1, 0, 0], sizes = [1, 4, 8], strides = [1, 1, 1]} : vector<3x4x8xf32> to vector<1x4x8xf32>
    %188 = vector.shape_cast %187 : vector<1x4x8xf32> to vector<4x8xf32>
    %cst_75 = arith.constant dense<0.000000e+00> : vector<4x256xf32>
    %189 = tpu.matmul %188, %167, %cst_75 {dimension_numbers = #tpu.dot_dimension_numbers<[1], [0], [0], [1], [0, 0, 1, 1], [], []>, precision = #tpu.contract_precision<fp32>} : vector<4x8xf32>, vector<8x256xf32>, vector<4x256xf32> -> vector<4x256xf32>
    %190 = arith.addf %186, %189 : vector<4x256xf32>
    %191 = vector.extract_strided_slice %170 {offsets = [2, 0, 0], sizes = [1, 4, 8], strides = [1, 1, 1]} : vector<3x4x8xf32> to vector<1x4x8xf32>
    %192 = vector.shape_cast %191 : vector<1x4x8xf32> to vector<4x8xf32>
    %cst_76 = arith.constant dense<0.000000e+00> : vector<4x256xf32>
    %193 = tpu.matmul %192, %181, %cst_76 {dimension_numbers = #tpu.dot_dimension_numbers<[1], [0], [0], [1], [0, 0, 1, 1], [], []>, precision = #tpu.contract_precision<fp32>} : vector<4x8xf32>, vector<8x256xf32>, vector<4x256xf32> -> vector<4x256xf32>
    %194 = arith.addf %190, %193 : vector<4x256xf32>
    %195 = arith.mulf %109, %194 : vector<4x256xf32>
    %196 = vector.extract_strided_slice %195 {offsets = [0, 0], sizes = [2, 256], strides = [1, 1]} : vector<4x256xf32> to vector<2x256xf32>
    %cst_77 = arith.constant dense<0.000000e+00> : vector<256xf32>
    %197 = vector.multi_reduction <add>, %196, %cst_77 [0] : vector<2x256xf32> to vector<256xf32>
    %198 = vector.shape_cast %197 : vector<256xf32> to vector<1x256xf32>
    %199 = vector.extract_strided_slice %195 {offsets = [2, 0], sizes = [2, 256], strides = [1, 1]} : vector<4x256xf32> to vector<2x256xf32>
    %cst_78 = arith.constant dense<0.000000e+00> : vector<256xf32>
    %200 = vector.multi_reduction <add>, %199, %cst_78 [0] : vector<2x256xf32> to vector<256xf32>
    %201 = vector.shape_cast %200 : vector<256xf32> to vector<1x256xf32>
    %202 = tpu.concatenate %198, %201 in 0 : vector<1x256xf32>, vector<1x256xf32> -> vector<2x256xf32>
    %203 = vector.extract_strided_slice %202 {offsets = [0, 0], sizes = [2, 128], strides = [1, 1]} : vector<2x256xf32> to vector<2x128xf32>
    %c0_79 = arith.constant 0 : index
    %c0_80 = arith.constant 0 : index
    %c128 = arith.constant 128 : index
    %204 = vector.load %arg9[%c0_79, %c0_80, %c128] : memref<2x2x256xf32, #tpu.memory_space<vmem>>, vector<1x2x128xf32>
    %205 = vector.shape_cast %204 : vector<1x2x128xf32> to vector<2x128xf32>
    %206 = vector.shape_cast %203 : vector<2x128xf32> to vector<1x2x128xf32>
    tpu.vector_store %arg9[%c0_79, %c0_80, %c128], %206 {strides = array<i32>} : memref<2x2x256xf32, #tpu.memory_space<vmem>>, vector<1x2x128xf32>,
    %207 = vector.extract_strided_slice %202 {offsets = [0, 128], sizes = [2, 128], strides = [1, 1]} : vector<2x256xf32> to vector<2x128xf32>
    %c1_81 = arith.constant 1 : index
    %c0_82 = arith.constant 0 : index
    %c128_83 = arith.constant 128 : index
    %208 = vector.load %arg9[%c1_81, %c0_82, %c128_83] : memref<2x2x256xf32, #tpu.memory_space<vmem>>, vector<1x2x128xf32>
    %209 = vector.shape_cast %208 : vector<1x2x128xf32> to vector<2x128xf32>
    %210 = vector.shape_cast %207 : vector<2x128xf32> to vector<1x2x128xf32>
    tpu.vector_store %arg9[%c1_81, %c0_82, %c128_83], %210 {strides = array<i32>} : memref<2x2x256xf32, #tpu.memory_space<vmem>>, vector<1x2x128xf32>,
    return
  }
  func.func @transform_0(%arg0: i32) -> (i32, i32, i32) {
    %c0_i32 = arith.constant 0 : i32
    %c0_i32_0 = arith.constant 0 : i32
    %c0_i32_1 = arith.constant 0 : i32
    return %arg0, %c0_i32, %c0_i32_0 : i32, i32, i32
  }
  func.func @transform_1(%arg0: i32) -> (i32, i32) {
    %c0_i32 = arith.constant 0 : i32
    %c0_i32_0 = arith.constant 0 : i32
    %c0_i32_1 = arith.constant 0 : i32
    return %c0_i32, %c0_i32_0 : i32, i32
  }
  func.func @transform_2(%arg0: i32) -> (i32, i32, i32, i32) {
    %c0_i32 = arith.constant 0 : i32
    %c0_i32_0 = arith.constant 0 : i32
    %c0_i32_1 = arith.constant 0 : i32
    %c0_i32_2 = arith.constant 0 : i32
    %c0_i32_3 = arith.constant 0 : i32
    return %c0_i32, %c0_i32_0, %c0_i32_1, %c0_i32_2 : i32, i32, i32, i32
  }
  func.func @transform_3(%arg0: i32) -> (i32, i32, i32) {
    %c0_i32 = arith.constant 0 : i32
    %c0_i32_0 = arith.constant 0 : i32
    %c0_i32_1 = arith.constant 0 : i32
    %c0_i32_2 = arith.constant 0 : i32
    return %c0_i32, %c0_i32_0, %c0_i32_1 : i32, i32, i32
  }
  func.func @transform_4(%arg0: i32) -> (i32, i32, i32, i32) {
    %c0_i32 = arith.constant 0 : i32
    %c0_i32_0 = arith.constant 0 : i32
    %c0_i32_1 = arith.constant 0 : i32
    %c0_i32_2 = arith.constant 0 : i32
    %c0_i32_3 = arith.constant 0 : i32
    return %c0_i32, %c0_i32_0, %c0_i32_1, %c0_i32_2 : i32, i32, i32, i32
  }
  func.func @transform_5(%arg0: i32) -> (i32, i32, i32) {
    %c0_i32 = arith.constant 0 : i32
    %c0_i32_0 = arith.constant 0 : i32
    %c0_i32_1 = arith.constant 0 : i32
    %c0_i32_2 = arith.constant 0 : i32
    return %c0_i32, %c0_i32_0, %c0_i32_1 : i32, i32, i32
  }
  func.func @transform_6(%arg0: i32) -> (i32, i32, i32, i32) {
    %c0_i32 = arith.constant 0 : i32
    %c0_i32_0 = arith.constant 0 : i32
    %c0_i32_1 = arith.constant 0 : i32
    %c0_i32_2 = arith.constant 0 : i32
    %c0_i32_3 = arith.constant 0 : i32
    return %c0_i32, %c0_i32_0, %c0_i32_1, %c0_i32_2 : i32, i32, i32, i32
  }
  func.func @transform_7(%arg0: i32) -> (i32, i32, i32) {
    %c0_i32 = arith.constant 0 : i32
    %c0_i32_0 = arith.constant 0 : i32
    %c0_i32_1 = arith.constant 0 : i32
    %c0_i32_2 = arith.constant 0 : i32
    return %c0_i32, %c0_i32_0, %c0_i32_1 : i32, i32, i32
  }
  func.func @transform_8(%arg0: i32) -> (i32, i32, i32) {
    %c0_i32 = arith.constant 0 : i32
    %c0_i32_0 = arith.constant 0 : i32
    %c0_i32_1 = arith.constant 0 : i32
    return %c0_i32, %c0_i32_0, %arg0 : i32, i32, i32
  }
}

</mosaic_0001>

<llo_original>
// kernel: tpu_custom_call.1
$region0: #{tpu_custom_call.1}
  #allocation0 [shape = 'u32[]', space=smem, size = 0x4, offset = 0x4, fixed_abs, tag = 'smem constant byte address 0x4 - core index']
  #allocation1 [shape = 'u32[144,128]{1,0:T(1,128)}', space=vmem, size = 0x12000, scoped, tag = 'internal scratch']
  %s0 = inlined_call_operand.vmem [shape: f32[4,4,256], index: 0, kind: input, shape index: {}]
  %s1 = inlined_call_operand.vmem [shape: f32[2,256], index: 1, kind: input, shape index: {}]
  %s2 = inlined_call_operand.vmem [shape: f32[4,3,8,4], index: 2, kind: input, shape index: {}]
  %s3 = inlined_call_operand.vmem [shape: f32[4,8,1], index: 3, kind: input, shape index: {}]
  %s4 = inlined_call_operand.vmem [shape: f32[4,3,8,8], index: 4, kind: input, shape index: {}]
  %s5 = inlined_call_operand.vmem [shape: f32[4,8,1], index: 5, kind: input, shape index: {}]
  %s6 = inlined_call_operand.vmem [shape: f32[4,3,4,8], index: 6, kind: input, shape index: {}]
  %s7 = inlined_call_operand.vmem [shape: f32[4,4,1], index: 7, kind: input, shape index: {}]
  %s8 = inlined_call_operand.hbm [shape: f32[2,2,512], index: 8, kind: output, shape index: {}]
  %s9 = sld [smem:[#allocation0]]
  $region65: #{tpu_custom_call.1} parent=0
    _
  %s11 = ssub.s32 1, %s9
  %s12 = scalar_select 0, %s11, %s9
  $region1: #{tpu_custom_call.1} parent=0
    #allocation2 [shape = 'u8[8192]{0}', space=vmem, size = 0x2000, scoped, tag = 'output window, operand 0']
    #allocation3 [shape = 's32[2]{0}', space=sflag, size = 0x8, scoped, tag = 'scoped memory for tpu_custom_call.1']
    %13 = vsyncpa [#allocation3], 0
    %s14 = scalar_lea.sflag [#allocation3], 1
    %15 = vsyncpa %s14, 0
    loop: start=0, step=1, limit=4
    $region2: #{tpu_custom_call.1} parent=1 // loop_pre_header
      _
    $region3: #{tpu_custom_call.1} parent=1 // loop_header
      %s17 = sphi 0, %s21
      %p18 = scmp.ge.s32.totalorder %s17, 4
      %s27 = sphi 0, %s29
      %s30 = sphi 0, %s27
      %s31 = sphi 0, %s30
      %s47 = sphi 0, %s31
      %s51 = sphi 0, %s51
      %s53 = sphi 0, %s51
      %s54 = sphi 0, %s53
      %s68 = sphi 0, %s54
      %s72 = sphi 0, %s72
      %s74 = sphi 0, %s72
      %s75 = sphi 0, %s74
      %s89 = sphi 0, %s75
      %s93 = sphi 0, %s93
      %s95 = sphi 0, %s93
      %s96 = sphi 0, %s95
      %s110 = sphi 0, %s96
      %s114 = sphi 0, %s114
      %s116 = sphi 0, %s114
      %s117 = sphi 0, %s116
      %s131 = sphi 0, %s117
      %s135 = sphi 0, %s135
      %s137 = sphi 0, %s135
      %s138 = sphi 0, %s137
      %s152 = sphi 0, %s138
      %s156 = sphi 0, %s156
      %s158 = sphi 0, %s156
      %s159 = sphi 0, %s158
      %s173 = sphi 0, %s159
      %s177 = sphi 0, %s177
      %s179 = sphi 0, %s177
      %s180 = sphi 0, %s179
      %s194 = sphi 0, %s180
      %s200 = sphi 0, %s202
      %s203 = sphi 0, %s200
      %s204 = sphi 0, %s203
      %s220 = sphi 0, %s204
    $region4: #{tpu_custom_call.1} parent=1 // loop_header_branch
      %20 = sbr.rel (%p18) target = $region8
    $region5: #{tpu_custom_call.1} parent=1 // loop_body
      %s22 = ssub.s32 %s17, 1
      %s23 = ssub.s32 %s17, 2
      %s24 = sadd.s32 %s17, 1
      %s25 = ssub.s32 %s17, %s24
      %p26 = scmp.eq.s32.totalorder %s25, 0
      %s28 = sadd.s32 %s27, 1
      %s29 = scalar_select %p26, %s27, %s28
      %p32 = pneg %p26
      %p33 = scmp.eq.s32.totalorder %s17, 1
      %p34 = por %p32, %p33
      %p35 = scmp.ne.s32.totalorder %s27, %s30
      %p36 = scmp.eq.s32.totalorder %s17, 0
      %p37 = por %p35, %p36
      %p38 = scmp.ne.s32.totalorder %s27, %s30
      %p39 = scmp.eq.s32.totalorder %s22, 1
      %p40 = por %p38, %p39
      %p41 = scmp.ne.s32.totalorder %s30, %s31
      %p42 = scmp.eq.s32.totalorder %s22, 0
      %p43 = por %p41, %p42
      %p44 = scmp.ne.s32.totalorder %s30, %s31
      %p45 = scmp.eq.s32.totalorder %s23, 1
      %p46 = por %p44, %p45
      %p48 = scmp.ne.s32.totalorder %s31, %s47
      %p49 = scmp.eq.s32.totalorder %s23, 0
      %p50 = por %p48, %p49
      %s52 = sadd.s32 %s51, 1
      %p55 = scmp.eq.s32.totalorder %s17, 1
      %p56 = scmp.ne.s32.totalorder %s51, %s53
      %p57 = scmp.eq.s32.totalorder %s17, 0
      %p58 = por %p56, %p57
      %p59 = scmp.ne.s32.totalorder %s51, %s53
      %p60 = scmp.eq.s32.totalorder %s22, 1
      %p61 = por %p59, %p60
      %p62 = scmp.ne.s32.totalorder %s53, %s54
      %p63 = scmp.eq.s32.totalorder %s22, 0
      %p64 = por %p62, %p63
      %p65 = scmp.ne.s32.totalorder %s53, %s54
      %p66 = scmp.eq.s32.totalorder %s23, 1
      %p67 = por %p65, %p66
      %p69 = scmp.ne.s32.totalorder %s54, %s68
      %p70 = scmp.eq.s32.totalorder %s23, 0
      %p71 = por %p69, %p70
      %s73 = sadd.s32 %s72, 1
      %p76 = scmp.eq.s32.totalorder %s17, 1
      %p77 = scmp.ne.s32.totalorder %s72, %s74
      %p78 = scmp.eq.s32.totalorder %s17, 0
      %p79 = por %p77, %p78
      %p80 = scmp.ne.s32.totalorder %s72, %s74
      %p81 = scmp.eq.s32.totalorder %s22, 1
      %p82 = por %p80, %p81
      %p83 = scmp.ne.s32.totalorder %s74, %s75
      %p84 = scmp.eq.s32.totalorder %s22, 0
      %p85 = por %p83, %p84
      %p86 = scmp.ne.s32.totalorder %s74, %s75
      %p87 = scmp.eq.s32.totalorder %s23, 1
      %p88 = por %p86, %p87
      %p90 = scmp.ne.s32.totalorder %s75, %s89
      %p91 = scmp.eq.s32.totalorder %s23, 0
      %p92 = por %p90, %p91
      %s94 = sadd.s32 %s93, 1
      %p97 = scmp.eq.s32.totalorder %s17, 1
      %p98 = scmp.ne.s32.totalorder %s93, %s95
      %p99 = scmp.eq.s32.totalorder %s17, 0
      %p100 = por %p98, %p99
      %p101 = scmp.ne.s32.totalorder %s93, %s95
      %p102 = scmp.eq.s32.totalorder %s22, 1
      %p103 = por %p101, %p102
      %p104 = scmp.ne.s32.totalorder %s95, %s96
      %p105 = scmp.eq.s32.totalorder %s22, 0
      %p106 = por %p104, %p105
      %p107 = scmp.ne.s32.totalorder %s95, %s96
      %p108 = scmp.eq.s32.totalorder %s23, 1
      %p109 = por %p107, %p108
      %p111 = scmp.ne.s32.totalorder %s96, %s110
      %p112 = scmp.eq.s32.totalorder %s23, 0
      %p113 = por %p111, %p112
      %s115 = sadd.s32 %s114, 1
      %p118 = scmp.eq.s32.totalorder %s17, 1
      %p119 = scmp.ne.s32.totalorder %s114, %s116
      %p120 = scmp.eq.s32.totalorder %s17, 0
      %p121 = por %p119, %p120
      %p122 = scmp.ne.s32.totalorder %s114, %s116
      %p123 = scmp.eq.s32.totalorder %s22, 1
      %p124 = por %p122, %p123
      %p125 = scmp.ne.s32.totalorder %s116, %s117
      %p126 = scmp.eq.s32.totalorder %s22, 0
      %p127 = por %p125, %p126
      %p128 = scmp.ne.s32.totalorder %s116, %s117
      %p129 = scmp.eq.s32.totalorder %s23, 1
      %p130 = por %p128, %p129
      %p132 = scmp.ne.s32.totalorder %s117, %s131
      %p133 = scmp.eq.s32.totalorder %s23, 0
      %p134 = por %p132, %p133
      %s136 = sadd.s32 %s135, 1
      %p139 = scmp.eq.s32.totalorder %s17, 1
      %p140 = scmp.ne.s32.totalorder %s135, %s137
      %p141 = scmp.eq.s32.totalorder %s17, 0
      %p142 = por %p140, %p141
      %p143 = scmp.ne.s32.totalorder %s135, %s137
      %p144 = scmp.eq.s32.totalorder %s22, 1
      %p145 = por %p143, %p144
      %p146 = scmp.ne.s32.totalorder %s137, %s138
      %p147 = scmp.eq.s32.totalorder %s22, 0
      %p148 = por %p146, %p147
      %p149 = scmp.ne.s32.totalorder %s137, %s138
      %p150 = scmp.eq.s32.totalorder %s23, 1
      %p151 = por %p149, %p150
      %p153 = scmp.ne.s32.totalorder %s138, %s152
      %p154 = scmp.eq.s32.totalorder %s23, 0
      %p155 = por %p153, %p154
      %s157 = sadd.s32 %s156, 1
      %p160 = scmp.eq.s32.totalorder %s17, 1
      %p161 = scmp.ne.s32.totalorder %s156, %s158
      %p162 = scmp.eq.s32.totalorder %s17, 0
      %p163 = por %p161, %p162
      %p164 = scmp.ne.s32.totalorder %s156, %s158
      %p165 = scmp.eq.s32.totalorder %s22, 1
      %p166 = por %p164, %p165
      %p167 = scmp.ne.s32.totalorder %s158, %s159
      %p168 = scmp.eq.s32.totalorder %s22, 0
      %p169 = por %p167, %p168
      %p170 = scmp.ne.s32.totalorder %s158, %s159
      %p171 = scmp.eq.s32.totalorder %s23, 1
      %p172 = por %p170, %p171
      %p174 = scmp.ne.s32.totalorder %s159, %s173
      %p175 = scmp.eq.s32.totalorder %s23, 0
      %p176 = por %p174, %p175
      %s178 = sadd.s32 %s177, 1
      %p181 = scmp.eq.s32.totalorder %s17, 1
      %p182 = scmp.ne.s32.totalorder %s177, %s179
      %p183 = scmp.eq.s32.totalorder %s17, 0
      %p184 = por %p182, %p183
      %p185 = scmp.ne.s32.totalorder %s177, %s179
      %p186 = scmp.eq.s32.totalorder %s22, 1
      %p187 = por %p185, %p186
      %p188 = scmp.ne.s32.totalorder %s179, %s180
      %p189 = scmp.eq.s32.totalorder %s22, 0
      %p190 = por %p188, %p189
      %p191 = scmp.ne.s32.totalorder %s179, %s180
      %p192 = scmp.eq.s32.totalorder %s23, 1
      %p193 = por %p191, %p192
      %p195 = scmp.ne.s32.totalorder %s180, %s194
      %p196 = scmp.eq.s32.totalorder %s23, 0
      %p197 = por %p195, %p196
      %s198 = ssub.s32 %s17, %s24
      %p199 = scmp.eq.s32.totalorder %s198, 0
      %s201 = sadd.s32 %s200, 1
      %s202 = scalar_select %p199, %s200, %s201
      %p205 = pneg %p199
      %p206 = scmp.eq.s32.totalorder %s17, 1
      %p207 = por %p205, %p206
      %p208 = scmp.ne.s32.totalorder %s200, %s203
      %p209 = scmp.eq.s32.totalorder %s17, 0
      %p210 = por %p208, %p209
      %p211 = scmp.ne.s32.totalorder %s200, %s203
      %p212 = scmp.eq.s32.totalorder %s22, 1
      %p213 = por %p211, %p212
      %p214 = scmp.ne.s32.totalorder %s203, %s204
      %p215 = scmp.eq.s32.totalorder %s22, 0
      %p216 = por %p214, %p215
      %p217 = scmp.ne.s32.totalorder %s203, %s204
      %p218 = scmp.eq.s32.totalorder %s23, 1
      %p219 = por %p217, %p218
      %p221 = scmp.ne.s32.totalorder %s204, %s220
      %p222 = scmp.eq.s32.totalorder %s23, 0
      %p223 = por %p221, %p222
      %p224 = scmp.le.s32.totalorder 1, %s17
      %p225 = scmp.lt.s32.totalorder %s17, 3
      %p226 = pnand %p224, %p225
      %p227 = pneg %p226
      // Predicated region
      $region9: #{tpu_custom_call.1} parent=5 // pred_check
        _
      $region10: #{tpu_custom_call.1} parent=5 // pred_check_branch
        %229 = sbr.rel (%p226) target = $region12
      $region11: #{tpu_custom_call.1} parent=5 // pred_region
        %s230 = ssub.s32 %s17, 1
        // Predicated region
        $region13: #{tpu_custom_call.1} parent=11 // pred_check
          %p231 = pneg %p64
        $region14: #{tpu_custom_call.1} parent=11 // pred_check_branch
          %233 = sbr.rel (%p231) target = $region16
        $region15: #{tpu_custom_call.1} parent=11 // pred_region
          _
        $region16: #{tpu_custom_call.1} parent=11 // pred_fallthru
          _
        // Predicated region
        $region17: #{tpu_custom_call.1} parent=11 // pred_check
          %p234 = pneg %p85
        $region18: #{tpu_custom_call.1} parent=11 // pred_check_branch
          %236 = sbr.rel (%p234) target = $region20
        $region19: #{tpu_custom_call.1} parent=11 // pred_region
          _
        $region20: #{tpu_custom_call.1} parent=11 // pred_fallthru
          _
        // Predicated region
        $region21: #{tpu_custom_call.1} parent=11 // pred_check
          %p237 = pneg %p106
        $region22: #{tpu_custom_call.1} parent=11 // pred_check_branch
          %239 = sbr.rel (%p237) target = $region24
        $region23: #{tpu_custom_call.1} parent=11 // pred_region
          _
        $region24: #{tpu_custom_call.1} parent=11 // pred_fallthru
          _
        // Predicated region
        $region25: #{tpu_custom_call.1} parent=11 // pred_check
          %p240 = pneg %p127
        $region26: #{tpu_custom_call.1} parent=11 // pred_check_branch
          %242 = sbr.rel (%p240) target = $region28
        $region27: #{tpu_custom_call.1} parent=11 // pred_region
          _
        $region28: #{tpu_custom_call.1} parent=11 // pred_fallthru
          _
        // Predicated region
        $region29: #{tpu_custom_call.1} parent=11 // pred_check
          %p243 = pneg %p148
        $region30: #{tpu_custom_call.1} parent=11 // pred_check_branch
          %245 = sbr.rel (%p243) target = $region32
        $region31: #{tpu_custom_call.1} parent=11 // pred_region
          _
        $region32: #{tpu_custom_call.1} parent=11 // pred_fallthru
          _
        // Predicated region
        $region33: #{tpu_custom_call.1} parent=11 // pred_check
          %p246 = pneg %p169
        $region34: #{tpu_custom_call.1} parent=11 // pred_check_branch
          %248 = sbr.rel (%p246) target = $region36
        $region35: #{tpu_custom_call.1} parent=11 // pred_region
          _
        $region36: #{tpu_custom_call.1} parent=11 // pred_fallthru
          _
        // Predicated region
        $region37: #{tpu_custom_call.1} parent=11 // pred_check
          %p249 = pneg %p190
        $region38: #{tpu_custom_call.1} parent=11 // pred_check_branch
          %251 = sbr.rel (%p249) target = $region40
        $region39: #{tpu_custom_call.1} parent=11 // pred_region
          _
        $region40: #{tpu_custom_call.1} parent=11 // pred_fallthru
          _
      $region12: #{tpu_custom_call.1} parent=5 // pred_fallthru
        _
      %p252 = scmp.lt.s32.totalorder %s17, 2
      // Predicated region
      $region41: #{tpu_custom_call.1} parent=5 // pred_check
        %p253 = pneg %p252
      $region42: #{tpu_custom_call.1} parent=5 // pred_check_branch
        %255 = sbr.rel (%p253) target = $region44
      $region43: #{tpu_custom_call.1} parent=5 // pred_region
        // Predicated region
        $region45: #{tpu_custom_call.1} parent=43 // pred_check
          %p256 = pneg %p37
        $region46: #{tpu_custom_call.1} parent=43 // pred_check_branch
          %258 = sbr.rel (%p256) target = $region48
        $region47: #{tpu_custom_call.1} parent=43 // pred_region
          %s259 = smul.u32 2, %s17
          %p260 = scmp.lt.s32.totalorder %s259, 3
          %s261 = scalar_select %p260, %s259, 3
          %s262 = smul.addr %s261, 2
          %s263 = smul.addr %s262, 4
          %s264 = scalar_lea.vmem %s0, %s263
          %s265 = smul.u32 2, %s17
        $region48: #{tpu_custom_call.1} parent=43 // pred_fallthru
          _
      $region44: #{tpu_custom_call.1} parent=5 // pred_fallthru
        _
      %p266 = scmp.le.s32.totalorder 1, %s17
      %p267 = scmp.lt.s32.totalorder %s17, 3
      %p268 = pnand %p266, %p267
      %p269 = pneg %p268
      // Predicated region
      $region49: #{tpu_custom_call.1} parent=5 // pred_check
        _
      $region50: #{tpu_custom_call.1} parent=5 // pred_check_branch
        %271 = sbr.rel (%p268) target = $region52
      $region51: #{tpu_custom_call.1} parent=5 // pred_region
        %s272 = ssub.s32 %s17, 1
        %s273 = smul.u32 2, %s22
        %p274 = scmp.lt.s32.totalorder %s273, 3
        %s275 = scalar_select %p274, %s273, 3
        %s276 = smul.addr %s275, 2
        %s277 = smul.addr %s276, 4
        %s278 = scalar_lea.vmem %s0, %s277
        %p279 = pneg %p43
        %p280 = pneg %p40
        %p281 = pneg %p64
        %p282 = pneg %p61
        %p283 = pneg %p85
        %p284 = pneg %p82
        %p285 = pneg %p106
        %p286 = pneg %p103
        %p287 = pneg %p127
        %p288 = pneg %p124
        %p289 = pneg %p148
        %p290 = pneg %p145
        %p291 = pneg %p169
        %p292 = pneg %p166
        %p293 = pneg %p190
        %p294 = pneg %p187
        %p295 = pneg %p216
        %p296 = pneg %p213
        %s297 = sand.u32 %s203, 1
        %s298 = scalar_lea.sflag [#allocation3], %s297
        %s299 = sand.u32 %s203, 1
        %s300 = smul.addr %s299, 8
        %s301 = scalar_lea.vmem [#allocation2], %s300
        %s302 = smul.u32 2, %s22
        %p303 = scmp.lt.s32.totalorder %s302, 3
        %s304 = scalar_select %p303, %s302, 3
        %s305 = smul.addr %s304, 2
        %s306 = smul.addr %s305, 4
        %s307 = scalar_lea.vmem %s0, %s306
        %s308 = smul.u32 2, %s22
        %s309 = smul.u32 2, %s22
        %v310 = vld [vmem:[%s1] sm:$0xf]
        %s311 = smul.u32 %s22, 2
        %v312 = vld [vmem:[%s307] sm:$0xff]
        %s313 = smul.u32 %s311, 24
        %s314 = scalar_lea.vmem %s2, %s313
        %v315 = vld [vmem:[%s314] sm:$0xff]
        %v316 = vld [vmem:[%s314 + $0x8] sm:$0xff]
        %v317 = vld [vmem:[%s314 + $0x10] sm:$0xff]
        %s318 = smul.u32 %s311, 8
        %s319 = scalar_lea.vmem %s3, %s318
        %v320 = vld [vmem:[%s319] sm:$0xff]
        %v322 = vcombine.high %v312, %v312
        %324 = vrot.lane.b32.xlu0 %v312, 1
        %v325 = vpop.permute.xlu0 %324
        %326 = vrot.lane.b32.xlu0 %v322, 1
        %v327 = vpop.permute.xlu0 %326
        %v328 = vlaneseq
        %v329 = vand.u32 %v328, 127
        %vm330 = vcmp.lt.s32.totalorder %v329, 1
        %v331 = vsel %vm330, %v325, %v327
        %v332 = vsel %vm330, %v327, %v325
        %v334 = vlaneseq
        %v335 = vshrl.u32 %v334, 7
        %v336 = vsub.s32 0, %v335
        %v337 = vrot.slane %v310, %v336
        %v338 = vlaneseq
        %v339 = vshrl.u32 %v338, 7
        %v340 = vsub.s32 2, %v339
        %v341 = vrot.slane %v310, %v340
        %v344 = vlaneseq
        %v345 = vshrl.u32 %v344, 7
        %v346 = vsub.s32 0, %v345
        %v347 = vrot.slane %v337, %v346
        %v348 = vlaneseq
        %v349 = vshrl.u32 %v348, 7
        %v350 = vsub.s32 0, %v349
        %v351 = vrot.slane %v341, %v350
        %v352 = vmul.f32 %v332, %v347
        %v353 = vmul.f32 %v331, %v351
        %354 = vrot.lane.b32.xlu0 %v312, 127
        %v355 = vpop.permute.xlu0 %354
        %356 = vrot.lane.b32.xlu0 %v322, 127
        %v357 = vpop.permute.xlu0 %356
        %vm358 = vcmp.lt.s32.totalorder %v329, 127
        %v359 = vsel %vm358, %v355, %v357
        %v360 = vsel %vm358, %v357, %v355
        %v361 = vlaneseq
        %v362 = vshrl.u32 %v361, 7
        %v363 = vsub.s32 1, %v362
        %v364 = vrot.slane %v310, %v363
        %v365 = vlaneseq
        %v366 = vshrl.u32 %v365, 7
        %v367 = vsub.s32 3, %v366
        %v368 = vrot.slane %v310, %v367
        %v371 = vlaneseq
        %v372 = vshrl.u32 %v371, 7
        %v373 = vsub.s32 1, %v372
        %v374 = vrot.slane %v364, %v373
        %v375 = vlaneseq
        %v376 = vshrl.u32 %v375, 7
        %v377 = vsub.s32 1, %v376
        %v378 = vrot.slane %v368, %v377
        %v379 = vmul.f32 %v359, %v374
        %v380 = vmul.f32 %v360, %v378
        %vm381 = vcmask 31744
        %v383 = vsel %vm381, %v315, 0
        %vm385 = vcmask 1043456
        %v387 = vsel %vm385, %v352, 0
        %v390 = vsel %vm385, %v353, 0
        %v392 = vand.u32 %v390, 4294901760
        %393 = vmatprep.subr.mxu0 %v392
        %v394 = vand.u32 %v387, 4294901760
        %395 = vmatpush1.msra.mxu0 %v394
        %396 = vmatprep.subr.mxu0 0.0
        %397 = vmatpush1.msra.mxu0 0.0
        %398 = vmatprep.subr.mxu0 0.0
        %399 = vmatpush1.msra.mxu0 0.0
        %400 = vmatprep.subr.mxu0 0.0
        %401 = vmatpush1.msra.mxu0 0.0
        %402 = vmatprep.subr.mxu0 0.0
        %403 = vmatpush1.msra.mxu0 0.0
        %404 = vmatprep.subr.mxu0 0.0
        %405 = vmatpush1.msra.mxu0 0.0
        %406 = vmatprep.subr.mxu0 0.0
        %407 = vmatpush1.msra.mxu0 0.0
        %408 = vmatprep.subr.mxu0 0.0
        %409 = vmatpush1.msra.mxu0 0.0
        %410 = vmatprep.subr.mxu0 0.0
        %411 = vmatpush1.msra.mxu0 0.0
        %412 = vmatprep.subr.mxu0 0.0
        %413 = vmatpush1.msra.mxu0 0.0
        %414 = vmatprep.subr.mxu0 0.0
        %415 = vmatpush1.msra.mxu0 0.0
        %416 = vmatprep.subr.mxu0 0.0
        %417 = vmatpush1.msra.mxu0 0.0
        %418 = vmatprep.subr.mxu0 0.0
        %419 = vmatpush1.msra.mxu0 0.0
        %420 = vmatprep.subr.mxu0 0.0
        %421 = vmatpush1.msra.mxu0 0.0
        %422 = vmatprep.subr.mxu0 0.0
        %423 = vmatpush1.msra.mxu0 0.0
        %424 = vmatprep.subr.mxu0 0.0
        %425 = vmatpush1.msra.mxu0 0.0
        %426 = vmatprep.subr.mxu0 0.0
        %427 = vmatpush1.msra.mxu0 0.0
        %428 = vmatprep.subr.mxu0 0.0
        %429 = vmatpush1.msra.mxu0 0.0
        %430 = vmatprep.subr.mxu0 0.0
        %431 = vmatpush1.msra.mxu0 0.0
        %432 = vmatprep.subr.mxu0 0.0
        %433 = vmatpush1.msra.mxu0 0.0
        %434 = vmatprep.subr.mxu0 0.0
        %435 = vmatpush1.msra.mxu0 0.0
        %436 = vmatprep.subr.mxu0 0.0
        %437 = vmatpush1.msra.mxu0 0.0
        %438 = vmatprep.subr.mxu0 0.0
        %439 = vmatpush1.msra.mxu0 0.0
        %440 = vmatprep.subr.mxu0 0.0
        %441 = vmatpush1.msra.mxu0 0.0
        %442 = vmatprep.subr.mxu0 0.0
        %443 = vmatpush1.msra.mxu0 0.0
        %444 = vmatprep.subr.mxu0 0.0
        %445 = vmatpush1.msra.mxu0 0.0
        %446 = vmatprep.subr.mxu0 0.0
        %447 = vmatpush1.msra.mxu0 0.0
        %448 = vmatprep.subr.mxu0 0.0
        %449 = vmatpush1.msra.mxu0 0.0
        %450 = vmatprep.subr.mxu0 0.0
        %451 = vmatpush1.msra.mxu0 0.0
        %452 = vmatprep.subr.mxu0 0.0
        %453 = vmatpush1.msra.mxu0 0.0
        %454 = vmatprep.subr.mxu0 0.0
        %455 = vmatpush1.msra.mxu0 0.0
        %456 = vmatprep.subr.mxu0 0.0
        %457 = vmatpush1.msra.mxu0 0.0
        %458 = vmatprep.mubr.f32.mxu0 0.0
        %v459 = vand.u32 %v383, 4294901760
        %v460 = vsub.f32 %v383, %v459
        %v461 = vand.u32 %v460, 4294901760
        %v462 = vsub.f32 %v460, %v461
        %v463 = vand.u32 %v462, 4294901760
        %464 = vmatmul.mubr.f32.gmra.mrb[0].mxu0 %v463
        %v465 = vpop.f32.mrb[0].mxu0
        %v466 = vadd.f32 0.0, %v465
        %v467 = vpop.f32.mrb[0].mxu0
        %v468 = vadd.f32 0.0, %v467
        %469 = vdwg.mxu0
        %v470 = vand.u32 %v390, 4294901760
        %v471 = vsub.f32 %v390, %v470
        %v472 = vand.u32 %v471, 4294901760
        %v473 = vsub.f32 %v471, %v472
        %v474 = vand.u32 %v473, 4294901760
        %475 = vmatprep.subr.mxu0 %v474
        %v476 = vand.u32 %v387, 4294901760
        %v477 = vsub.f32 %v387, %v476
        %v478 = vand.u32 %v477, 4294901760
        %v479 = vsub.f32 %v477, %v478
        %v480 = vand.u32 %v479, 4294901760
        %481 = vmatpush1.msra.mxu0 %v480
        %482 = vmatprep.subr.mxu0 0.0
        %483 = vmatpush1.msra.mxu0 0.0
        %484 = vmatprep.subr.mxu0 0.0
        %485 = vmatpush1.msra.mxu0 0.0
        %486 = vmatprep.subr.mxu0 0.0
        %487 = vmatpush1.msra.mxu0 0.0
        %488 = vmatprep.subr.mxu0 0.0
        %489 = vmatpush1.msra.mxu0 0.0
        %490 = vmatprep.subr.mxu0 0.0
        %491 = vmatpush1.msra.mxu0 0.0
        %492 = vmatprep.subr.mxu0 0.0
        %493 = vmatpush1.msra.mxu0 0.0
        %494 = vmatprep.subr.mxu0 0.0
        %495 = vmatpush1.msra.mxu0 0.0
        %496 = vmatprep.subr.mxu0 0.0
        %497 = vmatpush1.msra.mxu0 0.0
        %498 = vmatprep.subr.mxu0 0.0
        %499 = vmatpush1.msra.mxu0 0.0
        %500 = vmatprep.subr.mxu0 0.0
        %501 = vmatpush1.msra.mxu0 0.0
        %502 = vmatprep.subr.mxu0 0.0
        %503 = vmatpush1.msra.mxu0 0.0
        %504 = vmatprep.subr.mxu0 0.0
        %505 = vmatpush1.msra.mxu0 0.0
        %506 = vmatprep.subr.mxu0 0.0
        %507 = vmatpush1.msra.mxu0 0.0
        %508 = vmatprep.subr.mxu0 0.0
        %509 = vmatpush1.msra.mxu0 0.0
        %510 = vmatprep.subr.mxu0 0.0
        %511 = vmatpush1.msra.mxu0 0.0
        %512 = vmatprep.subr.mxu0 0.0
        %513 = vmatpush1.msra.mxu0 0.0
        %514 = vmatprep.subr.mxu0 0.0
        %515 = vmatpush1.msra.mxu0 0.0
        %516 = vmatprep.subr.mxu0 0.0
        %517 = vmatpush1.msra.mxu0 0.0
        %518 = vmatprep.subr.mxu0 0.0
        %519 = vmatpush1.msra.mxu0 0.0
        %520 = vmatprep.subr.mxu0 0.0
        %521 = vmatpush1.msra.mxu0 0.0
        %522 = vmatprep.subr.mxu0 0.0
        %523 = vmatpush1.msra.mxu0 0.0
        %524 = vmatprep.subr.mxu0 0.0
        %525 = vmatpush1.msra.mxu0 0.0
        %526 = vmatprep.subr.mxu0 0.0
        %527 = vmatpush1.msra.mxu0 0.0
        %528 = vmatprep.subr.mxu0 0.0
        %529 = vmatpush1.msra.mxu0 0.0
        %530 = vmatprep.subr.mxu0 0.0
        %531 = vmatpush1.msra.mxu0 0.0
        %532 = vmatprep.subr.mxu0 0.0
        %533 = vmatpush1.msra.mxu0 0.0
        %534 = vmatprep.subr.mxu0 0.0
        %535 = vmatpush1.msra.mxu0 0.0
        %536 = vmatprep.subr.mxu0 0.0
        %537 = vmatpush1.msra.mxu0 0.0
        %538 = vmatprep.subr.mxu0 0.0
        %539 = vmatpush1.msra.mxu0 0.0
        %540 = vmatprep.subr.mxu0 0.0
        %541 = vmatpush1.msra.mxu0 0.0
        %542 = vmatprep.subr.mxu0 0.0
        %543 = vmatpush1.msra.mxu0 0.0
        %544 = vmatprep.mubr.f32.mxu0 0.0
        %v545 = vand.u32 %v383, 4294901760
        %546 = vmatmul.mubr.f32.gmra.mrb[0].mxu0 %v545
        %v547 = vpop.f32.mrb[0].mxu0
        %v548 = vadd.f32 %v466, %v547
        %v549 = vpop.f32.mrb[0].mxu0
        %v550 = vadd.f32 %v468, %v549
        %551 = vdwg.mxu0
        %v552 = vand.u32 %v390, 4294901760
        %v553 = vsub.f32 %v390, %v552
        %554 = vmatprep.subr.mxu0 %v553
        %v555 = vand.u32 %v387, 4294901760
        %v556 = vsub.f32 %v387, %v555
        %557 = vmatpush1.msra.mxu0 %v556
        %558 = vmatprep.subr.mxu0 0.0
        %559 = vmatpush1.msra.mxu0 0.0
        %560 = vmatprep.subr.mxu0 0.0
        %561 = vmatpush1.msra.mxu0 0.0
        %562 = vmatprep.subr.mxu0 0.0
        %563 = vmatpush1.msra.mxu0 0.0
        %564 = vmatprep.subr.mxu0 0.0
        %565 = vmatpush1.msra.mxu0 0.0
        %566 = vmatprep.subr.mxu0 0.0
        %567 = vmatpush1.msra.mxu0 0.0
        %568 = vmatprep.subr.mxu0 0.0
        %569 = vmatpush1.msra.mxu0 0.0
        %570 = vmatprep.subr.mxu0 0.0
        %571 = vmatpush1.msra.mxu0 0.0
        %572 = vmatprep.subr.mxu0 0.0
        %573 = vmatpush1.msra.mxu0 0.0
        %574 = vmatprep.subr.mxu0 0.0
        %575 = vmatpush1.msra.mxu0 0.0
        %576 = vmatprep.subr.mxu0 0.0
        %577 = vmatpush1.msra.mxu0 0.0
        %578 = vmatprep.subr.mxu0 0.0
        %579 = vmatpush1.msra.mxu0 0.0
        %580 = vmatprep.subr.mxu0 0.0
        %581 = vmatpush1.msra.mxu0 0.0
        %582 = vmatprep.subr.mxu0 0.0
        %583 = vmatpush1.msra.mxu0 0.0
        %584 = vmatprep.subr.mxu0 0.0
        %585 = vmatpush1.msra.mxu0 0.0
        %586 = vmatprep.subr.mxu0 0.0
        %587 = vmatpush1.msra.mxu0 0.0
        %588 = vmatprep.subr.mxu0 0.0
        %589 = vmatpush1.msra.mxu0 0.0
        %590 = vmatprep.subr.mxu0 0.0
        %591 = vmatpush1.msra.mxu0 0.0
        %592 = vmatprep.subr.mxu0 0.0
        %593 = vmatpush1.msra.mxu0 0.0
        %594 = vmatprep.subr.mxu0 0.0
        %595 = vmatpush1.msra.mxu0 0.0
        %596 = vmatprep.subr.mxu0 0.0
        %597 = vmatpush1.msra.mxu0 0.0
        %598 = vmatprep.subr.mxu0 0.0
        %599 = vmatpush1.msra.mxu0 0.0
        %600 = vmatprep.subr.mxu0 0.0
        %601 = vmatpush1.msra.mxu0 0.0
        %602 = vmatprep.subr.mxu0 0.0
        %603 = vmatpush1.msra.mxu0 0.0
        %604 = vmatprep.subr.mxu0 0.0
        %605 = vmatpush1.msra.mxu0 0.0
        %606 = vmatprep.subr.mxu0 0.0
        %607 = vmatpush1.msra.mxu0 0.0
        %608 = vmatprep.subr.mxu0 0.0
        %609 = vmatpush1.msra.mxu0 0.0
        %610 = vmatprep.subr.mxu0 0.0
        %611 = vmatpush1.msra.mxu0 0.0
        %612 = vmatprep.subr.mxu0 0.0
        %613 = vmatpush1.msra.mxu0 0.0
        %614 = vmatprep.subr.mxu0 0.0
        %615 = vmatpush1.msra.mxu0 0.0
        %616 = vmatprep.subr.mxu0 0.0
        %617 = vmatpush1.msra.mxu0 0.0
        %618 = vmatprep.subr.mxu0 0.0
        %619 = vmatpush1.msra.mxu0 0.0
        %620 = vmatprep.mubr.f32.mxu0 0.0
        %v621 = vand.u32 %v383, 4294901760
        %v622 = vsub.f32 %v383, %v621
        %623 = vmatmul.mubr.f32.gmra.mrb[0].mxu0 %v622
        %v624 = vpop.f32.mrb[0].mxu0
        %v625 = vadd.f32 %v548, %v624
        %v626 = vpop.f32.mrb[0].mxu0
        %v627 = vadd.f32 %v550, %v626
        %628 = vdwg.mxu0
        %v629 = vand.u32 %v390, 4294901760
        %630 = vmatprep.subr.mxu0 %v629
        %v631 = vand.u32 %v387, 4294901760
        %632 = vmatpush1.msra.mxu0 %v631
        %633 = vmatprep.subr.mxu0 0.0
        %634 = vmatpush1.msra.mxu0 0.0
        %635 = vmatprep.subr.mxu0 0.0
        %636 = vmatpush1.msra.mxu0 0.0
        %637 = vmatprep.subr.mxu0 0.0
        %638 = vmatpush1.msra.mxu0 0.0
        %639 = vmatprep.subr.mxu0 0.0
        %640 = vmatpush1.msra.mxu0 0.0
        %641 = vmatprep.subr.mxu0 0.0
        %642 = vmatpush1.msra.mxu0 0.0
        %643 = vmatprep.subr.mxu0 0.0
        %644 = vmatpush1.msra.mxu0 0.0
        %645 = vmatprep.subr.mxu0 0.0
        %646 = vmatpush1.msra.mxu0 0.0
        %647 = vmatprep.subr.mxu0 0.0
        %648 = vmatpush1.msra.mxu0 0.0
        %649 = vmatprep.subr.mxu0 0.0
        %650 = vmatpush1.msra.mxu0 0.0
        %651 = vmatprep.subr.mxu0 0.0
        %652 = vmatpush1.msra.mxu0 0.0
        %653 = vmatprep.subr.mxu0 0.0
        %654 = vmatpush1.msra.mxu0 0.0
        %655 = vmatprep.subr.mxu0 0.0
        %656 = vmatpush1.msra.mxu0 0.0
        %657 = vmatprep.subr.mxu0 0.0
        %658 = vmatpush1.msra.mxu0 0.0
        %659 = vmatprep.subr.mxu0 0.0
        %660 = vmatpush1.msra.mxu0 0.0
        %661 = vmatprep.subr.mxu0 0.0
        %662 = vmatpush1.msra.mxu0 0.0
        %663 = vmatprep.subr.mxu0 0.0
        %664 = vmatpush1.msra.mxu0 0.0
        %665 = vmatprep.subr.mxu0 0.0
        %666 = vmatpush1.msra.mxu0 0.0
        %667 = vmatprep.subr.mxu0 0.0
        %668 = vmatpush1.msra.mxu0 0.0
        %669 = vmatprep.subr.mxu0 0.0
        %670 = vmatpush1.msra.mxu0 0.0
        %671 = vmatprep.subr.mxu0 0.0
        %672 = vmatpush1.msra.mxu0 0.0
        %673 = vmatprep.subr.mxu0 0.0
        %674 = vmatpush1.msra.mxu0 0.0
        %675 = vmatprep.subr.mxu0 0.0
        %676 = vmatpush1.msra.mxu0 0.0
        %677 = vmatprep.subr.mxu0 0.0
        %678 = vmatpush1.msra.mxu0 0.0
        %679 = vmatprep.subr.mxu0 0.0
        %680 = vmatpush1.msra.mxu0 0.0
        %681 = vmatprep.subr.mxu0 0.0
        %682 = vmatpush1.msra.mxu0 0.0
        %683 = vmatprep.subr.mxu0 0.0
        %684 = vmatpush1.msra.mxu0 0.0
        %685 = vmatprep.subr.mxu0 0.0
        %686 = vmatpush1.msra.mxu0 0.0
        %687 = vmatprep.subr.mxu0 0.0
        %688 = vmatpush1.msra.mxu0 0.0
        %689 = vmatprep.subr.mxu0 0.0
        %690 = vmatpush1.msra.mxu0 0.0
        %691 = vmatprep.subr.mxu0 0.0
        %692 = vmatpush1.msra.mxu0 0.0
        %693 = vmatprep.subr.mxu0 0.0
        %694 = vmatpush1.msra.mxu0 0.0
        %695 = vmatprep.mubr.f32.mxu0 0.0
        %v696 = vand.u32 %v383, 4294901760
        %v697 = vsub.f32 %v383, %v696
        %v698 = vand.u32 %v697, 4294901760
        %699 = vmatmul.mubr.f32.gmra.mrb[0].mxu0 %v698
        %v700 = vpop.f32.mrb[0].mxu0
        %v701 = vadd.f32 %v625, %v700
        %v702 = vpop.f32.mrb[0].mxu0
        %v703 = vadd.f32 %v627, %v702
        %704 = vdwg.mxu0
        %v705 = vand.u32 %v390, 4294901760
        %v706 = vsub.f32 %v390, %v705
        %v707 = vand.u32 %v706, 4294901760
        %708 = vmatprep.subr.mxu0 %v707
        %v709 = vand.u32 %v387, 4294901760
        %v710 = vsub.f32 %v387, %v709
        %v711 = vand.u32 %v710, 4294901760
        %712 = vmatpush1.msra.mxu0 %v711
        %713 = vmatprep.subr.mxu0 0.0
        %714 = vmatpush1.msra.mxu0 0.0
        %715 = vmatprep.subr.mxu0 0.0
        %716 = vmatpush1.msra.mxu0 0.0
        %717 = vmatprep.subr.mxu0 0.0
        %718 = vmatpush1.msra.mxu0 0.0
        %719 = vmatprep.subr.mxu0 0.0
        %720 = vmatpush1.msra.mxu0 0.0
        %721 = vmatprep.subr.mxu0 0.0
        %722 = vmatpush1.msra.mxu0 0.0
        %723 = vmatprep.subr.mxu0 0.0
        %724 = vmatpush1.msra.mxu0 0.0
        %725 = vmatprep.subr.mxu0 0.0
        %726 = vmatpush1.msra.mxu0 0.0
        %727 = vmatprep.subr.mxu0 0.0
        %728 = vmatpush1.msra.mxu0 0.0
        %729 = vmatprep.subr.mxu0 0.0
        %730 = vmatpush1.msra.mxu0 0.0
        %731 = vmatprep.subr.mxu0 0.0
        %732 = vmatpush1.msra.mxu0 0.0
        %733 = vmatprep.subr.mxu0 0.0
        %734 = vmatpush1.msra.mxu0 0.0
        %735 = vmatprep.subr.mxu0 0.0
        %736 = vmatpush1.msra.mxu0 0.0
        %737 = vmatprep.subr.mxu0 0.0
        %738 = vmatpush1.msra.mxu0 0.0
        %739 = vmatprep.subr.mxu0 0.0
        %740 = vmatpush1.msra.mxu0 0.0
        %741 = vmatprep.subr.mxu0 0.0
        %742 = vmatpush1.msra.mxu0 0.0
        %743 = vmatprep.subr.mxu0 0.0
        %744 = vmatpush1.msra.mxu0 0.0
        %745 = vmatprep.subr.mxu0 0.0
        %746 = vmatpush1.msra.mxu0 0.0
        %747 = vmatprep.subr.mxu0 0.0
        %748 = vmatpush1.msra.mxu0 0.0
        %749 = vmatprep.subr.mxu0 0.0
        %750 = vmatpush1.msra.mxu0 0.0
        %751 = vmatprep.subr.mxu0 0.0
        %752 = vmatpush1.msra.mxu0 0.0
        %753 = vmatprep.subr.mxu0 0.0
        %754 = vmatpush1.msra.mxu0 0.0
        %755 = vmatprep.subr.mxu0 0.0
        %756 = vmatpush1.msra.mxu0 0.0
        %757 = vmatprep.subr.mxu0 0.0
        %758 = vmatpush1.msra.mxu0 0.0
        %759 = vmatprep.subr.mxu0 0.0
        %760 = vmatpush1.msra.mxu0 0.0
        %761 = vmatprep.subr.mxu0 0.0
        %762 = vmatpush1.msra.mxu0 0.0
        %763 = vmatprep.subr.mxu0 0.0
        %764 = vmatpush1.msra.mxu0 0.0
        %765 = vmatprep.subr.mxu0 0.0
        %766 = vmatpush1.msra.mxu0 0.0
        %767 = vmatprep.subr.mxu0 0.0
        %768 = vmatpush1.msra.mxu0 0.0
        %769 = vmatprep.subr.mxu0 0.0
        %770 = vmatpush1.msra.mxu0 0.0
        %771 = vmatprep.subr.mxu0 0.0
        %772 = vmatpush1.msra.mxu0 0.0
        %773 = vmatprep.subr.mxu0 0.0
        %774 = vmatpush1.msra.mxu0 0.0
        %775 = vmatprep.mubr.f32.mxu0 0.0
        %v776 = vand.u32 %v383, 4294901760
        %777 = vmatmul.mubr.f32.gmra.mrb[0].mxu0 %v776
        %v778 = vpop.f32.mrb[0].mxu0
        %v779 = vadd.f32 %v701, %v778
        %v780 = vpop.f32.mrb[0].mxu0
        %v781 = vadd.f32 %v703, %v780
        %782 = vdwg.mxu0
        %v783 = vand.u32 %v390, 4294901760
        %784 = vmatprep.subr.mxu0 %v783
        %v785 = vand.u32 %v387, 4294901760
        %786 = vmatpush1.msra.mxu0 %v785
        %787 = vmatprep.subr.mxu0 0.0
        %788 = vmatpush1.msra.mxu0 0.0
        %789 = vmatprep.subr.mxu0 0.0
        %790 = vmatpush1.msra.mxu0 0.0
        %791 = vmatprep.subr.mxu0 0.0
        %792 = vmatpush1.msra.mxu0 0.0
        %793 = vmatprep.subr.mxu0 0.0
        %794 = vmatpush1.msra.mxu0 0.0
        %795 = vmatprep.subr.mxu0 0.0
        %796 = vmatpush1.msra.mxu0 0.0
        %797 = vmatprep.subr.mxu0 0.0
        %798 = vmatpush1.msra.mxu0 0.0
        %799 = vmatprep.subr.mxu0 0.0
        %800 = vmatpush1.msra.mxu0 0.0
        %801 = vmatprep.subr.mxu0 0.0
        %802 = vmatpush1.msra.mxu0 0.0
        %803 = vmatprep.subr.mxu0 0.0
        %804 = vmatpush1.msra.mxu0 0.0
        %805 = vmatprep.subr.mxu0 0.0
        %806 = vmatpush1.msra.mxu0 0.0
        %807 = vmatprep.subr.mxu0 0.0
        %808 = vmatpush1.msra.mxu0 0.0
        %809 = vmatprep.subr.mxu0 0.0
        %810 = vmatpush1.msra.mxu0 0.0
        %811 = vmatprep.subr.mxu0 0.0
        %812 = vmatpush1.msra.mxu0 0.0
        %813 = vmatprep.subr.mxu0 0.0
        %814 = vmatpush1.msra.mxu0 0.0
        %815 = vmatprep.subr.mxu0 0.0
        %816 = vmatpush1.msra.mxu0 0.0
        %817 = vmatprep.subr.mxu0 0.0
        %818 = vmatpush1.msra.mxu0 0.0
        %819 = vmatprep.subr.mxu0 0.0
        %820 = vmatpush1.msra.mxu0 0.0
        %821 = vmatprep.subr.mxu0 0.0
        %822 = vmatpush1.msra.mxu0 0.0
        %823 = vmatprep.subr.mxu0 0.0
        %824 = vmatpush1.msra.mxu0 0.0
        %825 = vmatprep.subr.mxu0 0.0
        %826 = vmatpush1.msra.mxu0 0.0
        %827 = vmatprep.subr.mxu0 0.0
        %828 = vmatpush1.msra.mxu0 0.0
        %829 = vmatprep.subr.mxu0 0.0
        %830 = vmatpush1.msra.mxu0 0.0
        %831 = vmatprep.subr.mxu0 0.0
        %832 = vmatpush1.msra.mxu0 0.0
        %833 = vmatprep.subr.mxu0 0.0
        %834 = vmatpush1.msra.mxu0 0.0
        %835 = vmatprep.subr.mxu0 0.0
        %836 = vmatpush1.msra.mxu0 0.0
        %837 = vmatprep.subr.mxu0 0.0
        %838 = vmatpush1.msra.mxu0 0.0
        %839 = vmatprep.subr.mxu0 0.0
        %840 = vmatpush1.msra.mxu0 0.0
        %841 = vmatprep.subr.mxu0 0.0
        %842 = vmatpush1.msra.mxu0 0.0
        %843 = vmatprep.subr.mxu0 0.0
        %844 = vmatpush1.msra.mxu0 0.0
        %845 = vmatprep.subr.mxu0 0.0
        %846 = vmatpush1.msra.mxu0 0.0
        %847 = vmatprep.subr.mxu0 0.0
        %848 = vmatpush1.msra.mxu0 0.0
        %849 = vmatprep.mubr.f32.mxu0 0.0
        %v850 = vand.u32 %v383, 4294901760
        %851 = vmatmul.mubr.f32.gmra.mrb[0].mxu0 %v850
        %v852 = vpop.f32.mrb[0].mxu0
        %v853 = vadd.f32 %v779, %v852
        %v854 = vpop.f32.mrb[0].mxu0
        %v855 = vadd.f32 %v781, %v854
        %856 = vdwg.mxu0
        %858 = vset.pattern.permute.xlu0 0
        %859 = vperm.xlu0 %858, %v320
        %v860 = vpop.permute.xlu0 %859
        %v862 = vadd.f32 %v860, %v853
        %v863 = vadd.f32 %v860, %v855
        %v865 = vsel %vm381, %v316, 0
        %v867 = vsel %vm385, %v312, 0
        %v869 = vsel %vm385, %v322, 0
        %v871 = vand.u32 %v869, 4294901760
        %872 = vmatprep.subr.mxu0 %v871
        %v873 = vand.u32 %v867, 4294901760
        %874 = vmatpush1.msra.mxu0 %v873
        %875 = vmatprep.subr.mxu0 0.0
        %876 = vmatpush1.msra.mxu0 0.0
        %877 = vmatprep.subr.mxu0 0.0
        %878 = vmatpush1.msra.mxu0 0.0
        %879 = vmatprep.subr.mxu0 0.0
        %880 = vmatpush1.msra.mxu0 0.0
        %881 = vmatprep.subr.mxu0 0.0
        %882 = vmatpush1.msra.mxu0 0.0
        %883 = vmatprep.subr.mxu0 0.0
        %884 = vmatpush1.msra.mxu0 0.0
        %885 = vmatprep.subr.mxu0 0.0
        %886 = vmatpush1.msra.mxu0 0.0
        %887 = vmatprep.subr.mxu0 0.0
        %888 = vmatpush1.msra.mxu0 0.0
        %889 = vmatprep.subr.mxu0 0.0
        %890 = vmatpush1.msra.mxu0 0.0
        %891 = vmatprep.subr.mxu0 0.0
        %892 = vmatpush1.msra.mxu0 0.0
        %893 = vmatprep.subr.mxu0 0.0
        %894 = vmatpush1.msra.mxu0 0.0
        %895 = vmatprep.subr.mxu0 0.0
        %896 = vmatpush1.msra.mxu0 0.0
        %897 = vmatprep.subr.mxu0 0.0
        %898 = vmatpush1.msra.mxu0 0.0
        %899 = vmatprep.subr.mxu0 0.0
        %900 = vmatpush1.msra.mxu0 0.0
        %901 = vmatprep.subr.mxu0 0.0
        %902 = vmatpush1.msra.mxu0 0.0
        %903 = vmatprep.subr.mxu0 0.0
        %904 = vmatpush1.msra.mxu0 0.0
        %905 = vmatprep.subr.mxu0 0.0
        %906 = vmatpush1.msra.mxu0 0.0
        %907 = vmatprep.subr.mxu0 0.0
        %908 = vmatpush1.msra.mxu0 0.0
        %909 = vmatprep.subr.mxu0 0.0
        %910 = vmatpush1.msra.mxu0 0.0
        %911 = vmatprep.subr.mxu0 0.0
        %912 = vmatpush1.msra.mxu0 0.0
        %913 = vmatprep.subr.mxu0 0.0
        %914 = vmatpush1.msra.mxu0 0.0
        %915 = vmatprep.subr.mxu0 0.0
        %916 = vmatpush1.msra.mxu0 0.0
        %917 = vmatprep.subr.mxu0 0.0
        %918 = vmatpush1.msra.mxu0 0.0
        %919 = vmatprep.subr.mxu0 0.0
        %920 = vmatpush1.msra.mxu0 0.0
        %921 = vmatprep.subr.mxu0 0.0
        %922 = vmatpush1.msra.mxu0 0.0
        %923 = vmatprep.subr.mxu0 0.0
        %924 = vmatpush1.msra.mxu0 0.0
        %925 = vmatprep.subr.mxu0 0.0
        %926 = vmatpush1.msra.mxu0 0.0
        %927 = vmatprep.subr.mxu0 0.0
        %928 = vmatpush1.msra.mxu0 0.0
        %929 = vmatprep.subr.mxu0 0.0
        %930 = vmatpush1.msra.mxu0 0.0
        %931 = vmatprep.subr.mxu0 0.0
        %932 = vmatpush1.msra.mxu0 0.0
        %933 = vmatprep.subr.mxu0 0.0
        %934 = vmatpush1.msra.mxu0 0.0
        %935 = vmatprep.subr.mxu0 0.0
        %936 = vmatpush1.msra.mxu0 0.0
        %937 = vmatprep.mubr.f32.mxu0 0.0
        %v938 = vand.u32 %v865, 4294901760
        %v939 = vsub.f32 %v865, %v938
        %v940 = vand.u32 %v939, 4294901760
        %v941 = vsub.f32 %v939, %v940
        %v942 = vand.u32 %v941, 4294901760
        %943 = vmatmul.mubr.f32.gmra.mrb[0].mxu0 %v942
        %v944 = vpop.f32.mrb[0].mxu0
        %v945 = vadd.f32 0.0, %v944
        %v946 = vpop.f32.mrb[0].mxu0
        %v947 = vadd.f32 0.0, %v946
        %948 = vdwg.mxu0
        %v949 = vand.u32 %v869, 4294901760
        %v950 = vsub.f32 %v869, %v949
        %v951 = vand.u32 %v950, 4294901760
        %v952 = vsub.f32 %v950, %v951
        %v953 = vand.u32 %v952, 4294901760
        %954 = vmatprep.subr.mxu0 %v953
        %v955 = vand.u32 %v867, 4294901760
        %v956 = vsub.f32 %v867, %v955
        %v957 = vand.u32 %v956, 4294901760
        %v958 = vsub.f32 %v956, %v957
        %v959 = vand.u32 %v958, 4294901760
        %960 = vmatpush1.msra.mxu0 %v959
        %961 = vmatprep.subr.mxu0 0.0
        %962 = vmatpush1.msra.mxu0 0.0
        %963 = vmatprep.subr.mxu0 0.0
        %964 = vmatpush1.msra.mxu0 0.0
        %965 = vmatprep.subr.mxu0 0.0
        %966 = vmatpush1.msra.mxu0 0.0
        %967 = vmatprep.subr.mxu0 0.0
        %968 = vmatpush1.msra.mxu0 0.0
        %969 = vmatprep.subr.mxu0 0.0
        %970 = vmatpush1.msra.mxu0 0.0
        %971 = vmatprep.subr.mxu0 0.0
        %972 = vmatpush1.msra.mxu0 0.0
        %973 = vmatprep.subr.mxu0 0.0
        %974 = vmatpush1.msra.mxu0 0.0
        %975 = vmatprep.subr.mxu0 0.0
        %976 = vmatpush1.msra.mxu0 0.0
        %977 = vmatprep.subr.mxu0 0.0
        %978 = vmatpush1.msra.mxu0 0.0
        %979 = vmatprep.subr.mxu0 0.0
        %980 = vmatpush1.msra.mxu0 0.0
        %981 = vmatprep.subr.mxu0 0.0
        %982 = vmatpush1.msra.mxu0 0.0
        %983 = vmatprep.subr.mxu0 0.0
        %984 = vmatpush1.msra.mxu0 0.0
        %985 = vmatprep.subr.mxu0 0.0
        %986 = vmatpush1.msra.mxu0 0.0
        %987 = vmatprep.subr.mxu0 0.0
        %988 = vmatpush1.msra.mxu0 0.0
        %989 = vmatprep.subr.mxu0 0.0
        %990 = vmatpush1.msra.mxu0 0.0
        %991 = vmatprep.subr.mxu0 0.0
        %992 = vmatpush1.msra.mxu0 0.0
        %993 = vmatprep.subr.mxu0 0.0
        %994 = vmatpush1.msra.mxu0 0.0
        %995 = vmatprep.subr.mxu0 0.0
        %996 = vmatpush1.msra.mxu0 0.0
        %997 = vmatprep.subr.mxu0 0.0
        %998 = vmatpush1.msra.mxu0 0.0
        %999 = vmatprep.subr.mxu0 0.0
        %1000 = vmatpush1.msra.mxu0 0.0
        %1001 = vmatprep.subr.mxu0 0.0
        %1002 = vmatpush1.msra.mxu0 0.0
        %1003 = vmatprep.subr.mxu0 0.0
        %1004 = vmatpush1.msra.mxu0 0.0
        %1005 = vmatprep.subr.mxu0 0.0
        %1006 = vmatpush1.msra.mxu0 0.0
        %1007 = vmatprep.subr.mxu0 0.0
        %1008 = vmatpush1.msra.mxu0 0.0
        %1009 = vmatprep.subr.mxu0 0.0
        %1010 = vmatpush1.msra.mxu0 0.0
        %1011 = vmatprep.subr.mxu0 0.0
        %1012 = vmatpush1.msra.mxu0 0.0
        %1013 = vmatprep.subr.mxu0 0.0
        %1014 = vmatpush1.msra.mxu0 0.0
        %1015 = vmatprep.subr.mxu0 0.0
        %1016 = vmatpush1.msra.mxu0 0.0
        %1017 = vmatprep.subr.mxu0 0.0
        %1018 = vmatpush1.msra.mxu0 0.0
        %1019 = vmatprep.subr.mxu0 0.0
        %1020 = vmatpush1.msra.mxu0 0.0
        %1021 = vmatprep.subr.mxu0 0.0
        %1022 = vmatpush1.msra.mxu0 0.0
        %1023 = vmatprep.mubr.f32.mxu0 0.0
        %v1024 = vand.u32 %v865, 4294901760
        %1025 = vmatmul.mubr.f32.gmra.mrb[0].mxu0 %v1024
        %v1026 = vpop.f32.mrb[0].mxu0
        %v1027 = vadd.f32 %v945, %v1026
        %v1028 = vpop.f32.mrb[0].mxu0
        %v1029 = vadd.f32 %v947, %v1028
        %1030 = vdwg.mxu0
        %v1031 = vand.u32 %v869, 4294901760
        %v1032 = vsub.f32 %v869, %v1031
        %1033 = vmatprep.subr.mxu0 %v1032
        %v1034 = vand.u32 %v867, 4294901760
        %v1035 = vsub.f32 %v867, %v1034
        %1036 = vmatpush1.msra.mxu0 %v1035
        %1037 = vmatprep.subr.mxu0 0.0
        %1038 = vmatpush1.msra.mxu0 0.0
        %1039 = vmatprep.subr.mxu0 0.0
        %1040 = vmatpush1.msra.mxu0 0.0
        %1041 = vmatprep.subr.mxu0 0.0
        %1042 = vmatpush1.msra.mxu0 0.0
        %1043 = vmatprep.subr.mxu0 0.0
        %1044 = vmatpush1.msra.mxu0 0.0
        %1045 = vmatprep.subr.mxu0 0.0
        %1046 = vmatpush1.msra.mxu0 0.0
        %1047 = vmatprep.subr.mxu0 0.0
        %1048 = vmatpush1.msra.mxu0 0.0
        %1049 = vmatprep.subr.mxu0 0.0
        %1050 = vmatpush1.msra.mxu0 0.0
        %1051 = vmatprep.subr.mxu0 0.0
        %1052 = vmatpush1.msra.mxu0 0.0
        %1053 = vmatprep.subr.mxu0 0.0
        %1054 = vmatpush1.msra.mxu0 0.0
        %1055 = vmatprep.subr.mxu0 0.0
        %1056 = vmatpush1.msra.mxu0 0.0
        %1057 = vmatprep.subr.mxu0 0.0
        %1058 = vmatpush1.msra.mxu0 0.0
        %1059 = vmatprep.subr.mxu0 0.0
        %1060 = vmatpush1.msra.mxu0 0.0
        %1061 = vmatprep.subr.mxu0 0.0
        %1062 = vmatpush1.msra.mxu0 0.0
        %1063 = vmatprep.subr.mxu0 0.0
        %1064 = vmatpush1.msra.mxu0 0.0
        %1065 = vmatprep.subr.mxu0 0.0
        %1066 = vmatpush1.msra.mxu0 0.0
        %1067 = vmatprep.subr.mxu0 0.0
        %1068 = vmatpush1.msra.mxu0 0.0
        %1069 = vmatprep.subr.mxu0 0.0
        %1070 = vmatpush1.msra.mxu0 0.0
        %1071 = vmatprep.subr.mxu0 0.0
        %1072 = vmatpush1.msra.mxu0 0.0
        %1073 = vmatprep.subr.mxu0 0.0
        %1074 = vmatpush1.msra.mxu0 0.0
        %1075 = vmatprep.subr.mxu0 0.0
        %1076 = vmatpush1.msra.mxu0 0.0
        %1077 = vmatprep.subr.mxu0 0.0
        %1078 = vmatpush1.msra.mxu0 0.0
        %1079 = vmatprep.subr.mxu0 0.0
        %1080 = vmatpush1.msra.mxu0 0.0
        %1081 = vmatprep.subr.mxu0 0.0
        %1082 = vmatpush1.msra.mxu0 0.0
        %1083 = vmatprep.subr.mxu0 0.0
        %1084 = vmatpush1.msra.mxu0 0.0
        %1085 = vmatprep.subr.mxu0 0.0
        %1086 = vmatpush1.msra.mxu0 0.0
        %1087 = vmatprep.subr.mxu0 0.0
        %1088 = vmatpush1.msra.mxu0 0.0
        %1089 = vmatprep.subr.mxu0 0.0
        %1090 = vmatpush1.msra.mxu0 0.0
        %1091 = vmatprep.subr.mxu0 0.0
        %1092 = vmatpush1.msra.mxu0 0.0
        %1093 = vmatprep.subr.mxu0 0.0
        %1094 = vmatpush1.msra.mxu0 0.0
        %1095 = vmatprep.subr.mxu0 0.0
        %1096 = vmatpush1.msra.mxu0 0.0
        %1097 = vmatprep.subr.mxu0 0.0
        %1098 = vmatpush1.msra.mxu0 0.0
        %1099 = vmatprep.mubr.f32.mxu0 0.0
        %v1100 = vand.u32 %v865, 4294901760
        %v1101 = vsub.f32 %v865, %v1100
        %1102 = vmatmul.mubr.f32.gmra.mrb[0].mxu0 %v1101
        %v1103 = vpop.f32.mrb[0].mxu0
        %v1104 = vadd.f32 %v1027, %v1103
        %v1105 = vpop.f32.mrb[0].mxu0
        %v1106 = vadd.f32 %v1029, %v1105
        %1107 = vdwg.mxu0
        %v1108 = vand.u32 %v869, 4294901760
        %1109 = vmatprep.subr.mxu0 %v1108
        %v1110 = vand.u32 %v867, 4294901760
        %1111 = vmatpush1.msra.mxu0 %v1110
        %1112 = vmatprep.subr.mxu0 0.0
        %1113 = vmatpush1.msra.mxu0 0.0
        %1114 = vmatprep.subr.mxu0 0.0
        %1115 = vmatpush1.msra.mxu0 0.0
        %1116 = vmatprep.subr.mxu0 0.0
        %1117 = vmatpush1.msra.mxu0 0.0
        %1118 = vmatprep.subr.mxu0 0.0
        %1119 = vmatpush1.msra.mxu0 0.0
        %1120 = vmatprep.subr.mxu0 0.0
        %1121 = vmatpush1.msra.mxu0 0.0
        %1122 = vmatprep.subr.mxu0 0.0
        %1123 = vmatpush1.msra.mxu0 0.0
        %1124 = vmatprep.subr.mxu0 0.0
        %1125 = vmatpush1.msra.mxu0 0.0
        %1126 = vmatprep.subr.mxu0 0.0
        %1127 = vmatpush1.msra.mxu0 0.0
        %1128 = vmatprep.subr.mxu0 0.0
        %1129 = vmatpush1.msra.mxu0 0.0
        %1130 = vmatprep.subr.mxu0 0.0
        %1131 = vmatpush1.msra.mxu0 0.0
        %1132 = vmatprep.subr.mxu0 0.0
        %1133 = vmatpush1.msra.mxu0 0.0
        %1134 = vmatprep.subr.mxu0 0.0
        %1135 = vmatpush1.msra.mxu0 0.0
        %1136 = vmatprep.subr.mxu0 0.0
        %1137 = vmatpush1.msra.mxu0 0.0
        %1138 = vmatprep.subr.mxu0 0.0
        %1139 = vmatpush1.msra.mxu0 0.0
        %1140 = vmatprep.subr.mxu0 0.0
        %1141 = vmatpush1.msra.mxu0 0.0
        %1142 = vmatprep.subr.mxu0 0.0
        %1143 = vmatpush1.msra.mxu0 0.0
        %1144 = vmatprep.subr.mxu0 0.0
        %1145 = vmatpush1.msra.mxu0 0.0
        %1146 = vmatprep.subr.mxu0 0.0
        %1147 = vmatpush1.msra.mxu0 0.0
        %1148 = vmatprep.subr.mxu0 0.0
        %1149 = vmatpush1.msra.mxu0 0.0
        %1150 = vmatprep.subr.mxu0 0.0
        %1151 = vmatpush1.msra.mxu0 0.0
        %1152 = vmatprep.subr.mxu0 0.0
        %1153 = vmatpush1.msra.mxu0 0.0
        %1154 = vmatprep.subr.mxu0 0.0
        %1155 = vmatpush1.msra.mxu0 0.0
        %1156 = vmatprep.subr.mxu0 0.0
        %1157 = vmatpush1.msra.mxu0 0.0
        %1158 = vmatprep.subr.mxu0 0.0
        %1159 = vmatpush1.msra.mxu0 0.0
        %1160 = vmatprep.subr.mxu0 0.0
        %1161 = vmatpush1.msra.mxu0 0.0
        %1162 = vmatprep.subr.mxu0 0.0
        %1163 = vmatpush1.msra.mxu0 0.0
        %1164 = vmatprep.subr.mxu0 0.0
        %1165 = vmatpush1.msra.mxu0 0.0
        %1166 = vmatprep.subr.mxu0 0.0
        %1167 = vmatpush1.msra.mxu0 0.0
        %1168 = vmatprep.subr.mxu0 0.0
        %1169 = vmatpush1.msra.mxu0 0.0
        %1170 = vmatprep.subr.mxu0 0.0
        %1171 = vmatpush1.msra.mxu0 0.0
        %1172 = vmatprep.subr.mxu0 0.0
        %1173 = vmatpush1.msra.mxu0 0.0
        %1174 = vmatprep.mubr.f32.mxu0 0.0
        %v1175 = vand.u32 %v865, 4294901760
        %v1176 = vsub.f32 %v865, %v1175
        %v1177 = vand.u32 %v1176, 4294901760
        %1178 = vmatmul.mubr.f32.gmra.mrb[0].mxu0 %v1177
        %v1179 = vpop.f32.mrb[0].mxu0
        %v1180 = vadd.f32 %v1104, %v1179
        %v1181 = vpop.f32.mrb[0].mxu0
        %v1182 = vadd.f32 %v1106, %v1181
        %1183 = vdwg.mxu0
        %v1184 = vand.u32 %v869, 4294901760
        %v1185 = vsub.f32 %v869, %v1184
        %v1186 = vand.u32 %v1185, 4294901760
        %1187 = vmatprep.subr.mxu0 %v1186
        %v1188 = vand.u32 %v867, 4294901760
        %v1189 = vsub.f32 %v867, %v1188
        %v1190 = vand.u32 %v1189, 4294901760
        %1191 = vmatpush1.msra.mxu0 %v1190
        %1192 = vmatprep.subr.mxu0 0.0
        %1193 = vmatpush1.msra.mxu0 0.0
        %1194 = vmatprep.subr.mxu0 0.0
        %1195 = vmatpush1.msra.mxu0 0.0
        %1196 = vmatprep.subr.mxu0 0.0
        %1197 = vmatpush1.msra.mxu0 0.0
        %1198 = vmatprep.subr.mxu0 0.0
        %1199 = vmatpush1.msra.mxu0 0.0
        %1200 = vmatprep.subr.mxu0 0.0
        %1201 = vmatpush1.msra.mxu0 0.0
        %1202 = vmatprep.subr.mxu0 0.0
        %1203 = vmatpush1.msra.mxu0 0.0
        %1204 = vmatprep.subr.mxu0 0.0
        %1205 = vmatpush1.msra.mxu0 0.0
        %1206 = vmatprep.subr.mxu0 0.0
        %1207 = vmatpush1.msra.mxu0 0.0
        %1208 = vmatprep.subr.mxu0 0.0
        %1209 = vmatpush1.msra.mxu0 0.0
        %1210 = vmatprep.subr.mxu0 0.0
        %1211 = vmatpush1.msra.mxu0 0.0
        %1212 = vmatprep.subr.mxu0 0.0
        %1213 = vmatpush1.msra.mxu0 0.0
        %1214 = vmatprep.subr.mxu0 0.0
        %1215 = vmatpush1.msra.mxu0 0.0
        %1216 = vmatprep.subr.mxu0 0.0
        %1217 = vmatpush1.msra.mxu0 0.0
        %1218 = vmatprep.subr.mxu0 0.0
        %1219 = vmatpush1.msra.mxu0 0.0
        %1220 = vmatprep.subr.mxu0 0.0
        %1221 = vmatpush1.msra.mxu0 0.0
        %1222 = vmatprep.subr.mxu0 0.0
        %1223 = vmatpush1.msra.mxu0 0.0
        %1224 = vmatprep.subr.mxu0 0.0
        %1225 = vmatpush1.msra.mxu0 0.0
        %1226 = vmatprep.subr.mxu0 0.0
        %1227 = vmatpush1.msra.mxu0 0.0
        %1228 = vmatprep.subr.mxu0 0.0
        %1229 = vmatpush1.msra.mxu0 0.0
        %1230 = vmatprep.subr.mxu0 0.0
        %1231 = vmatpush1.msra.mxu0 0.0
        %1232 = vmatprep.subr.mxu0 0.0
        %1233 = vmatpush1.msra.mxu0 0.0
        %1234 = vmatprep.subr.mxu0 0.0
        %1235 = vmatpush1.msra.mxu0 0.0
        %1236 = vmatprep.subr.mxu0 0.0
        %1237 = vmatpush1.msra.mxu0 0.0
        %1238 = vmatprep.subr.mxu0 0.0
        %1239 = vmatpush1.msra.mxu0 0.0
        %1240 = vmatprep.subr.mxu0 0.0
        %1241 = vmatpush1.msra.mxu0 0.0
        %1242 = vmatprep.subr.mxu0 0.0
        %1243 = vmatpush1.msra.mxu0 0.0
        %1244 = vmatprep.subr.mxu0 0.0
        %1245 = vmatpush1.msra.mxu0 0.0
        %1246 = vmatprep.subr.mxu0 0.0
        %1247 = vmatpush1.msra.mxu0 0.0
        %1248 = vmatprep.subr.mxu0 0.0
        %1249 = vmatpush1.msra.mxu0 0.0
        %1250 = vmatprep.subr.mxu0 0.0
        %1251 = vmatpush1.msra.mxu0 0.0
        %1252 = vmatprep.subr.mxu0 0.0
        %1253 = vmatpush1.msra.mxu0 0.0
        %1254 = vmatprep.mubr.f32.mxu0 0.0
        %v1255 = vand.u32 %v865, 4294901760
        %1256 = vmatmul.mubr.f32.gmra.mrb[0].mxu0 %v1255
        %v1257 = vpop.f32.mrb[0].mxu0
        %v1258 = vadd.f32 %v1180, %v1257
        %v1259 = vpop.f32.mrb[0].mxu0
        %v1260 = vadd.f32 %v1182, %v1259
        %1261 = vdwg.mxu0
        %v1262 = vand.u32 %v869, 4294901760
        %1263 = vmatprep.subr.mxu0 %v1262
        %v1264 = vand.u32 %v867, 4294901760
        %1265 = vmatpush1.msra.mxu0 %v1264
        %1266 = vmatprep.subr.mxu0 0.0
        %1267 = vmatpush1.msra.mxu0 0.0
        %1268 = vmatprep.subr.mxu0 0.0
        %1269 = vmatpush1.msra.mxu0 0.0
        %1270 = vmatprep.subr.mxu0 0.0
        %1271 = vmatpush1.msra.mxu0 0.0
        %1272 = vmatprep.subr.mxu0 0.0
        %1273 = vmatpush1.msra.mxu0 0.0
        %1274 = vmatprep.subr.mxu0 0.0
        %1275 = vmatpush1.msra.mxu0 0.0
        %1276 = vmatprep.subr.mxu0 0.0
        %1277 = vmatpush1.msra.mxu0 0.0
        %1278 = vmatprep.subr.mxu0 0.0
        %1279 = vmatpush1.msra.mxu0 0.0
        %1280 = vmatprep.subr.mxu0 0.0
        %1281 = vmatpush1.msra.mxu0 0.0
        %1282 = vmatprep.subr.mxu0 0.0
        %1283 = vmatpush1.msra.mxu0 0.0
        %1284 = vmatprep.subr.mxu0 0.0
        %1285 = vmatpush1.msra.mxu0 0.0
        %1286 = vmatprep.subr.mxu0 0.0
        %1287 = vmatpush1.msra.mxu0 0.0
        %1288 = vmatprep.subr.mxu0 0.0
        %1289 = vmatpush1.msra.mxu0 0.0
        %1290 = vmatprep.subr.mxu0 0.0
        %1291 = vmatpush1.msra.mxu0 0.0
        %1292 = vmatprep.subr.mxu0 0.0
        %1293 = vmatpush1.msra.mxu0 0.0
        %1294 = vmatprep.subr.mxu0 0.0
        %1295 = vmatpush1.msra.mxu0 0.0
        %1296 = vmatprep.subr.mxu0 0.0
        %1297 = vmatpush1.msra.mxu0 0.0
        %1298 = vmatprep.subr.mxu0 0.0
        %1299 = vmatpush1.msra.mxu0 0.0
        %1300 = vmatprep.subr.mxu0 0.0
        %1301 = vmatpush1.msra.mxu0 0.0
        %1302 = vmatprep.subr.mxu0 0.0
        %1303 = vmatpush1.msra.mxu0 0.0
        %1304 = vmatprep.subr.mxu0 0.0
        %1305 = vmatpush1.msra.mxu0 0.0
        %1306 = vmatprep.subr.mxu0 0.0
        %1307 = vmatpush1.msra.mxu0 0.0
        %1308 = vmatprep.subr.mxu0 0.0
        %1309 = vmatpush1.msra.mxu0 0.0
        %1310 = vmatprep.subr.mxu0 0.0
        %1311 = vmatpush1.msra.mxu0 0.0
        %1312 = vmatprep.subr.mxu0 0.0
        %1313 = vmatpush1.msra.mxu0 0.0
        %1314 = vmatprep.subr.mxu0 0.0
        %1315 = vmatpush1.msra.mxu0 0.0
        %1316 = vmatprep.subr.mxu0 0.0
        %1317 = vmatpush1.msra.mxu0 0.0
        %1318 = vmatprep.subr.mxu0 0.0
        %1319 = vmatpush1.msra.mxu0 0.0
        %1320 = vmatprep.subr.mxu0 0.0
        %1321 = vmatpush1.msra.mxu0 0.0
        %1322 = vmatprep.subr.mxu0 0.0
        %1323 = vmatpush1.msra.mxu0 0.0
        %1324 = vmatprep.subr.mxu0 0.0
        %1325 = vmatpush1.msra.mxu0 0.0
        %1326 = vmatprep.subr.mxu0 0.0
        %1327 = vmatpush1.msra.mxu0 0.0
        %1328 = vmatprep.mubr.f32.mxu0 0.0
        %v1329 = vand.u32 %v865, 4294901760
        %1330 = vmatmul.mubr.f32.gmra.mrb[0].mxu0 %v1329
        %v1331 = vpop.f32.mrb[0].mxu0
        %v1332 = vadd.f32 %v1258, %v1331
        %v1333 = vpop.f32.mrb[0].mxu0
        %v1334 = vadd.f32 %v1260, %v1333
        %1335 = vdwg.mxu0
        %v1336 = vadd.f32 %v862, %v1332
        %v1337 = vadd.f32 %v863, %v1334
        %v1339 = vsel %vm381, %v317, 0
        %v1342 = vsel %vm385, %v379, 0
        %v1345 = vsel %vm385, %v380, 0
        %v1347 = vand.u32 %v1345, 4294901760
        %1348 = vmatprep.subr.mxu0 %v1347
        %v1349 = vand.u32 %v1342, 4294901760
        %1350 = vmatpush1.msra.mxu0 %v1349
        %1351 = vmatprep.subr.mxu0 0.0
        %1352 = vmatpush1.msra.mxu0 0.0
        %1353 = vmatprep.subr.mxu0 0.0
        %1354 = vmatpush1.msra.mxu0 0.0
        %1355 = vmatprep.subr.mxu0 0.0
        %1356 = vmatpush1.msra.mxu0 0.0
        %1357 = vmatprep.subr.mxu0 0.0
        %1358 = vmatpush1.msra.mxu0 0.0
        %1359 = vmatprep.subr.mxu0 0.0
        %1360 = vmatpush1.msra.mxu0 0.0
        %1361 = vmatprep.subr.mxu0 0.0
        %1362 = vmatpush1.msra.mxu0 0.0
        %1363 = vmatprep.subr.mxu0 0.0
        %1364 = vmatpush1.msra.mxu0 0.0
        %1365 = vmatprep.subr.mxu0 0.0
        %1366 = vmatpush1.msra.mxu0 0.0
        %1367 = vmatprep.subr.mxu0 0.0
        %1368 = vmatpush1.msra.mxu0 0.0
        %1369 = vmatprep.subr.mxu0 0.0
        %1370 = vmatpush1.msra.mxu0 0.0
        %1371 = vmatprep.subr.mxu0 0.0
        %1372 = vmatpush1.msra.mxu0 0.0
        %1373 = vmatprep.subr.mxu0 0.0
        %1374 = vmatpush1.msra.mxu0 0.0
        %1375 = vmatprep.subr.mxu0 0.0
        %1376 = vmatpush1.msra.mxu0 0.0
        %1377 = vmatprep.subr.mxu0 0.0
        %1378 = vmatpush1.msra.mxu0 0.0
        %1379 = vmatprep.subr.mxu0 0.0
        %1380 = vmatpush1.msra.mxu0 0.0
        %1381 = vmatprep.subr.mxu0 0.0
        %1382 = vmatpush1.msra.mxu0 0.0
        %1383 = vmatprep.subr.mxu0 0.0
        %1384 = vmatpush1.msra.mxu0 0.0
        %1385 = vmatprep.subr.mxu0 0.0
        %1386 = vmatpush1.msra.mxu0 0.0
        %1387 = vmatprep.subr.mxu0 0.0
        %1388 = vmatpush1.msra.mxu0 0.0
        %1389 = vmatprep.subr.mxu0 0.0
        %1390 = vmatpush1.msra.mxu0 0.0
        %1391 = vmatprep.subr.mxu0 0.0
        %1392 = vmatpush1.msra.mxu0 0.0
        %1393 = vmatprep.subr.mxu0 0.0
        %1394 = vmatpush1.msra.mxu0 0.0
        %1395 = vmatprep.subr.mxu0 0.0
        %1396 = vmatpush1.msra.mxu0 0.0
        %1397 = vmatprep.subr.mxu0 0.0
        %1398 = vmatpush1.msra.mxu0 0.0
        %1399 = vmatprep.subr.mxu0 0.0
        %1400 = vmatpush1.msra.mxu0 0.0
        %1401 = vmatprep.subr.mxu0 0.0
        %1402 = vmatpush1.msra.mxu0 0.0
        %1403 = vmatprep.subr.mxu0 0.0
        %1404 = vmatpush1.msra.mxu0 0.0
        %1405 = vmatprep.subr.mxu0 0.0
        %1406 = vmatpush1.msra.mxu0 0.0
        %1407 = vmatprep.subr.mxu0 0.0
        %1408 = vmatpush1.msra.mxu0 0.0
        %1409 = vmatprep.subr.mxu0 0.0
        %1410 = vmatpush1.msra.mxu0 0.0
        %1411 = vmatprep.subr.mxu0 0.0
        %1412 = vmatpush1.msra.mxu0 0.0
        %1413 = vmatprep.mubr.f32.mxu0 0.0
        %v1414 = vand.u32 %v1339, 4294901760
        %v1415 = vsub.f32 %v1339, %v1414
        %v1416 = vand.u32 %v1415, 4294901760
        %v1417 = vsub.f32 %v1415, %v1416
        %v1418 = vand.u32 %v1417, 4294901760
        %1419 = vmatmul.mubr.f32.gmra.mrb[0].mxu0 %v1418
        %v1420 = vpop.f32.mrb[0].mxu0
        %v1421 = vadd.f32 0.0, %v1420
        %v1422 = vpop.f32.mrb[0].mxu0
        %v1423 = vadd.f32 0.0, %v1422
        %1424 = vdwg.mxu0
        %v1425 = vand.u32 %v1345, 4294901760
        %v1426 = vsub.f32 %v1345, %v1425
        %v1427 = vand.u32 %v1426, 4294901760
        %v1428 = vsub.f32 %v1426, %v1427
        %v1429 = vand.u32 %v1428, 4294901760
        %1430 = vmatprep.subr.mxu0 %v1429
        %v1431 = vand.u32 %v1342, 4294901760
        %v1432 = vsub.f32 %v1342, %v1431
        %v1433 = vand.u32 %v1432, 4294901760
        %v1434 = vsub.f32 %v1432, %v1433
        %v1435 = vand.u32 %v1434, 4294901760
        %1436 = vmatpush1.msra.mxu0 %v1435
        %1437 = vmatprep.subr.mxu0 0.0
        %1438 = vmatpush1.msra.mxu0 0.0
        %1439 = vmatprep.subr.mxu0 0.0
        %1440 = vmatpush1.msra.mxu0 0.0
        %1441 = vmatprep.subr.mxu0 0.0
        %1442 = vmatpush1.msra.mxu0 0.0
        %1443 = vmatprep.subr.mxu0 0.0
        %1444 = vmatpush1.msra.mxu0 0.0
        %1445 = vmatprep.subr.mxu0 0.0
        %1446 = vmatpush1.msra.mxu0 0.0
        %1447 = vmatprep.subr.mxu0 0.0
        %1448 = vmatpush1.msra.mxu0 0.0
        %1449 = vmatprep.subr.mxu0 0.0
        %1450 = vmatpush1.msra.mxu0 0.0
        %1451 = vmatprep.subr.mxu0 0.0
        %1452 = vmatpush1.msra.mxu0 0.0
        %1453 = vmatprep.subr.mxu0 0.0
        %1454 = vmatpush1.msra.mxu0 0.0
        %1455 = vmatprep.subr.mxu0 0.0
        %1456 = vmatpush1.msra.mxu0 0.0
        %1457 = vmatprep.subr.mxu0 0.0
        %1458 = vmatpush1.msra.mxu0 0.0
        %1459 = vmatprep.subr.mxu0 0.0
        %1460 = vmatpush1.msra.mxu0 0.0
        %1461 = vmatprep.subr.mxu0 0.0
        %1462 = vmatpush1.msra.mxu0 0.0
        %1463 = vmatprep.subr.mxu0 0.0
        %1464 = vmatpush1.msra.mxu0 0.0
        %1465 = vmatprep.subr.mxu0 0.0
        %1466 = vmatpush1.msra.mxu0 0.0
        %1467 = vmatprep.subr.mxu0 0.0
        %1468 = vmatpush1.msra.mxu0 0.0
        %1469 = vmatprep.subr.mxu0 0.0
        %1470 = vmatpush1.msra.mxu0 0.0
        %1471 = vmatprep.subr.mxu0 0.0
        %1472 = vmatpush1.msra.mxu0 0.0
        %1473 = vmatprep.subr.mxu0 0.0
        %1474 = vmatpush1.msra.mxu0 0.0
        %1475 = vmatprep.subr.mxu0 0.0
        %1476 = vmatpush1.msra.mxu0 0.0
        %1477 = vmatprep.subr.mxu0 0.0
        %1478 = vmatpush1.msra.mxu0 0.0
        %1479 = vmatprep.subr.mxu0 0.0
        %1480 = vmatpush1.msra.mxu0 0.0
        %1481 = vmatprep.subr.mxu0 0.0
        %1482 = vmatpush1.msra.mxu0 0.0
        %1483 = vmatprep.subr.mxu0 0.0
        %1484 = vmatpush1.msra.mxu0 0.0
        %1485 = vmatprep.subr.mxu0 0.0
        %1486 = vmatpush1.msra.mxu0 0.0
        %1487 = vmatprep.subr.mxu0 0.0
        %1488 = vmatpush1.msra.mxu0 0.0
        %1489 = vmatprep.subr.mxu0 0.0
        %1490 = vmatpush1.msra.mxu0 0.0
        %1491 = vmatprep.subr.mxu0 0.0
        %1492 = vmatpush1.msra.mxu0 0.0
        %1493 = vmatprep.subr.mxu0 0.0
        %1494 = vmatpush1.msra.mxu0 0.0
        %1495 = vmatprep.subr.mxu0 0.0
        %1496 = vmatpush1.msra.mxu0 0.0
        %1497 = vmatprep.subr.mxu0 0.0
        %1498 = vmatpush1.msra.mxu0 0.0
        %1499 = vmatprep.mubr.f32.mxu0 0.0
        %v1500 = vand.u32 %v1339, 4294901760
        %1501 = vmatmul.mubr.f32.gmra.mrb[0].mxu0 %v1500
        %v1502 = vpop.f32.mrb[0].mxu0
        %v1503 = vadd.f32 %v1421, %v1502
        %v1504 = vpop.f32.mrb[0].mxu0
        %v1505 = vadd.f32 %v1423, %v1504
        %1506 = vdwg.mxu0
        %v1507 = vand.u32 %v1345, 4294901760
        %v1508 = vsub.f32 %v1345, %v1507
        %1509 = vmatprep.subr.mxu0 %v1508
        %v1510 = vand.u32 %v1342, 4294901760
        %v1511 = vsub.f32 %v1342, %v1510
        %1512 = vmatpush1.msra.mxu0 %v1511
        %1513 = vmatprep.subr.mxu0 0.0
        %1514 = vmatpush1.msra.mxu0 0.0
        %1515 = vmatprep.subr.mxu0 0.0
        %1516 = vmatpush1.msra.mxu0 0.0
        %1517 = vmatprep.subr.mxu0 0.0
        %1518 = vmatpush1.msra.mxu0 0.0
        %1519 = vmatprep.subr.mxu0 0.0
        %1520 = vmatpush1.msra.mxu0 0.0
        %1521 = vmatprep.subr.mxu0 0.0
        %1522 = vmatpush1.msra.mxu0 0.0
        %1523 = vmatprep.subr.mxu0 0.0
        %1524 = vmatpush1.msra.mxu0 0.0
        %1525 = vmatprep.subr.mxu0 0.0
        %1526 = vmatpush1.msra.mxu0 0.0
        %1527 = vmatprep.subr.mxu0 0.0
        %1528 = vmatpush1.msra.mxu0 0.0
        %1529 = vmatprep.subr.mxu0 0.0
        %1530 = vmatpush1.msra.mxu0 0.0
        %1531 = vmatprep.subr.mxu0 0.0
        %1532 = vmatpush1.msra.mxu0 0.0
        %1533 = vmatprep.subr.mxu0 0.0
        %1534 = vmatpush1.msra.mxu0 0.0
        %1535 = vmatprep.subr.mxu0 0.0
        %1536 = vmatpush1.msra.mxu0 0.0
        %1537 = vmatprep.subr.mxu0 0.0
        %1538 = vmatpush1.msra.mxu0 0.0
        %1539 = vmatprep.subr.mxu0 0.0
        %1540 = vmatpush1.msra.mxu0 0.0
        %1541 = vmatprep.subr.mxu0 0.0
        %1542 = vmatpush1.msra.mxu0 0.0
        %1543 = vmatprep.subr.mxu0 0.0
        %1544 = vmatpush1.msra.mxu0 0.0
        %1545 = vmatprep.subr.mxu0 0.0
        %1546 = vmatpush1.msra.mxu0 0.0
        %1547 = vmatprep.subr.mxu0 0.0
        %1548 = vmatpush1.msra.mxu0 0.0
        %1549 = vmatprep.subr.mxu0 0.0
        %1550 = vmatpush1.msra.mxu0 0.0
        %1551 = vmatprep.subr.mxu0 0.0
        %1552 = vmatpush1.msra.mxu0 0.0
        %1553 = vmatprep.subr.mxu0 0.0
        %1554 = vmatpush1.msra.mxu0 0.0
        %1555 = vmatprep.subr.mxu0 0.0
        %1556 = vmatpush1.msra.mxu0 0.0
        %1557 = vmatprep.subr.mxu0 0.0
        %1558 = vmatpush1.msra.mxu0 0.0
        %1559 = vmatprep.subr.mxu0 0.0
        %1560 = vmatpush1.msra.mxu0 0.0
        %1561 = vmatprep.subr.mxu0 0.0
        %1562 = vmatpush1.msra.mxu0 0.0
        %1563 = vmatprep.subr.mxu0 0.0
        %1564 = vmatpush1.msra.mxu0 0.0
        %1565 = vmatprep.subr.mxu0 0.0
        %1566 = vmatpush1.msra.mxu0 0.0
        %1567 = vmatprep.subr.mxu0 0.0
        %1568 = vmatpush1.msra.mxu0 0.0
        %1569 = vmatprep.subr.mxu0 0.0
        %1570 = vmatpush1.msra.mxu0 0.0
        %1571 = vmatprep.subr.mxu0 0.0
        %1572 = vmatpush1.msra.mxu0 0.0
        %1573 = vmatprep.subr.mxu0 0.0
        %1574 = vmatpush1.msra.mxu0 0.0
        %1575 = vmatprep.mubr.f32.mxu0 0.0
        %v1576 = vand.u32 %v1339, 4294901760
        %v1577 = vsub.f32 %v1339, %v1576
        %1578 = vmatmul.mubr.f32.gmra.mrb[0].mxu0 %v1577
        %v1579 = vpop.f32.mrb[0].mxu0
        %v1580 = vadd.f32 %v1503, %v1579
        %v1581 = vpop.f32.mrb[0].mxu0
        %v1582 = vadd.f32 %v1505, %v1581
        %1583 = vdwg.mxu0
        %v1584 = vand.u32 %v1345, 4294901760
        %1585 = vmatprep.subr.mxu0 %v1584
        %v1586 = vand.u32 %v1342, 4294901760
        %1587 = vmatpush1.msra.mxu0 %v1586
        %1588 = vmatprep.subr.mxu0 0.0
        %1589 = vmatpush1.msra.mxu0 0.0
        %1590 = vmatprep.subr.mxu0 0.0
        %1591 = vmatpush1.msra.mxu0 0.0
        %1592 = vmatprep.subr.mxu0 0.0
        %1593 = vmatpush1.msra.mxu0 0.0
        %1594 = vmatprep.subr.mxu0 0.0
        %1595 = vmatpush1.msra.mxu0 0.0
        %1596 = vmatprep.subr.mxu0 0.0
        %1597 = vmatpush1.msra.mxu0 0.0
        %1598 = vmatprep.subr.mxu0 0.0
        %1599 = vmatpush1.msra.mxu0 0.0
        %1600 = vmatprep.subr.mxu0 0.0
        %1601 = vmatpush1.msra.mxu0 0.0
        %1602 = vmatprep.subr.mxu0 0.0
        %1603 = vmatpush1.msra.mxu0 0.0
        %1604 = vmatprep.subr.mxu0 0.0
        %1605 = vmatpush1.msra.mxu0 0.0
        %1606 = vmatprep.subr.mxu0 0.0
        %1607 = vmatpush1.msra.mxu0 0.0
        %1608 = vmatprep.subr.mxu0 0.0
        %1609 = vmatpush1.msra.mxu0 0.0
        %1610 = vmatprep.subr.mxu0 0.0
        %1611 = vmatpush1.msra.mxu0 0.0
        %1612 = vmatprep.subr.mxu0 0.0
        %1613 = vmatpush1.msra.mxu0 0.0
        %1614 = vmatprep.subr.mxu0 0.0
        %1615 = vmatpush1.msra.mxu0 0.0
        %1616 = vmatprep.subr.mxu0 0.0
        %1617 = vmatpush1.msra.mxu0 0.0
        %1618 = vmatprep.subr.mxu0 0.0
        %1619 = vmatpush1.msra.mxu0 0.0
        %1620 = vmatprep.subr.mxu0 0.0
        %1621 = vmatpush1.msra.mxu0 0.0
        %1622 = vmatprep.subr.mxu0 0.0
        %1623 = vmatpush1.msra.mxu0 0.0
        %1624 = vmatprep.subr.mxu0 0.0
        %1625 = vmatpush1.msra.mxu0 0.0
        %1626 = vmatprep.subr.mxu0 0.0
        %1627 = vmatpush1.msra.mxu0 0.0
        %1628 = vmatprep.subr.mxu0 0.0
        %1629 = vmatpush1.msra.mxu0 0.0
        %1630 = vmatprep.subr.mxu0 0.0
        %1631 = vmatpush1.msra.mxu0 0.0
        %1632 = vmatprep.subr.mxu0 0.0
        %1633 = vmatpush1.msra.mxu0 0.0
        %1634 = vmatprep.subr.mxu0 0.0
        %1635 = vmatpush1.msra.mxu0 0.0
        %1636 = vmatprep.subr.mxu0 0.0
        %1637 = vmatpush1.msra.mxu0 0.0
        %1638 = vmatprep.subr.mxu0 0.0
        %1639 = vmatpush1.msra.mxu0 0.0
        %1640 = vmatprep.subr.mxu0 0.0
        %1641 = vmatpush1.msra.mxu0 0.0
        %1642 = vmatprep.subr.mxu0 0.0
        %1643 = vmatpush1.msra.mxu0 0.0
        %1644 = vmatprep.subr.mxu0 0.0
        %1645 = vmatpush1.msra.mxu0 0.0
        %1646 = vmatprep.subr.mxu0 0.0
        %1647 = vmatpush1.msra.mxu0 0.0
        %1648 = vmatprep.subr.mxu0 0.0
        %1649 = vmatpush1.msra.mxu0 0.0
        %1650 = vmatprep.mubr.f32.mxu0 0.0
        %v1651 = vand.u32 %v1339, 4294901760
        %v1652 = vsub.f32 %v1339, %v1651
        %v1653 = vand.u32 %v1652, 4294901760
        %1654 = vmatmul.mubr.f32.gmra.mrb[0].mxu0 %v1653
        %v1655 = vpop.f32.mrb[0].mxu0
        %v1656 = vadd.f32 %v1580, %v1655
        %v1657 = vpop.f32.mrb[0].mxu0
        %v1658 = vadd.f32 %v1582, %v1657
        %1659 = vdwg.mxu0
        %v1660 = vand.u32 %v1345, 4294901760
        %v1661 = vsub.f32 %v1345, %v1660
        %v1662 = vand.u32 %v1661, 4294901760
        %1663 = vmatprep.subr.mxu0 %v1662
        %v1664 = vand.u32 %v1342, 4294901760
        %v1665 = vsub.f32 %v1342, %v1664
        %v1666 = vand.u32 %v1665, 4294901760
        %1667 = vmatpush1.msra.mxu0 %v1666
        %1668 = vmatprep.subr.mxu0 0.0
        %1669 = vmatpush1.msra.mxu0 0.0
        %1670 = vmatprep.subr.mxu0 0.0
        %1671 = vmatpush1.msra.mxu0 0.0
        %1672 = vmatprep.subr.mxu0 0.0
        %1673 = vmatpush1.msra.mxu0 0.0
        %1674 = vmatprep.subr.mxu0 0.0
        %1675 = vmatpush1.msra.mxu0 0.0
        %1676 = vmatprep.subr.mxu0 0.0
        %1677 = vmatpush1.msra.mxu0 0.0
        %1678 = vmatprep.subr.mxu0 0.0
        %1679 = vmatpush1.msra.mxu0 0.0
        %1680 = vmatprep.subr.mxu0 0.0
        %1681 = vmatpush1.msra.mxu0 0.0
        %1682 = vmatprep.subr.mxu0 0.0
        %1683 = vmatpush1.msra.mxu0 0.0
        %1684 = vmatprep.subr.mxu0 0.0
        %1685 = vmatpush1.msra.mxu0 0.0
        %1686 = vmatprep.subr.mxu0 0.0
        %1687 = vmatpush1.msra.mxu0 0.0
        %1688 = vmatprep.subr.mxu0 0.0
        %1689 = vmatpush1.msra.mxu0 0.0
        %1690 = vmatprep.subr.mxu0 0.0
        %1691 = vmatpush1.msra.mxu0 0.0
        %1692 = vmatprep.subr.mxu0 0.0
        %1693 = vmatpush1.msra.mxu0 0.0
        %1694 = vmatprep.subr.mxu0 0.0
        %1695 = vmatpush1.msra.mxu0 0.0
        %1696 = vmatprep.subr.mxu0 0.0
        %1697 = vmatpush1.msra.mxu0 0.0
        %1698 = vmatprep.subr.mxu0 0.0
        %1699 = vmatpush1.msra.mxu0 0.0
        %1700 = vmatprep.subr.mxu0 0.0
        %1701 = vmatpush1.msra.mxu0 0.0
        %1702 = vmatprep.subr.mxu0 0.0
        %1703 = vmatpush1.msra.mxu0 0.0
        %1704 = vmatprep.subr.mxu0 0.0
        %1705 = vmatpush1.msra.mxu0 0.0
        %1706 = vmatprep.subr.mxu0 0.0
        %1707 = vmatpush1.msra.mxu0 0.0
        %1708 = vmatprep.subr.mxu0 0.0
        %1709 = vmatpush1.msra.mxu0 0.0
        %1710 = vmatprep.subr.mxu0 0.0
        %1711 = vmatpush1.msra.mxu0 0.0
        %1712 = vmatprep.subr.mxu0 0.0
        %1713 = vmatpush1.msra.mxu0 0.0
        %1714 = vmatprep.subr.mxu0 0.0
        %1715 = vmatpush1.msra.mxu0 0.0
        %1716 = vmatprep.subr.mxu0 0.0
        %1717 = vmatpush1.msra.mxu0 0.0
        %1718 = vmatprep.subr.mxu0 0.0
        %1719 = vmatpush1.msra.mxu0 0.0
        %1720 = vmatprep.subr.mxu0 0.0
        %1721 = vmatpush1.msra.mxu0 0.0
        %1722 = vmatprep.subr.mxu0 0.0
        %1723 = vmatpush1.msra.mxu0 0.0
        %1724 = vmatprep.subr.mxu0 0.0
        %1725 = vmatpush1.msra.mxu0 0.0
        %1726 = vmatprep.subr.mxu0 0.0
        %1727 = vmatpush1.msra.mxu0 0.0
        %1728 = vmatprep.subr.mxu0 0.0
        %1729 = vmatpush1.msra.mxu0 0.0
        %1730 = vmatprep.mubr.f32.mxu0 0.0
        %v1731 = vand.u32 %v1339, 4294901760
        %1732 = vmatmul.mubr.f32.gmra.mrb[0].mxu0 %v1731
        %v1733 = vpop.f32.mrb[0].mxu0
        %v1734 = vadd.f32 %v1656, %v1733
        %v1735 = vpop.f32.mrb[0].mxu0
        %v1736 = vadd.f32 %v1658, %v1735
        %1737 = vdwg.mxu0
        %v1738 = vand.u32 %v1345, 4294901760
        %1739 = vmatprep.subr.mxu0 %v1738
        %v1740 = vand.u32 %v1342, 4294901760
        %1741 = vmatpush1.msra.mxu0 %v1740
        %1742 = vmatprep.subr.mxu0 0.0
        %1743 = vmatpush1.msra.mxu0 0.0
        %1744 = vmatprep.subr.mxu0 0.0
        %1745 = vmatpush1.msra.mxu0 0.0
        %1746 = vmatprep.subr.mxu0 0.0
        %1747 = vmatpush1.msra.mxu0 0.0
        %1748 = vmatprep.subr.mxu0 0.0
        %1749 = vmatpush1.msra.mxu0 0.0
        %1750 = vmatprep.subr.mxu0 0.0
        %1751 = vmatpush1.msra.mxu0 0.0
        %1752 = vmatprep.subr.mxu0 0.0
        %1753 = vmatpush1.msra.mxu0 0.0
        %1754 = vmatprep.subr.mxu0 0.0
        %1755 = vmatpush1.msra.mxu0 0.0
        %1756 = vmatprep.subr.mxu0 0.0
        %1757 = vmatpush1.msra.mxu0 0.0
        %1758 = vmatprep.subr.mxu0 0.0
        %1759 = vmatpush1.msra.mxu0 0.0
        %1760 = vmatprep.subr.mxu0 0.0
        %1761 = vmatpush1.msra.mxu0 0.0
        %1762 = vmatprep.subr.mxu0 0.0
        %1763 = vmatpush1.msra.mxu0 0.0
        %1764 = vmatprep.subr.mxu0 0.0
        %1765 = vmatpush1.msra.mxu0 0.0
        %1766 = vmatprep.subr.mxu0 0.0
        %1767 = vmatpush1.msra.mxu0 0.0
        %1768 = vmatprep.subr.mxu0 0.0
        %1769 = vmatpush1.msra.mxu0 0.0
        %1770 = vmatprep.subr.mxu0 0.0
        %1771 = vmatpush1.msra.mxu0 0.0
        %1772 = vmatprep.subr.mxu0 0.0
        %1773 = vmatpush1.msra.mxu0 0.0
        %1774 = vmatprep.subr.mxu0 0.0
        %1775 = vmatpush1.msra.mxu0 0.0
        %1776 = vmatprep.subr.mxu0 0.0
        %1777 = vmatpush1.msra.mxu0 0.0
        %1778 = vmatprep.subr.mxu0 0.0
        %1779 = vmatpush1.msra.mxu0 0.0
        %1780 = vmatprep.subr.mxu0 0.0
        %1781 = vmatpush1.msra.mxu0 0.0
        %1782 = vmatprep.subr.mxu0 0.0
        %1783 = vmatpush1.msra.mxu0 0.0
        %1784 = vmatprep.subr.mxu0 0.0
        %1785 = vmatpush1.msra.mxu0 0.0
        %1786 = vmatprep.subr.mxu0 0.0
        %1787 = vmatpush1.msra.mxu0 0.0
        %1788 = vmatprep.subr.mxu0 0.0
        %1789 = vmatpush1.msra.mxu0 0.0
        %1790 = vmatprep.subr.mxu0 0.0
        %1791 = vmatpush1.msra.mxu0 0.0
        %1792 = vmatprep.subr.mxu0 0.0
        %1793 = vmatpush1.msra.mxu0 0.0
        %1794 = vmatprep.subr.mxu0 0.0
        %1795 = vmatpush1.msra.mxu0 0.0
        %1796 = vmatprep.subr.mxu0 0.0
        %1797 = vmatpush1.msra.mxu0 0.0
        %1798 = vmatprep.subr.mxu0 0.0
        %1799 = vmatpush1.msra.mxu0 0.0
        %1800 = vmatprep.subr.mxu0 0.0
        %1801 = vmatpush1.msra.mxu0 0.0
        %1802 = vmatprep.subr.mxu0 0.0
        %1803 = vmatpush1.msra.mxu0 0.0
        %1804 = vmatprep.mubr.f32.mxu0 0.0
        %v1805 = vand.u32 %v1339, 4294901760
        %1806 = vmatmul.mubr.f32.gmra.mrb[0].mxu0 %v1805
        %v1807 = vpop.f32.mrb[0].mxu0
        %v1808 = vadd.f32 %v1734, %v1807
        %v1809 = vpop.f32.mrb[0].mxu0
        %v1810 = vadd.f32 %v1736, %v1809
        %1811 = vdwg.mxu0
        %v1812 = vadd.f32 %v1336, %v1808
        %v1813 = vadd.f32 %v1337, %v1810
        %v1814 = vmax.f32 %v1812, 0.0
        %v1815 = vmax.f32 %v1813, 0.0
        %s1816 = scalar_lea.vmem %s4, %s313
        %v1817 = vld [vmem:[%s1816] sm:$0xff]
        %v1818 = vld [vmem:[%s1816 + $0x8] sm:$0xff]
        %v1819 = vld [vmem:[%s1816 + $0x10] sm:$0xff]
        %s1820 = scalar_lea.vmem %s5, %s318
        %v1821 = vld [vmem:[%s1820] sm:$0xff]
        %1822 = vrot.lane.b32.xlu0 %v1814, 1
        %v1823 = vpop.permute.xlu0 %1822
        %1824 = vrot.lane.b32.xlu0 %v1815, 1
        %v1825 = vpop.permute.xlu0 %1824
        %v1826 = vsel %vm330, %v1823, %v1825
        %v1827 = vsel %vm330, %v1825, %v1823
        %v1828 = vmul.f32 %v1827, %v347
        %v1829 = vmul.f32 %v1826, %v351
        %1830 = vrot.lane.b32.xlu0 %v1814, 127
        %v1831 = vpop.permute.xlu0 %1830
        %1832 = vrot.lane.b32.xlu0 %v1815, 127
        %v1833 = vpop.permute.xlu0 %1832
        %v1834 = vsel %vm358, %v1831, %v1833
        %v1835 = vsel %vm358, %v1833, %v1831
        %v1836 = vmul.f32 %v1834, %v374
        %v1837 = vmul.f32 %v1835, %v378
        %vm1838 = vcmask 64512
        %v1840 = vsel %vm1838, %v1817, 0
        %v1842 = vand.u32 %v1829, 4294901760
        %1843 = vmatprep.subr.mxu0 %v1842
        %v1844 = vand.u32 %v1828, 4294901760
        %1845 = vmatpush1.msra.mxu0 %v1844
        %1846 = vmatprep.subr.mxu0 0.0
        %1847 = vmatpush1.msra.mxu0 0.0
        %1848 = vmatprep.subr.mxu0 0.0
        %1849 = vmatpush1.msra.mxu0 0.0
        %1850 = vmatprep.subr.mxu0 0.0
        %1851 = vmatpush1.msra.mxu0 0.0
        %1852 = vmatprep.subr.mxu0 0.0
        %1853 = vmatpush1.msra.mxu0 0.0
        %1854 = vmatprep.subr.mxu0 0.0
        %1855 = vmatpush1.msra.mxu0 0.0
        %1856 = vmatprep.subr.mxu0 0.0
        %1857 = vmatpush1.msra.mxu0 0.0
        %1858 = vmatprep.subr.mxu0 0.0
        %1859 = vmatpush1.msra.mxu0 0.0
        %1860 = vmatprep.subr.mxu0 0.0
        %1861 = vmatpush1.msra.mxu0 0.0
        %1862 = vmatprep.subr.mxu0 0.0
        %1863 = vmatpush1.msra.mxu0 0.0
        %1864 = vmatprep.subr.mxu0 0.0
        %1865 = vmatpush1.msra.mxu0 0.0
        %1866 = vmatprep.subr.mxu0 0.0
        %1867 = vmatpush1.msra.mxu0 0.0
        %1868 = vmatprep.subr.mxu0 0.0
        %1869 = vmatpush1.msra.mxu0 0.0
        %1870 = vmatprep.subr.mxu0 0.0
        %1871 = vmatpush1.msra.mxu0 0.0
        %1872 = vmatprep.subr.mxu0 0.0
        %1873 = vmatpush1.msra.mxu0 0.0
        %1874 = vmatprep.subr.mxu0 0.0
        %1875 = vmatpush1.msra.mxu0 0.0
        %1876 = vmatprep.subr.mxu0 0.0
        %1877 = vmatpush1.msra.mxu0 0.0
        %1878 = vmatprep.subr.mxu0 0.0
        %1879 = vmatpush1.msra.mxu0 0.0
        %1880 = vmatprep.subr.mxu0 0.0
        %1881 = vmatpush1.msra.mxu0 0.0
        %1882 = vmatprep.subr.mxu0 0.0
        %1883 = vmatpush1.msra.mxu0 0.0
        %1884 = vmatprep.subr.mxu0 0.0
        %1885 = vmatpush1.msra.mxu0 0.0
        %1886 = vmatprep.subr.mxu0 0.0
        %1887 = vmatpush1.msra.mxu0 0.0
        %1888 = vmatprep.subr.mxu0 0.0
        %1889 = vmatpush1.msra.mxu0 0.0
        %1890 = vmatprep.subr.mxu0 0.0
        %1891 = vmatpush1.msra.mxu0 0.0
        %1892 = vmatprep.subr.mxu0 0.0
        %1893 = vmatpush1.msra.mxu0 0.0
        %1894 = vmatprep.subr.mxu0 0.0
        %1895 = vmatpush1.msra.mxu0 0.0
        %1896 = vmatprep.subr.mxu0 0.0
        %1897 = vmatpush1.msra.mxu0 0.0
        %1898 = vmatprep.subr.mxu0 0.0
        %1899 = vmatpush1.msra.mxu0 0.0
        %1900 = vmatprep.subr.mxu0 0.0
        %1901 = vmatpush1.msra.mxu0 0.0
        %1902 = vmatprep.subr.mxu0 0.0
        %1903 = vmatpush1.msra.mxu0 0.0
        %1904 = vmatprep.subr.mxu0 0.0
        %1905 = vmatpush1.msra.mxu0 0.0
        %1906 = vmatprep.subr.mxu0 0.0
        %1907 = vmatpush1.msra.mxu0 0.0
        %1908 = vmatprep.mubr.f32.mxu0 0.0
        %v1909 = vand.u32 %v1840, 4294901760
        %v1910 = vsub.f32 %v1840, %v1909
        %v1911 = vand.u32 %v1910, 4294901760
        %v1912 = vsub.f32 %v1910, %v1911
        %v1913 = vand.u32 %v1912, 4294901760
        %1914 = vmatmul.mubr.f32.gmra.mrb[0].mxu0 %v1913
        %v1915 = vpop.f32.mrb[0].mxu0
        %v1916 = vadd.f32 0.0, %v1915
        %v1917 = vpop.f32.mrb[0].mxu0
        %v1918 = vadd.f32 0.0, %v1917
        %1919 = vdwg.mxu0
        %v1920 = vand.u32 %v1829, 4294901760
        %v1921 = vsub.f32 %v1829, %v1920
        %v1922 = vand.u32 %v1921, 4294901760
        %v1923 = vsub.f32 %v1921, %v1922
        %v1924 = vand.u32 %v1923, 4294901760
        %1925 = vmatprep.subr.mxu0 %v1924
        %v1926 = vand.u32 %v1828, 4294901760
        %v1927 = vsub.f32 %v1828, %v1926
        %v1928 = vand.u32 %v1927, 4294901760
        %v1929 = vsub.f32 %v1927, %v1928
        %v1930 = vand.u32 %v1929, 4294901760
        %1931 = vmatpush1.msra.mxu0 %v1930
        %1932 = vmatprep.subr.mxu0 0.0
        %1933 = vmatpush1.msra.mxu0 0.0
        %1934 = vmatprep.subr.mxu0 0.0
        %1935 = vmatpush1.msra.mxu0 0.0
        %1936 = vmatprep.subr.mxu0 0.0
        %1937 = vmatpush1.msra.mxu0 0.0
        %1938 = vmatprep.subr.mxu0 0.0
        %1939 = vmatpush1.msra.mxu0 0.0
        %1940 = vmatprep.subr.mxu0 0.0
        %1941 = vmatpush1.msra.mxu0 0.0
        %1942 = vmatprep.subr.mxu0 0.0
        %1943 = vmatpush1.msra.mxu0 0.0
        %1944 = vmatprep.subr.mxu0 0.0
        %1945 = vmatpush1.msra.mxu0 0.0
        %1946 = vmatprep.subr.mxu0 0.0
        %1947 = vmatpush1.msra.mxu0 0.0
        %1948 = vmatprep.subr.mxu0 0.0
        %1949 = vmatpush1.msra.mxu0 0.0
        %1950 = vmatprep.subr.mxu0 0.0
        %1951 = vmatpush1.msra.mxu0 0.0
        %1952 = vmatprep.subr.mxu0 0.0
        %1953 = vmatpush1.msra.mxu0 0.0
        %1954 = vmatprep.subr.mxu0 0.0
        %1955 = vmatpush1.msra.mxu0 0.0
        %1956 = vmatprep.subr.mxu0 0.0
        %1957 = vmatpush1.msra.mxu0 0.0
        %1958 = vmatprep.subr.mxu0 0.0
        %1959 = vmatpush1.msra.mxu0 0.0
        %1960 = vmatprep.subr.mxu0 0.0
        %1961 = vmatpush1.msra.mxu0 0.0
        %1962 = vmatprep.subr.mxu0 0.0
        %1963 = vmatpush1.msra.mxu0 0.0
        %1964 = vmatprep.subr.mxu0 0.0
        %1965 = vmatpush1.msra.mxu0 0.0
        %1966 = vmatprep.subr.mxu0 0.0
        %1967 = vmatpush1.msra.mxu0 0.0
        %1968 = vmatprep.subr.mxu0 0.0
        %1969 = vmatpush1.msra.mxu0 0.0
        %1970 = vmatprep.subr.mxu0 0.0
        %1971 = vmatpush1.msra.mxu0 0.0
        %1972 = vmatprep.subr.mxu0 0.0
        %1973 = vmatpush1.msra.mxu0 0.0
        %1974 = vmatprep.subr.mxu0 0.0
        %1975 = vmatpush1.msra.mxu0 0.0
        %1976 = vmatprep.subr.mxu0 0.0
        %1977 = vmatpush1.msra.mxu0 0.0
        %1978 = vmatprep.subr.mxu0 0.0
        %1979 = vmatpush1.msra.mxu0 0.0
        %1980 = vmatprep.subr.mxu0 0.0
        %1981 = vmatpush1.msra.mxu0 0.0
        %1982 = vmatprep.subr.mxu0 0.0
        %1983 = vmatpush1.msra.mxu0 0.0
        %1984 = vmatprep.subr.mxu0 0.0
        %1985 = vmatpush1.msra.mxu0 0.0
        %1986 = vmatprep.subr.mxu0 0.0
        %1987 = vmatpush1.msra.mxu0 0.0
        %1988 = vmatprep.subr.mxu0 0.0
        %1989 = vmatpush1.msra.mxu0 0.0
        %1990 = vmatprep.subr.mxu0 0.0
        %1991 = vmatpush1.msra.mxu0 0.0
        %1992 = vmatprep.subr.mxu0 0.0
        %1993 = vmatpush1.msra.mxu0 0.0
        %1994 = vmatprep.mubr.f32.mxu0 0.0
        %v1995 = vand.u32 %v1840, 4294901760
        %1996 = vmatmul.mubr.f32.gmra.mrb[0].mxu0 %v1995
        %v1997 = vpop.f32.mrb[0].mxu0
        %v1998 = vadd.f32 %v1916, %v1997
        %v1999 = vpop.f32.mrb[0].mxu0
        %v2000 = vadd.f32 %v1918, %v1999
        %2001 = vdwg.mxu0
        %v2002 = vand.u32 %v1829, 4294901760
        %v2003 = vsub.f32 %v1829, %v2002
        %2004 = vmatprep.subr.mxu0 %v2003
        %v2005 = vand.u32 %v1828, 4294901760
        %v2006 = vsub.f32 %v1828, %v2005
        %2007 = vmatpush1.msra.mxu0 %v2006
        %2008 = vmatprep.subr.mxu0 0.0
        %2009 = vmatpush1.msra.mxu0 0.0
        %2010 = vmatprep.subr.mxu0 0.0
        %2011 = vmatpush1.msra.mxu0 0.0
        %2012 = vmatprep.subr.mxu0 0.0
        %2013 = vmatpush1.msra.mxu0 0.0
        %2014 = vmatprep.subr.mxu0 0.0
        %2015 = vmatpush1.msra.mxu0 0.0
        %2016 = vmatprep.subr.mxu0 0.0
        %2017 = vmatpush1.msra.mxu0 0.0
        %2018 = vmatprep.subr.mxu0 0.0
        %2019 = vmatpush1.msra.mxu0 0.0
        %2020 = vmatprep.subr.mxu0 0.0
        %2021 = vmatpush1.msra.mxu0 0.0
        %2022 = vmatprep.subr.mxu0 0.0
        %2023 = vmatpush1.msra.mxu0 0.0
        %2024 = vmatprep.subr.mxu0 0.0
        %2025 = vmatpush1.msra.mxu0 0.0
        %2026 = vmatprep.subr.mxu0 0.0
        %2027 = vmatpush1.msra.mxu0 0.0
        %2028 = vmatprep.subr.mxu0 0.0
        %2029 = vmatpush1.msra.mxu0 0.0
        %2030 = vmatprep.subr.mxu0 0.0
        %2031 = vmatpush1.msra.mxu0 0.0
        %2032 = vmatprep.subr.mxu0 0.0
        %2033 = vmatpush1.msra.mxu0 0.0
        %2034 = vmatprep.subr.mxu0 0.0
        %2035 = vmatpush1.msra.mxu0 0.0
        %2036 = vmatprep.subr.mxu0 0.0
        %2037 = vmatpush1.msra.mxu0 0.0
        %2038 = vmatprep.subr.mxu0 0.0
        %2039 = vmatpush1.msra.mxu0 0.0
        %2040 = vmatprep.subr.mxu0 0.0
        %2041 = vmatpush1.msra.mxu0 0.0
        %2042 = vmatprep.subr.mxu0 0.0
        %2043 = vmatpush1.msra.mxu0 0.0
        %2044 = vmatprep.subr.mxu0 0.0
        %2045 = vmatpush1.msra.mxu0 0.0
        %2046 = vmatprep.subr.mxu0 0.0
        %2047 = vmatpush1.msra.mxu0 0.0
        %2048 = vmatprep.subr.mxu0 0.0
        %2049 = vmatpush1.msra.mxu0 0.0
        %2050 = vmatprep.subr.mxu0 0.0
        %2051 = vmatpush1.msra.mxu0 0.0
        %2052 = vmatprep.subr.mxu0 0.0
        %2053 = vmatpush1.msra.mxu0 0.0
        %2054 = vmatprep.subr.mxu0 0.0
        %2055 = vmatpush1.msra.mxu0 0.0
        %2056 = vmatprep.subr.mxu0 0.0
        %2057 = vmatpush1.msra.mxu0 0.0
        %2058 = vmatprep.subr.mxu0 0.0
        %2059 = vmatpush1.msra.mxu0 0.0
        %2060 = vmatprep.subr.mxu0 0.0
        %2061 = vmatpush1.msra.mxu0 0.0
        %2062 = vmatprep.subr.mxu0 0.0
        %2063 = vmatpush1.msra.mxu0 0.0
        %2064 = vmatprep.subr.mxu0 0.0
        %2065 = vmatpush1.msra.mxu0 0.0
        %2066 = vmatprep.subr.mxu0 0.0
        %2067 = vmatpush1.msra.mxu0 0.0
        %2068 = vmatprep.subr.mxu0 0.0
        %2069 = vmatpush1.msra.mxu0 0.0
        %2070 = vmatprep.mubr.f32.mxu0 0.0
        %v2071 = vand.u32 %v1840, 4294901760
        %v2072 = vsub.f32 %v1840, %v2071
        %2073 = vmatmul.mubr.f32.gmra.mrb[0].mxu0 %v2072
        %v2074 = vpop.f32.mrb[0].mxu0
        %v2075 = vadd.f32 %v1998, %v2074
        %v2076 = vpop.f32.mrb[0].mxu0
        %v2077 = vadd.f32 %v2000, %v2076
        %2078 = vdwg.mxu0
        %v2079 = vand.u32 %v1829, 4294901760
        %2080 = vmatprep.subr.mxu0 %v2079
        %v2081 = vand.u32 %v1828, 4294901760
        %2082 = vmatpush1.msra.mxu0 %v2081
        %2083 = vmatprep.subr.mxu0 0.0
        %2084 = vmatpush1.msra.mxu0 0.0
        %2085 = vmatprep.subr.mxu0 0.0
        %2086 = vmatpush1.msra.mxu0 0.0
        %2087 = vmatprep.subr.mxu0 0.0
        %2088 = vmatpush1.msra.mxu0 0.0
        %2089 = vmatprep.subr.mxu0 0.0
        %2090 = vmatpush1.msra.mxu0 0.0
        %2091 = vmatprep.subr.mxu0 0.0
        %2092 = vmatpush1.msra.mxu0 0.0
        %2093 = vmatprep.subr.mxu0 0.0
        %2094 = vmatpush1.msra.mxu0 0.0
        %2095 = vmatprep.subr.mxu0 0.0
        %2096 = vmatpush1.msra.mxu0 0.0
        %2097 = vmatprep.subr.mxu0 0.0
        %2098 = vmatpush1.msra.mxu0 0.0
        %2099 = vmatprep.subr.mxu0 0.0
        %2100 = vmatpush1.msra.mxu0 0.0
        %2101 = vmatprep.subr.mxu0 0.0
        %2102 = vmatpush1.msra.mxu0 0.0
        %2103 = vmatprep.subr.mxu0 0.0
        %2104 = vmatpush1.msra.mxu0 0.0
        %2105 = vmatprep.subr.mxu0 0.0
        %2106 = vmatpush1.msra.mxu0 0.0
        %2107 = vmatprep.subr.mxu0 0.0
        %2108 = vmatpush1.msra.mxu0 0.0
        %2109 = vmatprep.subr.mxu0 0.0
        %2110 = vmatpush1.msra.mxu0 0.0
        %2111 = vmatprep.subr.mxu0 0.0
        %2112 = vmatpush1.msra.mxu0 0.0
        %2113 = vmatprep.subr.mxu0 0.0
        %2114 = vmatpush1.msra.mxu0 0.0
        %2115 = vmatprep.subr.mxu0 0.0
        %2116 = vmatpush1.msra.mxu0 0.0
        %2117 = vmatprep.subr.mxu0 0.0
        %2118 = vmatpush1.msra.mxu0 0.0
        %2119 = vmatprep.subr.mxu0 0.0
        %2120 = vmatpush1.msra.mxu0 0.0
        %2121 = vmatprep.subr.mxu0 0.0
        %2122 = vmatpush1.msra.mxu0 0.0
        %2123 = vmatprep.subr.mxu0 0.0
        %2124 = vmatpush1.msra.mxu0 0.0
        %2125 = vmatprep.subr.mxu0 0.0
        %2126 = vmatpush1.msra.mxu0 0.0
        %2127 = vmatprep.subr.mxu0 0.0
        %2128 = vmatpush1.msra.mxu0 0.0
        %2129 = vmatprep.subr.mxu0 0.0
        %2130 = vmatpush1.msra.mxu0 0.0
        %2131 = vmatprep.subr.mxu0 0.0
        %2132 = vmatpush1.msra.mxu0 0.0
        %2133 = vmatprep.subr.mxu0 0.0
        %2134 = vmatpush1.msra.mxu0 0.0
        %2135 = vmatprep.subr.mxu0 0.0
        %2136 = vmatpush1.msra.mxu0 0.0
        %2137 = vmatprep.subr.mxu0 0.0
        %2138 = vmatpush1.msra.mxu0 0.0
        %2139 = vmatprep.subr.mxu0 0.0
        %2140 = vmatpush1.msra.mxu0 0.0
        %2141 = vmatprep.subr.mxu0 0.0
        %2142 = vmatpush1.msra.mxu0 0.0
        %2143 = vmatprep.subr.mxu0 0.0
        %2144 = vmatpush1.msra.mxu0 0.0
        %2145 = vmatprep.mubr.f32.mxu0 0.0
        %v2146 = vand.u32 %v1840, 4294901760
        %v2147 = vsub.f32 %v1840, %v2146
        %v2148 = vand.u32 %v2147, 4294901760
        %2149 = vmatmul.mubr.f32.gmra.mrb[0].mxu0 %v2148
        %v2150 = vpop.f32.mrb[0].mxu0
        %v2151 = vadd.f32 %v2075, %v2150
        %v2152 = vpop.f32.mrb[0].mxu0
        %v2153 = vadd.f32 %v2077, %v2152
        %2154 = vdwg.mxu0
        %v2155 = vand.u32 %v1829, 4294901760
        %v2156 = vsub.f32 %v1829, %v2155
        %v2157 = vand.u32 %v2156, 4294901760
        %2158 = vmatprep.subr.mxu0 %v2157
        %v2159 = vand.u32 %v1828, 4294901760
        %v2160 = vsub.f32 %v1828, %v2159
        %v2161 = vand.u32 %v2160, 4294901760
        %2162 = vmatpush1.msra.mxu0 %v2161
        %2163 = vmatprep.subr.mxu0 0.0
        %2164 = vmatpush1.msra.mxu0 0.0
        %2165 = vmatprep.subr.mxu0 0.0
        %2166 = vmatpush1.msra.mxu0 0.0
        %2167 = vmatprep.subr.mxu0 0.0
        %2168 = vmatpush1.msra.mxu0 0.0
        %2169 = vmatprep.subr.mxu0 0.0
        %2170 = vmatpush1.msra.mxu0 0.0
        %2171 = vmatprep.subr.mxu0 0.0
        %2172 = vmatpush1.msra.mxu0 0.0
        %2173 = vmatprep.subr.mxu0 0.0
        %2174 = vmatpush1.msra.mxu0 0.0
        %2175 = vmatprep.subr.mxu0 0.0
        %2176 = vmatpush1.msra.mxu0 0.0
        %2177 = vmatprep.subr.mxu0 0.0
        %2178 = vmatpush1.msra.mxu0 0.0
        %2179 = vmatprep.subr.mxu0 0.0
        %2180 = vmatpush1.msra.mxu0 0.0
        %2181 = vmatprep.subr.mxu0 0.0
        %2182 = vmatpush1.msra.mxu0 0.0
        %2183 = vmatprep.subr.mxu0 0.0
        %2184 = vmatpush1.msra.mxu0 0.0
        %2185 = vmatprep.subr.mxu0 0.0
        %2186 = vmatpush1.msra.mxu0 0.0
        %2187 = vmatprep.subr.mxu0 0.0
        %2188 = vmatpush1.msra.mxu0 0.0
        %2189 = vmatprep.subr.mxu0 0.0
        %2190 = vmatpush1.msra.mxu0 0.0
        %2191 = vmatprep.subr.mxu0 0.0
        %2192 = vmatpush1.msra.mxu0 0.0
        %2193 = vmatprep.subr.mxu0 0.0
        %2194 = vmatpush1.msra.mxu0 0.0
        %2195 = vmatprep.subr.mxu0 0.0
        %2196 = vmatpush1.msra.mxu0 0.0
        %2197 = vmatprep.subr.mxu0 0.0
        %2198 = vmatpush1.msra.mxu0 0.0
        %2199 = vmatprep.subr.mxu0 0.0
        %2200 = vmatpush1.msra.mxu0 0.0
        %2201 = vmatprep.subr.mxu0 0.0
        %2202 = vmatpush1.msra.mxu0 0.0
        %2203 = vmatprep.subr.mxu0 0.0
        %2204 = vmatpush1.msra.mxu0 0.0
        %2205 = vmatprep.subr.mxu0 0.0
        %2206 = vmatpush1.msra.mxu0 0.0
        %2207 = vmatprep.subr.mxu0 0.0
        %2208 = vmatpush1.msra.mxu0 0.0
        %2209 = vmatprep.subr.mxu0 0.0
        %2210 = vmatpush1.msra.mxu0 0.0
        %2211 = vmatprep.subr.mxu0 0.0
        %2212 = vmatpush1.msra.mxu0 0.0
        %2213 = vmatprep.subr.mxu0 0.0
        %2214 = vmatpush1.msra.mxu0 0.0
        %2215 = vmatprep.subr.mxu0 0.0
        %2216 = vmatpush1.msra.mxu0 0.0
        %2217 = vmatprep.subr.mxu0 0.0
        %2218 = vmatpush1.msra.mxu0 0.0
        %2219 = vmatprep.subr.mxu0 0.0
        %2220 = vmatpush1.msra.mxu0 0.0
        %2221 = vmatprep.subr.mxu0 0.0
        %2222 = vmatpush1.msra.mxu0 0.0
        %2223 = vmatprep.subr.mxu0 0.0
        %2224 = vmatpush1.msra.mxu0 0.0
        %2225 = vmatprep.mubr.f32.mxu0 0.0
        %v2226 = vand.u32 %v1840, 4294901760
        %2227 = vmatmul.mubr.f32.gmra.mrb[0].mxu0 %v2226
        %v2228 = vpop.f32.mrb[0].mxu0
        %v2229 = vadd.f32 %v2151, %v2228
        %v2230 = vpop.f32.mrb[0].mxu0
        %v2231 = vadd.f32 %v2153, %v2230
        %2232 = vdwg.mxu0
        %v2233 = vand.u32 %v1829, 4294901760
        %2234 = vmatprep.subr.mxu0 %v2233
        %v2235 = vand.u32 %v1828, 4294901760
        %2236 = vmatpush1.msra.mxu0 %v2235
        %2237 = vmatprep.subr.mxu0 0.0
        %2238 = vmatpush1.msra.mxu0 0.0
        %2239 = vmatprep.subr.mxu0 0.0
        %2240 = vmatpush1.msra.mxu0 0.0
        %2241 = vmatprep.subr.mxu0 0.0
        %2242 = vmatpush1.msra.mxu0 0.0
        %2243 = vmatprep.subr.mxu0 0.0
        %2244 = vmatpush1.msra.mxu0 0.0
        %2245 = vmatprep.subr.mxu0 0.0
        %2246 = vmatpush1.msra.mxu0 0.0
        %2247 = vmatprep.subr.mxu0 0.0
        %2248 = vmatpush1.msra.mxu0 0.0
        %2249 = vmatprep.subr.mxu0 0.0
        %2250 = vmatpush1.msra.mxu0 0.0
        %2251 = vmatprep.subr.mxu0 0.0
        %2252 = vmatpush1.msra.mxu0 0.0
        %2253 = vmatprep.subr.mxu0 0.0
        %2254 = vmatpush1.msra.mxu0 0.0
        %2255 = vmatprep.subr.mxu0 0.0
        %2256 = vmatpush1.msra.mxu0 0.0
        %2257 = vmatprep.subr.mxu0 0.0
        %2258 = vmatpush1.msra.mxu0 0.0
        %2259 = vmatprep.subr.mxu0 0.0
        %2260 = vmatpush1.msra.mxu0 0.0
        %2261 = vmatprep.subr.mxu0 0.0
        %2262 = vmatpush1.msra.mxu0 0.0
        %2263 = vmatprep.subr.mxu0 0.0
        %2264 = vmatpush1.msra.mxu0 0.0
        %2265 = vmatprep.subr.mxu0 0.0
        %2266 = vmatpush1.msra.mxu0 0.0
        %2267 = vmatprep.subr.mxu0 0.0
        %2268 = vmatpush1.msra.mxu0 0.0
        %2269 = vmatprep.subr.mxu0 0.0
        %2270 = vmatpush1.msra.mxu0 0.0
        %2271 = vmatprep.subr.mxu0 0.0
        %2272 = vmatpush1.msra.mxu0 0.0
        %2273 = vmatprep.subr.mxu0 0.0
        %2274 = vmatpush1.msra.mxu0 0.0
        %2275 = vmatprep.subr.mxu0 0.0
        %2276 = vmatpush1.msra.mxu0 0.0
        %2277 = vmatprep.subr.mxu0 0.0
        %2278 = vmatpush1.msra.mxu0 0.0
        %2279 = vmatprep.subr.mxu0 0.0
        %2280 = vmatpush1.msra.mxu0 0.0
        %2281 = vmatprep.subr.mxu0 0.0
        %2282 = vmatpush1.msra.mxu0 0.0
        %2283 = vmatprep.subr.mxu0 0.0
        %2284 = vmatpush1.msra.mxu0 0.0
        %2285 = vmatprep.subr.mxu0 0.0
        %2286 = vmatpush1.msra.mxu0 0.0
        %2287 = vmatprep.subr.mxu0 0.0
        %2288 = vmatpush1.msra.mxu0 0.0
        %2289 = vmatprep.subr.mxu0 0.0
        %2290 = vmatpush1.msra.mxu0 0.0
        %2291 = vmatprep.subr.mxu0 0.0
        %2292 = vmatpush1.msra.mxu0 0.0
        %2293 = vmatprep.subr.mxu0 0.0
        %2294 = vmatpush1.msra.mxu0 0.0
        %2295 = vmatprep.subr.mxu0 0.0
        %2296 = vmatpush1.msra.mxu0 0.0
        %2297 = vmatprep.subr.mxu0 0.0
        %2298 = vmatpush1.msra.mxu0 0.0
        %2299 = vmatprep.mubr.f32.mxu0 0.0
        %v2300 = vand.u32 %v1840, 4294901760
        %2301 = vmatmul.mubr.f32.gmra.mrb[0].mxu0 %v2300
        %v2302 = vpop.f32.mrb[0].mxu0
        %v2303 = vadd.f32 %v2229, %v2302
        %v2304 = vpop.f32.mrb[0].mxu0
        %v2305 = vadd.f32 %v2231, %v2304
        %2306 = vdwg.mxu0
        %2308 = vset.pattern.permute.xlu0 0
        %2309 = vperm.xlu0 %2308, %v1821
        %v2310 = vpop.permute.xlu0 %2309
        %v2312 = vadd.f32 %v2310, %v2303
        %v2313 = vadd.f32 %v2310, %v2305
        %v2315 = vsel %vm1838, %v1818, 0
        %v2317 = vand.u32 %v1815, 4294901760
        %2318 = vmatprep.subr.mxu0 %v2317
        %v2319 = vand.u32 %v1814, 4294901760
        %2320 = vmatpush1.msra.mxu0 %v2319
        %2321 = vmatprep.subr.mxu0 0.0
        %2322 = vmatpush1.msra.mxu0 0.0
        %2323 = vmatprep.subr.mxu0 0.0
        %2324 = vmatpush1.msra.mxu0 0.0
        %2325 = vmatprep.subr.mxu0 0.0
        %2326 = vmatpush1.msra.mxu0 0.0
        %2327 = vmatprep.subr.mxu0 0.0
        %2328 = vmatpush1.msra.mxu0 0.0
        %2329 = vmatprep.subr.mxu0 0.0
        %2330 = vmatpush1.msra.mxu0 0.0
        %2331 = vmatprep.subr.mxu0 0.0
        %2332 = vmatpush1.msra.mxu0 0.0
        %2333 = vmatprep.subr.mxu0 0.0
        %2334 = vmatpush1.msra.mxu0 0.0
        %2335 = vmatprep.subr.mxu0 0.0
        %2336 = vmatpush1.msra.mxu0 0.0
        %2337 = vmatprep.subr.mxu0 0.0
        %2338 = vmatpush1.msra.mxu0 0.0
        %2339 = vmatprep.subr.mxu0 0.0
        %2340 = vmatpush1.msra.mxu0 0.0
        %2341 = vmatprep.subr.mxu0 0.0
        %2342 = vmatpush1.msra.mxu0 0.0
        %2343 = vmatprep.subr.mxu0 0.0
        %2344 = vmatpush1.msra.mxu0 0.0
        %2345 = vmatprep.subr.mxu0 0.0
        %2346 = vmatpush1.msra.mxu0 0.0
        %2347 = vmatprep.subr.mxu0 0.0
        %2348 = vmatpush1.msra.mxu0 0.0
        %2349 = vmatprep.subr.mxu0 0.0
        %2350 = vmatpush1.msra.mxu0 0.0
        %2351 = vmatprep.subr.mxu0 0.0
        %2352 = vmatpush1.msra.mxu0 0.0
        %2353 = vmatprep.subr.mxu0 0.0
        %2354 = vmatpush1.msra.mxu0 0.0
        %2355 = vmatprep.subr.mxu0 0.0
        %2356 = vmatpush1.msra.mxu0 0.0
        %2357 = vmatprep.subr.mxu0 0.0
        %2358 = vmatpush1.msra.mxu0 0.0
        %2359 = vmatprep.subr.mxu0 0.0
        %2360 = vmatpush1.msra.mxu0 0.0
        %2361 = vmatprep.subr.mxu0 0.0
        %2362 = vmatpush1.msra.mxu0 0.0
        %2363 = vmatprep.subr.mxu0 0.0
        %2364 = vmatpush1.msra.mxu0 0.0
        %2365 = vmatprep.subr.mxu0 0.0
        %2366 = vmatpush1.msra.mxu0 0.0
        %2367 = vmatprep.subr.mxu0 0.0
        %2368 = vmatpush1.msra.mxu0 0.0
        %2369 = vmatprep.subr.mxu0 0.0
        %2370 = vmatpush1.msra.mxu0 0.0
        %2371 = vmatprep.subr.mxu0 0.0
        %2372 = vmatpush1.msra.mxu0 0.0
        %2373 = vmatprep.subr.mxu0 0.0
        %2374 = vmatpush1.msra.mxu0 0.0
        %2375 = vmatprep.subr.mxu0 0.0
        %2376 = vmatpush1.msra.mxu0 0.0
        %2377 = vmatprep.subr.mxu0 0.0
        %2378 = vmatpush1.msra.mxu0 0.0
        %2379 = vmatprep.subr.mxu0 0.0
        %2380 = vmatpush1.msra.mxu0 0.0
        %2381 = vmatprep.subr.mxu0 0.0
        %2382 = vmatpush1.msra.mxu0 0.0
        %2383 = vmatprep.mubr.f32.mxu0 0.0
        %v2384 = vand.u32 %v2315, 4294901760
        %v2385 = vsub.f32 %v2315, %v2384
        %v2386 = vand.u32 %v2385, 4294901760
        %v2387 = vsub.f32 %v2385, %v2386
        %v2388 = vand.u32 %v2387, 4294901760
        %2389 = vmatmul.mubr.f32.gmra.mrb[0].mxu0 %v2388
        %v2390 = vpop.f32.mrb[0].mxu0
        %v2391 = vadd.f32 0.0, %v2390
        %v2392 = vpop.f32.mrb[0].mxu0
        %v2393 = vadd.f32 0.0, %v2392
        %2394 = vdwg.mxu0
        %v2395 = vand.u32 %v1815, 4294901760
        %v2396 = vsub.f32 %v1815, %v2395
        %v2397 = vand.u32 %v2396, 4294901760
        %v2398 = vsub.f32 %v2396, %v2397
        %v2399 = vand.u32 %v2398, 4294901760
        %2400 = vmatprep.subr.mxu0 %v2399
        %v2401 = vand.u32 %v1814, 4294901760
        %v2402 = vsub.f32 %v1814, %v2401
        %v2403 = vand.u32 %v2402, 4294901760
        %v2404 = vsub.f32 %v2402, %v2403
        %v2405 = vand.u32 %v2404, 4294901760
        %2406 = vmatpush1.msra.mxu0 %v2405
        %2407 = vmatprep.subr.mxu0 0.0
        %2408 = vmatpush1.msra.mxu0 0.0
        %2409 = vmatprep.subr.mxu0 0.0
        %2410 = vmatpush1.msra.mxu0 0.0
        %2411 = vmatprep.subr.mxu0 0.0
        %2412 = vmatpush1.msra.mxu0 0.0
        %2413 = vmatprep.subr.mxu0 0.0
        %2414 = vmatpush1.msra.mxu0 0.0
        %2415 = vmatprep.subr.mxu0 0.0
        %2416 = vmatpush1.msra.mxu0 0.0
        %2417 = vmatprep.subr.mxu0 0.0
        %2418 = vmatpush1.msra.mxu0 0.0
        %2419 = vmatprep.subr.mxu0 0.0
        %2420 = vmatpush1.msra.mxu0 0.0
        %2421 = vmatprep.subr.mxu0 0.0
        %2422 = vmatpush1.msra.mxu0 0.0
        %2423 = vmatprep.subr.mxu0 0.0
        %2424 = vmatpush1.msra.mxu0 0.0
        %2425 = vmatprep.subr.mxu0 0.0
        %2426 = vmatpush1.msra.mxu0 0.0
        %2427 = vmatprep.subr.mxu0 0.0
        %2428 = vmatpush1.msra.mxu0 0.0
        %2429 = vmatprep.subr.mxu0 0.0
        %2430 = vmatpush1.msra.mxu0 0.0
        %2431 = vmatprep.subr.mxu0 0.0
        %2432 = vmatpush1.msra.mxu0 0.0
        %2433 = vmatprep.subr.mxu0 0.0
        %2434 = vmatpush1.msra.mxu0 0.0
        %2435 = vmatprep.subr.mxu0 0.0
        %2436 = vmatpush1.msra.mxu0 0.0
        %2437 = vmatprep.subr.mxu0 0.0
        %2438 = vmatpush1.msra.mxu0 0.0
        %2439 = vmatprep.subr.mxu0 0.0
        %2440 = vmatpush1.msra.mxu0 0.0
        %2441 = vmatprep.subr.mxu0 0.0
        %2442 = vmatpush1.msra.mxu0 0.0
        %2443 = vmatprep.subr.mxu0 0.0
        %2444 = vmatpush1.msra.mxu0 0.0
        %2445 = vmatprep.subr.mxu0 0.0
        %2446 = vmatpush1.msra.mxu0 0.0
        %2447 = vmatprep.subr.mxu0 0.0
        %2448 = vmatpush1.msra.mxu0 0.0
        %2449 = vmatprep.subr.mxu0 0.0
        %2450 = vmatpush1.msra.mxu0 0.0
        %2451 = vmatprep.subr.mxu0 0.0
        %2452 = vmatpush1.msra.mxu0 0.0
        %2453 = vmatprep.subr.mxu0 0.0
        %2454 = vmatpush1.msra.mxu0 0.0
        %2455 = vmatprep.subr.mxu0 0.0
        %2456 = vmatpush1.msra.mxu0 0.0
        %2457 = vmatprep.subr.mxu0 0.0
        %2458 = vmatpush1.msra.mxu0 0.0
        %2459 = vmatprep.subr.mxu0 0.0
        %2460 = vmatpush1.msra.mxu0 0.0
        %2461 = vmatprep.subr.mxu0 0.0
        %2462 = vmatpush1.msra.mxu0 0.0
        %2463 = vmatprep.subr.mxu0 0.0
        %2464 = vmatpush1.msra.mxu0 0.0
        %2465 = vmatprep.subr.mxu0 0.0
        %2466 = vmatpush1.msra.mxu0 0.0
        %2467 = vmatprep.subr.mxu0 0.0
        %2468 = vmatpush1.msra.mxu0 0.0
        %2469 = vmatprep.mubr.f32.mxu0 0.0
        %v2470 = vand.u32 %v2315, 4294901760
        %2471 = vmatmul.mubr.f32.gmra.mrb[0].mxu0 %v2470
        %v2472 = vpop.f32.mrb[0].mxu0
        %v2473 = vadd.f32 %v2391, %v2472
        %v2474 = vpop.f32.mrb[0].mxu0
        %v2475 = vadd.f32 %v2393, %v2474
        %2476 = vdwg.mxu0
        %v2477 = vand.u32 %v1815, 4294901760
        %v2478 = vsub.f32 %v1815, %v2477
        %2479 = vmatprep.subr.mxu0 %v2478
        %v2480 = vand.u32 %v1814, 4294901760
        %v2481 = vsub.f32 %v1814, %v2480
        %2482 = vmatpush1.msra.mxu0 %v2481
        %2483 = vmatprep.subr.mxu0 0.0
        %2484 = vmatpush1.msra.mxu0 0.0
        %2485 = vmatprep.subr.mxu0 0.0
        %2486 = vmatpush1.msra.mxu0 0.0
        %2487 = vmatprep.subr.mxu0 0.0
        %2488 = vmatpush1.msra.mxu0 0.0
        %2489 = vmatprep.subr.mxu0 0.0
        %2490 = vmatpush1.msra.mxu0 0.0
        %2491 = vmatprep.subr.mxu0 0.0
        %2492 = vmatpush1.msra.mxu0 0.0
        %2493 = vmatprep.subr.mxu0 0.0
        %2494 = vmatpush1.msra.mxu0 0.0
        %2495 = vmatprep.subr.mxu0 0.0
        %2496 = vmatpush1.msra.mxu0 0.0
        %2497 = vmatprep.subr.mxu0 0.0
        %2498 = vmatpush1.msra.mxu0 0.0
        %2499 = vmatprep.subr.mxu0 0.0
        %2500 = vmatpush1.msra.mxu0 0.0
        %2501 = vmatprep.subr.mxu0 0.0
        %2502 = vmatpush1.msra.mxu0 0.0
        %2503 = vmatprep.subr.mxu0 0.0
        %2504 = vmatpush1.msra.mxu0 0.0
        %2505 = vmatprep.subr.mxu0 0.0
        %2506 = vmatpush1.msra.mxu0 0.0
        %2507 = vmatprep.subr.mxu0 0.0
        %2508 = vmatpush1.msra.mxu0 0.0
        %2509 = vmatprep.subr.mxu0 0.0
        %2510 = vmatpush1.msra.mxu0 0.0
        %2511 = vmatprep.subr.mxu0 0.0
        %2512 = vmatpush1.msra.mxu0 0.0
        %2513 = vmatprep.subr.mxu0 0.0
        %2514 = vmatpush1.msra.mxu0 0.0
        %2515 = vmatprep.subr.mxu0 0.0
        %2516 = vmatpush1.msra.mxu0 0.0
        %2517 = vmatprep.subr.mxu0 0.0
        %2518 = vmatpush1.msra.mxu0 0.0
        %2519 = vmatprep.subr.mxu0 0.0
        %2520 = vmatpush1.msra.mxu0 0.0
        %2521 = vmatprep.subr.mxu0 0.0
        %2522 = vmatpush1.msra.mxu0 0.0
        %2523 = vmatprep.subr.mxu0 0.0
        %2524 = vmatpush1.msra.mxu0 0.0
        %2525 = vmatprep.subr.mxu0 0.0
        %2526 = vmatpush1.msra.mxu0 0.0
        %2527 = vmatprep.subr.mxu0 0.0
        %2528 = vmatpush1.msra.mxu0 0.0
        %2529 = vmatprep.subr.mxu0 0.0
        %2530 = vmatpush1.msra.mxu0 0.0
        %2531 = vmatprep.subr.mxu0 0.0
        %2532 = vmatpush1.msra.mxu0 0.0
        %2533 = vmatprep.subr.mxu0 0.0
        %2534 = vmatpush1.msra.mxu0 0.0
        %2535 = vmatprep.subr.mxu0 0.0
        %2536 = vmatpush1.msra.mxu0 0.0
        %2537 = vmatprep.subr.mxu0 0.0
        %2538 = vmatpush1.msra.mxu0 0.0
        %2539 = vmatprep.subr.mxu0 0.0
        %2540 = vmatpush1.msra.mxu0 0.0
        %2541 = vmatprep.subr.mxu0 0.0
        %2542 = vmatpush1.msra.mxu0 0.0
        %2543 = vmatprep.subr.mxu0 0.0
        %2544 = vmatpush1.msra.mxu0 0.0
        %2545 = vmatprep.mubr.f32.mxu0 0.0
        %v2546 = vand.u32 %v2315, 4294901760
        %v2547 = vsub.f32 %v2315, %v2546
        %2548 = vmatmul.mubr.f32.gmra.mrb[0].mxu0 %v2547
        %v2549 = vpop.f32.mrb[0].mxu0
        %v2550 = vadd.f32 %v2473, %v2549
        %v2551 = vpop.f32.mrb[0].mxu0
        %v2552 = vadd.f32 %v2475, %v2551
        %2553 = vdwg.mxu0
        %v2554 = vand.u32 %v1815, 4294901760
        %2555 = vmatprep.subr.mxu0 %v2554
        %v2556 = vand.u32 %v1814, 4294901760
        %2557 = vmatpush1.msra.mxu0 %v2556
        %2558 = vmatprep.subr.mxu0 0.0
        %2559 = vmatpush1.msra.mxu0 0.0
        %2560 = vmatprep.subr.mxu0 0.0
        %2561 = vmatpush1.msra.mxu0 0.0
        %2562 = vmatprep.subr.mxu0 0.0
        %2563 = vmatpush1.msra.mxu0 0.0
        %2564 = vmatprep.subr.mxu0 0.0
        %2565 = vmatpush1.msra.mxu0 0.0
        %2566 = vmatprep.subr.mxu0 0.0
        %2567 = vmatpush1.msra.mxu0 0.0
        %2568 = vmatprep.subr.mxu0 0.0
        %2569 = vmatpush1.msra.mxu0 0.0
        %2570 = vmatprep.subr.mxu0 0.0
        %2571 = vmatpush1.msra.mxu0 0.0
        %2572 = vmatprep.subr.mxu0 0.0
        %2573 = vmatpush1.msra.mxu0 0.0
        %2574 = vmatprep.subr.mxu0 0.0
        %2575 = vmatpush1.msra.mxu0 0.0
        %2576 = vmatprep.subr.mxu0 0.0
        %2577 = vmatpush1.msra.mxu0 0.0
        %2578 = vmatprep.subr.mxu0 0.0
        %2579 = vmatpush1.msra.mxu0 0.0
        %2580 = vmatprep.subr.mxu0 0.0
        %2581 = vmatpush1.msra.mxu0 0.0
        %2582 = vmatprep.subr.mxu0 0.0
        %2583 = vmatpush1.msra.mxu0 0.0
        %2584 = vmatprep.subr.mxu0 0.0
        %2585 = vmatpush1.msra.mxu0 0.0
        %2586 = vmatprep.subr.mxu0 0.0
        %2587 = vmatpush1.msra.mxu0 0.0
        %2588 = vmatprep.subr.mxu0 0.0
        %2589 = vmatpush1.msra.mxu0 0.0
        %2590 = vmatprep.subr.mxu0 0.0
        %2591 = vmatpush1.msra.mxu0 0.0
        %2592 = vmatprep.subr.mxu0 0.0
        %2593 = vmatpush1.msra.mxu0 0.0
        %2594 = vmatprep.subr.mxu0 0.0
        %2595 = vmatpush1.msra.mxu0 0.0
        %2596 = vmatprep.subr.mxu0 0.0
        %2597 = vmatpush1.msra.mxu0 0.0
        %2598 = vmatprep.subr.mxu0 0.0
        %2599 = vmatpush1.msra.mxu0 0.0
        %2600 = vmatprep.subr.mxu0 0.0
        %2601 = vmatpush1.msra.mxu0 0.0
        %2602 = vmatprep.subr.mxu0 0.0
        %2603 = vmatpush1.msra.mxu0 0.0
        %2604 = vmatprep.subr.mxu0 0.0
        %2605 = vmatpush1.msra.mxu0 0.0
        %2606 = vmatprep.subr.mxu0 0.0
        %2607 = vmatpush1.msra.mxu0 0.0
        %2608 = vmatprep.subr.mxu0 0.0
        %2609 = vmatpush1.msra.mxu0 0.0
        %2610 = vmatprep.subr.mxu0 0.0
        %2611 = vmatpush1.msra.mxu0 0.0
        %2612 = vmatprep.subr.mxu0 0.0
        %2613 = vmatpush1.msra.mxu0 0.0
        %2614 = vmatprep.subr.mxu0 0.0
        %2615 = vmatpush1.msra.mxu0 0.0
        %2616 = vmatprep.subr.mxu0 0.0
        %2617 = vmatpush1.msra.mxu0 0.0
        %2618 = vmatprep.subr.mxu0 0.0
        %2619 = vmatpush1.msra.mxu0 0.0
        %2620 = vmatprep.mubr.f32.mxu0 0.0
        %v2621 = vand.u32 %v2315, 4294901760
        %v2622 = vsub.f32 %v2315, %v2621
        %v2623 = vand.u32 %v2622, 4294901760
        %2624 = vmatmul.mubr.f32.gmra.mrb[0].mxu0 %v2623
        %v2625 = vpop.f32.mrb[0].mxu0
        %v2626 = vadd.f32 %v2550, %v2625
        %v2627 = vpop.f32.mrb[0].mxu0
        %v2628 = vadd.f32 %v2552, %v2627
        %2629 = vdwg.mxu0
        %v2630 = vand.u32 %v1815, 4294901760
        %v2631 = vsub.f32 %v1815, %v2630
        %v2632 = vand.u32 %v2631, 4294901760
        %2633 = vmatprep.subr.mxu0 %v2632
        %v2634 = vand.u32 %v1814, 4294901760
        %v2635 = vsub.f32 %v1814, %v2634
        %v2636 = vand.u32 %v2635, 4294901760
        %2637 = vmatpush1.msra.mxu0 %v2636
        %2638 = vmatprep.subr.mxu0 0.0
        %2639 = vmatpush1.msra.mxu0 0.0
        %2640 = vmatprep.subr.mxu0 0.0
        %2641 = vmatpush1.msra.mxu0 0.0
        %2642 = vmatprep.subr.mxu0 0.0
        %2643 = vmatpush1.msra.mxu0 0.0
        %2644 = vmatprep.subr.mxu0 0.0
        %2645 = vmatpush1.msra.mxu0 0.0
        %2646 = vmatprep.subr.mxu0 0.0
        %2647 = vmatpush1.msra.mxu0 0.0
        %2648 = vmatprep.subr.mxu0 0.0
        %2649 = vmatpush1.msra.mxu0 0.0
        %2650 = vmatprep.subr.mxu0 0.0
        %2651 = vmatpush1.msra.mxu0 0.0
        %2652 = vmatprep.subr.mxu0 0.0
        %2653 = vmatpush1.msra.mxu0 0.0
        %2654 = vmatprep.subr.mxu0 0.0
        %2655 = vmatpush1.msra.mxu0 0.0
        %2656 = vmatprep.subr.mxu0 0.0
        %2657 = vmatpush1.msra.mxu0 0.0
        %2658 = vmatprep.subr.mxu0 0.0
        %2659 = vmatpush1.msra.mxu0 0.0
        %2660 = vmatprep.subr.mxu0 0.0
        %2661 = vmatpush1.msra.mxu0 0.0
        %2662 = vmatprep.subr.mxu0 0.0
        %2663 = vmatpush1.msra.mxu0 0.0
        %2664 = vmatprep.subr.mxu0 0.0
        %2665 = vmatpush1.msra.mxu0 0.0
        %2666 = vmatprep.subr.mxu0 0.0
        %2667 = vmatpush1.msra.mxu0 0.0
        %2668 = vmatprep.subr.mxu0 0.0
        %2669 = vmatpush1.msra.mxu0 0.0
        %2670 = vmatprep.subr.mxu0 0.0
        %2671 = vmatpush1.msra.mxu0 0.0
        %2672 = vmatprep.subr.mxu0 0.0
        %2673 = vmatpush1.msra.mxu0 0.0
        %2674 = vmatprep.subr.mxu0 0.0
        %2675 = vmatpush1.msra.mxu0 0.0
        %2676 = vmatprep.subr.mxu0 0.0
        %2677 = vmatpush1.msra.mxu0 0.0
        %2678 = vmatprep.subr.mxu0 0.0
        %2679 = vmatpush1.msra.mxu0 0.0
        %2680 = vmatprep.subr.mxu0 0.0
        %2681 = vmatpush1.msra.mxu0 0.0
        %2682 = vmatprep.subr.mxu0 0.0
        %2683 = vmatpush1.msra.mxu0 0.0
        %2684 = vmatprep.subr.mxu0 0.0
        %2685 = vmatpush1.msra.mxu0 0.0
        %2686 = vmatprep.subr.mxu0 0.0
        %2687 = vmatpush1.msra.mxu0 0.0
        %2688 = vmatprep.subr.mxu0 0.0
        %2689 = vmatpush1.msra.mxu0 0.0
        %2690 = vmatprep.subr.mxu0 0.0
        %2691 = vmatpush1.msra.mxu0 0.0
        %2692 = vmatprep.subr.mxu0 0.0
        %2693 = vmatpush1.msra.mxu0 0.0
        %2694 = vmatprep.subr.mxu0 0.0
        %2695 = vmatpush1.msra.mxu0 0.0
        %2696 = vmatprep.subr.mxu0 0.0
        %2697 = vmatpush1.msra.mxu0 0.0
        %2698 = vmatprep.subr.mxu0 0.0
        %2699 = vmatpush1.msra.mxu0 0.0
        %2700 = vmatprep.mubr.f32.mxu0 0.0
        %v2701 = vand.u32 %v2315, 4294901760
        %2702 = vmatmul.mubr.f32.gmra.mrb[0].mxu0 %v2701
        %v2703 = vpop.f32.mrb[0].mxu0
        %v2704 = vadd.f32 %v2626, %v2703
        %v2705 = vpop.f32.mrb[0].mxu0
        %v2706 = vadd.f32 %v2628, %v2705
        %2707 = vdwg.mxu0
        %v2708 = vand.u32 %v1815, 4294901760
        %2709 = vmatprep.subr.mxu0 %v2708
        %v2710 = vand.u32 %v1814, 4294901760
        %2711 = vmatpush1.msra.mxu0 %v2710
        %2712 = vmatprep.subr.mxu0 0.0
        %2713 = vmatpush1.msra.mxu0 0.0
        %2714 = vmatprep.subr.mxu0 0.0
        %2715 = vmatpush1.msra.mxu0 0.0
        %2716 = vmatprep.subr.mxu0 0.0
        %2717 = vmatpush1.msra.mxu0 0.0
        %2718 = vmatprep.subr.mxu0 0.0
        %2719 = vmatpush1.msra.mxu0 0.0
        %2720 = vmatprep.subr.mxu0 0.0
        %2721 = vmatpush1.msra.mxu0 0.0
        %2722 = vmatprep.subr.mxu0 0.0
        %2723 = vmatpush1.msra.mxu0 0.0
        %2724 = vmatprep.subr.mxu0 0.0
        %2725 = vmatpush1.msra.mxu0 0.0
        %2726 = vmatprep.subr.mxu0 0.0
        %2727 = vmatpush1.msra.mxu0 0.0
        %2728 = vmatprep.subr.mxu0 0.0
        %2729 = vmatpush1.msra.mxu0 0.0
        %2730 = vmatprep.subr.mxu0 0.0
        %2731 = vmatpush1.msra.mxu0 0.0
        %2732 = vmatprep.subr.mxu0 0.0
        %2733 = vmatpush1.msra.mxu0 0.0
        %2734 = vmatprep.subr.mxu0 0.0
        %2735 = vmatpush1.msra.mxu0 0.0
        %2736 = vmatprep.subr.mxu0 0.0
        %2737 = vmatpush1.msra.mxu0 0.0
        %2738 = vmatprep.subr.mxu0 0.0
        %2739 = vmatpush1.msra.mxu0 0.0
        %2740 = vmatprep.subr.mxu0 0.0
        %2741 = vmatpush1.msra.mxu0 0.0
        %2742 = vmatprep.subr.mxu0 0.0
        %2743 = vmatpush1.msra.mxu0 0.0
        %2744 = vmatprep.subr.mxu0 0.0
        %2745 = vmatpush1.msra.mxu0 0.0
        %2746 = vmatprep.subr.mxu0 0.0
        %2747 = vmatpush1.msra.mxu0 0.0
        %2748 = vmatprep.subr.mxu0 0.0
        %2749 = vmatpush1.msra.mxu0 0.0
        %2750 = vmatprep.subr.mxu0 0.0
        %2751 = vmatpush1.msra.mxu0 0.0
        %2752 = vmatprep.subr.mxu0 0.0
        %2753 = vmatpush1.msra.mxu0 0.0
        %2754 = vmatprep.subr.mxu0 0.0
        %2755 = vmatpush1.msra.mxu0 0.0
        %2756 = vmatprep.subr.mxu0 0.0
        %2757 = vmatpush1.msra.mxu0 0.0
        %2758 = vmatprep.subr.mxu0 0.0
        %2759 = vmatpush1.msra.mxu0 0.0
        %2760 = vmatprep.subr.mxu0 0.0
        %2761 = vmatpush1.msra.mxu0 0.0
        %2762 = vmatprep.subr.mxu0 0.0
        %2763 = vmatpush1.msra.mxu0 0.0
        %2764 = vmatprep.subr.mxu0 0.0
        %2765 = vmatpush1.msra.mxu0 0.0
        %2766 = vmatprep.subr.mxu0 0.0
        %2767 = vmatpush1.msra.mxu0 0.0
        %2768 = vmatprep.subr.mxu0 0.0
        %2769 = vmatpush1.msra.mxu0 0.0
        %2770 = vmatprep.subr.mxu0 0.0
        %2771 = vmatpush1.msra.mxu0 0.0
        %2772 = vmatprep.subr.mxu0 0.0
        %2773 = vmatpush1.msra.mxu0 0.0
        %2774 = vmatprep.mubr.f32.mxu0 0.0
        %v2775 = vand.u32 %v2315, 4294901760
        %2776 = vmatmul.mubr.f32.gmra.mrb[0].mxu0 %v2775
        %v2777 = vpop.f32.mrb[0].mxu0
        %v2778 = vadd.f32 %v2704, %v2777
        %v2779 = vpop.f32.mrb[0].mxu0
        %v2780 = vadd.f32 %v2706, %v2779
        %2781 = vdwg.mxu0
        %v2782 = vadd.f32 %v2312, %v2778
        %v2783 = vadd.f32 %v2313, %v2780
        %v2785 = vsel %vm1838, %v1819, 0
        %v2787 = vand.u32 %v1837, 4294901760
        %2788 = vmatprep.subr.mxu0 %v2787
        %v2789 = vand.u32 %v1836, 4294901760
        %2790 = vmatpush1.msra.mxu0 %v2789
        %2791 = vmatprep.subr.mxu0 0.0
        %2792 = vmatpush1.msra.mxu0 0.0
        %2793 = vmatprep.subr.mxu0 0.0
        %2794 = vmatpush1.msra.mxu0 0.0
        %2795 = vmatprep.subr.mxu0 0.0
        %2796 = vmatpush1.msra.mxu0 0.0
        %2797 = vmatprep.subr.mxu0 0.0
        %2798 = vmatpush1.msra.mxu0 0.0
        %2799 = vmatprep.subr.mxu0 0.0
        %2800 = vmatpush1.msra.mxu0 0.0
        %2801 = vmatprep.subr.mxu0 0.0
        %2802 = vmatpush1.msra.mxu0 0.0
        %2803 = vmatprep.subr.mxu0 0.0
        %2804 = vmatpush1.msra.mxu0 0.0
        %2805 = vmatprep.subr.mxu0 0.0
        %2806 = vmatpush1.msra.mxu0 0.0
        %2807 = vmatprep.subr.mxu0 0.0
        %2808 = vmatpush1.msra.mxu0 0.0
        %2809 = vmatprep.subr.mxu0 0.0
        %2810 = vmatpush1.msra.mxu0 0.0
        %2811 = vmatprep.subr.mxu0 0.0
        %2812 = vmatpush1.msra.mxu0 0.0
        %2813 = vmatprep.subr.mxu0 0.0
        %2814 = vmatpush1.msra.mxu0 0.0
        %2815 = vmatprep.subr.mxu0 0.0
        %2816 = vmatpush1.msra.mxu0 0.0
        %2817 = vmatprep.subr.mxu0 0.0
        %2818 = vmatpush1.msra.mxu0 0.0
        %2819 = vmatprep.subr.mxu0 0.0
        %2820 = vmatpush1.msra.mxu0 0.0
        %2821 = vmatprep.subr.mxu0 0.0
        %2822 = vmatpush1.msra.mxu0 0.0
        %2823 = vmatprep.subr.mxu0 0.0
        %2824 = vmatpush1.msra.mxu0 0.0
        %2825 = vmatprep.subr.mxu0 0.0
        %2826 = vmatpush1.msra.mxu0 0.0
        %2827 = vmatprep.subr.mxu0 0.0
        %2828 = vmatpush1.msra.mxu0 0.0
        %2829 = vmatprep.subr.mxu0 0.0
        %2830 = vmatpush1.msra.mxu0 0.0
        %2831 = vmatprep.subr.mxu0 0.0
        %2832 = vmatpush1.msra.mxu0 0.0
        %2833 = vmatprep.subr.mxu0 0.0
        %2834 = vmatpush1.msra.mxu0 0.0
        %2835 = vmatprep.subr.mxu0 0.0
        %2836 = vmatpush1.msra.mxu0 0.0
        %2837 = vmatprep.subr.mxu0 0.0
        %2838 = vmatpush1.msra.mxu0 0.0
        %2839 = vmatprep.subr.mxu0 0.0
        %2840 = vmatpush1.msra.mxu0 0.0
        %2841 = vmatprep.subr.mxu0 0.0
        %2842 = vmatpush1.msra.mxu0 0.0
        %2843 = vmatprep.subr.mxu0 0.0
        %2844 = vmatpush1.msra.mxu0 0.0
        %2845 = vmatprep.subr.mxu0 0.0
        %2846 = vmatpush1.msra.mxu0 0.0
        %2847 = vmatprep.subr.mxu0 0.0
        %2848 = vmatpush1.msra.mxu0 0.0
        %2849 = vmatprep.subr.mxu0 0.0
        %2850 = vmatpush1.msra.mxu0 0.0
        %2851 = vmatprep.subr.mxu0 0.0
        %2852 = vmatpush1.msra.mxu0 0.0
        %2853 = vmatprep.mubr.f32.mxu0 0.0
        %v2854 = vand.u32 %v2785, 4294901760
        %v2855 = vsub.f32 %v2785, %v2854
        %v2856 = vand.u32 %v2855, 4294901760
        %v2857 = vsub.f32 %v2855, %v2856
        %v2858 = vand.u32 %v2857, 4294901760
        %2859 = vmatmul.mubr.f32.gmra.mrb[0].mxu0 %v2858
        %v2860 = vpop.f32.mrb[0].mxu0
        %v2861 = vadd.f32 0.0, %v2860
        %v2862 = vpop.f32.mrb[0].mxu0
        %v2863 = vadd.f32 0.0, %v2862
        %2864 = vdwg.mxu0
        %v2865 = vand.u32 %v1837, 4294901760
        %v2866 = vsub.f32 %v1837, %v2865
        %v2867 = vand.u32 %v2866, 4294901760
        %v2868 = vsub.f32 %v2866, %v2867
        %v2869 = vand.u32 %v2868, 4294901760
        %2870 = vmatprep.subr.mxu0 %v2869
        %v2871 = vand.u32 %v1836, 4294901760
        %v2872 = vsub.f32 %v1836, %v2871
        %v2873 = vand.u32 %v2872, 4294901760
        %v2874 = vsub.f32 %v2872, %v2873
        %v2875 = vand.u32 %v2874, 4294901760
        %2876 = vmatpush1.msra.mxu0 %v2875
        %2877 = vmatprep.subr.mxu0 0.0
        %2878 = vmatpush1.msra.mxu0 0.0
        %2879 = vmatprep.subr.mxu0 0.0
        %2880 = vmatpush1.msra.mxu0 0.0
        %2881 = vmatprep.subr.mxu0 0.0
        %2882 = vmatpush1.msra.mxu0 0.0
        %2883 = vmatprep.subr.mxu0 0.0
        %2884 = vmatpush1.msra.mxu0 0.0
        %2885 = vmatprep.subr.mxu0 0.0
        %2886 = vmatpush1.msra.mxu0 0.0
        %2887 = vmatprep.subr.mxu0 0.0
        %2888 = vmatpush1.msra.mxu0 0.0
        %2889 = vmatprep.subr.mxu0 0.0
        %2890 = vmatpush1.msra.mxu0 0.0
        %2891 = vmatprep.subr.mxu0 0.0
        %2892 = vmatpush1.msra.mxu0 0.0
        %2893 = vmatprep.subr.mxu0 0.0
        %2894 = vmatpush1.msra.mxu0 0.0
        %2895 = vmatprep.subr.mxu0 0.0
        %2896 = vmatpush1.msra.mxu0 0.0
        %2897 = vmatprep.subr.mxu0 0.0
        %2898 = vmatpush1.msra.mxu0 0.0
        %2899 = vmatprep.subr.mxu0 0.0
        %2900 = vmatpush1.msra.mxu0 0.0
        %2901 = vmatprep.subr.mxu0 0.0
        %2902 = vmatpush1.msra.mxu0 0.0
        %2903 = vmatprep.subr.mxu0 0.0
        %2904 = vmatpush1.msra.mxu0 0.0
        %2905 = vmatprep.subr.mxu0 0.0
        %2906 = vmatpush1.msra.mxu0 0.0
        %2907 = vmatprep.subr.mxu0 0.0
        %2908 = vmatpush1.msra.mxu0 0.0
        %2909 = vmatprep.subr.mxu0 0.0
        %2910 = vmatpush1.msra.mxu0 0.0
        %2911 = vmatprep.subr.mxu0 0.0
        %2912 = vmatpush1.msra.mxu0 0.0
        %2913 = vmatprep.subr.mxu0 0.0
        %2914 = vmatpush1.msra.mxu0 0.0
        %2915 = vmatprep.subr.mxu0 0.0
        %2916 = vmatpush1.msra.mxu0 0.0
        %2917 = vmatprep.subr.mxu0 0.0
        %2918 = vmatpush1.msra.mxu0 0.0
        %2919 = vmatprep.subr.mxu0 0.0
        %2920 = vmatpush1.msra.mxu0 0.0
        %2921 = vmatprep.subr.mxu0 0.0
        %2922 = vmatpush1.msra.mxu0 0.0
        %2923 = vmatprep.subr.mxu0 0.0
        %2924 = vmatpush1.msra.mxu0 0.0
        %2925 = vmatprep.subr.mxu0 0.0
        %2926 = vmatpush1.msra.mxu0 0.0
        %2927 = vmatprep.subr.mxu0 0.0
        %2928 = vmatpush1.msra.mxu0 0.0
        %2929 = vmatprep.subr.mxu0 0.0
        %2930 = vmatpush1.msra.mxu0 0.0
        %2931 = vmatprep.subr.mxu0 0.0
        %2932 = vmatpush1.msra.mxu0 0.0
        %2933 = vmatprep.subr.mxu0 0.0
        %2934 = vmatpush1.msra.mxu0 0.0
        %2935 = vmatprep.subr.mxu0 0.0
        %2936 = vmatpush1.msra.mxu0 0.0
        %2937 = vmatprep.subr.mxu0 0.0
        %2938 = vmatpush1.msra.mxu0 0.0
        %2939 = vmatprep.mubr.f32.mxu0 0.0
        %v2940 = vand.u32 %v2785, 4294901760
        %2941 = vmatmul.mubr.f32.gmra.mrb[0].mxu0 %v2940
        %v2942 = vpop.f32.mrb[0].mxu0
        %v2943 = vadd.f32 %v2861, %v2942
        %v2944 = vpop.f32.mrb[0].mxu0
        %v2945 = vadd.f32 %v2863, %v2944
        %2946 = vdwg.mxu0
        %v2947 = vand.u32 %v1837, 4294901760
        %v2948 = vsub.f32 %v1837, %v2947
        %2949 = vmatprep.subr.mxu0 %v2948
        %v2950 = vand.u32 %v1836, 4294901760
        %v2951 = vsub.f32 %v1836, %v2950
        %2952 = vmatpush1.msra.mxu0 %v2951
        %2953 = vmatprep.subr.mxu0 0.0
        %2954 = vmatpush1.msra.mxu0 0.0
        %2955 = vmatprep.subr.mxu0 0.0
        %2956 = vmatpush1.msra.mxu0 0.0
        %2957 = vmatprep.subr.mxu0 0.0
        %2958 = vmatpush1.msra.mxu0 0.0
        %2959 = vmatprep.subr.mxu0 0.0
        %2960 = vmatpush1.msra.mxu0 0.0
        %2961 = vmatprep.subr.mxu0 0.0
        %2962 = vmatpush1.msra.mxu0 0.0
        %2963 = vmatprep.subr.mxu0 0.0
        %2964 = vmatpush1.msra.mxu0 0.0
        %2965 = vmatprep.subr.mxu0 0.0
        %2966 = vmatpush1.msra.mxu0 0.0
        %2967 = vmatprep.subr.mxu0 0.0
        %2968 = vmatpush1.msra.mxu0 0.0
        %2969 = vmatprep.subr.mxu0 0.0
        %2970 = vmatpush1.msra.mxu0 0.0
        %2971 = vmatprep.subr.mxu0 0.0
        %2972 = vmatpush1.msra.mxu0 0.0
        %2973 = vmatprep.subr.mxu0 0.0
        %2974 = vmatpush1.msra.mxu0 0.0
        %2975 = vmatprep.subr.mxu0 0.0
        %2976 = vmatpush1.msra.mxu0 0.0
        %2977 = vmatprep.subr.mxu0 0.0
        %2978 = vmatpush1.msra.mxu0 0.0
        %2979 = vmatprep.subr.mxu0 0.0
        %2980 = vmatpush1.msra.mxu0 0.0
        %2981 = vmatprep.subr.mxu0 0.0
        %2982 = vmatpush1.msra.mxu0 0.0
        %2983 = vmatprep.subr.mxu0 0.0
        %2984 = vmatpush1.msra.mxu0 0.0
        %2985 = vmatprep.subr.mxu0 0.0
        %2986 = vmatpush1.msra.mxu0 0.0
        %2987 = vmatprep.subr.mxu0 0.0
        %2988 = vmatpush1.msra.mxu0 0.0
        %2989 = vmatprep.subr.mxu0 0.0
        %2990 = vmatpush1.msra.mxu0 0.0
        %2991 = vmatprep.subr.mxu0 0.0
        %2992 = vmatpush1.msra.mxu0 0.0
        %2993 = vmatprep.subr.mxu0 0.0
        %2994 = vmatpush1.msra.mxu0 0.0
        %2995 = vmatprep.subr.mxu0 0.0
        %2996 = vmatpush1.msra.mxu0 0.0
        %2997 = vmatprep.subr.mxu0 0.0
        %2998 = vmatpush1.msra.mxu0 0.0
        %2999 = vmatprep.subr.mxu0 0.0
        %3000 = vmatpush1.msra.mxu0 0.0
        %3001 = vmatprep.subr.mxu0 0.0
        %3002 = vmatpush1.msra.mxu0 0.0
        %3003 = vmatprep.subr.mxu0 0.0
        %3004 = vmatpush1.msra.mxu0 0.0
        %3005 = vmatprep.subr.mxu0 0.0
        %3006 = vmatpush1.msra.mxu0 0.0
        %3007 = vmatprep.subr.mxu0 0.0
        %3008 = vmatpush1.msra.mxu0 0.0
        %3009 = vmatprep.subr.mxu0 0.0
        %3010 = vmatpush1.msra.mxu0 0.0
        %3011 = vmatprep.subr.mxu0 0.0
        %3012 = vmatpush1.msra.mxu0 0.0
        %3013 = vmatprep.subr.mxu0 0.0
        %3014 = vmatpush1.msra.mxu0 0.0
        %3015 = vmatprep.mubr.f32.mxu0 0.0
        %v3016 = vand.u32 %v2785, 4294901760
        %v3017 = vsub.f32 %v2785, %v3016
        %3018 = vmatmul.mubr.f32.gmra.mrb[0].mxu0 %v3017
        %v3019 = vpop.f32.mrb[0].mxu0
        %v3020 = vadd.f32 %v2943, %v3019
        %v3021 = vpop.f32.mrb[0].mxu0
        %v3022 = vadd.f32 %v2945, %v3021
        %3023 = vdwg.mxu0
        %v3024 = vand.u32 %v1837, 4294901760
        %3025 = vmatprep.subr.mxu0 %v3024
        %v3026 = vand.u32 %v1836, 4294901760
        %3027 = vmatpush1.msra.mxu0 %v3026
        %3028 = vmatprep.subr.mxu0 0.0
        %3029 = vmatpush1.msra.mxu0 0.0
        %3030 = vmatprep.subr.mxu0 0.0
        %3031 = vmatpush1.msra.mxu0 0.0
        %3032 = vmatprep.subr.mxu0 0.0
        %3033 = vmatpush1.msra.mxu0 0.0
        %3034 = vmatprep.subr.mxu0 0.0
        %3035 = vmatpush1.msra.mxu0 0.0
        %3036 = vmatprep.subr.mxu0 0.0
        %3037 = vmatpush1.msra.mxu0 0.0
        %3038 = vmatprep.subr.mxu0 0.0
        %3039 = vmatpush1.msra.mxu0 0.0
        %3040 = vmatprep.subr.mxu0 0.0
        %3041 = vmatpush1.msra.mxu0 0.0
        %3042 = vmatprep.subr.mxu0 0.0
        %3043 = vmatpush1.msra.mxu0 0.0
        %3044 = vmatprep.subr.mxu0 0.0
        %3045 = vmatpush1.msra.mxu0 0.0
        %3046 = vmatprep.subr.mxu0 0.0
        %3047 = vmatpush1.msra.mxu0 0.0
        %3048 = vmatprep.subr.mxu0 0.0
        %3049 = vmatpush1.msra.mxu0 0.0
        %3050 = vmatprep.subr.mxu0 0.0
        %3051 = vmatpush1.msra.mxu0 0.0
        %3052 = vmatprep.subr.mxu0 0.0
        %3053 = vmatpush1.msra.mxu0 0.0
        %3054 = vmatprep.subr.mxu0 0.0
        %3055 = vmatpush1.msra.mxu0 0.0
        %3056 = vmatprep.subr.mxu0 0.0
        %3057 = vmatpush1.msra.mxu0 0.0
        %3058 = vmatprep.subr.mxu0 0.0
        %3059 = vmatpush1.msra.mxu0 0.0
        %3060 = vmatprep.subr.mxu0 0.0
        %3061 = vmatpush1.msra.mxu0 0.0
        %3062 = vmatprep.subr.mxu0 0.0
        %3063 = vmatpush1.msra.mxu0 0.0
        %3064 = vmatprep.subr.mxu0 0.0
        %3065 = vmatpush1.msra.mxu0 0.0
        %3066 = vmatprep.subr.mxu0 0.0
        %3067 = vmatpush1.msra.mxu0 0.0
        %3068 = vmatprep.subr.mxu0 0.0
        %3069 = vmatpush1.msra.mxu0 0.0
        %3070 = vmatprep.subr.mxu0 0.0
        %3071 = vmatpush1.msra.mxu0 0.0
        %3072 = vmatprep.subr.mxu0 0.0
        %3073 = vmatpush1.msra.mxu0 0.0
        %3074 = vmatprep.subr.mxu0 0.0
        %3075 = vmatpush1.msra.mxu0 0.0
        %3076 = vmatprep.subr.mxu0 0.0
        %3077 = vmatpush1.msra.mxu0 0.0
        %3078 = vmatprep.subr.mxu0 0.0
        %3079 = vmatpush1.msra.mxu0 0.0
        %3080 = vmatprep.subr.mxu0 0.0
        %3081 = vmatpush1.msra.mxu0 0.0
        %3082 = vmatprep.subr.mxu0 0.0
        %3083 = vmatpush1.msra.mxu0 0.0
        %3084 = vmatprep.subr.mxu0 0.0
        %3085 = vmatpush1.msra.mxu0 0.0
        %3086 = vmatprep.subr.mxu0 0.0
        %3087 = vmatpush1.msra.mxu0 0.0
        %3088 = vmatprep.subr.mxu0 0.0
        %3089 = vmatpush1.msra.mxu0 0.0
        %3090 = vmatprep.mubr.f32.mxu0 0.0
        %v3091 = vand.u32 %v2785, 4294901760
        %v3092 = vsub.f32 %v2785, %v3091
        %v3093 = vand.u32 %v3092, 4294901760
        %3094 = vmatmul.mubr.f32.gmra.mrb[0].mxu0 %v3093
        %v3095 = vpop.f32.mrb[0].mxu0
        %v3096 = vadd.f32 %v3020, %v3095
        %v3097 = vpop.f32.mrb[0].mxu0
        %v3098 = vadd.f32 %v3022, %v3097
        %3099 = vdwg.mxu0
        %v3100 = vand.u32 %v1837, 4294901760
        %v3101 = vsub.f32 %v1837, %v3100
        %v3102 = vand.u32 %v3101, 4294901760
        %3103 = vmatprep.subr.mxu0 %v3102
        %v3104 = vand.u32 %v1836, 4294901760
        %v3105 = vsub.f32 %v1836, %v3104
        %v3106 = vand.u32 %v3105, 4294901760
        %3107 = vmatpush1.msra.mxu0 %v3106
        %3108 = vmatprep.subr.mxu0 0.0
        %3109 = vmatpush1.msra.mxu0 0.0
        %3110 = vmatprep.subr.mxu0 0.0
        %3111 = vmatpush1.msra.mxu0 0.0
        %3112 = vmatprep.subr.mxu0 0.0
        %3113 = vmatpush1.msra.mxu0 0.0
        %3114 = vmatprep.subr.mxu0 0.0
        %3115 = vmatpush1.msra.mxu0 0.0
        %3116 = vmatprep.subr.mxu0 0.0
        %3117 = vmatpush1.msra.mxu0 0.0
        %3118 = vmatprep.subr.mxu0 0.0
        %3119 = vmatpush1.msra.mxu0 0.0
        %3120 = vmatprep.subr.mxu0 0.0
        %3121 = vmatpush1.msra.mxu0 0.0
        %3122 = vmatprep.subr.mxu0 0.0
        %3123 = vmatpush1.msra.mxu0 0.0
        %3124 = vmatprep.subr.mxu0 0.0
        %3125 = vmatpush1.msra.mxu0 0.0
        %3126 = vmatprep.subr.mxu0 0.0
        %3127 = vmatpush1.msra.mxu0 0.0
        %3128 = vmatprep.subr.mxu0 0.0
        %3129 = vmatpush1.msra.mxu0 0.0
        %3130 = vmatprep.subr.mxu0 0.0
        %3131 = vmatpush1.msra.mxu0 0.0
        %3132 = vmatprep.subr.mxu0 0.0
        %3133 = vmatpush1.msra.mxu0 0.0
        %3134 = vmatprep.subr.mxu0 0.0
        %3135 = vmatpush1.msra.mxu0 0.0
        %3136 = vmatprep.subr.mxu0 0.0
        %3137 = vmatpush1.msra.mxu0 0.0
        %3138 = vmatprep.subr.mxu0 0.0
        %3139 = vmatpush1.msra.mxu0 0.0
        %3140 = vmatprep.subr.mxu0 0.0
        %3141 = vmatpush1.msra.mxu0 0.0
        %3142 = vmatprep.subr.mxu0 0.0
        %3143 = vmatpush1.msra.mxu0 0.0
        %3144 = vmatprep.subr.mxu0 0.0
        %3145 = vmatpush1.msra.mxu0 0.0
        %3146 = vmatprep.subr.mxu0 0.0
        %3147 = vmatpush1.msra.mxu0 0.0
        %3148 = vmatprep.subr.mxu0 0.0
        %3149 = vmatpush1.msra.mxu0 0.0
        %3150 = vmatprep.subr.mxu0 0.0
        %3151 = vmatpush1.msra.mxu0 0.0
        %3152 = vmatprep.subr.mxu0 0.0
        %3153 = vmatpush1.msra.mxu0 0.0
        %3154 = vmatprep.subr.mxu0 0.0
        %3155 = vmatpush1.msra.mxu0 0.0
        %3156 = vmatprep.subr.mxu0 0.0
        %3157 = vmatpush1.msra.mxu0 0.0
        %3158 = vmatprep.subr.mxu0 0.0
        %3159 = vmatpush1.msra.mxu0 0.0
        %3160 = vmatprep.subr.mxu0 0.0
        %3161 = vmatpush1.msra.mxu0 0.0
        %3162 = vmatprep.subr.mxu0 0.0
        %3163 = vmatpush1.msra.mxu0 0.0
        %3164 = vmatprep.subr.mxu0 0.0
        %3165 = vmatpush1.msra.mxu0 0.0
        %3166 = vmatprep.subr.mxu0 0.0
        %3167 = vmatpush1.msra.mxu0 0.0
        %3168 = vmatprep.subr.mxu0 0.0
        %3169 = vmatpush1.msra.mxu0 0.0
        %3170 = vmatprep.mubr.f32.mxu0 0.0
        %v3171 = vand.u32 %v2785, 4294901760
        %3172 = vmatmul.mubr.f32.gmra.mrb[0].mxu0 %v3171
        %v3173 = vpop.f32.mrb[0].mxu0
        %v3174 = vadd.f32 %v3096, %v3173
        %v3175 = vpop.f32.mrb[0].mxu0
        %v3176 = vadd.f32 %v3098, %v3175
        %3177 = vdwg.mxu0
        %v3178 = vand.u32 %v1837, 4294901760
        %3179 = vmatprep.subr.mxu0 %v3178
        %v3180 = vand.u32 %v1836, 4294901760
        %3181 = vmatpush1.msra.mxu0 %v3180
        %3182 = vmatprep.subr.mxu0 0.0
        %3183 = vmatpush1.msra.mxu0 0.0
        %3184 = vmatprep.subr.mxu0 0.0
        %3185 = vmatpush1.msra.mxu0 0.0
        %3186 = vmatprep.subr.mxu0 0.0
        %3187 = vmatpush1.msra.mxu0 0.0
        %3188 = vmatprep.subr.mxu0 0.0
        %3189 = vmatpush1.msra.mxu0 0.0
        %3190 = vmatprep.subr.mxu0 0.0
        %3191 = vmatpush1.msra.mxu0 0.0
        %3192 = vmatprep.subr.mxu0 0.0
        %3193 = vmatpush1.msra.mxu0 0.0
        %3194 = vmatprep.subr.mxu0 0.0
        %3195 = vmatpush1.msra.mxu0 0.0
        %3196 = vmatprep.subr.mxu0 0.0
        %3197 = vmatpush1.msra.mxu0 0.0
        %3198 = vmatprep.subr.mxu0 0.0
        %3199 = vmatpush1.msra.mxu0 0.0
        %3200 = vmatprep.subr.mxu0 0.0
        %3201 = vmatpush1.msra.mxu0 0.0
        %3202 = vmatprep.subr.mxu0 0.0
        %3203 = vmatpush1.msra.mxu0 0.0
        %3204 = vmatprep.subr.mxu0 0.0
        %3205 = vmatpush1.msra.mxu0 0.0
        %3206 = vmatprep.subr.mxu0 0.0
        %3207 = vmatpush1.msra.mxu0 0.0
        %3208 = vmatprep.subr.mxu0 0.0
        %3209 = vmatpush1.msra.mxu0 0.0
        %3210 = vmatprep.subr.mxu0 0.0
        %3211 = vmatpush1.msra.mxu0 0.0
        %3212 = vmatprep.subr.mxu0 0.0
        %3213 = vmatpush1.msra.mxu0 0.0
        %3214 = vmatprep.subr.mxu0 0.0
        %3215 = vmatpush1.msra.mxu0 0.0
        %3216 = vmatprep.subr.mxu0 0.0
        %3217 = vmatpush1.msra.mxu0 0.0
        %3218 = vmatprep.subr.mxu0 0.0
        %3219 = vmatpush1.msra.mxu0 0.0
        %3220 = vmatprep.subr.mxu0 0.0
        %3221 = vmatpush1.msra.mxu0 0.0
        %3222 = vmatprep.subr.mxu0 0.0
        %3223 = vmatpush1.msra.mxu0 0.0
        %3224 = vmatprep.subr.mxu0 0.0
        %3225 = vmatpush1.msra.mxu0 0.0
        %3226 = vmatprep.subr.mxu0 0.0
        %3227 = vmatpush1.msra.mxu0 0.0
        %3228 = vmatprep.subr.mxu0 0.0
        %3229 = vmatpush1.msra.mxu0 0.0
        %3230 = vmatprep.subr.mxu0 0.0
        %3231 = vmatpush1.msra.mxu0 0.0
        %3232 = vmatprep.subr.mxu0 0.0
        %3233 = vmatpush1.msra.mxu0 0.0
        %3234 = vmatprep.subr.mxu0 0.0
        %3235 = vmatpush1.msra.mxu0 0.0
        %3236 = vmatprep.subr.mxu0 0.0
        %3237 = vmatpush1.msra.mxu0 0.0
        %3238 = vmatprep.subr.mxu0 0.0
        %3239 = vmatpush1.msra.mxu0 0.0
        %3240 = vmatprep.subr.mxu0 0.0
        %3241 = vmatpush1.msra.mxu0 0.0
        %3242 = vmatprep.subr.mxu0 0.0
        %3243 = vmatpush1.msra.mxu0 0.0
        %3244 = vmatprep.mubr.f32.mxu0 0.0
        %v3245 = vand.u32 %v2785, 4294901760
        %3246 = vmatmul.mubr.f32.gmra.mrb[0].mxu0 %v3245
        %v3247 = vpop.f32.mrb[0].mxu0
        %v3248 = vadd.f32 %v3174, %v3247
        %v3249 = vpop.f32.mrb[0].mxu0
        %v3250 = vadd.f32 %v3176, %v3249
        %3251 = vdwg.mxu0
        %v3252 = vadd.f32 %v2782, %v3248
        %v3253 = vadd.f32 %v2783, %v3250
        %v3254 = vmax.f32 %v3252, 0.0
        %v3255 = vmax.f32 %v3253, 0.0
        %s3256 = smul.u32 %s311, 12
        %s3257 = scalar_lea.vmem %s6, %s3256
        %v3258 = vld [vmem:[%s3257] sm:$0xf]
        %v3259 = vld [vmem:[%s3257 + $0x4] sm:$0xf]
        %v3260 = vld [vmem:[%s3257 + $0x8] sm:$0xf]
        %s3261 = smul.u32 %s311, 4
        %s3262 = scalar_lea.vmem %s7, %s3261
        %v3263 = vld [vmem:[%s3262] sm:$0xf]
        %3264 = vrot.lane.b32.xlu0 %v3254, 1
        %v3265 = vpop.permute.xlu0 %3264
        %3266 = vrot.lane.b32.xlu0 %v3255, 1
        %v3267 = vpop.permute.xlu0 %3266
        %v3268 = vsel %vm330, %v3265, %v3267
        %v3269 = vsel %vm330, %v3267, %v3265
        %v3270 = vmul.f32 %v3269, %v347
        %v3271 = vmul.f32 %v3268, %v351
        %3272 = vrot.lane.b32.xlu0 %v3254, 127
        %v3273 = vpop.permute.xlu0 %3272
        %3274 = vrot.lane.b32.xlu0 %v3255, 127
        %v3275 = vpop.permute.xlu0 %3274
        %v3276 = vsel %vm358, %v3273, %v3275
        %v3277 = vsel %vm358, %v3275, %v3273
        %v3278 = vmul.f32 %v3276, %v374
        %v3279 = vmul.f32 %v3277, %v378
        %v3281 = vsel %vm1838, %v3258, 0
        %v3283 = vand.u32 %v3271, 4294901760
        %3284 = vmatprep.subr.mxu0 %v3283
        %v3285 = vand.u32 %v3270, 4294901760
        %3286 = vmatpush1.msra.mxu0 %v3285
        %3287 = vmatprep.subr.mxu0 0.0
        %3288 = vmatpush1.msra.mxu0 0.0
        %3289 = vmatprep.subr.mxu0 0.0
        %3290 = vmatpush1.msra.mxu0 0.0
        %3291 = vmatprep.subr.mxu0 0.0
        %3292 = vmatpush1.msra.mxu0 0.0
        %3293 = vmatprep.subr.mxu0 0.0
        %3294 = vmatpush1.msra.mxu0 0.0
        %3295 = vmatprep.subr.mxu0 0.0
        %3296 = vmatpush1.msra.mxu0 0.0
        %3297 = vmatprep.subr.mxu0 0.0
        %3298 = vmatpush1.msra.mxu0 0.0
        %3299 = vmatprep.subr.mxu0 0.0
        %3300 = vmatpush1.msra.mxu0 0.0
        %3301 = vmatprep.subr.mxu0 0.0
        %3302 = vmatpush1.msra.mxu0 0.0
        %3303 = vmatprep.subr.mxu0 0.0
        %3304 = vmatpush1.msra.mxu0 0.0
        %3305 = vmatprep.subr.mxu0 0.0
        %3306 = vmatpush1.msra.mxu0 0.0
        %3307 = vmatprep.subr.mxu0 0.0
        %3308 = vmatpush1.msra.mxu0 0.0
        %3309 = vmatprep.subr.mxu0 0.0
        %3310 = vmatpush1.msra.mxu0 0.0
        %3311 = vmatprep.subr.mxu0 0.0
        %3312 = vmatpush1.msra.mxu0 0.0
        %3313 = vmatprep.subr.mxu0 0.0
        %3314 = vmatpush1.msra.mxu0 0.0
        %3315 = vmatprep.subr.mxu0 0.0
        %3316 = vmatpush1.msra.mxu0 0.0
        %3317 = vmatprep.subr.mxu0 0.0
        %3318 = vmatpush1.msra.mxu0 0.0
        %3319 = vmatprep.subr.mxu0 0.0
        %3320 = vmatpush1.msra.mxu0 0.0
        %3321 = vmatprep.subr.mxu0 0.0
        %3322 = vmatpush1.msra.mxu0 0.0
        %3323 = vmatprep.subr.mxu0 0.0
        %3324 = vmatpush1.msra.mxu0 0.0
        %3325 = vmatprep.subr.mxu0 0.0
        %3326 = vmatpush1.msra.mxu0 0.0
        %3327 = vmatprep.subr.mxu0 0.0
        %3328 = vmatpush1.msra.mxu0 0.0
        %3329 = vmatprep.subr.mxu0 0.0
        %3330 = vmatpush1.msra.mxu0 0.0
        %3331 = vmatprep.subr.mxu0 0.0
        %3332 = vmatpush1.msra.mxu0 0.0
        %3333 = vmatprep.subr.mxu0 0.0
        %3334 = vmatpush1.msra.mxu0 0.0
        %3335 = vmatprep.subr.mxu0 0.0
        %3336 = vmatpush1.msra.mxu0 0.0
        %3337 = vmatprep.subr.mxu0 0.0
        %3338 = vmatpush1.msra.mxu0 0.0
        %3339 = vmatprep.subr.mxu0 0.0
        %3340 = vmatpush1.msra.mxu0 0.0
        %3341 = vmatprep.subr.mxu0 0.0
        %3342 = vmatpush1.msra.mxu0 0.0
        %3343 = vmatprep.subr.mxu0 0.0
        %3344 = vmatpush1.msra.mxu0 0.0
        %3345 = vmatprep.subr.mxu0 0.0
        %3346 = vmatpush1.msra.mxu0 0.0
        %3347 = vmatprep.subr.mxu0 0.0
        %3348 = vmatpush1.msra.mxu0 0.0
        %3349 = vmatprep.mubr.f32.mxu0 0.0
        %v3350 = vand.u32 %v3281, 4294901760
        %v3351 = vsub.f32 %v3281, %v3350
        %v3352 = vand.u32 %v3351, 4294901760
        %v3353 = vsub.f32 %v3351, %v3352
        %v3354 = vand.u32 %v3353, 4294901760
        %3355 = vmatmul.mubr.f32.gmra.mrb[0].mxu0 %v3354
        %v3356 = vpop.f32.mrb[0].mxu0
        %v3357 = vadd.f32 0.0, %v3356
        %v3358 = vpop.f32.mrb[0].mxu0
        %v3359 = vadd.f32 0.0, %v3358
        %3360 = vdwg.mxu0
        %v3361 = vand.u32 %v3271, 4294901760
        %v3362 = vsub.f32 %v3271, %v3361
        %v3363 = vand.u32 %v3362, 4294901760
        %v3364 = vsub.f32 %v3362, %v3363
        %v3365 = vand.u32 %v3364, 4294901760
        %3366 = vmatprep.subr.mxu0 %v3365
        %v3367 = vand.u32 %v3270, 4294901760
        %v3368 = vsub.f32 %v3270, %v3367
        %v3369 = vand.u32 %v3368, 4294901760
        %v3370 = vsub.f32 %v3368, %v3369
        %v3371 = vand.u32 %v3370, 4294901760
        %3372 = vmatpush1.msra.mxu0 %v3371
        %3373 = vmatprep.subr.mxu0 0.0
        %3374 = vmatpush1.msra.mxu0 0.0
        %3375 = vmatprep.subr.mxu0 0.0
        %3376 = vmatpush1.msra.mxu0 0.0
        %3377 = vmatprep.subr.mxu0 0.0
        %3378 = vmatpush1.msra.mxu0 0.0
        %3379 = vmatprep.subr.mxu0 0.0
        %3380 = vmatpush1.msra.mxu0 0.0
        %3381 = vmatprep.subr.mxu0 0.0
        %3382 = vmatpush1.msra.mxu0 0.0
        %3383 = vmatprep.subr.mxu0 0.0
        %3384 = vmatpush1.msra.mxu0 0.0
        %3385 = vmatprep.subr.mxu0 0.0
        %3386 = vmatpush1.msra.mxu0 0.0
        %3387 = vmatprep.subr.mxu0 0.0
        %3388 = vmatpush1.msra.mxu0 0.0
        %3389 = vmatprep.subr.mxu0 0.0
        %3390 = vmatpush1.msra.mxu0 0.0
        %3391 = vmatprep.subr.mxu0 0.0
        %3392 = vmatpush1.msra.mxu0 0.0
        %3393 = vmatprep.subr.mxu0 0.0
        %3394 = vmatpush1.msra.mxu0 0.0
        %3395 = vmatprep.subr.mxu0 0.0
        %3396 = vmatpush1.msra.mxu0 0.0
        %3397 = vmatprep.subr.mxu0 0.0
        %3398 = vmatpush1.msra.mxu0 0.0
        %3399 = vmatprep.subr.mxu0 0.0
        %3400 = vmatpush1.msra.mxu0 0.0
        %3401 = vmatprep.subr.mxu0 0.0
        %3402 = vmatpush1.msra.mxu0 0.0
        %3403 = vmatprep.subr.mxu0 0.0
        %3404 = vmatpush1.msra.mxu0 0.0
        %3405 = vmatprep.subr.mxu0 0.0
        %3406 = vmatpush1.msra.mxu0 0.0
        %3407 = vmatprep.subr.mxu0 0.0
        %3408 = vmatpush1.msra.mxu0 0.0
        %3409 = vmatprep.subr.mxu0 0.0
        %3410 = vmatpush1.msra.mxu0 0.0
        %3411 = vmatprep.subr.mxu0 0.0
        %3412 = vmatpush1.msra.mxu0 0.0
        %3413 = vmatprep.subr.mxu0 0.0
        %3414 = vmatpush1.msra.mxu0 0.0
        %3415 = vmatprep.subr.mxu0 0.0
        %3416 = vmatpush1.msra.mxu0 0.0
        %3417 = vmatprep.subr.mxu0 0.0
        %3418 = vmatpush1.msra.mxu0 0.0
        %3419 = vmatprep.subr.mxu0 0.0
        %3420 = vmatpush1.msra.mxu0 0.0
        %3421 = vmatprep.subr.mxu0 0.0
        %3422 = vmatpush1.msra.mxu0 0.0
        %3423 = vmatprep.subr.mxu0 0.0
        %3424 = vmatpush1.msra.mxu0 0.0
        %3425 = vmatprep.subr.mxu0 0.0
        %3426 = vmatpush1.msra.mxu0 0.0
        %3427 = vmatprep.subr.mxu0 0.0
        %3428 = vmatpush1.msra.mxu0 0.0
        %3429 = vmatprep.subr.mxu0 0.0
        %3430 = vmatpush1.msra.mxu0 0.0
        %3431 = vmatprep.subr.mxu0 0.0
        %3432 = vmatpush1.msra.mxu0 0.0
        %3433 = vmatprep.subr.mxu0 0.0
        %3434 = vmatpush1.msra.mxu0 0.0
        %3435 = vmatprep.mubr.f32.mxu0 0.0
        %v3436 = vand.u32 %v3281, 4294901760
        %3437 = vmatmul.mubr.f32.gmra.mrb[0].mxu0 %v3436
        %v3438 = vpop.f32.mrb[0].mxu0
        %v3439 = vadd.f32 %v3357, %v3438
        %v3440 = vpop.f32.mrb[0].mxu0
        %v3441 = vadd.f32 %v3359, %v3440
        %3442 = vdwg.mxu0
        %v3443 = vand.u32 %v3271, 4294901760
        %v3444 = vsub.f32 %v3271, %v3443
        %3445 = vmatprep.subr.mxu0 %v3444
        %v3446 = vand.u32 %v3270, 4294901760
        %v3447 = vsub.f32 %v3270, %v3446
        %3448 = vmatpush1.msra.mxu0 %v3447
        %3449 = vmatprep.subr.mxu0 0.0
        %3450 = vmatpush1.msra.mxu0 0.0
        %3451 = vmatprep.subr.mxu0 0.0
        %3452 = vmatpush1.msra.mxu0 0.0
        %3453 = vmatprep.subr.mxu0 0.0
        %3454 = vmatpush1.msra.mxu0 0.0
        %3455 = vmatprep.subr.mxu0 0.0
        %3456 = vmatpush1.msra.mxu0 0.0
        %3457 = vmatprep.subr.mxu0 0.0
        %3458 = vmatpush1.msra.mxu0 0.0
        %3459 = vmatprep.subr.mxu0 0.0
        %3460 = vmatpush1.msra.mxu0 0.0
        %3461 = vmatprep.subr.mxu0 0.0
        %3462 = vmatpush1.msra.mxu0 0.0
        %3463 = vmatprep.subr.mxu0 0.0
        %3464 = vmatpush1.msra.mxu0 0.0
        %3465 = vmatprep.subr.mxu0 0.0
        %3466 = vmatpush1.msra.mxu0 0.0
        %3467 = vmatprep.subr.mxu0 0.0
        %3468 = vmatpush1.msra.mxu0 0.0
        %3469 = vmatprep.subr.mxu0 0.0
        %3470 = vmatpush1.msra.mxu0 0.0
        %3471 = vmatprep.subr.mxu0 0.0
        %3472 = vmatpush1.msra.mxu0 0.0
        %3473 = vmatprep.subr.mxu0 0.0
        %3474 = vmatpush1.msra.mxu0 0.0
        %3475 = vmatprep.subr.mxu0 0.0
        %3476 = vmatpush1.msra.mxu0 0.0
        %3477 = vmatprep.subr.mxu0 0.0
        %3478 = vmatpush1.msra.mxu0 0.0
        %3479 = vmatprep.subr.mxu0 0.0
        %3480 = vmatpush1.msra.mxu0 0.0
        %3481 = vmatprep.subr.mxu0 0.0
        %3482 = vmatpush1.msra.mxu0 0.0
        %3483 = vmatprep.subr.mxu0 0.0
        %3484 = vmatpush1.msra.mxu0 0.0
        %3485 = vmatprep.subr.mxu0 0.0
        %3486 = vmatpush1.msra.mxu0 0.0
        %3487 = vmatprep.subr.mxu0 0.0
        %3488 = vmatpush1.msra.mxu0 0.0
        %3489 = vmatprep.subr.mxu0 0.0
        %3490 = vmatpush1.msra.mxu0 0.0
        %3491 = vmatprep.subr.mxu0 0.0
        %3492 = vmatpush1.msra.mxu0 0.0
        %3493 = vmatprep.subr.mxu0 0.0
        %3494 = vmatpush1.msra.mxu0 0.0
        %3495 = vmatprep.subr.mxu0 0.0
        %3496 = vmatpush1.msra.mxu0 0.0
        %3497 = vmatprep.subr.mxu0 0.0
        %3498 = vmatpush1.msra.mxu0 0.0
        %3499 = vmatprep.subr.mxu0 0.0
        %3500 = vmatpush1.msra.mxu0 0.0
        %3501 = vmatprep.subr.mxu0 0.0
        %3502 = vmatpush1.msra.mxu0 0.0
        %3503 = vmatprep.subr.mxu0 0.0
        %3504 = vmatpush1.msra.mxu0 0.0
        %3505 = vmatprep.subr.mxu0 0.0
        %3506 = vmatpush1.msra.mxu0 0.0
        %3507 = vmatprep.subr.mxu0 0.0
        %3508 = vmatpush1.msra.mxu0 0.0
        %3509 = vmatprep.subr.mxu0 0.0
        %3510 = vmatpush1.msra.mxu0 0.0
        %3511 = vmatprep.mubr.f32.mxu0 0.0
        %v3512 = vand.u32 %v3281, 4294901760
        %v3513 = vsub.f32 %v3281, %v3512
        %3514 = vmatmul.mubr.f32.gmra.mrb[0].mxu0 %v3513
        %v3515 = vpop.f32.mrb[0].mxu0
        %v3516 = vadd.f32 %v3439, %v3515
        %v3517 = vpop.f32.mrb[0].mxu0
        %v3518 = vadd.f32 %v3441, %v3517
        %3519 = vdwg.mxu0
        %v3520 = vand.u32 %v3271, 4294901760
        %3521 = vmatprep.subr.mxu0 %v3520
        %v3522 = vand.u32 %v3270, 4294901760
        %3523 = vmatpush1.msra.mxu0 %v3522
        %3524 = vmatprep.subr.mxu0 0.0
        %3525 = vmatpush1.msra.mxu0 0.0
        %3526 = vmatprep.subr.mxu0 0.0
        %3527 = vmatpush1.msra.mxu0 0.0
        %3528 = vmatprep.subr.mxu0 0.0
        %3529 = vmatpush1.msra.mxu0 0.0
        %3530 = vmatprep.subr.mxu0 0.0
        %3531 = vmatpush1.msra.mxu0 0.0
        %3532 = vmatprep.subr.mxu0 0.0
        %3533 = vmatpush1.msra.mxu0 0.0
        %3534 = vmatprep.subr.mxu0 0.0
        %3535 = vmatpush1.msra.mxu0 0.0
        %3536 = vmatprep.subr.mxu0 0.0
        %3537 = vmatpush1.msra.mxu0 0.0
        %3538 = vmatprep.subr.mxu0 0.0
        %3539 = vmatpush1.msra.mxu0 0.0
        %3540 = vmatprep.subr.mxu0 0.0
        %3541 = vmatpush1.msra.mxu0 0.0
        %3542 = vmatprep.subr.mxu0 0.0
        %3543 = vmatpush1.msra.mxu0 0.0
        %3544 = vmatprep.subr.mxu0 0.0
        %3545 = vmatpush1.msra.mxu0 0.0
        %3546 = vmatprep.subr.mxu0 0.0
        %3547 = vmatpush1.msra.mxu0 0.0
        %3548 = vmatprep.subr.mxu0 0.0
        %3549 = vmatpush1.msra.mxu0 0.0
        %3550 = vmatprep.subr.mxu0 0.0
        %3551 = vmatpush1.msra.mxu0 0.0
        %3552 = vmatprep.subr.mxu0 0.0
        %3553 = vmatpush1.msra.mxu0 0.0
        %3554 = vmatprep.subr.mxu0 0.0
        %3555 = vmatpush1.msra.mxu0 0.0
        %3556 = vmatprep.subr.mxu0 0.0
        %3557 = vmatpush1.msra.mxu0 0.0
        %3558 = vmatprep.subr.mxu0 0.0
        %3559 = vmatpush1.msra.mxu0 0.0
        %3560 = vmatprep.subr.mxu0 0.0
        %3561 = vmatpush1.msra.mxu0 0.0
        %3562 = vmatprep.subr.mxu0 0.0
        %3563 = vmatpush1.msra.mxu0 0.0
        %3564 = vmatprep.subr.mxu0 0.0
        %3565 = vmatpush1.msra.mxu0 0.0
        %3566 = vmatprep.subr.mxu0 0.0
        %3567 = vmatpush1.msra.mxu0 0.0
        %3568 = vmatprep.subr.mxu0 0.0
        %3569 = vmatpush1.msra.mxu0 0.0
        %3570 = vmatprep.subr.mxu0 0.0
        %3571 = vmatpush1.msra.mxu0 0.0
        %3572 = vmatprep.subr.mxu0 0.0
        %3573 = vmatpush1.msra.mxu0 0.0
        %3574 = vmatprep.subr.mxu0 0.0
        %3575 = vmatpush1.msra.mxu0 0.0
        %3576 = vmatprep.subr.mxu0 0.0
        %3577 = vmatpush1.msra.mxu0 0.0
        %3578 = vmatprep.subr.mxu0 0.0
        %3579 = vmatpush1.msra.mxu0 0.0
        %3580 = vmatprep.subr.mxu0 0.0
        %3581 = vmatpush1.msra.mxu0 0.0
        %3582 = vmatprep.subr.mxu0 0.0
        %3583 = vmatpush1.msra.mxu0 0.0
        %3584 = vmatprep.subr.mxu0 0.0
        %3585 = vmatpush1.msra.mxu0 0.0
        %3586 = vmatprep.mubr.f32.mxu0 0.0
        %v3587 = vand.u32 %v3281, 4294901760
        %v3588 = vsub.f32 %v3281, %v3587
        %v3589 = vand.u32 %v3588, 4294901760
        %3590 = vmatmul.mubr.f32.gmra.mrb[0].mxu0 %v3589
        %v3591 = vpop.f32.mrb[0].mxu0
        %v3592 = vadd.f32 %v3516, %v3591
        %v3593 = vpop.f32.mrb[0].mxu0
        %v3594 = vadd.f32 %v3518, %v3593
        %3595 = vdwg.mxu0
        %v3596 = vand.u32 %v3271, 4294901760
        %v3597 = vsub.f32 %v3271, %v3596
        %v3598 = vand.u32 %v3597, 4294901760
        %3599 = vmatprep.subr.mxu0 %v3598
        %v3600 = vand.u32 %v3270, 4294901760
        %v3601 = vsub.f32 %v3270, %v3600
        %v3602 = vand.u32 %v3601, 4294901760
        %3603 = vmatpush1.msra.mxu0 %v3602
        %3604 = vmatprep.subr.mxu0 0.0
        %3605 = vmatpush1.msra.mxu0 0.0
        %3606 = vmatprep.subr.mxu0 0.0
        %3607 = vmatpush1.msra.mxu0 0.0
        %3608 = vmatprep.subr.mxu0 0.0
        %3609 = vmatpush1.msra.mxu0 0.0
        %3610 = vmatprep.subr.mxu0 0.0
        %3611 = vmatpush1.msra.mxu0 0.0
        %3612 = vmatprep.subr.mxu0 0.0
        %3613 = vmatpush1.msra.mxu0 0.0
        %3614 = vmatprep.subr.mxu0 0.0
        %3615 = vmatpush1.msra.mxu0 0.0
        %3616 = vmatprep.subr.mxu0 0.0
        %3617 = vmatpush1.msra.mxu0 0.0
        %3618 = vmatprep.subr.mxu0 0.0
        %3619 = vmatpush1.msra.mxu0 0.0
        %3620 = vmatprep.subr.mxu0 0.0
        %3621 = vmatpush1.msra.mxu0 0.0
        %3622 = vmatprep.subr.mxu0 0.0
        %3623 = vmatpush1.msra.mxu0 0.0
        %3624 = vmatprep.subr.mxu0 0.0
        %3625 = vmatpush1.msra.mxu0 0.0
        %3626 = vmatprep.subr.mxu0 0.0
        %3627 = vmatpush1.msra.mxu0 0.0
        %3628 = vmatprep.subr.mxu0 0.0
        %3629 = vmatpush1.msra.mxu0 0.0
        %3630 = vmatprep.subr.mxu0 0.0
        %3631 = vmatpush1.msra.mxu0 0.0
        %3632 = vmatprep.subr.mxu0 0.0
        %3633 = vmatpush1.msra.mxu0 0.0
        %3634 = vmatprep.subr.mxu0 0.0
        %3635 = vmatpush1.msra.mxu0 0.0
        %3636 = vmatprep.subr.mxu0 0.0
        %3637 = vmatpush1.msra.mxu0 0.0
        %3638 = vmatprep.subr.mxu0 0.0
        %3639 = vmatpush1.msra.mxu0 0.0
        %3640 = vmatprep.subr.mxu0 0.0
        %3641 = vmatpush1.msra.mxu0 0.0
        %3642 = vmatprep.subr.mxu0 0.0
        %3643 = vmatpush1.msra.mxu0 0.0
        %3644 = vmatprep.subr.mxu0 0.0
        %3645 = vmatpush1.msra.mxu0 0.0
        %3646 = vmatprep.subr.mxu0 0.0
        %3647 = vmatpush1.msra.mxu0 0.0
        %3648 = vmatprep.subr.mxu0 0.0
        %3649 = vmatpush1.msra.mxu0 0.0
        %3650 = vmatprep.subr.mxu0 0.0
        %3651 = vmatpush1.msra.mxu0 0.0
        %3652 = vmatprep.subr.mxu0 0.0
        %3653 = vmatpush1.msra.mxu0 0.0
        %3654 = vmatprep.subr.mxu0 0.0
        %3655 = vmatpush1.msra.mxu0 0.0
        %3656 = vmatprep.subr.mxu0 0.0
        %3657 = vmatpush1.msra.mxu0 0.0
        %3658 = vmatprep.subr.mxu0 0.0
        %3659 = vmatpush1.msra.mxu0 0.0
        %3660 = vmatprep.subr.mxu0 0.0
        %3661 = vmatpush1.msra.mxu0 0.0
        %3662 = vmatprep.subr.mxu0 0.0
        %3663 = vmatpush1.msra.mxu0 0.0
        %3664 = vmatprep.subr.mxu0 0.0
        %3665 = vmatpush1.msra.mxu0 0.0
        %3666 = vmatprep.mubr.f32.mxu0 0.0
        %v3667 = vand.u32 %v3281, 4294901760
        %3668 = vmatmul.mubr.f32.gmra.mrb[0].mxu0 %v3667
        %v3669 = vpop.f32.mrb[0].mxu0
        %v3670 = vadd.f32 %v3592, %v3669
        %v3671 = vpop.f32.mrb[0].mxu0
        %v3672 = vadd.f32 %v3594, %v3671
        %3673 = vdwg.mxu0
        %v3674 = vand.u32 %v3271, 4294901760
        %3675 = vmatprep.subr.mxu0 %v3674
        %v3676 = vand.u32 %v3270, 4294901760
        %3677 = vmatpush1.msra.mxu0 %v3676
        %3678 = vmatprep.subr.mxu0 0.0
        %3679 = vmatpush1.msra.mxu0 0.0
        %3680 = vmatprep.subr.mxu0 0.0
        %3681 = vmatpush1.msra.mxu0 0.0
        %3682 = vmatprep.subr.mxu0 0.0
        %3683 = vmatpush1.msra.mxu0 0.0
        %3684 = vmatprep.subr.mxu0 0.0
        %3685 = vmatpush1.msra.mxu0 0.0
        %3686 = vmatprep.subr.mxu0 0.0
        %3687 = vmatpush1.msra.mxu0 0.0
        %3688 = vmatprep.subr.mxu0 0.0
        %3689 = vmatpush1.msra.mxu0 0.0
        %3690 = vmatprep.subr.mxu0 0.0
        %3691 = vmatpush1.msra.mxu0 0.0
        %3692 = vmatprep.subr.mxu0 0.0
        %3693 = vmatpush1.msra.mxu0 0.0
        %3694 = vmatprep.subr.mxu0 0.0
        %3695 = vmatpush1.msra.mxu0 0.0
        %3696 = vmatprep.subr.mxu0 0.0
        %3697 = vmatpush1.msra.mxu0 0.0
        %3698 = vmatprep.subr.mxu0 0.0
        %3699 = vmatpush1.msra.mxu0 0.0
        %3700 = vmatprep.subr.mxu0 0.0
        %3701 = vmatpush1.msra.mxu0 0.0
        %3702 = vmatprep.subr.mxu0 0.0
        %3703 = vmatpush1.msra.mxu0 0.0
        %3704 = vmatprep.subr.mxu0 0.0
        %3705 = vmatpush1.msra.mxu0 0.0
        %3706 = vmatprep.subr.mxu0 0.0
        %3707 = vmatpush1.msra.mxu0 0.0
        %3708 = vmatprep.subr.mxu0 0.0
        %3709 = vmatpush1.msra.mxu0 0.0
        %3710 = vmatprep.subr.mxu0 0.0
        %3711 = vmatpush1.msra.mxu0 0.0
        %3712 = vmatprep.subr.mxu0 0.0
        %3713 = vmatpush1.msra.mxu0 0.0
        %3714 = vmatprep.subr.mxu0 0.0
        %3715 = vmatpush1.msra.mxu0 0.0
        %3716 = vmatprep.subr.mxu0 0.0
        %3717 = vmatpush1.msra.mxu0 0.0
        %3718 = vmatprep.subr.mxu0 0.0
        %3719 = vmatpush1.msra.mxu0 0.0
        %3720 = vmatprep.subr.mxu0 0.0
        %3721 = vmatpush1.msra.mxu0 0.0
        %3722 = vmatprep.subr.mxu0 0.0
        %3723 = vmatpush1.msra.mxu0 0.0
        %3724 = vmatprep.subr.mxu0 0.0
        %3725 = vmatpush1.msra.mxu0 0.0
        %3726 = vmatprep.subr.mxu0 0.0
        %3727 = vmatpush1.msra.mxu0 0.0
        %3728 = vmatprep.subr.mxu0 0.0
        %3729 = vmatpush1.msra.mxu0 0.0
        %3730 = vmatprep.subr.mxu0 0.0
        %3731 = vmatpush1.msra.mxu0 0.0
        %3732 = vmatprep.subr.mxu0 0.0
        %3733 = vmatpush1.msra.mxu0 0.0
        %3734 = vmatprep.subr.mxu0 0.0
        %3735 = vmatpush1.msra.mxu0 0.0
        %3736 = vmatprep.subr.mxu0 0.0
        %3737 = vmatpush1.msra.mxu0 0.0
        %3738 = vmatprep.subr.mxu0 0.0
        %3739 = vmatpush1.msra.mxu0 0.0
        %3740 = vmatprep.mubr.f32.mxu0 0.0
        %v3741 = vand.u32 %v3281, 4294901760
        %3742 = vmatmul.mubr.f32.gmra.mrb[0].mxu0 %v3741
        %v3743 = vpop.f32.mrb[0].mxu0
        %v3744 = vadd.f32 %v3670, %v3743
        %v3745 = vpop.f32.mrb[0].mxu0
        %v3746 = vadd.f32 %v3672, %v3745
        %3747 = vdwg.mxu0
        %3749 = vset.pattern.permute.xlu0 0
        %3750 = vperm.xlu0 %3749, %v3263
        %v3751 = vpop.permute.xlu0 %3750
        %v3753 = vadd.f32 %v3751, %v3744
        %v3754 = vadd.f32 %v3751, %v3746
        %v3756 = vsel %vm1838, %v3259, 0
        %v3758 = vand.u32 %v3255, 4294901760
        %3759 = vmatprep.subr.mxu0 %v3758
        %v3760 = vand.u32 %v3254, 4294901760
        %3761 = vmatpush1.msra.mxu0 %v3760
        %3762 = vmatprep.subr.mxu0 0.0
        %3763 = vmatpush1.msra.mxu0 0.0
        %3764 = vmatprep.subr.mxu0 0.0
        %3765 = vmatpush1.msra.mxu0 0.0
        %3766 = vmatprep.subr.mxu0 0.0
        %3767 = vmatpush1.msra.mxu0 0.0
        %3768 = vmatprep.subr.mxu0 0.0
        %3769 = vmatpush1.msra.mxu0 0.0
        %3770 = vmatprep.subr.mxu0 0.0
        %3771 = vmatpush1.msra.mxu0 0.0
        %3772 = vmatprep.subr.mxu0 0.0
        %3773 = vmatpush1.msra.mxu0 0.0
        %3774 = vmatprep.subr.mxu0 0.0
        %3775 = vmatpush1.msra.mxu0 0.0
        %3776 = vmatprep.subr.mxu0 0.0
        %3777 = vmatpush1.msra.mxu0 0.0
        %3778 = vmatprep.subr.mxu0 0.0
        %3779 = vmatpush1.msra.mxu0 0.0
        %3780 = vmatprep.subr.mxu0 0.0
        %3781 = vmatpush1.msra.mxu0 0.0
        %3782 = vmatprep.subr.mxu0 0.0
        %3783 = vmatpush1.msra.mxu0 0.0
        %3784 = vmatprep.subr.mxu0 0.0
        %3785 = vmatpush1.msra.mxu0 0.0
        %3786 = vmatprep.subr.mxu0 0.0
        %3787 = vmatpush1.msra.mxu0 0.0
        %3788 = vmatprep.subr.mxu0 0.0
        %3789 = vmatpush1.msra.mxu0 0.0
        %3790 = vmatprep.subr.mxu0 0.0
        %3791 = vmatpush1.msra.mxu0 0.0
        %3792 = vmatprep.subr.mxu0 0.0
        %3793 = vmatpush1.msra.mxu0 0.0
        %3794 = vmatprep.subr.mxu0 0.0
        %3795 = vmatpush1.msra.mxu0 0.0
        %3796 = vmatprep.subr.mxu0 0.0
        %3797 = vmatpush1.msra.mxu0 0.0
        %3798 = vmatprep.subr.mxu0 0.0
        %3799 = vmatpush1.msra.mxu0 0.0
        %3800 = vmatprep.subr.mxu0 0.0
        %3801 = vmatpush1.msra.mxu0 0.0
        %3802 = vmatprep.subr.mxu0 0.0
        %3803 = vmatpush1.msra.mxu0 0.0
        %3804 = vmatprep.subr.mxu0 0.0
        %3805 = vmatpush1.msra.mxu0 0.0
        %3806 = vmatprep.subr.mxu0 0.0
        %3807 = vmatpush1.msra.mxu0 0.0
        %3808 = vmatprep.subr.mxu0 0.0
        %3809 = vmatpush1.msra.mxu0 0.0
        %3810 = vmatprep.subr.mxu0 0.0
        %3811 = vmatpush1.msra.mxu0 0.0
        %3812 = vmatprep.subr.mxu0 0.0
        %3813 = vmatpush1.msra.mxu0 0.0
        %3814 = vmatprep.subr.mxu0 0.0
        %3815 = vmatpush1.msra.mxu0 0.0
        %3816 = vmatprep.subr.mxu0 0.0
        %3817 = vmatpush1.msra.mxu0 0.0
        %3818 = vmatprep.subr.mxu0 0.0
        %3819 = vmatpush1.msra.mxu0 0.0
        %3820 = vmatprep.subr.mxu0 0.0
        %3821 = vmatpush1.msra.mxu0 0.0
        %3822 = vmatprep.subr.mxu0 0.0
        %3823 = vmatpush1.msra.mxu0 0.0
        %3824 = vmatprep.mubr.f32.mxu0 0.0
        %v3825 = vand.u32 %v3756, 4294901760
        %v3826 = vsub.f32 %v3756, %v3825
        %v3827 = vand.u32 %v3826, 4294901760
        %v3828 = vsub.f32 %v3826, %v3827
        %v3829 = vand.u32 %v3828, 4294901760
        %3830 = vmatmul.mubr.f32.gmra.mrb[0].mxu0 %v3829
        %v3831 = vpop.f32.mrb[0].mxu0
        %v3832 = vadd.f32 0.0, %v3831
        %v3833 = vpop.f32.mrb[0].mxu0
        %v3834 = vadd.f32 0.0, %v3833
        %3835 = vdwg.mxu0
        %v3836 = vand.u32 %v3255, 4294901760
        %v3837 = vsub.f32 %v3255, %v3836
        %v3838 = vand.u32 %v3837, 4294901760
        %v3839 = vsub.f32 %v3837, %v3838
        %v3840 = vand.u32 %v3839, 4294901760
        %3841 = vmatprep.subr.mxu0 %v3840
        %v3842 = vand.u32 %v3254, 4294901760
        %v3843 = vsub.f32 %v3254, %v3842
        %v3844 = vand.u32 %v3843, 4294901760
        %v3845 = vsub.f32 %v3843, %v3844
        %v3846 = vand.u32 %v3845, 4294901760
        %3847 = vmatpush1.msra.mxu0 %v3846
        %3848 = vmatprep.subr.mxu0 0.0
        %3849 = vmatpush1.msra.mxu0 0.0
        %3850 = vmatprep.subr.mxu0 0.0
        %3851 = vmatpush1.msra.mxu0 0.0
        %3852 = vmatprep.subr.mxu0 0.0
        %3853 = vmatpush1.msra.mxu0 0.0
        %3854 = vmatprep.subr.mxu0 0.0
        %3855 = vmatpush1.msra.mxu0 0.0
        %3856 = vmatprep.subr.mxu0 0.0
        %3857 = vmatpush1.msra.mxu0 0.0
        %3858 = vmatprep.subr.mxu0 0.0
        %3859 = vmatpush1.msra.mxu0 0.0
        %3860 = vmatprep.subr.mxu0 0.0
        %3861 = vmatpush1.msra.mxu0 0.0
        %3862 = vmatprep.subr.mxu0 0.0
        %3863 = vmatpush1.msra.mxu0 0.0
        %3864 = vmatprep.subr.mxu0 0.0
        %3865 = vmatpush1.msra.mxu0 0.0
        %3866 = vmatprep.subr.mxu0 0.0
        %3867 = vmatpush1.msra.mxu0 0.0
        %3868 = vmatprep.subr.mxu0 0.0
        %3869 = vmatpush1.msra.mxu0 0.0
        %3870 = vmatprep.subr.mxu0 0.0
        %3871 = vmatpush1.msra.mxu0 0.0
        %3872 = vmatprep.subr.mxu0 0.0
        %3873 = vmatpush1.msra.mxu0 0.0
        %3874 = vmatprep.subr.mxu0 0.0
        %3875 = vmatpush1.msra.mxu0 0.0
        %3876 = vmatprep.subr.mxu0 0.0
        %3877 = vmatpush1.msra.mxu0 0.0
        %3878 = vmatprep.subr.mxu0 0.0
        %3879 = vmatpush1.msra.mxu0 0.0
        %3880 = vmatprep.subr.mxu0 0.0
        %3881 = vmatpush1.msra.mxu0 0.0
        %3882 = vmatprep.subr.mxu0 0.0
        %3883 = vmatpush1.msra.mxu0 0.0
        %3884 = vmatprep.subr.mxu0 0.0
        %3885 = vmatpush1.msra.mxu0 0.0
        %3886 = vmatprep.subr.mxu0 0.0
        %3887 = vmatpush1.msra.mxu0 0.0
        %3888 = vmatprep.subr.mxu0 0.0
        %3889 = vmatpush1.msra.mxu0 0.0
        %3890 = vmatprep.subr.mxu0 0.0
        %3891 = vmatpush1.msra.mxu0 0.0
        %3892 = vmatprep.subr.mxu0 0.0
        %3893 = vmatpush1.msra.mxu0 0.0
        %3894 = vmatprep.subr.mxu0 0.0
        %3895 = vmatpush1.msra.mxu0 0.0
        %3896 = vmatprep.subr.mxu0 0.0
        %3897 = vmatpush1.msra.mxu0 0.0
        %3898 = vmatprep.subr.mxu0 0.0
        %3899 = vmatpush1.msra.mxu0 0.0
        %3900 = vmatprep.subr.mxu0 0.0
        %3901 = vmatpush1.msra.mxu0 0.0
        %3902 = vmatprep.subr.mxu0 0.0
        %3903 = vmatpush1.msra.mxu0 0.0
        %3904 = vmatprep.subr.mxu0 0.0
        %3905 = vmatpush1.msra.mxu0 0.0
        %3906 = vmatprep.subr.mxu0 0.0
        %3907 = vmatpush1.msra.mxu0 0.0
        %3908 = vmatprep.subr.mxu0 0.0
        %3909 = vmatpush1.msra.mxu0 0.0
        %3910 = vmatprep.mubr.f32.mxu0 0.0
        %v3911 = vand.u32 %v3756, 4294901760
        %3912 = vmatmul.mubr.f32.gmra.mrb[0].mxu0 %v3911
        %v3913 = vpop.f32.mrb[0].mxu0
        %v3914 = vadd.f32 %v3832, %v3913
        %v3915 = vpop.f32.mrb[0].mxu0
        %v3916 = vadd.f32 %v3834, %v3915
        %3917 = vdwg.mxu0
        %v3918 = vand.u32 %v3255, 4294901760
        %v3919 = vsub.f32 %v3255, %v3918
        %3920 = vmatprep.subr.mxu0 %v3919
        %v3921 = vand.u32 %v3254, 4294901760
        %v3922 = vsub.f32 %v3254, %v3921
        %3923 = vmatpush1.msra.mxu0 %v3922
        %3924 = vmatprep.subr.mxu0 0.0
        %3925 = vmatpush1.msra.mxu0 0.0
        %3926 = vmatprep.subr.mxu0 0.0
        %3927 = vmatpush1.msra.mxu0 0.0
        %3928 = vmatprep.subr.mxu0 0.0
        %3929 = vmatpush1.msra.mxu0 0.0
        %3930 = vmatprep.subr.mxu0 0.0
        %3931 = vmatpush1.msra.mxu0 0.0
        %3932 = vmatprep.subr.mxu0 0.0
        %3933 = vmatpush1.msra.mxu0 0.0
        %3934 = vmatprep.subr.mxu0 0.0
        %3935 = vmatpush1.msra.mxu0 0.0
        %3936 = vmatprep.subr.mxu0 0.0
        %3937 = vmatpush1.msra.mxu0 0.0
        %3938 = vmatprep.subr.mxu0 0.0
        %3939 = vmatpush1.msra.mxu0 0.0
        %3940 = vmatprep.subr.mxu0 0.0
        %3941 = vmatpush1.msra.mxu0 0.0
        %3942 = vmatprep.subr.mxu0 0.0
        %3943 = vmatpush1.msra.mxu0 0.0
        %3944 = vmatprep.subr.mxu0 0.0
        %3945 = vmatpush1.msra.mxu0 0.0
        %3946 = vmatprep.subr.mxu0 0.0
        %3947 = vmatpush1.msra.mxu0 0.0
        %3948 = vmatprep.subr.mxu0 0.0
        %3949 = vmatpush1.msra.mxu0 0.0
        %3950 = vmatprep.subr.mxu0 0.0
        %3951 = vmatpush1.msra.mxu0 0.0
        %3952 = vmatprep.subr.mxu0 0.0
        %3953 = vmatpush1.msra.mxu0 0.0
        %3954 = vmatprep.subr.mxu0 0.0
        %3955 = vmatpush1.msra.mxu0 0.0
        %3956 = vmatprep.subr.mxu0 0.0
        %3957 = vmatpush1.msra.mxu0 0.0
        %3958 = vmatprep.subr.mxu0 0.0
        %3959 = vmatpush1.msra.mxu0 0.0
        %3960 = vmatprep.subr.mxu0 0.0
        %3961 = vmatpush1.msra.mxu0 0.0
        %3962 = vmatprep.subr.mxu0 0.0
        %3963 = vmatpush1.msra.mxu0 0.0
        %3964 = vmatprep.subr.mxu0 0.0
        %3965 = vmatpush1.msra.mxu0 0.0
        %3966 = vmatprep.subr.mxu0 0.0
        %3967 = vmatpush1.msra.mxu0 0.0
        %3968 = vmatprep.subr.mxu0 0.0
        %3969 = vmatpush1.msra.mxu0 0.0
        %3970 = vmatprep.subr.mxu0 0.0
        %3971 = vmatpush1.msra.mxu0 0.0
        %3972 = vmatprep.subr.mxu0 0.0
        %3973 = vmatpush1.msra.mxu0 0.0
        %3974 = vmatprep.subr.mxu0 0.0
        %3975 = vmatpush1.msra.mxu0 0.0
        %3976 = vmatprep.subr.mxu0 0.0
        %3977 = vmatpush1.msra.mxu0 0.0
        %3978 = vmatprep.subr.mxu0 0.0
        %3979 = vmatpush1.msra.mxu0 0.0
        %3980 = vmatprep.subr.mxu0 0.0
        %3981 = vmatpush1.msra.mxu0 0.0
        %3982 = vmatprep.subr.mxu0 0.0
        %3983 = vmatpush1.msra.mxu0 0.0
        %3984 = vmatprep.subr.mxu0 0.0
        %3985 = vmatpush1.msra.mxu0 0.0
        %3986 = vmatprep.mubr.f32.mxu0 0.0
        %v3987 = vand.u32 %v3756, 4294901760
        %v3988 = vsub.f32 %v3756, %v3987
        %3989 = vmatmul.mubr.f32.gmra.mrb[0].mxu0 %v3988
        %v3990 = vpop.f32.mrb[0].mxu0
        %v3991 = vadd.f32 %v3914, %v3990
        %v3992 = vpop.f32.mrb[0].mxu0
        %v3993 = vadd.f32 %v3916, %v3992
        %3994 = vdwg.mxu0
        %v3995 = vand.u32 %v3255, 4294901760
        %3996 = vmatprep.subr.mxu0 %v3995
        %v3997 = vand.u32 %v3254, 4294901760
        %3998 = vmatpush1.msra.mxu0 %v3997
        %3999 = vmatprep.subr.mxu0 0.0
        %4000 = vmatpush1.msra.mxu0 0.0
        %4001 = vmatprep.subr.mxu0 0.0
        %4002 = vmatpush1.msra.mxu0 0.0
        %4003 = vmatprep.subr.mxu0 0.0
        %4004 = vmatpush1.msra.mxu0 0.0
        %4005 = vmatprep.subr.mxu0 0.0
        %4006 = vmatpush1.msra.mxu0 0.0
        %4007 = vmatprep.subr.mxu0 0.0
        %4008 = vmatpush1.msra.mxu0 0.0
        %4009 = vmatprep.subr.mxu0 0.0
        %4010 = vmatpush1.msra.mxu0 0.0
        %4011 = vmatprep.subr.mxu0 0.0
        %4012 = vmatpush1.msra.mxu0 0.0
        %4013 = vmatprep.subr.mxu0 0.0
        %4014 = vmatpush1.msra.mxu0 0.0
        %4015 = vmatprep.subr.mxu0 0.0
        %4016 = vmatpush1.msra.mxu0 0.0
        %4017 = vmatprep.subr.mxu0 0.0
        %4018 = vmatpush1.msra.mxu0 0.0
        %4019 = vmatprep.subr.mxu0 0.0
        %4020 = vmatpush1.msra.mxu0 0.0
        %4021 = vmatprep.subr.mxu0 0.0
        %4022 = vmatpush1.msra.mxu0 0.0
        %4023 = vmatprep.subr.mxu0 0.0
        %4024 = vmatpush1.msra.mxu0 0.0
        %4025 = vmatprep.subr.mxu0 0.0
        %4026 = vmatpush1.msra.mxu0 0.0
        %4027 = vmatprep.subr.mxu0 0.0
        %4028 = vmatpush1.msra.mxu0 0.0
        %4029 = vmatprep.subr.mxu0 0.0
        %4030 = vmatpush1.msra.mxu0 0.0
        %4031 = vmatprep.subr.mxu0 0.0
        %4032 = vmatpush1.msra.mxu0 0.0
        %4033 = vmatprep.subr.mxu0 0.0
        %4034 = vmatpush1.msra.mxu0 0.0
        %4035 = vmatprep.subr.mxu0 0.0
        %4036 = vmatpush1.msra.mxu0 0.0
        %4037 = vmatprep.subr.mxu0 0.0
        %4038 = vmatpush1.msra.mxu0 0.0
        %4039 = vmatprep.subr.mxu0 0.0
        %4040 = vmatpush1.msra.mxu0 0.0
        %4041 = vmatprep.subr.mxu0 0.0
        %4042 = vmatpush1.msra.mxu0 0.0
        %4043 = vmatprep.subr.mxu0 0.0
        %4044 = vmatpush1.msra.mxu0 0.0
        %4045 = vmatprep.subr.mxu0 0.0
        %4046 = vmatpush1.msra.mxu0 0.0
        %4047 = vmatprep.subr.mxu0 0.0
        %4048 = vmatpush1.msra.mxu0 0.0
        %4049 = vmatprep.subr.mxu0 0.0
        %4050 = vmatpush1.msra.mxu0 0.0
        %4051 = vmatprep.subr.mxu0 0.0
        %4052 = vmatpush1.msra.mxu0 0.0
        %4053 = vmatprep.subr.mxu0 0.0
        %4054 = vmatpush1.msra.mxu0 0.0
        %4055 = vmatprep.subr.mxu0 0.0
        %4056 = vmatpush1.msra.mxu0 0.0
        %4057 = vmatprep.subr.mxu0 0.0
        %4058 = vmatpush1.msra.mxu0 0.0
        %4059 = vmatprep.subr.mxu0 0.0
        %4060 = vmatpush1.msra.mxu0 0.0
        %4061 = vmatprep.mubr.f32.mxu0 0.0
        %v4062 = vand.u32 %v3756, 4294901760
        %v4063 = vsub.f32 %v3756, %v4062
        %v4064 = vand.u32 %v4063, 4294901760
        %4065 = vmatmul.mubr.f32.gmra.mrb[0].mxu0 %v4064
        %v4066 = vpop.f32.mrb[0].mxu0
        %v4067 = vadd.f32 %v3991, %v4066
        %v4068 = vpop.f32.mrb[0].mxu0
        %v4069 = vadd.f32 %v3993, %v4068
        %4070 = vdwg.mxu0
        %v4071 = vand.u32 %v3255, 4294901760
        %v4072 = vsub.f32 %v3255, %v4071
        %v4073 = vand.u32 %v4072, 4294901760
        %4074 = vmatprep.subr.mxu0 %v4073
        %v4075 = vand.u32 %v3254, 4294901760
        %v4076 = vsub.f32 %v3254, %v4075
        %v4077 = vand.u32 %v4076, 4294901760
        %4078 = vmatpush1.msra.mxu0 %v4077
        %4079 = vmatprep.subr.mxu0 0.0
        %4080 = vmatpush1.msra.mxu0 0.0
        %4081 = vmatprep.subr.mxu0 0.0
        %4082 = vmatpush1.msra.mxu0 0.0
        %4083 = vmatprep.subr.mxu0 0.0
        %4084 = vmatpush1.msra.mxu0 0.0
        %4085 = vmatprep.subr.mxu0 0.0
        %4086 = vmatpush1.msra.mxu0 0.0
        %4087 = vmatprep.subr.mxu0 0.0
        %4088 = vmatpush1.msra.mxu0 0.0
        %4089 = vmatprep.subr.mxu0 0.0
        %4090 = vmatpush1.msra.mxu0 0.0
        %4091 = vmatprep.subr.mxu0 0.0
        %4092 = vmatpush1.msra.mxu0 0.0
        %4093 = vmatprep.subr.mxu0 0.0
        %4094 = vmatpush1.msra.mxu0 0.0
        %4095 = vmatprep.subr.mxu0 0.0
        %4096 = vmatpush1.msra.mxu0 0.0
        %4097 = vmatprep.subr.mxu0 0.0
        %4098 = vmatpush1.msra.mxu0 0.0
        %4099 = vmatprep.subr.mxu0 0.0
        %4100 = vmatpush1.msra.mxu0 0.0
        %4101 = vmatprep.subr.mxu0 0.0
        %4102 = vmatpush1.msra.mxu0 0.0
        %4103 = vmatprep.subr.mxu0 0.0
        %4104 = vmatpush1.msra.mxu0 0.0
        %4105 = vmatprep.subr.mxu0 0.0
        %4106 = vmatpush1.msra.mxu0 0.0
        %4107 = vmatprep.subr.mxu0 0.0
        %4108 = vmatpush1.msra.mxu0 0.0
        %4109 = vmatprep.subr.mxu0 0.0
        %4110 = vmatpush1.msra.mxu0 0.0
        %4111 = vmatprep.subr.mxu0 0.0
        %4112 = vmatpush1.msra.mxu0 0.0
        %4113 = vmatprep.subr.mxu0 0.0
        %4114 = vmatpush1.msra.mxu0 0.0
        %4115 = vmatprep.subr.mxu0 0.0
        %4116 = vmatpush1.msra.mxu0 0.0
        %4117 = vmatprep.subr.mxu0 0.0
        %4118 = vmatpush1.msra.mxu0 0.0
        %4119 = vmatprep.subr.mxu0 0.0
        %4120 = vmatpush1.msra.mxu0 0.0
        %4121 = vmatprep.subr.mxu0 0.0
        %4122 = vmatpush1.msra.mxu0 0.0
        %4123 = vmatprep.subr.mxu0 0.0
        %4124 = vmatpush1.msra.mxu0 0.0
        %4125 = vmatprep.subr.mxu0 0.0
        %4126 = vmatpush1.msra.mxu0 0.0
        %4127 = vmatprep.subr.mxu0 0.0
        %4128 = vmatpush1.msra.mxu0 0.0
        %4129 = vmatprep.subr.mxu0 0.0
        %4130 = vmatpush1.msra.mxu0 0.0
        %4131 = vmatprep.subr.mxu0 0.0
        %4132 = vmatpush1.msra.mxu0 0.0
        %4133 = vmatprep.subr.mxu0 0.0
        %4134 = vmatpush1.msra.mxu0 0.0
        %4135 = vmatprep.subr.mxu0 0.0
        %4136 = vmatpush1.msra.mxu0 0.0
        %4137 = vmatprep.subr.mxu0 0.0
        %4138 = vmatpush1.msra.mxu0 0.0
        %4139 = vmatprep.subr.mxu0 0.0
        %4140 = vmatpush1.msra.mxu0 0.0
        %4141 = vmatprep.mubr.f32.mxu0 0.0
        %v4142 = vand.u32 %v3756, 4294901760
        %4143 = vmatmul.mubr.f32.gmra.mrb[0].mxu0 %v4142
        %v4144 = vpop.f32.mrb[0].mxu0
        %v4145 = vadd.f32 %v4067, %v4144
        %v4146 = vpop.f32.mrb[0].mxu0
        %v4147 = vadd.f32 %v4069, %v4146
        %4148 = vdwg.mxu0
        %v4149 = vand.u32 %v3255, 4294901760
        %4150 = vmatprep.subr.mxu0 %v4149
        %v4151 = vand.u32 %v3254, 4294901760
        %4152 = vmatpush1.msra.mxu0 %v4151
        %4153 = vmatprep.subr.mxu0 0.0
        %4154 = vmatpush1.msra.mxu0 0.0
        %4155 = vmatprep.subr.mxu0 0.0
        %4156 = vmatpush1.msra.mxu0 0.0
        %4157 = vmatprep.subr.mxu0 0.0
        %4158 = vmatpush1.msra.mxu0 0.0
        %4159 = vmatprep.subr.mxu0 0.0
        %4160 = vmatpush1.msra.mxu0 0.0
        %4161 = vmatprep.subr.mxu0 0.0
        %4162 = vmatpush1.msra.mxu0 0.0
        %4163 = vmatprep.subr.mxu0 0.0
        %4164 = vmatpush1.msra.mxu0 0.0
        %4165 = vmatprep.subr.mxu0 0.0
        %4166 = vmatpush1.msra.mxu0 0.0
        %4167 = vmatprep.subr.mxu0 0.0
        %4168 = vmatpush1.msra.mxu0 0.0
        %4169 = vmatprep.subr.mxu0 0.0
        %4170 = vmatpush1.msra.mxu0 0.0
        %4171 = vmatprep.subr.mxu0 0.0
        %4172 = vmatpush1.msra.mxu0 0.0
        %4173 = vmatprep.subr.mxu0 0.0
        %4174 = vmatpush1.msra.mxu0 0.0
        %4175 = vmatprep.subr.mxu0 0.0
        %4176 = vmatpush1.msra.mxu0 0.0
        %4177 = vmatprep.subr.mxu0 0.0
        %4178 = vmatpush1.msra.mxu0 0.0
        %4179 = vmatprep.subr.mxu0 0.0
        %4180 = vmatpush1.msra.mxu0 0.0
        %4181 = vmatprep.subr.mxu0 0.0
        %4182 = vmatpush1.msra.mxu0 0.0
        %4183 = vmatprep.subr.mxu0 0.0
        %4184 = vmatpush1.msra.mxu0 0.0
        %4185 = vmatprep.subr.mxu0 0.0
        %4186 = vmatpush1.msra.mxu0 0.0
        %4187 = vmatprep.subr.mxu0 0.0
        %4188 = vmatpush1.msra.mxu0 0.0
        %4189 = vmatprep.subr.mxu0 0.0
        %4190 = vmatpush1.msra.mxu0 0.0
        %4191 = vmatprep.subr.mxu0 0.0
        %4192 = vmatpush1.msra.mxu0 0.0
        %4193 = vmatprep.subr.mxu0 0.0
        %4194 = vmatpush1.msra.mxu0 0.0
        %4195 = vmatprep.subr.mxu0 0.0
        %4196 = vmatpush1.msra.mxu0 0.0
        %4197 = vmatprep.subr.mxu0 0.0
        %4198 = vmatpush1.msra.mxu0 0.0
        %4199 = vmatprep.subr.mxu0 0.0
        %4200 = vmatpush1.msra.mxu0 0.0
        %4201 = vmatprep.subr.mxu0 0.0
        %4202 = vmatpush1.msra.mxu0 0.0
        %4203 = vmatprep.subr.mxu0 0.0
        %4204 = vmatpush1.msra.mxu0 0.0
        %4205 = vmatprep.subr.mxu0 0.0
        %4206 = vmatpush1.msra.mxu0 0.0
        %4207 = vmatprep.subr.mxu0 0.0
        %4208 = vmatpush1.msra.mxu0 0.0
        %4209 = vmatprep.subr.mxu0 0.0
        %4210 = vmatpush1.msra.mxu0 0.0
        %4211 = vmatprep.subr.mxu0 0.0
        %4212 = vmatpush1.msra.mxu0 0.0
        %4213 = vmatprep.subr.mxu0 0.0
        %4214 = vmatpush1.msra.mxu0 0.0
        %4215 = vmatprep.mubr.f32.mxu0 0.0
        %v4216 = vand.u32 %v3756, 4294901760
        %4217 = vmatmul.mubr.f32.gmra.mrb[0].mxu0 %v4216
        %v4218 = vpop.f32.mrb[0].mxu0
        %v4219 = vadd.f32 %v4145, %v4218
        %v4220 = vpop.f32.mrb[0].mxu0
        %v4221 = vadd.f32 %v4147, %v4220
        %4222 = vdwg.mxu0
        %v4223 = vadd.f32 %v3753, %v4219
        %v4224 = vadd.f32 %v3754, %v4221
        %v4226 = vsel %vm1838, %v3260, 0
        %v4228 = vand.u32 %v3279, 4294901760
        %4229 = vmatprep.subr.mxu0 %v4228
        %v4230 = vand.u32 %v3278, 4294901760
        %4231 = vmatpush1.msra.mxu0 %v4230
        %4232 = vmatprep.subr.mxu0 0.0
        %4233 = vmatpush1.msra.mxu0 0.0
        %4234 = vmatprep.subr.mxu0 0.0
        %4235 = vmatpush1.msra.mxu0 0.0
        %4236 = vmatprep.subr.mxu0 0.0
        %4237 = vmatpush1.msra.mxu0 0.0
        %4238 = vmatprep.subr.mxu0 0.0
        %4239 = vmatpush1.msra.mxu0 0.0
        %4240 = vmatprep.subr.mxu0 0.0
        %4241 = vmatpush1.msra.mxu0 0.0
        %4242 = vmatprep.subr.mxu0 0.0
        %4243 = vmatpush1.msra.mxu0 0.0
        %4244 = vmatprep.subr.mxu0 0.0
        %4245 = vmatpush1.msra.mxu0 0.0
        %4246 = vmatprep.subr.mxu0 0.0
        %4247 = vmatpush1.msra.mxu0 0.0
        %4248 = vmatprep.subr.mxu0 0.0
        %4249 = vmatpush1.msra.mxu0 0.0
        %4250 = vmatprep.subr.mxu0 0.0
        %4251 = vmatpush1.msra.mxu0 0.0
        %4252 = vmatprep.subr.mxu0 0.0
        %4253 = vmatpush1.msra.mxu0 0.0
        %4254 = vmatprep.subr.mxu0 0.0
        %4255 = vmatpush1.msra.mxu0 0.0
        %4256 = vmatprep.subr.mxu0 0.0
        %4257 = vmatpush1.msra.mxu0 0.0
        %4258 = vmatprep.subr.mxu0 0.0
        %4259 = vmatpush1.msra.mxu0 0.0
        %4260 = vmatprep.subr.mxu0 0.0
        %4261 = vmatpush1.msra.mxu0 0.0
        %4262 = vmatprep.subr.mxu0 0.0
        %4263 = vmatpush1.msra.mxu0 0.0
        %4264 = vmatprep.subr.mxu0 0.0
        %4265 = vmatpush1.msra.mxu0 0.0
        %4266 = vmatprep.subr.mxu0 0.0
        %4267 = vmatpush1.msra.mxu0 0.0
        %4268 = vmatprep.subr.mxu0 0.0
        %4269 = vmatpush1.msra.mxu0 0.0
        %4270 = vmatprep.subr.mxu0 0.0
        %4271 = vmatpush1.msra.mxu0 0.0
        %4272 = vmatprep.subr.mxu0 0.0
        %4273 = vmatpush1.msra.mxu0 0.0
        %4274 = vmatprep.subr.mxu0 0.0
        %4275 = vmatpush1.msra.mxu0 0.0
        %4276 = vmatprep.subr.mxu0 0.0
        %4277 = vmatpush1.msra.mxu0 0.0
        %4278 = vmatprep.subr.mxu0 0.0
        %4279 = vmatpush1.msra.mxu0 0.0
        %4280 = vmatprep.subr.mxu0 0.0
        %4281 = vmatpush1.msra.mxu0 0.0
        %4282 = vmatprep.subr.mxu0 0.0
        %4283 = vmatpush1.msra.mxu0 0.0
        %4284 = vmatprep.subr.mxu0 0.0
        %4285 = vmatpush1.msra.mxu0 0.0
        %4286 = vmatprep.subr.mxu0 0.0
        %4287 = vmatpush1.msra.mxu0 0.0
        %4288 = vmatprep.subr.mxu0 0.0
        %4289 = vmatpush1.msra.mxu0 0.0
        %4290 = vmatprep.subr.mxu0 0.0
        %4291 = vmatpush1.msra.mxu0 0.0
        %4292 = vmatprep.subr.mxu0 0.0
        %4293 = vmatpush1.msra.mxu0 0.0
        %4294 = vmatprep.mubr.f32.mxu0 0.0
        %v4295 = vand.u32 %v4226, 4294901760
        %v4296 = vsub.f32 %v4226, %v4295
        %v4297 = vand.u32 %v4296, 4294901760
        %v4298 = vsub.f32 %v4296, %v4297
        %v4299 = vand.u32 %v4298, 4294901760
        %4300 = vmatmul.mubr.f32.gmra.mrb[0].mxu0 %v4299
        %v4301 = vpop.f32.mrb[0].mxu0
        %v4302 = vadd.f32 0.0, %v4301
        %v4303 = vpop.f32.mrb[0].mxu0
        %v4304 = vadd.f32 0.0, %v4303
        %4305 = vdwg.mxu0
        %v4306 = vand.u32 %v3279, 4294901760
        %v4307 = vsub.f32 %v3279, %v4306
        %v4308 = vand.u32 %v4307, 4294901760
        %v4309 = vsub.f32 %v4307, %v4308
        %v4310 = vand.u32 %v4309, 4294901760
        %4311 = vmatprep.subr.mxu0 %v4310
        %v4312 = vand.u32 %v3278, 4294901760
        %v4313 = vsub.f32 %v3278, %v4312
        %v4314 = vand.u32 %v4313, 4294901760
        %v4315 = vsub.f32 %v4313, %v4314
        %v4316 = vand.u32 %v4315, 4294901760
        %4317 = vmatpush1.msra.mxu0 %v4316
        %4318 = vmatprep.subr.mxu0 0.0
        %4319 = vmatpush1.msra.mxu0 0.0
        %4320 = vmatprep.subr.mxu0 0.0
        %4321 = vmatpush1.msra.mxu0 0.0
        %4322 = vmatprep.subr.mxu0 0.0
        %4323 = vmatpush1.msra.mxu0 0.0
        %4324 = vmatprep.subr.mxu0 0.0
        %4325 = vmatpush1.msra.mxu0 0.0
        %4326 = vmatprep.subr.mxu0 0.0
        %4327 = vmatpush1.msra.mxu0 0.0
        %4328 = vmatprep.subr.mxu0 0.0
        %4329 = vmatpush1.msra.mxu0 0.0
        %4330 = vmatprep.subr.mxu0 0.0
        %4331 = vmatpush1.msra.mxu0 0.0
        %4332 = vmatprep.subr.mxu0 0.0
        %4333 = vmatpush1.msra.mxu0 0.0
        %4334 = vmatprep.subr.mxu0 0.0
        %4335 = vmatpush1.msra.mxu0 0.0
        %4336 = vmatprep.subr.mxu0 0.0
        %4337 = vmatpush1.msra.mxu0 0.0
        %4338 = vmatprep.subr.mxu0 0.0
        %4339 = vmatpush1.msra.mxu0 0.0
        %4340 = vmatprep.subr.mxu0 0.0
        %4341 = vmatpush1.msra.mxu0 0.0
        %4342 = vmatprep.subr.mxu0 0.0
        %4343 = vmatpush1.msra.mxu0 0.0
        %4344 = vmatprep.subr.mxu0 0.0
        %4345 = vmatpush1.msra.mxu0 0.0
        %4346 = vmatprep.subr.mxu0 0.0
        %4347 = vmatpush1.msra.mxu0 0.0
        %4348 = vmatprep.subr.mxu0 0.0
        %4349 = vmatpush1.msra.mxu0 0.0
        %4350 = vmatprep.subr.mxu0 0.0
        %4351 = vmatpush1.msra.mxu0 0.0
        %4352 = vmatprep.subr.mxu0 0.0
        %4353 = vmatpush1.msra.mxu0 0.0
        %4354 = vmatprep.subr.mxu0 0.0
        %4355 = vmatpush1.msra.mxu0 0.0
        %4356 = vmatprep.subr.mxu0 0.0
        %4357 = vmatpush1.msra.mxu0 0.0
        %4358 = vmatprep.subr.mxu0 0.0
        %4359 = vmatpush1.msra.mxu0 0.0
        %4360 = vmatprep.subr.mxu0 0.0
        %4361 = vmatpush1.msra.mxu0 0.0
        %4362 = vmatprep.subr.mxu0 0.0
        %4363 = vmatpush1.msra.mxu0 0.0
        %4364 = vmatprep.subr.mxu0 0.0
        %4365 = vmatpush1.msra.mxu0 0.0
        %4366 = vmatprep.subr.mxu0 0.0
        %4367 = vmatpush1.msra.mxu0 0.0
        %4368 = vmatprep.subr.mxu0 0.0
        %4369 = vmatpush1.msra.mxu0 0.0
        %4370 = vmatprep.subr.mxu0 0.0
        %4371 = vmatpush1.msra.mxu0 0.0
        %4372 = vmatprep.subr.mxu0 0.0
        %4373 = vmatpush1.msra.mxu0 0.0
        %4374 = vmatprep.subr.mxu0 0.0
        %4375 = vmatpush1.msra.mxu0 0.0
        %4376 = vmatprep.subr.mxu0 0.0
        %4377 = vmatpush1.msra.mxu0 0.0
        %4378 = vmatprep.subr.mxu0 0.0
        %4379 = vmatpush1.msra.mxu0 0.0
        %4380 = vmatprep.mubr.f32.mxu0 0.0
        %v4381 = vand.u32 %v4226, 4294901760
        %4382 = vmatmul.mubr.f32.gmra.mrb[0].mxu0 %v4381
        %v4383 = vpop.f32.mrb[0].mxu0
        %v4384 = vadd.f32 %v4302, %v4383
        %v4385 = vpop.f32.mrb[0].mxu0
        %v4386 = vadd.f32 %v4304, %v4385
        %4387 = vdwg.mxu0
        %v4388 = vand.u32 %v3279, 4294901760
        %v4389 = vsub.f32 %v3279, %v4388
        %4390 = vmatprep.subr.mxu0 %v4389
        %v4391 = vand.u32 %v3278, 4294901760
        %v4392 = vsub.f32 %v3278, %v4391
        %4393 = vmatpush1.msra.mxu0 %v4392
        %4394 = vmatprep.subr.mxu0 0.0
        %4395 = vmatpush1.msra.mxu0 0.0
        %4396 = vmatprep.subr.mxu0 0.0
        %4397 = vmatpush1.msra.mxu0 0.0
        %4398 = vmatprep.subr.mxu0 0.0
        %4399 = vmatpush1.msra.mxu0 0.0
        %4400 = vmatprep.subr.mxu0 0.0
        %4401 = vmatpush1.msra.mxu0 0.0
        %4402 = vmatprep.subr.mxu0 0.0
        %4403 = vmatpush1.msra.mxu0 0.0
        %4404 = vmatprep.subr.mxu0 0.0
        %4405 = vmatpush1.msra.mxu0 0.0
        %4406 = vmatprep.subr.mxu0 0.0
        %4407 = vmatpush1.msra.mxu0 0.0
        %4408 = vmatprep.subr.mxu0 0.0
        %4409 = vmatpush1.msra.mxu0 0.0
        %4410 = vmatprep.subr.mxu0 0.0
        %4411 = vmatpush1.msra.mxu0 0.0
        %4412 = vmatprep.subr.mxu0 0.0
        %4413 = vmatpush1.msra.mxu0 0.0
        %4414 = vmatprep.subr.mxu0 0.0
        %4415 = vmatpush1.msra.mxu0 0.0
        %4416 = vmatprep.subr.mxu0 0.0
        %4417 = vmatpush1.msra.mxu0 0.0
        %4418 = vmatprep.subr.mxu0 0.0
        %4419 = vmatpush1.msra.mxu0 0.0
        %4420 = vmatprep.subr.mxu0 0.0
        %4421 = vmatpush1.msra.mxu0 0.0
        %4422 = vmatprep.subr.mxu0 0.0
        %4423 = vmatpush1.msra.mxu0 0.0
        %4424 = vmatprep.subr.mxu0 0.0
        %4425 = vmatpush1.msra.mxu0 0.0
        %4426 = vmatprep.subr.mxu0 0.0
        %4427 = vmatpush1.msra.mxu0 0.0
        %4428 = vmatprep.subr.mxu0 0.0
        %4429 = vmatpush1.msra.mxu0 0.0
        %4430 = vmatprep.subr.mxu0 0.0
        %4431 = vmatpush1.msra.mxu0 0.0
        %4432 = vmatprep.subr.mxu0 0.0
        %4433 = vmatpush1.msra.mxu0 0.0
        %4434 = vmatprep.subr.mxu0 0.0
        %4435 = vmatpush1.msra.mxu0 0.0
        %4436 = vmatprep.subr.mxu0 0.0
        %4437 = vmatpush1.msra.mxu0 0.0
        %4438 = vmatprep.subr.mxu0 0.0
        %4439 = vmatpush1.msra.mxu0 0.0
        %4440 = vmatprep.subr.mxu0 0.0
        %4441 = vmatpush1.msra.mxu0 0.0
        %4442 = vmatprep.subr.mxu0 0.0
        %4443 = vmatpush1.msra.mxu0 0.0
        %4444 = vmatprep.subr.mxu0 0.0
        %4445 = vmatpush1.msra.mxu0 0.0
        %4446 = vmatprep.subr.mxu0 0.0
        %4447 = vmatpush1.msra.mxu0 0.0
        %4448 = vmatprep.subr.mxu0 0.0
        %4449 = vmatpush1.msra.mxu0 0.0
        %4450 = vmatprep.subr.mxu0 0.0
        %4451 = vmatpush1.msra.mxu0 0.0
        %4452 = vmatprep.subr.mxu0 0.0
        %4453 = vmatpush1.msra.mxu0 0.0
        %4454 = vmatprep.subr.mxu0 0.0
        %4455 = vmatpush1.msra.mxu0 0.0
        %4456 = vmatprep.mubr.f32.mxu0 0.0
        %v4457 = vand.u32 %v4226, 4294901760
        %v4458 = vsub.f32 %v4226, %v4457
        %4459 = vmatmul.mubr.f32.gmra.mrb[0].mxu0 %v4458
        %v4460 = vpop.f32.mrb[0].mxu0
        %v4461 = vadd.f32 %v4384, %v4460
        %v4462 = vpop.f32.mrb[0].mxu0
        %v4463 = vadd.f32 %v4386, %v4462
        %4464 = vdwg.mxu0
        %v4465 = vand.u32 %v3279, 4294901760
        %4466 = vmatprep.subr.mxu0 %v4465
        %v4467 = vand.u32 %v3278, 4294901760
        %4468 = vmatpush1.msra.mxu0 %v4467
        %4469 = vmatprep.subr.mxu0 0.0
        %4470 = vmatpush1.msra.mxu0 0.0
        %4471 = vmatprep.subr.mxu0 0.0
        %4472 = vmatpush1.msra.mxu0 0.0
        %4473 = vmatprep.subr.mxu0 0.0
        %4474 = vmatpush1.msra.mxu0 0.0
        %4475 = vmatprep.subr.mxu0 0.0
        %4476 = vmatpush1.msra.mxu0 0.0
        %4477 = vmatprep.subr.mxu0 0.0
        %4478 = vmatpush1.msra.mxu0 0.0
        %4479 = vmatprep.subr.mxu0 0.0
        %4480 = vmatpush1.msra.mxu0 0.0
        %4481 = vmatprep.subr.mxu0 0.0
        %4482 = vmatpush1.msra.mxu0 0.0
        %4483 = vmatprep.subr.mxu0 0.0
        %4484 = vmatpush1.msra.mxu0 0.0
        %4485 = vmatprep.subr.mxu0 0.0
        %4486 = vmatpush1.msra.mxu0 0.0
        %4487 = vmatprep.subr.mxu0 0.0
        %4488 = vmatpush1.msra.mxu0 0.0
        %4489 = vmatprep.subr.mxu0 0.0
        %4490 = vmatpush1.msra.mxu0 0.0
        %4491 = vmatprep.subr.mxu0 0.0
        %4492 = vmatpush1.msra.mxu0 0.0
        %4493 = vmatprep.subr.mxu0 0.0
        %4494 = vmatpush1.msra.mxu0 0.0
        %4495 = vmatprep.subr.mxu0 0.0
        %4496 = vmatpush1.msra.mxu0 0.0
        %4497 = vmatprep.subr.mxu0 0.0
        %4498 = vmatpush1.msra.mxu0 0.0
        %4499 = vmatprep.subr.mxu0 0.0
        %4500 = vmatpush1.msra.mxu0 0.0
        %4501 = vmatprep.subr.mxu0 0.0
        %4502 = vmatpush1.msra.mxu0 0.0
        %4503 = vmatprep.subr.mxu0 0.0
        %4504 = vmatpush1.msra.mxu0 0.0
        %4505 = vmatprep.subr.mxu0 0.0
        %4506 = vmatpush1.msra.mxu0 0.0
        %4507 = vmatprep.subr.mxu0 0.0
        %4508 = vmatpush1.msra.mxu0 0.0
        %4509 = vmatprep.subr.mxu0 0.0
        %4510 = vmatpush1.msra.mxu0 0.0
        %4511 = vmatprep.subr.mxu0 0.0
        %4512 = vmatpush1.msra.mxu0 0.0
        %4513 = vmatprep.subr.mxu0 0.0
        %4514 = vmatpush1.msra.mxu0 0.0
        %4515 = vmatprep.subr.mxu0 0.0
        %4516 = vmatpush1.msra.mxu0 0.0
        %4517 = vmatprep.subr.mxu0 0.0
        %4518 = vmatpush1.msra.mxu0 0.0
        %4519 = vmatprep.subr.mxu0 0.0
        %4520 = vmatpush1.msra.mxu0 0.0
        %4521 = vmatprep.subr.mxu0 0.0
        %4522 = vmatpush1.msra.mxu0 0.0
        %4523 = vmatprep.subr.mxu0 0.0
        %4524 = vmatpush1.msra.mxu0 0.0
        %4525 = vmatprep.subr.mxu0 0.0
        %4526 = vmatpush1.msra.mxu0 0.0
        %4527 = vmatprep.subr.mxu0 0.0
        %4528 = vmatpush1.msra.mxu0 0.0
        %4529 = vmatprep.subr.mxu0 0.0
        %4530 = vmatpush1.msra.mxu0 0.0
        %4531 = vmatprep.mubr.f32.mxu0 0.0
        %v4532 = vand.u32 %v4226, 4294901760
        %v4533 = vsub.f32 %v4226, %v4532
        %v4534 = vand.u32 %v4533, 4294901760
        %4535 = vmatmul.mubr.f32.gmra.mrb[0].mxu0 %v4534
        %v4536 = vpop.f32.mrb[0].mxu0
        %v4537 = vadd.f32 %v4461, %v4536
        %v4538 = vpop.f32.mrb[0].mxu0
        %v4539 = vadd.f32 %v4463, %v4538
        %4540 = vdwg.mxu0
        %v4541 = vand.u32 %v3279, 4294901760
        %v4542 = vsub.f32 %v3279, %v4541
        %v4543 = vand.u32 %v4542, 4294901760
        %4544 = vmatprep.subr.mxu0 %v4543
        %v4545 = vand.u32 %v3278, 4294901760
        %v4546 = vsub.f32 %v3278, %v4545
        %v4547 = vand.u32 %v4546, 4294901760
        %4548 = vmatpush1.msra.mxu0 %v4547
        %4549 = vmatprep.subr.mxu0 0.0
        %4550 = vmatpush1.msra.mxu0 0.0
        %4551 = vmatprep.subr.mxu0 0.0
        %4552 = vmatpush1.msra.mxu0 0.0
        %4553 = vmatprep.subr.mxu0 0.0
        %4554 = vmatpush1.msra.mxu0 0.0
        %4555 = vmatprep.subr.mxu0 0.0
        %4556 = vmatpush1.msra.mxu0 0.0
        %4557 = vmatprep.subr.mxu0 0.0
        %4558 = vmatpush1.msra.mxu0 0.0
        %4559 = vmatprep.subr.mxu0 0.0
        %4560 = vmatpush1.msra.mxu0 0.0
        %4561 = vmatprep.subr.mxu0 0.0
        %4562 = vmatpush1.msra.mxu0 0.0
        %4563 = vmatprep.subr.mxu0 0.0
        %4564 = vmatpush1.msra.mxu0 0.0
        %4565 = vmatprep.subr.mxu0 0.0
        %4566 = vmatpush1.msra.mxu0 0.0
        %4567 = vmatprep.subr.mxu0 0.0
        %4568 = vmatpush1.msra.mxu0 0.0
        %4569 = vmatprep.subr.mxu0 0.0
        %4570 = vmatpush1.msra.mxu0 0.0
        %4571 = vmatprep.subr.mxu0 0.0
        %4572 = vmatpush1.msra.mxu0 0.0
        %4573 = vmatprep.subr.mxu0 0.0
        %4574 = vmatpush1.msra.mxu0 0.0
        %4575 = vmatprep.subr.mxu0 0.0
        %4576 = vmatpush1.msra.mxu0 0.0
        %4577 = vmatprep.subr.mxu0 0.0
        %4578 = vmatpush1.msra.mxu0 0.0
        %4579 = vmatprep.subr.mxu0 0.0
        %4580 = vmatpush1.msra.mxu0 0.0
        %4581 = vmatprep.subr.mxu0 0.0
        %4582 = vmatpush1.msra.mxu0 0.0
        %4583 = vmatprep.subr.mxu0 0.0
        %4584 = vmatpush1.msra.mxu0 0.0
        %4585 = vmatprep.subr.mxu0 0.0
        %4586 = vmatpush1.msra.mxu0 0.0
        %4587 = vmatprep.subr.mxu0 0.0
        %4588 = vmatpush1.msra.mxu0 0.0
        %4589 = vmatprep.subr.mxu0 0.0
        %4590 = vmatpush1.msra.mxu0 0.0
        %4591 = vmatprep.subr.mxu0 0.0
        %4592 = vmatpush1.msra.mxu0 0.0
        %4593 = vmatprep.subr.mxu0 0.0
        %4594 = vmatpush1.msra.mxu0 0.0
        %4595 = vmatprep.subr.mxu0 0.0
        %4596 = vmatpush1.msra.mxu0 0.0
        %4597 = vmatprep.subr.mxu0 0.0
        %4598 = vmatpush1.msra.mxu0 0.0
        %4599 = vmatprep.subr.mxu0 0.0
        %4600 = vmatpush1.msra.mxu0 0.0
        %4601 = vmatprep.subr.mxu0 0.0
        %4602 = vmatpush1.msra.mxu0 0.0
        %4603 = vmatprep.subr.mxu0 0.0
        %4604 = vmatpush1.msra.mxu0 0.0
        %4605 = vmatprep.subr.mxu0 0.0
        %4606 = vmatpush1.msra.mxu0 0.0
        %4607 = vmatprep.subr.mxu0 0.0
        %4608 = vmatpush1.msra.mxu0 0.0
        %4609 = vmatprep.subr.mxu0 0.0
        %4610 = vmatpush1.msra.mxu0 0.0
        %4611 = vmatprep.mubr.f32.mxu0 0.0
        %v4612 = vand.u32 %v4226, 4294901760
        %4613 = vmatmul.mubr.f32.gmra.mrb[0].mxu0 %v4612
        %v4614 = vpop.f32.mrb[0].mxu0
        %v4615 = vadd.f32 %v4537, %v4614
        %v4616 = vpop.f32.mrb[0].mxu0
        %v4617 = vadd.f32 %v4539, %v4616
        %4618 = vdwg.mxu0
        %v4619 = vand.u32 %v3279, 4294901760
        %4620 = vmatprep.subr.mxu0 %v4619
        %v4621 = vand.u32 %v3278, 4294901760
        %4622 = vmatpush1.msra.mxu0 %v4621
        %4623 = vmatprep.subr.mxu0 0.0
        %4624 = vmatpush1.msra.mxu0 0.0
        %4625 = vmatprep.subr.mxu0 0.0
        %4626 = vmatpush1.msra.mxu0 0.0
        %4627 = vmatprep.subr.mxu0 0.0
        %4628 = vmatpush1.msra.mxu0 0.0
        %4629 = vmatprep.subr.mxu0 0.0
        %4630 = vmatpush1.msra.mxu0 0.0
        %4631 = vmatprep.subr.mxu0 0.0
        %4632 = vmatpush1.msra.mxu0 0.0
        %4633 = vmatprep.subr.mxu0 0.0
        %4634 = vmatpush1.msra.mxu0 0.0
        %4635 = vmatprep.subr.mxu0 0.0
        %4636 = vmatpush1.msra.mxu0 0.0
        %4637 = vmatprep.subr.mxu0 0.0
        %4638 = vmatpush1.msra.mxu0 0.0
        %4639 = vmatprep.subr.mxu0 0.0
        %4640 = vmatpush1.msra.mxu0 0.0
        %4641 = vmatprep.subr.mxu0 0.0
        %4642 = vmatpush1.msra.mxu0 0.0
        %4643 = vmatprep.subr.mxu0 0.0
        %4644 = vmatpush1.msra.mxu0 0.0
        %4645 = vmatprep.subr.mxu0 0.0
        %4646 = vmatpush1.msra.mxu0 0.0
        %4647 = vmatprep.subr.mxu0 0.0
        %4648 = vmatpush1.msra.mxu0 0.0
        %4649 = vmatprep.subr.mxu0 0.0
        %4650 = vmatpush1.msra.mxu0 0.0
        %4651 = vmatprep.subr.mxu0 0.0
        %4652 = vmatpush1.msra.mxu0 0.0
        %4653 = vmatprep.subr.mxu0 0.0
        %4654 = vmatpush1.msra.mxu0 0.0
        %4655 = vmatprep.subr.mxu0 0.0
        %4656 = vmatpush1.msra.mxu0 0.0
        %4657 = vmatprep.subr.mxu0 0.0
        %4658 = vmatpush1.msra.mxu0 0.0
        %4659 = vmatprep.subr.mxu0 0.0
        %4660 = vmatpush1.msra.mxu0 0.0
        %4661 = vmatprep.subr.mxu0 0.0
        %4662 = vmatpush1.msra.mxu0 0.0
        %4663 = vmatprep.subr.mxu0 0.0
        %4664 = vmatpush1.msra.mxu0 0.0
        %4665 = vmatprep.subr.mxu0 0.0
        %4666 = vmatpush1.msra.mxu0 0.0
        %4667 = vmatprep.subr.mxu0 0.0
        %4668 = vmatpush1.msra.mxu0 0.0
        %4669 = vmatprep.subr.mxu0 0.0
        %4670 = vmatpush1.msra.mxu0 0.0
        %4671 = vmatprep.subr.mxu0 0.0
        %4672 = vmatpush1.msra.mxu0 0.0
        %4673 = vmatprep.subr.mxu0 0.0
        %4674 = vmatpush1.msra.mxu0 0.0
        %4675 = vmatprep.subr.mxu0 0.0
        %4676 = vmatpush1.msra.mxu0 0.0
        %4677 = vmatprep.subr.mxu0 0.0
        %4678 = vmatpush1.msra.mxu0 0.0
        %4679 = vmatprep.subr.mxu0 0.0
        %4680 = vmatpush1.msra.mxu0 0.0
        %4681 = vmatprep.subr.mxu0 0.0
        %4682 = vmatpush1.msra.mxu0 0.0
        %4683 = vmatprep.subr.mxu0 0.0
        %4684 = vmatpush1.msra.mxu0 0.0
        %4685 = vmatprep.mubr.f32.mxu0 0.0
        %v4686 = vand.u32 %v4226, 4294901760
        %4687 = vmatmul.mubr.f32.gmra.mrb[0].mxu0 %v4686
        %v4688 = vpop.f32.mrb[0].mxu0
        %v4689 = vadd.f32 %v4615, %v4688
        %v4690 = vpop.f32.mrb[0].mxu0
        %v4691 = vadd.f32 %v4617, %v4690
        %4692 = vdwg.mxu0
        %v4693 = vadd.f32 %v4223, %v4689
        %v4694 = vadd.f32 %v4224, %v4691
        %v4697 = vcombine.low %v4693, %v4694
        %v4699 = vmul.f32 %v312, %v4697
        %v4701 = vcombine.high %v4699, %v4699
        %vm4703 = vcmask 1041408
        %v4704 = vsel %vm4703, %v4699, 0.0
        %v4705 = vrot.slane %v4704, 4
        %v4706 = vadd.f32 %v4704, %v4705
        %v4707 = vrot.slane %v4706, 2
        %v4708 = vadd.f32 %v4706, %v4707
        %v4709 = vrot.slane %v4708, 1
        %v4710 = vadd.f32 %v4708, %v4709
        %v4711 = vsel %vm4703, %v4701, 0.0
        %v4712 = vrot.slane %v4711, 4
        %v4713 = vadd.f32 %v4711, %v4712
        %v4714 = vrot.slane %v4713, 2
        %v4715 = vadd.f32 %v4713, %v4714
        %v4716 = vrot.slane %v4715, 1
        %v4717 = vadd.f32 %v4715, %v4716
        %v4718 = vrot.slane %v4699, 2
        %v4719 = vrot.slane %v4701, 2
        %v4722 = vsel %vm4703, %v4718, 0.0
        %v4723 = vrot.slane %v4722, 4
        %v4724 = vadd.f32 %v4722, %v4723
        %v4725 = vrot.slane %v4724, 2
        %v4726 = vadd.f32 %v4724, %v4725
        %v4727 = vrot.slane %v4726, 1
        %v4728 = vadd.f32 %v4726, %v4727
        %v4729 = vsel %vm4703, %v4719, 0.0
        %v4730 = vrot.slane %v4729, 4
        %v4731 = vadd.f32 %v4729, %v4730
        %v4732 = vrot.slane %v4731, 2
        %v4733 = vadd.f32 %v4731, %v4732
        %v4734 = vrot.slane %v4733, 1
        %v4735 = vadd.f32 %v4733, %v4734
        %vm4736 = vcmask 1040384
        %v4737 = vsel %vm4736, %v4710, %v4728
        %v4738 = vsel %vm4736, %v4717, %v4735
        %4739 = vst [vmem:[%s301] sm:$0x3] %v4737
        %s4740 = scalar_lea.vmem %s301, 4 [#allocation2]
        %4741 = vst [vmem:[%s4740] sm:$0x3] %v4738
        %s4742 = sadd.s32 %s311, 1
        %s4743 = scalar_lea.vmem %s307, 8
        %v4744 = vld [vmem:[%s4743] sm:$0xff]
        %s4745 = smul.u32 %s4742, 24
        %s4746 = scalar_lea.vmem %s2, %s4745
        %v4747 = vld [vmem:[%s4746] sm:$0xff]
        %v4748 = vld [vmem:[%s4746 + $0x8] sm:$0xff]
        %v4749 = vld [vmem:[%s4746 + $0x10] sm:$0xff]
        %s4750 = smul.u32 %s4742, 8
        %s4751 = scalar_lea.vmem %s3, %s4750
        %v4752 = vld [vmem:[%s4751] sm:$0xff]
        %v4754 = vcombine.high %v4744, %v4744
        %4756 = vrot.lane.b32.xlu0 %v4744, 1
        %v4757 = vpop.permute.xlu0 %4756
        %4758 = vrot.lane.b32.xlu0 %v4754, 1
        %v4759 = vpop.permute.xlu0 %4758
        %v4760 = vsel %vm330, %v4757, %v4759
        %v4761 = vsel %vm330, %v4759, %v4757
        %v4762 = vmul.f32 %v4761, %v347
        %v4763 = vmul.f32 %v4760, %v351
        %4764 = vrot.lane.b32.xlu0 %v4744, 127
        %v4765 = vpop.permute.xlu0 %4764
        %4766 = vrot.lane.b32.xlu0 %v4754, 127
        %v4767 = vpop.permute.xlu0 %4766
        %v4768 = vsel %vm358, %v4765, %v4767
        %v4769 = vsel %vm358, %v4767, %v4765
        %v4770 = vmul.f32 %v4768, %v374
        %v4771 = vmul.f32 %v4769, %v378
        %v4773 = vsel %vm381, %v4747, 0
        %v4776 = vsel %vm385, %v4762, 0
        %v4779 = vsel %vm385, %v4763, 0
        %v4781 = vand.u32 %v4779, 4294901760
        %4782 = vmatprep.subr.mxu0 %v4781
        %v4783 = vand.u32 %v4776, 4294901760
        %4784 = vmatpush1.msra.mxu0 %v4783
        %4785 = vmatprep.subr.mxu0 0.0
        %4786 = vmatpush1.msra.mxu0 0.0
        %4787 = vmatprep.subr.mxu0 0.0
        %4788 = vmatpush1.msra.mxu0 0.0
        %4789 = vmatprep.subr.mxu0 0.0
        %4790 = vmatpush1.msra.mxu0 0.0
        %4791 = vmatprep.subr.mxu0 0.0
        %4792 = vmatpush1.msra.mxu0 0.0
        %4793 = vmatprep.subr.mxu0 0.0
        %4794 = vmatpush1.msra.mxu0 0.0
        %4795 = vmatprep.subr.mxu0 0.0
        %4796 = vmatpush1.msra.mxu0 0.0
        %4797 = vmatprep.subr.mxu0 0.0
        %4798 = vmatpush1.msra.mxu0 0.0
        %4799 = vmatprep.subr.mxu0 0.0
        %4800 = vmatpush1.msra.mxu0 0.0
        %4801 = vmatprep.subr.mxu0 0.0
        %4802 = vmatpush1.msra.mxu0 0.0
        %4803 = vmatprep.subr.mxu0 0.0
        %4804 = vmatpush1.msra.mxu0 0.0
        %4805 = vmatprep.subr.mxu0 0.0
        %4806 = vmatpush1.msra.mxu0 0.0
        %4807 = vmatprep.subr.mxu0 0.0
        %4808 = vmatpush1.msra.mxu0 0.0
        %4809 = vmatprep.subr.mxu0 0.0
        %4810 = vmatpush1.msra.mxu0 0.0
        %4811 = vmatprep.subr.mxu0 0.0
        %4812 = vmatpush1.msra.mxu0 0.0
        %4813 = vmatprep.subr.mxu0 0.0
        %4814 = vmatpush1.msra.mxu0 0.0
        %4815 = vmatprep.subr.mxu0 0.0
        %4816 = vmatpush1.msra.mxu0 0.0
        %4817 = vmatprep.subr.mxu0 0.0
        %4818 = vmatpush1.msra.mxu0 0.0
        %4819 = vmatprep.subr.mxu0 0.0
        %4820 = vmatpush1.msra.mxu0 0.0
        %4821 = vmatprep.subr.mxu0 0.0
        %4822 = vmatpush1.msra.mxu0 0.0
        %4823 = vmatprep.subr.mxu0 0.0
        %4824 = vmatpush1.msra.mxu0 0.0
        %4825 = vmatprep.subr.mxu0 0.0
        %4826 = vmatpush1.msra.mxu0 0.0
        %4827 = vmatprep.subr.mxu0 0.0
        %4828 = vmatpush1.msra.mxu0 0.0
        %4829 = vmatprep.subr.mxu0 0.0
        %4830 = vmatpush1.msra.mxu0 0.0
        %4831 = vmatprep.subr.mxu0 0.0
        %4832 = vmatpush1.msra.mxu0 0.0
        %4833 = vmatprep.subr.mxu0 0.0
        %4834 = vmatpush1.msra.mxu0 0.0
        %4835 = vmatprep.subr.mxu0 0.0
        %4836 = vmatpush1.msra.mxu0 0.0
        %4837 = vmatprep.subr.mxu0 0.0
        %4838 = vmatpush1.msra.mxu0 0.0
        %4839 = vmatprep.subr.mxu0 0.0
        %4840 = vmatpush1.msra.mxu0 0.0
        %4841 = vmatprep.subr.mxu0 0.0
        %4842 = vmatpush1.msra.mxu0 0.0
        %4843 = vmatprep.subr.mxu0 0.0
        %4844 = vmatpush1.msra.mxu0 0.0
        %4845 = vmatprep.subr.mxu0 0.0
        %4846 = vmatpush1.msra.mxu0 0.0
        %4847 = vmatprep.mubr.f32.mxu0 0.0
        %v4848 = vand.u32 %v4773, 4294901760
        %v4849 = vsub.f32 %v4773, %v4848
        %v4850 = vand.u32 %v4849, 4294901760
        %v4851 = vsub.f32 %v4849, %v4850
        %v4852 = vand.u32 %v4851, 4294901760
        %4853 = vmatmul.mubr.f32.gmra.mrb[0].mxu0 %v4852
        %v4854 = vpop.f32.mrb[0].mxu0
        %v4855 = vadd.f32 0.0, %v4854
        %v4856 = vpop.f32.mrb[0].mxu0
        %v4857 = vadd.f32 0.0, %v4856
        %4858 = vdwg.mxu0
        %v4859 = vand.u32 %v4779, 4294901760
        %v4860 = vsub.f32 %v4779, %v4859
        %v4861 = vand.u32 %v4860, 4294901760
        %v4862 = vsub.f32 %v4860, %v4861
        %v4863 = vand.u32 %v4862, 4294901760
        %4864 = vmatprep.subr.mxu0 %v4863
        %v4865 = vand.u32 %v4776, 4294901760
        %v4866 = vsub.f32 %v4776, %v4865
        %v4867 = vand.u32 %v4866, 4294901760
        %v4868 = vsub.f32 %v4866, %v4867
        %v4869 = vand.u32 %v4868, 4294901760
        %4870 = vmatpush1.msra.mxu0 %v4869
        %4871 = vmatprep.subr.mxu0 0.0
        %4872 = vmatpush1.msra.mxu0 0.0
        %4873 = vmatprep.subr.mxu0 0.0
        %4874 = vmatpush1.msra.mxu0 0.0
        %4875 = vmatprep.subr.mxu0 0.0
        %4876 = vmatpush1.msra.mxu0 0.0
        %4877 = vmatprep.subr.mxu0 0.0
        %4878 = vmatpush1.msra.mxu0 0.0
        %4879 = vmatprep.subr.mxu0 0.0
        %4880 = vmatpush1.msra.mxu0 0.0
        %4881 = vmatprep.subr.mxu0 0.0
        %4882 = vmatpush1.msra.mxu0 0.0
        %4883 = vmatprep.subr.mxu0 0.0
        %4884 = vmatpush1.msra.mxu0 0.0
        %4885 = vmatprep.subr.mxu0 0.0
        %4886 = vmatpush1.msra.mxu0 0.0
        %4887 = vmatprep.subr.mxu0 0.0
        %4888 = vmatpush1.msra.mxu0 0.0
        %4889 = vmatprep.subr.mxu0 0.0
        %4890 = vmatpush1.msra.mxu0 0.0
        %4891 = vmatprep.subr.mxu0 0.0
        %4892 = vmatpush1.msra.mxu0 0.0
        %4893 = vmatprep.subr.mxu0 0.0
        %4894 = vmatpush1.msra.mxu0 0.0
        %4895 = vmatprep.subr.mxu0 0.0
        %4896 = vmatpush1.msra.mxu0 0.0
        %4897 = vmatprep.subr.mxu0 0.0
        %4898 = vmatpush1.msra.mxu0 0.0
        %4899 = vmatprep.subr.mxu0 0.0
        %4900 = vmatpush1.msra.mxu0 0.0
        %4901 = vmatprep.subr.mxu0 0.0
        %4902 = vmatpush1.msra.mxu0 0.0
        %4903 = vmatprep.subr.mxu0 0.0
        %4904 = vmatpush1.msra.mxu0 0.0
        %4905 = vmatprep.subr.mxu0 0.0
        %4906 = vmatpush1.msra.mxu0 0.0
        %4907 = vmatprep.subr.mxu0 0.0
        %4908 = vmatpush1.msra.mxu0 0.0
        %4909 = vmatprep.subr.mxu0 0.0
        %4910 = vmatpush1.msra.mxu0 0.0
        %4911 = vmatprep.subr.mxu0 0.0
        %4912 = vmatpush1.msra.mxu0 0.0
        %4913 = vmatprep.subr.mxu0 0.0
        %4914 = vmatpush1.msra.mxu0 0.0
        %4915 = vmatprep.subr.mxu0 0.0
        %4916 = vmatpush1.msra.mxu0 0.0
        %4917 = vmatprep.subr.mxu0 0.0
        %4918 = vmatpush1.msra.mxu0 0.0
        %4919 = vmatprep.subr.mxu0 0.0
        %4920 = vmatpush1.msra.mxu0 0.0
        %4921 = vmatprep.subr.mxu0 0.0
        %4922 = vmatpush1.msra.mxu0 0.0
        %4923 = vmatprep.subr.mxu0 0.0
        %4924 = vmatpush1.msra.mxu0 0.0
        %4925 = vmatprep.subr.mxu0 0.0
        %4926 = vmatpush1.msra.mxu0 0.0
        %4927 = vmatprep.subr.mxu0 0.0
        %4928 = vmatpush1.msra.mxu0 0.0
        %4929 = vmatprep.subr.mxu0 0.0
        %4930 = vmatpush1.msra.mxu0 0.0
        %4931 = vmatprep.subr.mxu0 0.0
        %4932 = vmatpush1.msra.mxu0 0.0
        %4933 = vmatprep.mubr.f32.mxu0 0.0
        %v4934 = vand.u32 %v4773, 4294901760
        %4935 = vmatmul.mubr.f32.gmra.mrb[0].mxu0 %v4934
        %v4936 = vpop.f32.mrb[0].mxu0
        %v4937 = vadd.f32 %v4855, %v4936
        %v4938 = vpop.f32.mrb[0].mxu0
        %v4939 = vadd.f32 %v4857, %v4938
        %4940 = vdwg.mxu0
        %v4941 = vand.u32 %v4779, 4294901760
        %v4942 = vsub.f32 %v4779, %v4941
        %4943 = vmatprep.subr.mxu0 %v4942
        %v4944 = vand.u32 %v4776, 4294901760
        %v4945 = vsub.f32 %v4776, %v4944
        %4946 = vmatpush1.msra.mxu0 %v4945
        %4947 = vmatprep.subr.mxu0 0.0
        %4948 = vmatpush1.msra.mxu0 0.0
        %4949 = vmatprep.subr.mxu0 0.0
        %4950 = vmatpush1.msra.mxu0 0.0
        %4951 = vmatprep.subr.mxu0 0.0
        %4952 = vmatpush1.msra.mxu0 0.0
        %4953 = vmatprep.subr.mxu0 0.0
        %4954 = vmatpush1.msra.mxu0 0.0
        %4955 = vmatprep.subr.mxu0 0.0
        %4956 = vmatpush1.msra.mxu0 0.0
        %4957 = vmatprep.subr.mxu0 0.0
        %4958 = vmatpush1.msra.mxu0 0.0
        %4959 = vmatprep.subr.mxu0 0.0
        %4960 = vmatpush1.msra.mxu0 0.0
        %4961 = vmatprep.subr.mxu0 0.0
        %4962 = vmatpush1.msra.mxu0 0.0
        %4963 = vmatprep.subr.mxu0 0.0
        %4964 = vmatpush1.msra.mxu0 0.0
        %4965 = vmatprep.subr.mxu0 0.0
        %4966 = vmatpush1.msra.mxu0 0.0
        %4967 = vmatprep.subr.mxu0 0.0
        %4968 = vmatpush1.msra.mxu0 0.0
        %4969 = vmatprep.subr.mxu0 0.0
        %4970 = vmatpush1.msra.mxu0 0.0
        %4971 = vmatprep.subr.mxu0 0.0
        %4972 = vmatpush1.msra.mxu0 0.0
        %4973 = vmatprep.subr.mxu0 0.0
        %4974 = vmatpush1.msra.mxu0 0.0
        %4975 = vmatprep.subr.mxu0 0.0
        %4976 = vmatpush1.msra.mxu0 0.0
        %4977 = vmatprep.subr.mxu0 0.0
        %4978 = vmatpush1.msra.mxu0 0.0
        %4979 = vmatprep.subr.mxu0 0.0
        %4980 = vmatpush1.msra.mxu0 0.0
        %4981 = vmatprep.subr.mxu0 0.0
        %4982 = vmatpush1.msra.mxu0 0.0
        %4983 = vmatprep.subr.mxu0 0.0
        %4984 = vmatpush1.msra.mxu0 0.0
        %4985 = vmatprep.subr.mxu0 0.0
        %4986 = vmatpush1.msra.mxu0 0.0
        %4987 = vmatprep.subr.mxu0 0.0
        %4988 = vmatpush1.msra.mxu0 0.0
        %4989 = vmatprep.subr.mxu0 0.0
        %4990 = vmatpush1.msra.mxu0 0.0
        %4991 = vmatprep.subr.mxu0 0.0
        %4992 = vmatpush1.msra.mxu0 0.0
        %4993 = vmatprep.subr.mxu0 0.0
        %4994 = vmatpush1.msra.mxu0 0.0
        %4995 = vmatprep.subr.mxu0 0.0
        %4996 = vmatpush1.msra.mxu0 0.0
        %4997 = vmatprep.subr.mxu0 0.0
        %4998 = vmatpush1.msra.mxu0 0.0
        %4999 = vmatprep.subr.mxu0 0.0
        %5000 = vmatpush1.msra.mxu0 0.0
        %5001 = vmatprep.subr.mxu0 0.0
        %5002 = vmatpush1.msra.mxu0 0.0
        %5003 = vmatprep.subr.mxu0 0.0
        %5004 = vmatpush1.msra.mxu0 0.0
        %5005 = vmatprep.subr.mxu0 0.0
        %5006 = vmatpush1.msra.mxu0 0.0
        %5007 = vmatprep.subr.mxu0 0.0
        %5008 = vmatpush1.msra.mxu0 0.0
        %5009 = vmatprep.mubr.f32.mxu0 0.0
        %v5010 = vand.u32 %v4773, 4294901760
        %v5011 = vsub.f32 %v4773, %v5010
        %5012 = vmatmul.mubr.f32.gmra.mrb[0].mxu0 %v5011
        %v5013 = vpop.f32.mrb[0].mxu0
        %v5014 = vadd.f32 %v4937, %v5013
        %v5015 = vpop.f32.mrb[0].mxu0
        %v5016 = vadd.f32 %v4939, %v5015
        %5017 = vdwg.mxu0
        %v5018 = vand.u32 %v4779, 4294901760
        %5019 = vmatprep.subr.mxu0 %v5018
        %v5020 = vand.u32 %v4776, 4294901760
        %5021 = vmatpush1.msra.mxu0 %v5020
        %5022 = vmatprep.subr.mxu0 0.0
        %5023 = vmatpush1.msra.mxu0 0.0
        %5024 = vmatprep.subr.mxu0 0.0
        %5025 = vmatpush1.msra.mxu0 0.0
        %5026 = vmatprep.subr.mxu0 0.0
        %5027 = vmatpush1.msra.mxu0 0.0
        %5028 = vmatprep.subr.mxu0 0.0
        %5029 = vmatpush1.msra.mxu0 0.0
        %5030 = vmatprep.subr.mxu0 0.0
        %5031 = vmatpush1.msra.mxu0 0.0
        %5032 = vmatprep.subr.mxu0 0.0
        %5033 = vmatpush1.msra.mxu0 0.0
        %5034 = vmatprep.subr.mxu0 0.0
        %5035 = vmatpush1.msra.mxu0 0.0
        %5036 = vmatprep.subr.mxu0 0.0
        %5037 = vmatpush1.msra.mxu0 0.0
        %5038 = vmatprep.subr.mxu0 0.0
        %5039 = vmatpush1.msra.mxu0 0.0
        %5040 = vmatprep.subr.mxu0 0.0
        %5041 = vmatpush1.msra.mxu0 0.0
        %5042 = vmatprep.subr.mxu0 0.0
        %5043 = vmatpush1.msra.mxu0 0.0
        %5044 = vmatprep.subr.mxu0 0.0
        %5045 = vmatpush1.msra.mxu0 0.0
        %5046 = vmatprep.subr.mxu0 0.0
        %5047 = vmatpush1.msra.mxu0 0.0
        %5048 = vmatprep.subr.mxu0 0.0
        %5049 = vmatpush1.msra.mxu0 0.0
        %5050 = vmatprep.subr.mxu0 0.0
        %5051 = vmatpush1.msra.mxu0 0.0
        %5052 = vmatprep.subr.mxu0 0.0
        %5053 = vmatpush1.msra.mxu0 0.0
        %5054 = vmatprep.subr.mxu0 0.0
        %5055 = vmatpush1.msra.mxu0 0.0
        %5056 = vmatprep.subr.mxu0 0.0
        %5057 = vmatpush1.msra.mxu0 0.0
        %5058 = vmatprep.subr.mxu0 0.0
        %5059 = vmatpush1.msra.mxu0 0.0
        %5060 = vmatprep.subr.mxu0 0.0
        %5061 = vmatpush1.msra.mxu0 0.0
        %5062 = vmatprep.subr.mxu0 0.0
        %5063 = vmatpush1.msra.mxu0 0.0
        %5064 = vmatprep.subr.mxu0 0.0
        %5065 = vmatpush1.msra.mxu0 0.0
        %5066 = vmatprep.subr.mxu0 0.0
        %5067 = vmatpush1.msra.mxu0 0.0
        %5068 = vmatprep.subr.mxu0 0.0
        %5069 = vmatpush1.msra.mxu0 0.0
        %5070 = vmatprep.subr.mxu0 0.0
        %5071 = vmatpush1.msra.mxu0 0.0
        %5072 = vmatprep.subr.mxu0 0.0
        %5073 = vmatpush1.msra.mxu0 0.0
        %5074 = vmatprep.subr.mxu0 0.0
        %5075 = vmatpush1.msra.mxu0 0.0
        %5076 = vmatprep.subr.mxu0 0.0
        %5077 = vmatpush1.msra.mxu0 0.0
        %5078 = vmatprep.subr.mxu0 0.0
        %5079 = vmatpush1.msra.mxu0 0.0
        %5080 = vmatprep.subr.mxu0 0.0
        %5081 = vmatpush1.msra.mxu0 0.0
        %5082 = vmatprep.subr.mxu0 0.0
        %5083 = vmatpush1.msra.mxu0 0.0
        %5084 = vmatprep.mubr.f32.mxu0 0.0
        %v5085 = vand.u32 %v4773, 4294901760
        %v5086 = vsub.f32 %v4773, %v5085
        %v5087 = vand.u32 %v5086, 4294901760
        %5088 = vmatmul.mubr.f32.gmra.mrb[0].mxu0 %v5087
        %v5089 = vpop.f32.mrb[0].mxu0
        %v5090 = vadd.f32 %v5014, %v5089
        %v5091 = vpop.f32.mrb[0].mxu0
        %v5092 = vadd.f32 %v5016, %v5091
        %5093 = vdwg.mxu0
        %v5094 = vand.u32 %v4779, 4294901760
        %v5095 = vsub.f32 %v4779, %v5094
        %v5096 = vand.u32 %v5095, 4294901760
        %5097 = vmatprep.subr.mxu0 %v5096
        %v5098 = vand.u32 %v4776, 4294901760
        %v5099 = vsub.f32 %v4776, %v5098
        %v5100 = vand.u32 %v5099, 4294901760
        %5101 = vmatpush1.msra.mxu0 %v5100
        %5102 = vmatprep.subr.mxu0 0.0
        %5103 = vmatpush1.msra.mxu0 0.0
        %5104 = vmatprep.subr.mxu0 0.0
        %5105 = vmatpush1.msra.mxu0 0.0
        %5106 = vmatprep.subr.mxu0 0.0
        %5107 = vmatpush1.msra.mxu0 0.0
        %5108 = vmatprep.subr.mxu0 0.0
        %5109 = vmatpush1.msra.mxu0 0.0
        %5110 = vmatprep.subr.mxu0 0.0
        %5111 = vmatpush1.msra.mxu0 0.0
        %5112 = vmatprep.subr.mxu0 0.0
        %5113 = vmatpush1.msra.mxu0 0.0
        %5114 = vmatprep.subr.mxu0 0.0
        %5115 = vmatpush1.msra.mxu0 0.0
        %5116 = vmatprep.subr.mxu0 0.0
        %5117 = vmatpush1.msra.mxu0 0.0
        %5118 = vmatprep.subr.mxu0 0.0
        %5119 = vmatpush1.msra.mxu0 0.0
        %5120 = vmatprep.subr.mxu0 0.0
        %5121 = vmatpush1.msra.mxu0 0.0
        %5122 = vmatprep.subr.mxu0 0.0
        %5123 = vmatpush1.msra.mxu0 0.0
        %5124 = vmatprep.subr.mxu0 0.0
        %5125 = vmatpush1.msra.mxu0 0.0
        %5126 = vmatprep.subr.mxu0 0.0
        %5127 = vmatpush1.msra.mxu0 0.0
        %5128 = vmatprep.subr.mxu0 0.0
        %5129 = vmatpush1.msra.mxu0 0.0
        %5130 = vmatprep.subr.mxu0 0.0
        %5131 = vmatpush1.msra.mxu0 0.0
        %5132 = vmatprep.subr.mxu0 0.0
        %5133 = vmatpush1.msra.mxu0 0.0
        %5134 = vmatprep.subr.mxu0 0.0
        %5135 = vmatpush1.msra.mxu0 0.0
        %5136 = vmatprep.subr.mxu0 0.0
        %5137 = vmatpush1.msra.mxu0 0.0
        %5138 = vmatprep.subr.mxu0 0.0
        %5139 = vmatpush1.msra.mxu0 0.0
        %5140 = vmatprep.subr.mxu0 0.0
        %5141 = vmatpush1.msra.mxu0 0.0
        %5142 = vmatprep.subr.mxu0 0.0
        %5143 = vmatpush1.msra.mxu0 0.0
        %5144 = vmatprep.subr.mxu0 0.0
        %5145 = vmatpush1.msra.mxu0 0.0
        %5146 = vmatprep.subr.mxu0 0.0
        %5147 = vmatpush1.msra.mxu0 0.0
        %5148 = vmatprep.subr.mxu0 0.0
        %5149 = vmatpush1.msra.mxu0 0.0
        %5150 = vmatprep.subr.mxu0 0.0
        %5151 = vmatpush1.msra.mxu0 0.0
        %5152 = vmatprep.subr.mxu0 0.0
        %5153 = vmatpush1.msra.mxu0 0.0
        %5154 = vmatprep.subr.mxu0 0.0
        %5155 = vmatpush1.msra.mxu0 0.0
        %5156 = vmatprep.subr.mxu0 0.0
        %5157 = vmatpush1.msra.mxu0 0.0
        %5158 = vmatprep.subr.mxu0 0.0
        %5159 = vmatpush1.msra.mxu0 0.0
        %5160 = vmatprep.subr.mxu0 0.0
        %5161 = vmatpush1.msra.mxu0 0.0
        %5162 = vmatprep.subr.mxu0 0.0
        %5163 = vmatpush1.msra.mxu0 0.0
        %5164 = vmatprep.mubr.f32.mxu0 0.0
        %v5165 = vand.u32 %v4773, 4294901760
        %5166 = vmatmul.mubr.f32.gmra.mrb[0].mxu0 %v5165
        %v5167 = vpop.f32.mrb[0].mxu0
        %v5168 = vadd.f32 %v5090, %v5167
        %v5169 = vpop.f32.mrb[0].mxu0
        %v5170 = vadd.f32 %v5092, %v5169
        %5171 = vdwg.mxu0
        %v5172 = vand.u32 %v4779, 4294901760
        %5173 = vmatprep.subr.mxu0 %v5172
        %v5174 = vand.u32 %v4776, 4294901760
        %5175 = vmatpush1.msra.mxu0 %v5174
        %5176 = vmatprep.subr.mxu0 0.0
        %5177 = vmatpush1.msra.mxu0 0.0
        %5178 = vmatprep.subr.mxu0 0.0
        %5179 = vmatpush1.msra.mxu0 0.0
        %5180 = vmatprep.subr.mxu0 0.0
        %5181 = vmatpush1.msra.mxu0 0.0
        %5182 = vmatprep.subr.mxu0 0.0
        %5183 = vmatpush1.msra.mxu0 0.0
        %5184 = vmatprep.subr.mxu0 0.0
        %5185 = vmatpush1.msra.mxu0 0.0
        %5186 = vmatprep.subr.mxu0 0.0
        %5187 = vmatpush1.msra.mxu0 0.0
        %5188 = vmatprep.subr.mxu0 0.0
        %5189 = vmatpush1.msra.mxu0 0.0
        %5190 = vmatprep.subr.mxu0 0.0
        %5191 = vmatpush1.msra.mxu0 0.0
        %5192 = vmatprep.subr.mxu0 0.0
        %5193 = vmatpush1.msra.mxu0 0.0
        %5194 = vmatprep.subr.mxu0 0.0
        %5195 = vmatpush1.msra.mxu0 0.0
        %5196 = vmatprep.subr.mxu0 0.0
        %5197 = vmatpush1.msra.mxu0 0.0
        %5198 = vmatprep.subr.mxu0 0.0
        %5199 = vmatpush1.msra.mxu0 0.0
        %5200 = vmatprep.subr.mxu0 0.0
        %5201 = vmatpush1.msra.mxu0 0.0
        %5202 = vmatprep.subr.mxu0 0.0
        %5203 = vmatpush1.msra.mxu0 0.0
        %5204 = vmatprep.subr.mxu0 0.0
        %5205 = vmatpush1.msra.mxu0 0.0
        %5206 = vmatprep.subr.mxu0 0.0
        %5207 = vmatpush1.msra.mxu0 0.0
        %5208 = vmatprep.subr.mxu0 0.0
        %5209 = vmatpush1.msra.mxu0 0.0
        %5210 = vmatprep.subr.mxu0 0.0
        %5211 = vmatpush1.msra.mxu0 0.0
        %5212 = vmatprep.subr.mxu0 0.0
        %5213 = vmatpush1.msra.mxu0 0.0
        %5214 = vmatprep.subr.mxu0 0.0
        %5215 = vmatpush1.msra.mxu0 0.0
        %5216 = vmatprep.subr.mxu0 0.0
        %5217 = vmatpush1.msra.mxu0 0.0
        %5218 = vmatprep.subr.mxu0 0.0
        %5219 = vmatpush1.msra.mxu0 0.0
        %5220 = vmatprep.subr.mxu0 0.0
        %5221 = vmatpush1.msra.mxu0 0.0
        %5222 = vmatprep.subr.mxu0 0.0
        %5223 = vmatpush1.msra.mxu0 0.0
        %5224 = vmatprep.subr.mxu0 0.0
        %5225 = vmatpush1.msra.mxu0 0.0
        %5226 = vmatprep.subr.mxu0 0.0
        %5227 = vmatpush1.msra.mxu0 0.0
        %5228 = vmatprep.subr.mxu0 0.0
        %5229 = vmatpush1.msra.mxu0 0.0
        %5230 = vmatprep.subr.mxu0 0.0
        %5231 = vmatpush1.msra.mxu0 0.0
        %5232 = vmatprep.subr.mxu0 0.0
        %5233 = vmatpush1.msra.mxu0 0.0
        %5234 = vmatprep.subr.mxu0 0.0
        %5235 = vmatpush1.msra.mxu0 0.0
        %5236 = vmatprep.subr.mxu0 0.0
        %5237 = vmatpush1.msra.mxu0 0.0
        %5238 = vmatprep.mubr.f32.mxu0 0.0
        %v5239 = vand.u32 %v4773, 4294901760
        %5240 = vmatmul.mubr.f32.gmra.mrb[0].mxu0 %v5239
        %v5241 = vpop.f32.mrb[0].mxu0
        %v5242 = vadd.f32 %v5168, %v5241
        %v5243 = vpop.f32.mrb[0].mxu0
        %v5244 = vadd.f32 %v5170, %v5243
        %5245 = vdwg.mxu0
        %5247 = vset.pattern.permute.xlu0 0
        %5248 = vperm.xlu0 %5247, %v4752
        %v5249 = vpop.permute.xlu0 %5248
        %v5251 = vadd.f32 %v5249, %v5242
        %v5252 = vadd.f32 %v5249, %v5244
        %v5254 = vsel %vm381, %v4748, 0
        %v5256 = vsel %vm385, %v4744, 0
        %v5258 = vsel %vm385, %v4754, 0
        %v5260 = vand.u32 %v5258, 4294901760
        %5261 = vmatprep.subr.mxu0 %v5260
        %v5262 = vand.u32 %v5256, 4294901760
        %5263 = vmatpush1.msra.mxu0 %v5262
        %5264 = vmatprep.subr.mxu0 0.0
        %5265 = vmatpush1.msra.mxu0 0.0
        %5266 = vmatprep.subr.mxu0 0.0
        %5267 = vmatpush1.msra.mxu0 0.0
        %5268 = vmatprep.subr.mxu0 0.0
        %5269 = vmatpush1.msra.mxu0 0.0
        %5270 = vmatprep.subr.mxu0 0.0
        %5271 = vmatpush1.msra.mxu0 0.0
        %5272 = vmatprep.subr.mxu0 0.0
        %5273 = vmatpush1.msra.mxu0 0.0
        %5274 = vmatprep.subr.mxu0 0.0
        %5275 = vmatpush1.msra.mxu0 0.0
        %5276 = vmatprep.subr.mxu0 0.0
        %5277 = vmatpush1.msra.mxu0 0.0
        %5278 = vmatprep.subr.mxu0 0.0
        %5279 = vmatpush1.msra.mxu0 0.0
        %5280 = vmatprep.subr.mxu0 0.0
        %5281 = vmatpush1.msra.mxu0 0.0
        %5282 = vmatprep.subr.mxu0 0.0
        %5283 = vmatpush1.msra.mxu0 0.0
        %5284 = vmatprep.subr.mxu0 0.0
        %5285 = vmatpush1.msra.mxu0 0.0
        %5286 = vmatprep.subr.mxu0 0.0
        %5287 = vmatpush1.msra.mxu0 0.0
        %5288 = vmatprep.subr.mxu0 0.0
        %5289 = vmatpush1.msra.mxu0 0.0
        %5290 = vmatprep.subr.mxu0 0.0
        %5291 = vmatpush1.msra.mxu0 0.0
        %5292 = vmatprep.subr.mxu0 0.0
        %5293 = vmatpush1.msra.mxu0 0.0
        %5294 = vmatprep.subr.mxu0 0.0
        %5295 = vmatpush1.msra.mxu0 0.0
        %5296 = vmatprep.subr.mxu0 0.0
        %5297 = vmatpush1.msra.mxu0 0.0
        %5298 = vmatprep.subr.mxu0 0.0
        %5299 = vmatpush1.msra.mxu0 0.0
        %5300 = vmatprep.subr.mxu0 0.0
        %5301 = vmatpush1.msra.mxu0 0.0
        %5302 = vmatprep.subr.mxu0 0.0
        %5303 = vmatpush1.msra.mxu0 0.0
        %5304 = vmatprep.subr.mxu0 0.0
        %5305 = vmatpush1.msra.mxu0 0.0
        %5306 = vmatprep.subr.mxu0 0.0
        %5307 = vmatpush1.msra.mxu0 0.0
        %5308 = vmatprep.subr.mxu0 0.0
        %5309 = vmatpush1.msra.mxu0 0.0
        %5310 = vmatprep.subr.mxu0 0.0
        %5311 = vmatpush1.msra.mxu0 0.0
        %5312 = vmatprep.subr.mxu0 0.0
        %5313 = vmatpush1.msra.mxu0 0.0
        %5314 = vmatprep.subr.mxu0 0.0
        %5315 = vmatpush1.msra.mxu0 0.0
        %5316 = vmatprep.subr.mxu0 0.0
        %5317 = vmatpush1.msra.mxu0 0.0
        %5318 = vmatprep.subr.mxu0 0.0
        %5319 = vmatpush1.msra.mxu0 0.0
        %5320 = vmatprep.subr.mxu0 0.0
        %5321 = vmatpush1.msra.mxu0 0.0
        %5322 = vmatprep.subr.mxu0 0.0
        %5323 = vmatpush1.msra.mxu0 0.0
        %5324 = vmatprep.subr.mxu0 0.0
        %5325 = vmatpush1.msra.mxu0 0.0
        %5326 = vmatprep.mubr.f32.mxu0 0.0
        %v5327 = vand.u32 %v5254, 4294901760
        %v5328 = vsub.f32 %v5254, %v5327
        %v5329 = vand.u32 %v5328, 4294901760
        %v5330 = vsub.f32 %v5328, %v5329
        %v5331 = vand.u32 %v5330, 4294901760
        %5332 = vmatmul.mubr.f32.gmra.mrb[0].mxu0 %v5331
        %v5333 = vpop.f32.mrb[0].mxu0
        %v5334 = vadd.f32 0.0, %v5333
        %v5335 = vpop.f32.mrb[0].mxu0
        %v5336 = vadd.f32 0.0, %v5335
        %5337 = vdwg.mxu0
        %v5338 = vand.u32 %v5258, 4294901760
        %v5339 = vsub.f32 %v5258, %v5338
        %v5340 = vand.u32 %v5339, 4294901760
        %v5341 = vsub.f32 %v5339, %v5340
        %v5342 = vand.u32 %v5341, 4294901760
        %5343 = vmatprep.subr.mxu0 %v5342
        %v5344 = vand.u32 %v5256, 4294901760
        %v5345 = vsub.f32 %v5256, %v5344
        %v5346 = vand.u32 %v5345, 4294901760
        %v5347 = vsub.f32 %v5345, %v5346
        %v5348 = vand.u32 %v5347, 4294901760
        %5349 = vmatpush1.msra.mxu0 %v5348
        %5350 = vmatprep.subr.mxu0 0.0
        %5351 = vmatpush1.msra.mxu0 0.0
        %5352 = vmatprep.subr.mxu0 0.0
        %5353 = vmatpush1.msra.mxu0 0.0
        %5354 = vmatprep.subr.mxu0 0.0
        %5355 = vmatpush1.msra.mxu0 0.0
        %5356 = vmatprep.subr.mxu0 0.0
        %5357 = vmatpush1.msra.mxu0 0.0
        %5358 = vmatprep.subr.mxu0 0.0
        %5359 = vmatpush1.msra.mxu0 0.0
        %5360 = vmatprep.subr.mxu0 0.0
        %5361 = vmatpush1.msra.mxu0 0.0
        %5362 = vmatprep.subr.mxu0 0.0
        %5363 = vmatpush1.msra.mxu0 0.0
        %5364 = vmatprep.subr.mxu0 0.0
        %5365 = vmatpush1.msra.mxu0 0.0
        %5366 = vmatprep.subr.mxu0 0.0
        %5367 = vmatpush1.msra.mxu0 0.0
        %5368 = vmatprep.subr.mxu0 0.0
        %5369 = vmatpush1.msra.mxu0 0.0
        %5370 = vmatprep.subr.mxu0 0.0
        %5371 = vmatpush1.msra.mxu0 0.0
        %5372 = vmatprep.subr.mxu0 0.0
        %5373 = vmatpush1.msra.mxu0 0.0
        %5374 = vmatprep.subr.mxu0 0.0
        %5375 = vmatpush1.msra.mxu0 0.0
        %5376 = vmatprep.subr.mxu0 0.0
        %5377 = vmatpush1.msra.mxu0 0.0
        %5378 = vmatprep.subr.mxu0 0.0
        %5379 = vmatpush1.msra.mxu0 0.0
        %5380 = vmatprep.subr.mxu0 0.0
        %5381 = vmatpush1.msra.mxu0 0.0
        %5382 = vmatprep.subr.mxu0 0.0
        %5383 = vmatpush1.msra.mxu0 0.0
        %5384 = vmatprep.subr.mxu0 0.0
        %5385 = vmatpush1.msra.mxu0 0.0
        %5386 = vmatprep.subr.mxu0 0.0
        %5387 = vmatpush1.msra.mxu0 0.0
        %5388 = vmatprep.subr.mxu0 0.0
        %5389 = vmatpush1.msra.mxu0 0.0
        %5390 = vmatprep.subr.mxu0 0.0
        %5391 = vmatpush1.msra.mxu0 0.0
        %5392 = vmatprep.subr.mxu0 0.0
        %5393 = vmatpush1.msra.mxu0 0.0
        %5394 = vmatprep.subr.mxu0 0.0
        %5395 = vmatpush1.msra.mxu0 0.0
        %5396 = vmatprep.subr.mxu0 0.0
        %5397 = vmatpush1.msra.mxu0 0.0
        %5398 = vmatprep.subr.mxu0 0.0
        %5399 = vmatpush1.msra.mxu0 0.0
        %5400 = vmatprep.subr.mxu0 0.0
        %5401 = vmatpush1.msra.mxu0 0.0
        %5402 = vmatprep.subr.mxu0 0.0
        %5403 = vmatpush1.msra.mxu0 0.0
        %5404 = vmatprep.subr.mxu0 0.0
        %5405 = vmatpush1.msra.mxu0 0.0
        %5406 = vmatprep.subr.mxu0 0.0
        %5407 = vmatpush1.msra.mxu0 0.0
        %5408 = vmatprep.subr.mxu0 0.0
        %5409 = vmatpush1.msra.mxu0 0.0
        %5410 = vmatprep.subr.mxu0 0.0
        %5411 = vmatpush1.msra.mxu0 0.0
        %5412 = vmatprep.mubr.f32.mxu0 0.0
        %v5413 = vand.u32 %v5254, 4294901760
        %5414 = vmatmul.mubr.f32.gmra.mrb[0].mxu0 %v5413
        %v5415 = vpop.f32.mrb[0].mxu0
        %v5416 = vadd.f32 %v5334, %v5415
        %v5417 = vpop.f32.mrb[0].mxu0
        %v5418 = vadd.f32 %v5336, %v5417
        %5419 = vdwg.mxu0
        %v5420 = vand.u32 %v5258, 4294901760
        %v5421 = vsub.f32 %v5258, %v5420
        %5422 = vmatprep.subr.mxu0 %v5421
        %v5423 = vand.u32 %v5256, 4294901760
        %v5424 = vsub.f32 %v5256, %v5423
        %5425 = vmatpush1.msra.mxu0 %v5424
        %5426 = vmatprep.subr.mxu0 0.0
        %5427 = vmatpush1.msra.mxu0 0.0
        %5428 = vmatprep.subr.mxu0 0.0
        %5429 = vmatpush1.msra.mxu0 0.0
        %5430 = vmatprep.subr.mxu0 0.0
        %5431 = vmatpush1.msra.mxu0 0.0
        %5432 = vmatprep.subr.mxu0 0.0
        %5433 = vmatpush1.msra.mxu0 0.0
        %5434 = vmatprep.subr.mxu0 0.0
        %5435 = vmatpush1.msra.mxu0 0.0
        %5436 = vmatprep.subr.mxu0 0.0
        %5437 = vmatpush1.msra.mxu0 0.0
        %5438 = vmatprep.subr.mxu0 0.0
        %5439 = vmatpush1.msra.mxu0 0.0
        %5440 = vmatprep.subr.mxu0 0.0
        %5441 = vmatpush1.msra.mxu0 0.0
        %5442 = vmatprep.subr.mxu0 0.0
        %5443 = vmatpush1.msra.mxu0 0.0
        %5444 = vmatprep.subr.mxu0 0.0
        %5445 = vmatpush1.msra.mxu0 0.0
        %5446 = vmatprep.subr.mxu0 0.0
        %5447 = vmatpush1.msra.mxu0 0.0
        %5448 = vmatprep.subr.mxu0 0.0
        %5449 = vmatpush1.msra.mxu0 0.0
        %5450 = vmatprep.subr.mxu0 0.0
        %5451 = vmatpush1.msra.mxu0 0.0
        %5452 = vmatprep.subr.mxu0 0.0
        %5453 = vmatpush1.msra.mxu0 0.0
        %5454 = vmatprep.subr.mxu0 0.0
        %5455 = vmatpush1.msra.mxu0 0.0
        %5456 = vmatprep.subr.mxu0 0.0
        %5457 = vmatpush1.msra.mxu0 0.0
        %5458 = vmatprep.subr.mxu0 0.0
        %5459 = vmatpush1.msra.mxu0 0.0
        %5460 = vmatprep.subr.mxu0 0.0
        %5461 = vmatpush1.msra.mxu0 0.0
        %5462 = vmatprep.subr.mxu0 0.0
        %5463 = vmatpush1.msra.mxu0 0.0
        %5464 = vmatprep.subr.mxu0 0.0
        %5465 = vmatpush1.msra.mxu0 0.0
        %5466 = vmatprep.subr.mxu0 0.0
        %5467 = vmatpush1.msra.mxu0 0.0
        %5468 = vmatprep.subr.mxu0 0.0
        %5469 = vmatpush1.msra.mxu0 0.0
        %5470 = vmatprep.subr.mxu0 0.0
        %5471 = vmatpush1.msra.mxu0 0.0
        %5472 = vmatprep.subr.mxu0 0.0
        %5473 = vmatpush1.msra.mxu0 0.0
        %5474 = vmatprep.subr.mxu0 0.0
        %5475 = vmatpush1.msra.mxu0 0.0
        %5476 = vmatprep.subr.mxu0 0.0
        %5477 = vmatpush1.msra.mxu0 0.0
        %5478 = vmatprep.subr.mxu0 0.0
        %5479 = vmatpush1.msra.mxu0 0.0
        %5480 = vmatprep.subr.mxu0 0.0
        %5481 = vmatpush1.msra.mxu0 0.0
        %5482 = vmatprep.subr.mxu0 0.0
        %5483 = vmatpush1.msra.mxu0 0.0
        %5484 = vmatprep.subr.mxu0 0.0
        %5485 = vmatpush1.msra.mxu0 0.0
        %5486 = vmatprep.subr.mxu0 0.0
        %5487 = vmatpush1.msra.mxu0 0.0
        %5488 = vmatprep.mubr.f32.mxu0 0.0
        %v5489 = vand.u32 %v5254, 4294901760
        %v5490 = vsub.f32 %v5254, %v5489
        %5491 = vmatmul.mubr.f32.gmra.mrb[0].mxu0 %v5490
        %v5492 = vpop.f32.mrb[0].mxu0
        %v5493 = vadd.f32 %v5416, %v5492
        %v5494 = vpop.f32.mrb[0].mxu0
        %v5495 = vadd.f32 %v5418, %v5494
        %5496 = vdwg.mxu0
        %v5497 = vand.u32 %v5258, 4294901760
        %5498 = vmatprep.subr.mxu0 %v5497
        %v5499 = vand.u32 %v5256, 4294901760
        %5500 = vmatpush1.msra.mxu0 %v5499
        %5501 = vmatprep.subr.mxu0 0.0
        %5502 = vmatpush1.msra.mxu0 0.0
        %5503 = vmatprep.subr.mxu0 0.0
        %5504 = vmatpush1.msra.mxu0 0.0
        %5505 = vmatprep.subr.mxu0 0.0
        %5506 = vmatpush1.msra.mxu0 0.0
        %5507 = vmatprep.subr.mxu0 0.0
        %5508 = vmatpush1.msra.mxu0 0.0
        %5509 = vmatprep.subr.mxu0 0.0
        %5510 = vmatpush1.msra.mxu0 0.0
        %5511 = vmatprep.subr.mxu0 0.0
        %5512 = vmatpush1.msra.mxu0 0.0
        %5513 = vmatprep.subr.mxu0 0.0
        %5514 = vmatpush1.msra.mxu0 0.0
        %5515 = vmatprep.subr.mxu0 0.0
        %5516 = vmatpush1.msra.mxu0 0.0
        %5517 = vmatprep.subr.mxu0 0.0
        %5518 = vmatpush1.msra.mxu0 0.0
        %5519 = vmatprep.subr.mxu0 0.0
        %5520 = vmatpush1.msra.mxu0 0.0
        %5521 = vmatprep.subr.mxu0 0.0
        %5522 = vmatpush1.msra.mxu0 0.0
        %5523 = vmatprep.subr.mxu0 0.0
        %5524 = vmatpush1.msra.mxu0 0.0
        %5525 = vmatprep.subr.mxu0 0.0
        %5526 = vmatpush1.msra.mxu0 0.0
        %5527 = vmatprep.subr.mxu0 0.0
        %5528 = vmatpush1.msra.mxu0 0.0
        %5529 = vmatprep.subr.mxu0 0.0
        %5530 = vmatpush1.msra.mxu0 0.0
        %5531 = vmatprep.subr.mxu0 0.0
        %5532 = vmatpush1.msra.mxu0 0.0
        %5533 = vmatprep.subr.mxu0 0.0
        %5534 = vmatpush1.msra.mxu0 0.0
        %5535 = vmatprep.subr.mxu0 0.0
        %5536 = vmatpush1.msra.mxu0 0.0
        %5537 = vmatprep.subr.mxu0 0.0
        %5538 = vmatpush1.msra.mxu0 0.0
        %5539 = vmatprep.subr.mxu0 0.0
        %5540 = vmatpush1.msra.mxu0 0.0
        %5541 = vmatprep.subr.mxu0 0.0
        %5542 = vmatpush1.msra.mxu0 0.0
        %5543 = vmatprep.subr.mxu0 0.0
        %5544 = vmatpush1.msra.mxu0 0.0
        %5545 = vmatprep.subr.mxu0 0.0
        %5546 = vmatpush1.msra.mxu0 0.0
        %5547 = vmatprep.subr.mxu0 0.0
        %5548 = vmatpush1.msra.mxu0 0.0
        %5549 = vmatprep.subr.mxu0 0.0
        %5550 = vmatpush1.msra.mxu0 0.0
        %5551 = vmatprep.subr.mxu0 0.0
        %5552 = vmatpush1.msra.mxu0 0.0
        %5553 = vmatprep.subr.mxu0 0.0
        %5554 = vmatpush1.msra.mxu0 0.0
        %5555 = vmatprep.subr.mxu0 0.0
        %5556 = vmatpush1.msra.mxu0 0.0
        %5557 = vmatprep.subr.mxu0 0.0
        %5558 = vmatpush1.msra.mxu0 0.0
        %5559 = vmatprep.subr.mxu0 0.0
        %5560 = vmatpush1.msra.mxu0 0.0
        %5561 = vmatprep.subr.mxu0 0.0
        %5562 = vmatpush1.msra.mxu0 0.0
        %5563 = vmatprep.mubr.f32.mxu0 0.0
        %v5564 = vand.u32 %v5254, 4294901760
        %v5565 = vsub.f32 %v5254, %v5564
        %v5566 = vand.u32 %v5565, 4294901760
        %5567 = vmatmul.mubr.f32.gmra.mrb[0].mxu0 %v5566
        %v5568 = vpop.f32.mrb[0].mxu0
        %v5569 = vadd.f32 %v5493, %v5568
        %v5570 = vpop.f32.mrb[0].mxu0
        %v5571 = vadd.f32 %v5495, %v5570
        %5572 = vdwg.mxu0
        %v5573 = vand.u32 %v5258, 4294901760
        %v5574 = vsub.f32 %v5258, %v5573
        %v5575 = vand.u32 %v5574, 4294901760
        %5576 = vmatprep.subr.mxu0 %v5575
        %v5577 = vand.u32 %v5256, 4294901760
        %v5578 = vsub.f32 %v5256, %v5577
        %v5579 = vand.u32 %v5578, 4294901760
        %5580 = vmatpush1.msra.mxu0 %v5579
        %5581 = vmatprep.subr.mxu0 0.0
        %5582 = vmatpush1.msra.mxu0 0.0
        %5583 = vmatprep.subr.mxu0 0.0
        %5584 = vmatpush1.msra.mxu0 0.0
        %5585 = vmatprep.subr.mxu0 0.0
        %5586 = vmatpush1.msra.mxu0 0.0
        %5587 = vmatprep.subr.mxu0 0.0
        %5588 = vmatpush1.msra.mxu0 0.0
        %5589 = vmatprep.subr.mxu0 0.0
        %5590 = vmatpush1.msra.mxu0 0.0
        %5591 = vmatprep.subr.mxu0 0.0
        %5592 = vmatpush1.msra.mxu0 0.0
        %5593 = vmatprep.subr.mxu0 0.0
        %5594 = vmatpush1.msra.mxu0 0.0
        %5595 = vmatprep.subr.mxu0 0.0
        %5596 = vmatpush1.msra.mxu0 0.0
        %5597 = vmatprep.subr.mxu0 0.0
        %5598 = vmatpush1.msra.mxu0 0.0
        %5599 = vmatprep.subr.mxu0 0.0
        %5600 = vmatpush1.msra.mxu0 0.0
        %5601 = vmatprep.subr.mxu0 0.0
        %5602 = vmatpush1.msra.mxu0 0.0
        %5603 = vmatprep.subr.mxu0 0.0
        %5604 = vmatpush1.msra.mxu0 0.0
        %5605 = vmatprep.subr.mxu0 0.0
        %5606 = vmatpush1.msra.mxu0 0.0
        %5607 = vmatprep.subr.mxu0 0.0
        %5608 = vmatpush1.msra.mxu0 0.0
        %5609 = vmatprep.subr.mxu0 0.0
        %5610 = vmatpush1.msra.mxu0 0.0
        %5611 = vmatprep.subr.mxu0 0.0
        %5612 = vmatpush1.msra.mxu0 0.0
        %5613 = vmatprep.subr.mxu0 0.0
        %5614 = vmatpush1.msra.mxu0 0.0
        %5615 = vmatprep.subr.mxu0 0.0
        %5616 = vmatpush1.msra.mxu0 0.0
        %5617 = vmatprep.subr.mxu0 0.0
        %5618 = vmatpush1.msra.mxu0 0.0
        %5619 = vmatprep.subr.mxu0 0.0
        %5620 = vmatpush1.msra.mxu0 0.0
        %5621 = vmatprep.subr.mxu0 0.0
        %5622 = vmatpush1.msra.mxu0 0.0
        %5623 = vmatprep.subr.mxu0 0.0
        %5624 = vmatpush1.msra.mxu0 0.0
        %5625 = vmatprep.subr.mxu0 0.0
        %5626 = vmatpush1.msra.mxu0 0.0
        %5627 = vmatprep.subr.mxu0 0.0
        %5628 = vmatpush1.msra.mxu0 0.0
        %5629 = vmatprep.subr.mxu0 0.0
        %5630 = vmatpush1.msra.mxu0 0.0
        %5631 = vmatprep.subr.mxu0 0.0
        %5632 = vmatpush1.msra.mxu0 0.0
        %5633 = vmatprep.subr.mxu0 0.0
        %5634 = vmatpush1.msra.mxu0 0.0
        %5635 = vmatprep.subr.mxu0 0.0
        %5636 = vmatpush1.msra.mxu0 0.0
        %5637 = vmatprep.subr.mxu0 0.0
        %5638 = vmatpush1.msra.mxu0 0.0
        %5639 = vmatprep.subr.mxu0 0.0
        %5640 = vmatpush1.msra.mxu0 0.0
        %5641 = vmatprep.subr.mxu0 0.0
        %5642 = vmatpush1.msra.mxu0 0.0
        %5643 = vmatprep.mubr.f32.mxu0 0.0
        %v5644 = vand.u32 %v5254, 4294901760
        %5645 = vmatmul.mubr.f32.gmra.mrb[0].mxu0 %v5644
        %v5646 = vpop.f32.mrb[0].mxu0
        %v5647 = vadd.f32 %v5569, %v5646
        %v5648 = vpop.f32.mrb[0].mxu0
        %v5649 = vadd.f32 %v5571, %v5648
        %5650 = vdwg.mxu0
        %v5651 = vand.u32 %v5258, 4294901760
        %5652 = vmatprep.subr.mxu0 %v5651
        %v5653 = vand.u32 %v5256, 4294901760
        %5654 = vmatpush1.msra.mxu0 %v5653
        %5655 = vmatprep.subr.mxu0 0.0
        %5656 = vmatpush1.msra.mxu0 0.0
        %5657 = vmatprep.subr.mxu0 0.0
        %5658 = vmatpush1.msra.mxu0 0.0
        %5659 = vmatprep.subr.mxu0 0.0
        %5660 = vmatpush1.msra.mxu0 0.0
        %5661 = vmatprep.subr.mxu0 0.0
        %5662 = vmatpush1.msra.mxu0 0.0
        %5663 = vmatprep.subr.mxu0 0.0
        %5664 = vmatpush1.msra.mxu0 0.0
        %5665 = vmatprep.subr.mxu0 0.0
        %5666 = vmatpush1.msra.mxu0 0.0
        %5667 = vmatprep.subr.mxu0 0.0
        %5668 = vmatpush1.msra.mxu0 0.0
        %5669 = vmatprep.subr.mxu0 0.0
        %5670 = vmatpush1.msra.mxu0 0.0
        %5671 = vmatprep.subr.mxu0 0.0
        %5672 = vmatpush1.msra.mxu0 0.0
        %5673 = vmatprep.subr.mxu0 0.0
        %5674 = vmatpush1.msra.mxu0 0.0
        %5675 = vmatprep.subr.mxu0 0.0
        %5676 = vmatpush1.msra.mxu0 0.0
        %5677 = vmatprep.subr.mxu0 0.0
        %5678 = vmatpush1.msra.mxu0 0.0
        %5679 = vmatprep.subr.mxu0 0.0
        %5680 = vmatpush1.msra.mxu0 0.0
        %5681 = vmatprep.subr.mxu0 0.0
        %5682 = vmatpush1.msra.mxu0 0.0
        %5683 = vmatprep.subr.mxu0 0.0
        %5684 = vmatpush1.msra.mxu0 0.0
        %5685 = vmatprep.subr.mxu0 0.0
        %5686 = vmatpush1.msra.mxu0 0.0
        %5687 = vmatprep.subr.mxu0 0.0
        %5688 = vmatpush1.msra.mxu0 0.0
        %5689 = vmatprep.subr.mxu0 0.0
        %5690 = vmatpush1.msra.mxu0 0.0
        %5691 = vmatprep.subr.mxu0 0.0
        %5692 = vmatpush1.msra.mxu0 0.0
        %5693 = vmatprep.subr.mxu0 0.0
        %5694 = vmatpush1.msra.mxu0 0.0
        %5695 = vmatprep.subr.mxu0 0.0
        %5696 = vmatpush1.msra.mxu0 0.0
        %5697 = vmatprep.subr.mxu0 0.0
        %5698 = vmatpush1.msra.mxu0 0.0
        %5699 = vmatprep.subr.mxu0 0.0
        %5700 = vmatpush1.msra.mxu0 0.0
        %5701 = vmatprep.subr.mxu0 0.0
        %5702 = vmatpush1.msra.mxu0 0.0
        %5703 = vmatprep.subr.mxu0 0.0
        %5704 = vmatpush1.msra.mxu0 0.0
        %5705 = vmatprep.subr.mxu0 0.0
        %5706 = vmatpush1.msra.mxu0 0.0
        %5707 = vmatprep.subr.mxu0 0.0
        %5708 = vmatpush1.msra.mxu0 0.0
        %5709 = vmatprep.subr.mxu0 0.0
        %5710 = vmatpush1.msra.mxu0 0.0
        %5711 = vmatprep.subr.mxu0 0.0
        %5712 = vmatpush1.msra.mxu0 0.0
        %5713 = vmatprep.subr.mxu0 0.0
        %5714 = vmatpush1.msra.mxu0 0.0
        %5715 = vmatprep.subr.mxu0 0.0
        %5716 = vmatpush1.msra.mxu0 0.0
        %5717 = vmatprep.mubr.f32.mxu0 0.0
        %v5718 = vand.u32 %v5254, 4294901760
        %5719 = vmatmul.mubr.f32.gmra.mrb[0].mxu0 %v5718
        %v5720 = vpop.f32.mrb[0].mxu0
        %v5721 = vadd.f32 %v5647, %v5720
        %v5722 = vpop.f32.mrb[0].mxu0
        %v5723 = vadd.f32 %v5649, %v5722
        %5724 = vdwg.mxu0
        %v5725 = vadd.f32 %v5251, %v5721
        %v5726 = vadd.f32 %v5252, %v5723
        %v5728 = vsel %vm381, %v4749, 0
        %v5731 = vsel %vm385, %v4770, 0
        %v5734 = vsel %vm385, %v4771, 0
        %v5736 = vand.u32 %v5734, 4294901760
        %5737 = vmatprep.subr.mxu0 %v5736
        %v5738 = vand.u32 %v5731, 4294901760
        %5739 = vmatpush1.msra.mxu0 %v5738
        %5740 = vmatprep.subr.mxu0 0.0
        %5741 = vmatpush1.msra.mxu0 0.0
        %5742 = vmatprep.subr.mxu0 0.0
        %5743 = vmatpush1.msra.mxu0 0.0
        %5744 = vmatprep.subr.mxu0 0.0
        %5745 = vmatpush1.msra.mxu0 0.0
        %5746 = vmatprep.subr.mxu0 0.0
        %5747 = vmatpush1.msra.mxu0 0.0
        %5748 = vmatprep.subr.mxu0 0.0
        %5749 = vmatpush1.msra.mxu0 0.0
        %5750 = vmatprep.subr.mxu0 0.0
        %5751 = vmatpush1.msra.mxu0 0.0
        %5752 = vmatprep.subr.mxu0 0.0
        %5753 = vmatpush1.msra.mxu0 0.0
        %5754 = vmatprep.subr.mxu0 0.0
        %5755 = vmatpush1.msra.mxu0 0.0
        %5756 = vmatprep.subr.mxu0 0.0
        %5757 = vmatpush1.msra.mxu0 0.0
        %5758 = vmatprep.subr.mxu0 0.0
        %5759 = vmatpush1.msra.mxu0 0.0
        %5760 = vmatprep.subr.mxu0 0.0
        %5761 = vmatpush1.msra.mxu0 0.0
        %5762 = vmatprep.subr.mxu0 0.0
        %5763 = vmatpush1.msra.mxu0 0.0
        %5764 = vmatprep.subr.mxu0 0.0
        %5765 = vmatpush1.msra.mxu0 0.0
        %5766 = vmatprep.subr.mxu0 0.0
        %5767 = vmatpush1.msra.mxu0 0.0
        %5768 = vmatprep.subr.mxu0 0.0
        %5769 = vmatpush1.msra.mxu0 0.0
        %5770 = vmatprep.subr.mxu0 0.0
        %5771 = vmatpush1.msra.mxu0 0.0
        %5772 = vmatprep.subr.mxu0 0.0
        %5773 = vmatpush1.msra.mxu0 0.0
        %5774 = vmatprep.subr.mxu0 0.0
        %5775 = vmatpush1.msra.mxu0 0.0
        %5776 = vmatprep.subr.mxu0 0.0
        %5777 = vmatpush1.msra.mxu0 0.0
        %5778 = vmatprep.subr.mxu0 0.0
        %5779 = vmatpush1.msra.mxu0 0.0
        %5780 = vmatprep.subr.mxu0 0.0
        %5781 = vmatpush1.msra.mxu0 0.0
        %5782 = vmatprep.subr.mxu0 0.0
        %5783 = vmatpush1.msra.mxu0 0.0
        %5784 = vmatprep.subr.mxu0 0.0
        %5785 = vmatpush1.msra.mxu0 0.0
        %5786 = vmatprep.subr.mxu0 0.0
        %5787 = vmatpush1.msra.mxu0 0.0
        %5788 = vmatprep.subr.mxu0 0.0
        %5789 = vmatpush1.msra.mxu0 0.0
        %5790 = vmatprep.subr.mxu0 0.0
        %5791 = vmatpush1.msra.mxu0 0.0
        %5792 = vmatprep.subr.mxu0 0.0
        %5793 = vmatpush1.msra.mxu0 0.0
        %5794 = vmatprep.subr.mxu0 0.0
        %5795 = vmatpush1.msra.mxu0 0.0
        %5796 = vmatprep.subr.mxu0 0.0
        %5797 = vmatpush1.msra.mxu0 0.0
        %5798 = vmatprep.subr.mxu0 0.0
        %5799 = vmatpush1.msra.mxu0 0.0
        %5800 = vmatprep.subr.mxu0 0.0
        %5801 = vmatpush1.msra.mxu0 0.0
        %5802 = vmatprep.mubr.f32.mxu0 0.0
        %v5803 = vand.u32 %v5728, 4294901760
        %v5804 = vsub.f32 %v5728, %v5803
        %v5805 = vand.u32 %v5804, 4294901760
        %v5806 = vsub.f32 %v5804, %v5805
        %v5807 = vand.u32 %v5806, 4294901760
        %5808 = vmatmul.mubr.f32.gmra.mrb[0].mxu0 %v5807
        %v5809 = vpop.f32.mrb[0].mxu0
        %v5810 = vadd.f32 0.0, %v5809
        %v5811 = vpop.f32.mrb[0].mxu0
        %v5812 = vadd.f32 0.0, %v5811
        %5813 = vdwg.mxu0
        %v5814 = vand.u32 %v5734, 4294901760
        %v5815 = vsub.f32 %v5734, %v5814
        %v5816 = vand.u32 %v5815, 4294901760
        %v5817 = vsub.f32 %v5815, %v5816
        %v5818 = vand.u32 %v5817, 4294901760
        %5819 = vmatprep.subr.mxu0 %v5818
        %v5820 = vand.u32 %v5731, 4294901760
        %v5821 = vsub.f32 %v5731, %v5820
        %v5822 = vand.u32 %v5821, 4294901760
        %v5823 = vsub.f32 %v5821, %v5822
        %v5824 = vand.u32 %v5823, 4294901760
        %5825 = vmatpush1.msra.mxu0 %v5824
        %5826 = vmatprep.subr.mxu0 0.0
        %5827 = vmatpush1.msra.mxu0 0.0
        %5828 = vmatprep.subr.mxu0 0.0
        %5829 = vmatpush1.msra.mxu0 0.0
        %5830 = vmatprep.subr.mxu0 0.0
        %5831 = vmatpush1.msra.mxu0 0.0
        %5832 = vmatprep.subr.mxu0 0.0
        %5833 = vmatpush1.msra.mxu0 0.0
        %5834 = vmatprep.subr.mxu0 0.0
        %5835 = vmatpush1.msra.mxu0 0.0
        %5836 = vmatprep.subr.mxu0 0.0
        %5837 = vmatpush1.msra.mxu0 0.0
        %5838 = vmatprep.subr.mxu0 0.0
        %5839 = vmatpush1.msra.mxu0 0.0
        %5840 = vmatprep.subr.mxu0 0.0
        %5841 = vmatpush1.msra.mxu0 0.0
        %5842 = vmatprep.subr.mxu0 0.0
        %5843 = vmatpush1.msra.mxu0 0.0
        %5844 = vmatprep.subr.mxu0 0.0
        %5845 = vmatpush1.msra.mxu0 0.0
        %5846 = vmatprep.subr.mxu0 0.0
        %5847 = vmatpush1.msra.mxu0 0.0
        %5848 = vmatprep.subr.mxu0 0.0
        %5849 = vmatpush1.msra.mxu0 0.0
        %5850 = vmatprep.subr.mxu0 0.0
        %5851 = vmatpush1.msra.mxu0 0.0
        %5852 = vmatprep.subr.mxu0 0.0
        %5853 = vmatpush1.msra.mxu0 0.0
        %5854 = vmatprep.subr.mxu0 0.0
        %5855 = vmatpush1.msra.mxu0 0.0
        %5856 = vmatprep.subr.mxu0 0.0
        %5857 = vmatpush1.msra.mxu0 0.0
        %5858 = vmatprep.subr.mxu0 0.0
        %5859 = vmatpush1.msra.mxu0 0.0
        %5860 = vmatprep.subr.mxu0 0.0
        %5861 = vmatpush1.msra.mxu0 0.0
        %5862 = vmatprep.subr.mxu0 0.0
        %5863 = vmatpush1.msra.mxu0 0.0
        %5864 = vmatprep.subr.mxu0 0.0
        %5865 = vmatpush1.msra.mxu0 0.0
        %5866 = vmatprep.subr.mxu0 0.0
        %5867 = vmatpush1.msra.mxu0 0.0
        %5868 = vmatprep.subr.mxu0 0.0
        %5869 = vmatpush1.msra.mxu0 0.0
        %5870 = vmatprep.subr.mxu0 0.0
        %5871 = vmatpush1.msra.mxu0 0.0
        %5872 = vmatprep.subr.mxu0 0.0
        %5873 = vmatpush1.msra.mxu0 0.0
        %5874 = vmatprep.subr.mxu0 0.0
        %5875 = vmatpush1.msra.mxu0 0.0
        %5876 = vmatprep.subr.mxu0 0.0
        %5877 = vmatpush1.msra.mxu0 0.0
        %5878 = vmatprep.subr.mxu0 0.0
        %5879 = vmatpush1.msra.mxu0 0.0
        %5880 = vmatprep.subr.mxu0 0.0
        %5881 = vmatpush1.msra.mxu0 0.0
        %5882 = vmatprep.subr.mxu0 0.0
        %5883 = vmatpush1.msra.mxu0 0.0
        %5884 = vmatprep.subr.mxu0 0.0
        %5885 = vmatpush1.msra.mxu0 0.0
        %5886 = vmatprep.subr.mxu0 0.0
        %5887 = vmatpush1.msra.mxu0 0.0
        %5888 = vmatprep.mubr.f32.mxu0 0.0
        %v5889 = vand.u32 %v5728, 4294901760
        %5890 = vmatmul.mubr.f32.gmra.mrb[0].mxu0 %v5889
        %v5891 = vpop.f32.mrb[0].mxu0
        %v5892 = vadd.f32 %v5810, %v5891
        %v5893 = vpop.f32.mrb[0].mxu0
        %v5894 = vadd.f32 %v5812, %v5893
        %5895 = vdwg.mxu0
        %v5896 = vand.u32 %v5734, 4294901760
        %v5897 = vsub.f32 %v5734, %v5896
        %5898 = vmatprep.subr.mxu0 %v5897
        %v5899 = vand.u32 %v5731, 4294901760
        %v5900 = vsub.f32 %v5731, %v5899
        %5901 = vmatpush1.msra.mxu0 %v5900
        %5902 = vmatprep.subr.mxu0 0.0
        %5903 = vmatpush1.msra.mxu0 0.0
        %5904 = vmatprep.subr.mxu0 0.0
        %5905 = vmatpush1.msra.mxu0 0.0
        %5906 = vmatprep.subr.mxu0 0.0
        %5907 = vmatpush1.msra.mxu0 0.0
        %5908 = vmatprep.subr.mxu0 0.0
        %5909 = vmatpush1.msra.mxu0 0.0
        %5910 = vmatprep.subr.mxu0 0.0
        %5911 = vmatpush1.msra.mxu0 0.0
        %5912 = vmatprep.subr.mxu0 0.0
        %5913 = vmatpush1.msra.mxu0 0.0
        %5914 = vmatprep.subr.mxu0 0.0
        %5915 = vmatpush1.msra.mxu0 0.0
        %5916 = vmatprep.subr.mxu0 0.0
        %5917 = vmatpush1.msra.mxu0 0.0
        %5918 = vmatprep.subr.mxu0 0.0
        %5919 = vmatpush1.msra.mxu0 0.0
        %5920 = vmatprep.subr.mxu0 0.0
        %5921 = vmatpush1.msra.mxu0 0.0
        %5922 = vmatprep.subr.mxu0 0.0
        %5923 = vmatpush1.msra.mxu0 0.0
        %5924 = vmatprep.subr.mxu0 0.0
        %5925 = vmatpush1.msra.mxu0 0.0
        %5926 = vmatprep.subr.mxu0 0.0
        %5927 = vmatpush1.msra.mxu0 0.0
        %5928 = vmatprep.subr.mxu0 0.0
        %5929 = vmatpush1.msra.mxu0 0.0
        %5930 = vmatprep.subr.mxu0 0.0
        %5931 = vmatpush1.msra.mxu0 0.0
        %5932 = vmatprep.subr.mxu0 0.0
        %5933 = vmatpush1.msra.mxu0 0.0
        %5934 = vmatprep.subr.mxu0 0.0
        %5935 = vmatpush1.msra.mxu0 0.0
        %5936 = vmatprep.subr.mxu0 0.0
        %5937 = vmatpush1.msra.mxu0 0.0
        %5938 = vmatprep.subr.mxu0 0.0
        %5939 = vmatpush1.msra.mxu0 0.0
        %5940 = vmatprep.subr.mxu0 0.0
        %5941 = vmatpush1.msra.mxu0 0.0
        %5942 = vmatprep.subr.mxu0 0.0
        %5943 = vmatpush1.msra.mxu0 0.0
        %5944 = vmatprep.subr.mxu0 0.0
        %5945 = vmatpush1.msra.mxu0 0.0
        %5946 = vmatprep.subr.mxu0 0.0
        %5947 = vmatpush1.msra.mxu0 0.0
        %5948 = vmatprep.subr.mxu0 0.0
        %5949 = vmatpush1.msra.mxu0 0.0
        %5950 = vmatprep.subr.mxu0 0.0
        %5951 = vmatpush1.msra.mxu0 0.0
        %5952 = vmatprep.subr.mxu0 0.0
        %5953 = vmatpush1.msra.mxu0 0.0
        %5954 = vmatprep.subr.mxu0 0.0
        %5955 = vmatpush1.msra.mxu0 0.0
        %5956 = vmatprep.subr.mxu0 0.0
        %5957 = vmatpush1.msra.mxu0 0.0
        %5958 = vmatprep.subr.mxu0 0.0
        %5959 = vmatpush1.msra.mxu0 0.0
        %5960 = vmatprep.subr.mxu0 0.0
        %5961 = vmatpush1.msra.mxu0 0.0
        %5962 = vmatprep.subr.mxu0 0.0
        %5963 = vmatpush1.msra.mxu0 0.0
        %5964 = vmatprep.mubr.f32.mxu0 0.0
        %v5965 = vand.u32 %v5728, 4294901760
        %v5966 = vsub.f32 %v5728, %v5965
        %5967 = vmatmul.mubr.f32.gmra.mrb[0].mxu0 %v5966
        %v5968 = vpop.f32.mrb[0].mxu0
        %v5969 = vadd.f32 %v5892, %v5968
        %v5970 = vpop.f32.mrb[0].mxu0
        %v5971 = vadd.f32 %v5894, %v5970
        %5972 = vdwg.mxu0
        %v5973 = vand.u32 %v5734, 4294901760
        %5974 = vmatprep.subr.mxu0 %v5973
        %v5975 = vand.u32 %v5731, 4294901760
        %5976 = vmatpush1.msra.mxu0 %v5975
        %5977 = vmatprep.subr.mxu0 0.0
        %5978 = vmatpush1.msra.mxu0 0.0
        %5979 = vmatprep.subr.mxu0 0.0
        %5980 = vmatpush1.msra.mxu0 0.0
        %5981 = vmatprep.subr.mxu0 0.0
        %5982 = vmatpush1.msra.mxu0 0.0
        %5983 = vmatprep.subr.mxu0 0.0
        %5984 = vmatpush1.msra.mxu0 0.0
        %5985 = vmatprep.subr.mxu0 0.0
        %5986 = vmatpush1.msra.mxu0 0.0
        %5987 = vmatprep.subr.mxu0 0.0
        %5988 = vmatpush1.msra.mxu0 0.0
        %5989 = vmatprep.subr.mxu0 0.0
        %5990 = vmatpush1.msra.mxu0 0.0
        %5991 = vmatprep.subr.mxu0 0.0
        %5992 = vmatpush1.msra.mxu0 0.0
        %5993 = vmatprep.subr.mxu0 0.0
        %5994 = vmatpush1.msra.mxu0 0.0
        %5995 = vmatprep.subr.mxu0 0.0
        %5996 = vmatpush1.msra.mxu0 0.0
        %5997 = vmatprep.subr.mxu0 0.0
        %5998 = vmatpush1.msra.mxu0 0.0
        %5999 = vmatprep.subr.mxu0 0.0
        %6000 = vmatpush1.msra.mxu0 0.0
        %6001 = vmatprep.subr.mxu0 0.0
        %6002 = vmatpush1.msra.mxu0 0.0
        %6003 = vmatprep.subr.mxu0 0.0
        %6004 = vmatpush1.msra.mxu0 0.0
        %6005 = vmatprep.subr.mxu0 0.0
        %6006 = vmatpush1.msra.mxu0 0.0
        %6007 = vmatprep.subr.mxu0 0.0
        %6008 = vmatpush1.msra.mxu0 0.0
        %6009 = vmatprep.subr.mxu0 0.0
        %6010 = vmatpush1.msra.mxu0 0.0
        %6011 = vmatprep.subr.mxu0 0.0
        %6012 = vmatpush1.msra.mxu0 0.0
        %6013 = vmatprep.subr.mxu0 0.0
        %6014 = vmatpush1.msra.mxu0 0.0
        %6015 = vmatprep.subr.mxu0 0.0
        %6016 = vmatpush1.msra.mxu0 0.0
        %6017 = vmatprep.subr.mxu0 0.0
        %6018 = vmatpush1.msra.mxu0 0.0
        %6019 = vmatprep.subr.mxu0 0.0
        %6020 = vmatpush1.msra.mxu0 0.0
        %6021 = vmatprep.subr.mxu0 0.0
        %6022 = vmatpush1.msra.mxu0 0.0
        %6023 = vmatprep.subr.mxu0 0.0
        %6024 = vmatpush1.msra.mxu0 0.0
        %6025 = vmatprep.subr.mxu0 0.0
        %6026 = vmatpush1.msra.mxu0 0.0
        %6027 = vmatprep.subr.mxu0 0.0
        %6028 = vmatpush1.msra.mxu0 0.0
        %6029 = vmatprep.subr.mxu0 0.0
        %6030 = vmatpush1.msra.mxu0 0.0
        %6031 = vmatprep.subr.mxu0 0.0
        %6032 = vmatpush1.msra.mxu0 0.0
        %6033 = vmatprep.subr.mxu0 0.0
        %6034 = vmatpush1.msra.mxu0 0.0
        %6035 = vmatprep.subr.mxu0 0.0
        %6036 = vmatpush1.msra.mxu0 0.0
        %6037 = vmatprep.subr.mxu0 0.0
        %6038 = vmatpush1.msra.mxu0 0.0
        %6039 = vmatprep.mubr.f32.mxu0 0.0
        %v6040 = vand.u32 %v5728, 4294901760
        %v6041 = vsub.f32 %v5728, %v6040
        %v6042 = vand.u32 %v6041, 4294901760
        %6043 = vmatmul.mubr.f32.gmra.mrb[0].mxu0 %v6042
        %v6044 = vpop.f32.mrb[0].mxu0
        %v6045 = vadd.f32 %v5969, %v6044
        %v6046 = vpop.f32.mrb[0].mxu0
        %v6047 = vadd.f32 %v5971, %v6046
        %6048 = vdwg.mxu0
        %v6049 = vand.u32 %v5734, 4294901760
        %v6050 = vsub.f32 %v5734, %v6049
        %v6051 = vand.u32 %v6050, 4294901760
        %6052 = vmatprep.subr.mxu0 %v6051
        %v6053 = vand.u32 %v5731, 4294901760
        %v6054 = vsub.f32 %v5731, %v6053
        %v6055 = vand.u32 %v6054, 4294901760
        %6056 = vmatpush1.msra.mxu0 %v6055
        %6057 = vmatprep.subr.mxu0 0.0
        %6058 = vmatpush1.msra.mxu0 0.0
        %6059 = vmatprep.subr.mxu0 0.0
        %6060 = vmatpush1.msra.mxu0 0.0
        %6061 = vmatprep.subr.mxu0 0.0
        %6062 = vmatpush1.msra.mxu0 0.0
        %6063 = vmatprep.subr.mxu0 0.0
        %6064 = vmatpush1.msra.mxu0 0.0
        %6065 = vmatprep.subr.mxu0 0.0
        %6066 = vmatpush1.msra.mxu0 0.0
        %6067 = vmatprep.subr.mxu0 0.0
        %6068 = vmatpush1.msra.mxu0 0.0
        %6069 = vmatprep.subr.mxu0 0.0
        %6070 = vmatpush1.msra.mxu0 0.0
        %6071 = vmatprep.subr.mxu0 0.0
        %6072 = vmatpush1.msra.mxu0 0.0
        %6073 = vmatprep.subr.mxu0 0.0
        %6074 = vmatpush1.msra.mxu0 0.0
        %6075 = vmatprep.subr.mxu0 0.0
        %6076 = vmatpush1.msra.mxu0 0.0
        %6077 = vmatprep.subr.mxu0 0.0
        %6078 = vmatpush1.msra.mxu0 0.0
        %6079 = vmatprep.subr.mxu0 0.0
        %6080 = vmatpush1.msra.mxu0 0.0
        %6081 = vmatprep.subr.mxu0 0.0
        %6082 = vmatpush1.msra.mxu0 0.0
        %6083 = vmatprep.subr.mxu0 0.0
        %6084 = vmatpush1.msra.mxu0 0.0
        %6085 = vmatprep.subr.mxu0 0.0
        %6086 = vmatpush1.msra.mxu0 0.0
        %6087 = vmatprep.subr.mxu0 0.0
        %6088 = vmatpush1.msra.mxu0 0.0
        %6089 = vmatprep.subr.mxu0 0.0
        %6090 = vmatpush1.msra.mxu0 0.0
        %6091 = vmatprep.subr.mxu0 0.0
        %6092 = vmatpush1.msra.mxu0 0.0
        %6093 = vmatprep.subr.mxu0 0.0
        %6094 = vmatpush1.msra.mxu0 0.0
        %6095 = vmatprep.subr.mxu0 0.0
        %6096 = vmatpush1.msra.mxu0 0.0
        %6097 = vmatprep.subr.mxu0 0.0
        %6098 = vmatpush1.msra.mxu0 0.0
        %6099 = vmatprep.subr.mxu0 0.0
        %6100 = vmatpush1.msra.mxu0 0.0
        %6101 = vmatprep.subr.mxu0 0.0
        %6102 = vmatpush1.msra.mxu0 0.0
        %6103 = vmatprep.subr.mxu0 0.0
        %6104 = vmatpush1.msra.mxu0 0.0
        %6105 = vmatprep.subr.mxu0 0.0
        %6106 = vmatpush1.msra.mxu0 0.0
        %6107 = vmatprep.subr.mxu0 0.0
        %6108 = vmatpush1.msra.mxu0 0.0
        %6109 = vmatprep.subr.mxu0 0.0
        %6110 = vmatpush1.msra.mxu0 0.0
        %6111 = vmatprep.subr.mxu0 0.0
        %6112 = vmatpush1.msra.mxu0 0.0
        %6113 = vmatprep.subr.mxu0 0.0
        %6114 = vmatpush1.msra.mxu0 0.0
        %6115 = vmatprep.subr.mxu0 0.0
        %6116 = vmatpush1.msra.mxu0 0.0
        %6117 = vmatprep.subr.mxu0 0.0
        %6118 = vmatpush1.msra.mxu0 0.0
        %6119 = vmatprep.mubr.f32.mxu0 0.0
        %v6120 = vand.u32 %v5728, 4294901760
        %6121 = vmatmul.mubr.f32.gmra.mrb[0].mxu0 %v6120
        %v6122 = vpop.f32.mrb[0].mxu0
        %v6123 = vadd.f32 %v6045, %v6122
        %v6124 = vpop.f32.mrb[0].mxu0
        %v6125 = vadd.f32 %v6047, %v6124
        %6126 = vdwg.mxu0
        %v6127 = vand.u32 %v5734, 4294901760
        %6128 = vmatprep.subr.mxu0 %v6127
        %v6129 = vand.u32 %v5731, 4294901760
        %6130 = vmatpush1.msra.mxu0 %v6129
        %6131 = vmatprep.subr.mxu0 0.0
        %6132 = vmatpush1.msra.mxu0 0.0
        %6133 = vmatprep.subr.mxu0 0.0
        %6134 = vmatpush1.msra.mxu0 0.0
        %6135 = vmatprep.subr.mxu0 0.0
        %6136 = vmatpush1.msra.mxu0 0.0
        %6137 = vmatprep.subr.mxu0 0.0
        %6138 = vmatpush1.msra.mxu0 0.0
        %6139 = vmatprep.subr.mxu0 0.0
        %6140 = vmatpush1.msra.mxu0 0.0
        %6141 = vmatprep.subr.mxu0 0.0
        %6142 = vmatpush1.msra.mxu0 0.0
        %6143 = vmatprep.subr.mxu0 0.0
        %6144 = vmatpush1.msra.mxu0 0.0
        %6145 = vmatprep.subr.mxu0 0.0
        %6146 = vmatpush1.msra.mxu0 0.0
        %6147 = vmatprep.subr.mxu0 0.0
        %6148 = vmatpush1.msra.mxu0 0.0
        %6149 = vmatprep.subr.mxu0 0.0
        %6150 = vmatpush1.msra.mxu0 0.0
        %6151 = vmatprep.subr.mxu0 0.0
        %6152 = vmatpush1.msra.mxu0 0.0
        %6153 = vmatprep.subr.mxu0 0.0
        %6154 = vmatpush1.msra.mxu0 0.0
        %6155 = vmatprep.subr.mxu0 0.0
        %6156 = vmatpush1.msra.mxu0 0.0
        %6157 = vmatprep.subr.mxu0 0.0
        %6158 = vmatpush1.msra.mxu0 0.0
        %6159 = vmatprep.subr.mxu0 0.0
        %6160 = vmatpush1.msra.mxu0 0.0
        %6161 = vmatprep.subr.mxu0 0.0
        %6162 = vmatpush1.msra.mxu0 0.0
        %6163 = vmatprep.subr.mxu0 0.0
        %6164 = vmatpush1.msra.mxu0 0.0
        %6165 = vmatprep.subr.mxu0 0.0
        %6166 = vmatpush1.msra.mxu0 0.0
        %6167 = vmatprep.subr.mxu0 0.0
        %6168 = vmatpush1.msra.mxu0 0.0
        %6169 = vmatprep.subr.mxu0 0.0
        %6170 = vmatpush1.msra.mxu0 0.0
        %6171 = vmatprep.subr.mxu0 0.0
        %6172 = vmatpush1.msra.mxu0 0.0
        %6173 = vmatprep.subr.mxu0 0.0
        %6174 = vmatpush1.msra.mxu0 0.0
        %6175 = vmatprep.subr.mxu0 0.0
        %6176 = vmatpush1.msra.mxu0 0.0
        %6177 = vmatprep.subr.mxu0 0.0
        %6178 = vmatpush1.msra.mxu0 0.0
        %6179 = vmatprep.subr.mxu0 0.0
        %6180 = vmatpush1.msra.mxu0 0.0
        %6181 = vmatprep.subr.mxu0 0.0
        %6182 = vmatpush1.msra.mxu0 0.0
        %6183 = vmatprep.subr.mxu0 0.0
        %6184 = vmatpush1.msra.mxu0 0.0
        %6185 = vmatprep.subr.mxu0 0.0
        %6186 = vmatpush1.msra.mxu0 0.0
        %6187 = vmatprep.subr.mxu0 0.0
        %6188 = vmatpush1.msra.mxu0 0.0
        %6189 = vmatprep.subr.mxu0 0.0
        %6190 = vmatpush1.msra.mxu0 0.0
        %6191 = vmatprep.subr.mxu0 0.0
        %6192 = vmatpush1.msra.mxu0 0.0
        %6193 = vmatprep.mubr.f32.mxu0 0.0
        %v6194 = vand.u32 %v5728, 4294901760
        %6195 = vmatmul.mubr.f32.gmra.mrb[0].mxu0 %v6194
        %v6196 = vpop.f32.mrb[0].mxu0
        %v6197 = vadd.f32 %v6123, %v6196
        %v6198 = vpop.f32.mrb[0].mxu0
        %v6199 = vadd.f32 %v6125, %v6198
        %6200 = vdwg.mxu0
        %v6201 = vadd.f32 %v5725, %v6197
        %v6202 = vadd.f32 %v5726, %v6199
        %v6203 = vmax.f32 %v6201, 0.0
        %v6204 = vmax.f32 %v6202, 0.0
        %s6205 = scalar_lea.vmem %s4, %s4745
        %v6206 = vld [vmem:[%s6205] sm:$0xff]
        %v6207 = vld [vmem:[%s6205 + $0x8] sm:$0xff]
        %v6208 = vld [vmem:[%s6205 + $0x10] sm:$0xff]
        %s6209 = scalar_lea.vmem %s5, %s4750
        %v6210 = vld [vmem:[%s6209] sm:$0xff]
        %6211 = vrot.lane.b32.xlu0 %v6203, 1
        %v6212 = vpop.permute.xlu0 %6211
        %6213 = vrot.lane.b32.xlu0 %v6204, 1
        %v6214 = vpop.permute.xlu0 %6213
        %v6215 = vsel %vm330, %v6212, %v6214
        %v6216 = vsel %vm330, %v6214, %v6212
        %v6217 = vmul.f32 %v6216, %v347
        %v6218 = vmul.f32 %v6215, %v351
        %6219 = vrot.lane.b32.xlu0 %v6203, 127
        %v6220 = vpop.permute.xlu0 %6219
        %6221 = vrot.lane.b32.xlu0 %v6204, 127
        %v6222 = vpop.permute.xlu0 %6221
        %v6223 = vsel %vm358, %v6220, %v6222
        %v6224 = vsel %vm358, %v6222, %v6220
        %v6225 = vmul.f32 %v6223, %v374
        %v6226 = vmul.f32 %v6224, %v378
        %v6228 = vsel %vm1838, %v6206, 0
        %v6230 = vand.u32 %v6218, 4294901760
        %6231 = vmatprep.subr.mxu0 %v6230
        %v6232 = vand.u32 %v6217, 4294901760
        %6233 = vmatpush1.msra.mxu0 %v6232
        %6234 = vmatprep.subr.mxu0 0.0
        %6235 = vmatpush1.msra.mxu0 0.0
        %6236 = vmatprep.subr.mxu0 0.0
        %6237 = vmatpush1.msra.mxu0 0.0
        %6238 = vmatprep.subr.mxu0 0.0
        %6239 = vmatpush1.msra.mxu0 0.0
        %6240 = vmatprep.subr.mxu0 0.0
        %6241 = vmatpush1.msra.mxu0 0.0
        %6242 = vmatprep.subr.mxu0 0.0
        %6243 = vmatpush1.msra.mxu0 0.0
        %6244 = vmatprep.subr.mxu0 0.0
        %6245 = vmatpush1.msra.mxu0 0.0
        %6246 = vmatprep.subr.mxu0 0.0
        %6247 = vmatpush1.msra.mxu0 0.0
        %6248 = vmatprep.subr.mxu0 0.0
        %6249 = vmatpush1.msra.mxu0 0.0
        %6250 = vmatprep.subr.mxu0 0.0
        %6251 = vmatpush1.msra.mxu0 0.0
        %6252 = vmatprep.subr.mxu0 0.0
        %6253 = vmatpush1.msra.mxu0 0.0
        %6254 = vmatprep.subr.mxu0 0.0
        %6255 = vmatpush1.msra.mxu0 0.0
        %6256 = vmatprep.subr.mxu0 0.0
        %6257 = vmatpush1.msra.mxu0 0.0
        %6258 = vmatprep.subr.mxu0 0.0
        %6259 = vmatpush1.msra.mxu0 0.0
        %6260 = vmatprep.subr.mxu0 0.0
        %6261 = vmatpush1.msra.mxu0 0.0
        %6262 = vmatprep.subr.mxu0 0.0
        %6263 = vmatpush1.msra.mxu0 0.0
        %6264 = vmatprep.subr.mxu0 0.0
        %6265 = vmatpush1.msra.mxu0 0.0
        %6266 = vmatprep.subr.mxu0 0.0
        %6267 = vmatpush1.msra.mxu0 0.0
        %6268 = vmatprep.subr.mxu0 0.0
        %6269 = vmatpush1.msra.mxu0 0.0
        %6270 = vmatprep.subr.mxu0 0.0
        %6271 = vmatpush1.msra.mxu0 0.0
        %6272 = vmatprep.subr.mxu0 0.0
        %6273 = vmatpush1.msra.mxu0 0.0
        %6274 = vmatprep.subr.mxu0 0.0
        %6275 = vmatpush1.msra.mxu0 0.0
        %6276 = vmatprep.subr.mxu0 0.0
        %6277 = vmatpush1.msra.mxu0 0.0
        %6278 = vmatprep.subr.mxu0 0.0
        %6279 = vmatpush1.msra.mxu0 0.0
        %6280 = vmatprep.subr.mxu0 0.0
        %6281 = vmatpush1.msra.mxu0 0.0
        %6282 = vmatprep.subr.mxu0 0.0
        %6283 = vmatpush1.msra.mxu0 0.0
        %6284 = vmatprep.subr.mxu0 0.0
        %6285 = vmatpush1.msra.mxu0 0.0
        %6286 = vmatprep.subr.mxu0 0.0
        %6287 = vmatpush1.msra.mxu0 0.0
        %6288 = vmatprep.subr.mxu0 0.0
        %6289 = vmatpush1.msra.mxu0 0.0
        %6290 = vmatprep.subr.mxu0 0.0
        %6291 = vmatpush1.msra.mxu0 0.0
        %6292 = vmatprep.subr.mxu0 0.0
        %6293 = vmatpush1.msra.mxu0 0.0
        %6294 = vmatprep.subr.mxu0 0.0
        %6295 = vmatpush1.msra.mxu0 0.0
        %6296 = vmatprep.mubr.f32.mxu0 0.0
        %v6297 = vand.u32 %v6228, 4294901760
        %v6298 = vsub.f32 %v6228, %v6297
        %v6299 = vand.u32 %v6298, 4294901760
        %v6300 = vsub.f32 %v6298, %v6299
        %v6301 = vand.u32 %v6300, 4294901760
        %6302 = vmatmul.mubr.f32.gmra.mrb[0].mxu0 %v6301
        %v6303 = vpop.f32.mrb[0].mxu0
        %v6304 = vadd.f32 0.0, %v6303
        %v6305 = vpop.f32.mrb[0].mxu0
        %v6306 = vadd.f32 0.0, %v6305
        %6307 = vdwg.mxu0
        %v6308 = vand.u32 %v6218, 4294901760
        %v6309 = vsub.f32 %v6218, %v6308
        %v6310 = vand.u32 %v6309, 4294901760
        %v6311 = vsub.f32 %v6309, %v6310
        %v6312 = vand.u32 %v6311, 4294901760
        %6313 = vmatprep.subr.mxu0 %v6312
        %v6314 = vand.u32 %v6217, 4294901760
        %v6315 = vsub.f32 %v6217, %v6314
        %v6316 = vand.u32 %v6315, 4294901760
        %v6317 = vsub.f32 %v6315, %v6316
        %v6318 = vand.u32 %v6317, 4294901760
        %6319 = vmatpush1.msra.mxu0 %v6318
        %6320 = vmatprep.subr.mxu0 0.0
        %6321 = vmatpush1.msra.mxu0 0.0
        %6322 = vmatprep.subr.mxu0 0.0
        %6323 = vmatpush1.msra.mxu0 0.0
        %6324 = vmatprep.subr.mxu0 0.0
        %6325 = vmatpush1.msra.mxu0 0.0
        %6326 = vmatprep.subr.mxu0 0.0
        %6327 = vmatpush1.msra.mxu0 0.0
        %6328 = vmatprep.subr.mxu0 0.0
        %6329 = vmatpush1.msra.mxu0 0.0
        %6330 = vmatprep.subr.mxu0 0.0
        %6331 = vmatpush1.msra.mxu0 0.0
        %6332 = vmatprep.subr.mxu0 0.0
        %6333 = vmatpush1.msra.mxu0 0.0
        %6334 = vmatprep.subr.mxu0 0.0
        %6335 = vmatpush1.msra.mxu0 0.0
        %6336 = vmatprep.subr.mxu0 0.0
        %6337 = vmatpush1.msra.mxu0 0.0
        %6338 = vmatprep.subr.mxu0 0.0
        %6339 = vmatpush1.msra.mxu0 0.0
        %6340 = vmatprep.subr.mxu0 0.0
        %6341 = vmatpush1.msra.mxu0 0.0
        %6342 = vmatprep.subr.mxu0 0.0
        %6343 = vmatpush1.msra.mxu0 0.0
        %6344 = vmatprep.subr.mxu0 0.0
        %6345 = vmatpush1.msra.mxu0 0.0
        %6346 = vmatprep.subr.mxu0 0.0
        %6347 = vmatpush1.msra.mxu0 0.0
        %6348 = vmatprep.subr.mxu0 0.0
        %6349 = vmatpush1.msra.mxu0 0.0
        %6350 = vmatprep.subr.mxu0 0.0
        %6351 = vmatpush1.msra.mxu0 0.0
        %6352 = vmatprep.subr.mxu0 0.0
        %6353 = vmatpush1.msra.mxu0 0.0
        %6354 = vmatprep.subr.mxu0 0.0
        %6355 = vmatpush1.msra.mxu0 0.0
        %6356 = vmatprep.subr.mxu0 0.0
        %6357 = vmatpush1.msra.mxu0 0.0
        %6358 = vmatprep.subr.mxu0 0.0
        %6359 = vmatpush1.msra.mxu0 0.0
        %6360 = vmatprep.subr.mxu0 0.0
        %6361 = vmatpush1.msra.mxu0 0.0
        %6362 = vmatprep.subr.mxu0 0.0
        %6363 = vmatpush1.msra.mxu0 0.0
        %6364 = vmatprep.subr.mxu0 0.0
        %6365 = vmatpush1.msra.mxu0 0.0
        %6366 = vmatprep.subr.mxu0 0.0
        %6367 = vmatpush1.msra.mxu0 0.0
        %6368 = vmatprep.subr.mxu0 0.0
        %6369 = vmatpush1.msra.mxu0 0.0
        %6370 = vmatprep.subr.mxu0 0.0
        %6371 = vmatpush1.msra.mxu0 0.0
        %6372 = vmatprep.subr.mxu0 0.0
        %6373 = vmatpush1.msra.mxu0 0.0
        %6374 = vmatprep.subr.mxu0 0.0
        %6375 = vmatpush1.msra.mxu0 0.0
        %6376 = vmatprep.subr.mxu0 0.0
        %6377 = vmatpush1.msra.mxu0 0.0
        %6378 = vmatprep.subr.mxu0 0.0
        %6379 = vmatpush1.msra.mxu0 0.0
        %6380 = vmatprep.subr.mxu0 0.0
        %6381 = vmatpush1.msra.mxu0 0.0
        %6382 = vmatprep.mubr.f32.mxu0 0.0
        %v6383 = vand.u32 %v6228, 4294901760
        %6384 = vmatmul.mubr.f32.gmra.mrb[0].mxu0 %v6383
        %v6385 = vpop.f32.mrb[0].mxu0
        %v6386 = vadd.f32 %v6304, %v6385
        %v6387 = vpop.f32.mrb[0].mxu0
        %v6388 = vadd.f32 %v6306, %v6387
        %6389 = vdwg.mxu0
        %v6390 = vand.u32 %v6218, 4294901760
        %v6391 = vsub.f32 %v6218, %v6390
        %6392 = vmatprep.subr.mxu0 %v6391
        %v6393 = vand.u32 %v6217, 4294901760
        %v6394 = vsub.f32 %v6217, %v6393
        %6395 = vmatpush1.msra.mxu0 %v6394
        %6396 = vmatprep.subr.mxu0 0.0
        %6397 = vmatpush1.msra.mxu0 0.0
        %6398 = vmatprep.subr.mxu0 0.0
        %6399 = vmatpush1.msra.mxu0 0.0
        %6400 = vmatprep.subr.mxu0 0.0
        %6401 = vmatpush1.msra.mxu0 0.0
        %6402 = vmatprep.subr.mxu0 0.0
        %6403 = vmatpush1.msra.mxu0 0.0
        %6404 = vmatprep.subr.mxu0 0.0
        %6405 = vmatpush1.msra.mxu0 0.0
        %6406 = vmatprep.subr.mxu0 0.0
        %6407 = vmatpush1.msra.mxu0 0.0
        %6408 = vmatprep.subr.mxu0 0.0
        %6409 = vmatpush1.msra.mxu0 0.0
        %6410 = vmatprep.subr.mxu0 0.0
        %6411 = vmatpush1.msra.mxu0 0.0
        %6412 = vmatprep.subr.mxu0 0.0
        %6413 = vmatpush1.msra.mxu0 0.0
        %6414 = vmatprep.subr.mxu0 0.0
        %6415 = vmatpush1.msra.mxu0 0.0
        %6416 = vmatprep.subr.mxu0 0.0
        %6417 = vmatpush1.msra.mxu0 0.0
        %6418 = vmatprep.subr.mxu0 0.0
        %6419 = vmatpush1.msra.mxu0 0.0
        %6420 = vmatprep.subr.mxu0 0.0
        %6421 = vmatpush1.msra.mxu0 0.0
        %6422 = vmatprep.subr.mxu0 0.0
        %6423 = vmatpush1.msra.mxu0 0.0
        %6424 = vmatprep.subr.mxu0 0.0
        %6425 = vmatpush1.msra.mxu0 0.0
        %6426 = vmatprep.subr.mxu0 0.0
        %6427 = vmatpush1.msra.mxu0 0.0
        %6428 = vmatprep.subr.mxu0 0.0
        %6429 = vmatpush1.msra.mxu0 0.0
        %6430 = vmatprep.subr.mxu0 0.0
        %6431 = vmatpush1.msra.mxu0 0.0
        %6432 = vmatprep.subr.mxu0 0.0
        %6433 = vmatpush1.msra.mxu0 0.0
        %6434 = vmatprep.subr.mxu0 0.0
        %6435 = vmatpush1.msra.mxu0 0.0
        %6436 = vmatprep.subr.mxu0 0.0
        %6437 = vmatpush1.msra.mxu0 0.0
        %6438 = vmatprep.subr.mxu0 0.0
        %6439 = vmatpush1.msra.mxu0 0.0
        %6440 = vmatprep.subr.mxu0 0.0
        %6441 = vmatpush1.msra.mxu0 0.0
        %6442 = vmatprep.subr.mxu0 0.0
        %6443 = vmatpush1.msra.mxu0 0.0
        %6444 = vmatprep.subr.mxu0 0.0
        %6445 = vmatpush1.msra.mxu0 0.0
        %6446 = vmatprep.subr.mxu0 0.0
        %6447 = vmatpush1.msra.mxu0 0.0
        %6448 = vmatprep.subr.mxu0 0.0
        %6449 = vmatpush1.msra.mxu0 0.0
        %6450 = vmatprep.subr.mxu0 0.0
        %6451 = vmatpush1.msra.mxu0 0.0
        %6452 = vmatprep.subr.mxu0 0.0
        %6453 = vmatpush1.msra.mxu0 0.0
        %6454 = vmatprep.subr.mxu0 0.0
        %6455 = vmatpush1.msra.mxu0 0.0
        %6456 = vmatprep.subr.mxu0 0.0
        %6457 = vmatpush1.msra.mxu0 0.0
        %6458 = vmatprep.mubr.f32.mxu0 0.0
        %v6459 = vand.u32 %v6228, 4294901760
        %v6460 = vsub.f32 %v6228, %v6459
        %6461 = vmatmul.mubr.f32.gmra.mrb[0].mxu0 %v6460
        %v6462 = vpop.f32.mrb[0].mxu0
        %v6463 = vadd.f32 %v6386, %v6462
        %v6464 = vpop.f32.mrb[0].mxu0
        %v6465 = vadd.f32 %v6388, %v6464
        %6466 = vdwg.mxu0
        %v6467 = vand.u32 %v6218, 4294901760
        %6468 = vmatprep.subr.mxu0 %v6467
        %v6469 = vand.u32 %v6217, 4294901760
        %6470 = vmatpush1.msra.mxu0 %v6469
        %6471 = vmatprep.subr.mxu0 0.0
        %6472 = vmatpush1.msra.mxu0 0.0
        %6473 = vmatprep.subr.mxu0 0.0
        %6474 = vmatpush1.msra.mxu0 0.0
        %6475 = vmatprep.subr.mxu0 0.0
        %6476 = vmatpush1.msra.mxu0 0.0
        %6477 = vmatprep.subr.mxu0 0.0
        %6478 = vmatpush1.msra.mxu0 0.0
        %6479 = vmatprep.subr.mxu0 0.0
        %6480 = vmatpush1.msra.mxu0 0.0
        %6481 = vmatprep.subr.mxu0 0.0
        %6482 = vmatpush1.msra.mxu0 0.0
        %6483 = vmatprep.subr.mxu0 0.0
        %6484 = vmatpush1.msra.mxu0 0.0
        %6485 = vmatprep.subr.mxu0 0.0
        %6486 = vmatpush1.msra.mxu0 0.0
        %6487 = vmatprep.subr.mxu0 0.0
        %6488 = vmatpush1.msra.mxu0 0.0
        %6489 = vmatprep.subr.mxu0 0.0
        %6490 = vmatpush1.msra.mxu0 0.0
        %6491 = vmatprep.subr.mxu0 0.0
        %6492 = vmatpush1.msra.mxu0 0.0
        %6493 = vmatprep.subr.mxu0 0.0
        %6494 = vmatpush1.msra.mxu0 0.0
        %6495 = vmatprep.subr.mxu0 0.0
        %6496 = vmatpush1.msra.mxu0 0.0
        %6497 = vmatprep.subr.mxu0 0.0
        %6498 = vmatpush1.msra.mxu0 0.0
        %6499 = vmatprep.subr.mxu0 0.0
        %6500 = vmatpush1.msra.mxu0 0.0
        %6501 = vmatprep.subr.mxu0 0.0
        %6502 = vmatpush1.msra.mxu0 0.0
        %6503 = vmatprep.subr.mxu0 0.0
        %6504 = vmatpush1.msra.mxu0 0.0
        %6505 = vmatprep.subr.mxu0 0.0
        %6506 = vmatpush1.msra.mxu0 0.0
        %6507 = vmatprep.subr.mxu0 0.0
        %6508 = vmatpush1.msra.mxu0 0.0
        %6509 = vmatprep.subr.mxu0 0.0
        %6510 = vmatpush1.msra.mxu0 0.0
        %6511 = vmatprep.subr.mxu0 0.0
        %6512 = vmatpush1.msra.mxu0 0.0
        %6513 = vmatprep.subr.mxu0 0.0
        %6514 = vmatpush1.msra.mxu0 0.0
        %6515 = vmatprep.subr.mxu0 0.0
        %6516 = vmatpush1.msra.mxu0 0.0
        %6517 = vmatprep.subr.mxu0 0.0
        %6518 = vmatpush1.msra.mxu0 0.0
        %6519 = vmatprep.subr.mxu0 0.0
        %6520 = vmatpush1.msra.mxu0 0.0
        %6521 = vmatprep.subr.mxu0 0.0
        %6522 = vmatpush1.msra.mxu0 0.0
        %6523 = vmatprep.subr.mxu0 0.0
        %6524 = vmatpush1.msra.mxu0 0.0
        %6525 = vmatprep.subr.mxu0 0.0
        %6526 = vmatpush1.msra.mxu0 0.0
        %6527 = vmatprep.subr.mxu0 0.0
        %6528 = vmatpush1.msra.mxu0 0.0
        %6529 = vmatprep.subr.mxu0 0.0
        %6530 = vmatpush1.msra.mxu0 0.0
        %6531 = vmatprep.subr.mxu0 0.0
        %6532 = vmatpush1.msra.mxu0 0.0
        %6533 = vmatprep.mubr.f32.mxu0 0.0
        %v6534 = vand.u32 %v6228, 4294901760
        %v6535 = vsub.f32 %v6228, %v6534
        %v6536 = vand.u32 %v6535, 4294901760
        %6537 = vmatmul.mubr.f32.gmra.mrb[0].mxu0 %v6536
        %v6538 = vpop.f32.mrb[0].mxu0
        %v6539 = vadd.f32 %v6463, %v6538
        %v6540 = vpop.f32.mrb[0].mxu0
        %v6541 = vadd.f32 %v6465, %v6540
        %6542 = vdwg.mxu0
        %v6543 = vand.u32 %v6218, 4294901760
        %v6544 = vsub.f32 %v6218, %v6543
        %v6545 = vand.u32 %v6544, 4294901760
        %6546 = vmatprep.subr.mxu0 %v6545
        %v6547 = vand.u32 %v6217, 4294901760
        %v6548 = vsub.f32 %v6217, %v6547
        %v6549 = vand.u32 %v6548, 4294901760
        %6550 = vmatpush1.msra.mxu0 %v6549
        %6551 = vmatprep.subr.mxu0 0.0
        %6552 = vmatpush1.msra.mxu0 0.0
        %6553 = vmatprep.subr.mxu0 0.0
        %6554 = vmatpush1.msra.mxu0 0.0
        %6555 = vmatprep.subr.mxu0 0.0
        %6556 = vmatpush1.msra.mxu0 0.0
        %6557 = vmatprep.subr.mxu0 0.0
        %6558 = vmatpush1.msra.mxu0 0.0
        %6559 = vmatprep.subr.mxu0 0.0
        %6560 = vmatpush1.msra.mxu0 0.0
        %6561 = vmatprep.subr.mxu0 0.0
        %6562 = vmatpush1.msra.mxu0 0.0
        %6563 = vmatprep.subr.mxu0 0.0
        %6564 = vmatpush1.msra.mxu0 0.0
        %6565 = vmatprep.subr.mxu0 0.0
        %6566 = vmatpush1.msra.mxu0 0.0
        %6567 = vmatprep.subr.mxu0 0.0
        %6568 = vmatpush1.msra.mxu0 0.0
        %6569 = vmatprep.subr.mxu0 0.0
        %6570 = vmatpush1.msra.mxu0 0.0
        %6571 = vmatprep.subr.mxu0 0.0
        %6572 = vmatpush1.msra.mxu0 0.0
        %6573 = vmatprep.subr.mxu0 0.0
        %6574 = vmatpush1.msra.mxu0 0.0
        %6575 = vmatprep.subr.mxu0 0.0
        %6576 = vmatpush1.msra.mxu0 0.0
        %6577 = vmatprep.subr.mxu0 0.0
        %6578 = vmatpush1.msra.mxu0 0.0
        %6579 = vmatprep.subr.mxu0 0.0
        %6580 = vmatpush1.msra.mxu0 0.0
        %6581 = vmatprep.subr.mxu0 0.0
        %6582 = vmatpush1.msra.mxu0 0.0
        %6583 = vmatprep.subr.mxu0 0.0
        %6584 = vmatpush1.msra.mxu0 0.0
        %6585 = vmatprep.subr.mxu0 0.0
        %6586 = vmatpush1.msra.mxu0 0.0
        %6587 = vmatprep.subr.mxu0 0.0
        %6588 = vmatpush1.msra.mxu0 0.0
        %6589 = vmatprep.subr.mxu0 0.0
        %6590 = vmatpush1.msra.mxu0 0.0
        %6591 = vmatprep.subr.mxu0 0.0
        %6592 = vmatpush1.msra.mxu0 0.0
        %6593 = vmatprep.subr.mxu0 0.0
        %6594 = vmatpush1.msra.mxu0 0.0
        %6595 = vmatprep.subr.mxu0 0.0
        %6596 = vmatpush1.msra.mxu0 0.0
        %6597 = vmatprep.subr.mxu0 0.0
        %6598 = vmatpush1.msra.mxu0 0.0
        %6599 = vmatprep.subr.mxu0 0.0
        %6600 = vmatpush1.msra.mxu0 0.0
        %6601 = vmatprep.subr.mxu0 0.0
        %6602 = vmatpush1.msra.mxu0 0.0
        %6603 = vmatprep.subr.mxu0 0.0
        %6604 = vmatpush1.msra.mxu0 0.0
        %6605 = vmatprep.subr.mxu0 0.0
        %6606 = vmatpush1.msra.mxu0 0.0
        %6607 = vmatprep.subr.mxu0 0.0
        %6608 = vmatpush1.msra.mxu0 0.0
        %6609 = vmatprep.subr.mxu0 0.0
        %6610 = vmatpush1.msra.mxu0 0.0
        %6611 = vmatprep.subr.mxu0 0.0
        %6612 = vmatpush1.msra.mxu0 0.0
        %6613 = vmatprep.mubr.f32.mxu0 0.0
        %v6614 = vand.u32 %v6228, 4294901760
        %6615 = vmatmul.mubr.f32.gmra.mrb[0].mxu0 %v6614
        %v6616 = vpop.f32.mrb[0].mxu0
        %v6617 = vadd.f32 %v6539, %v6616
        %v6618 = vpop.f32.mrb[0].mxu0
        %v6619 = vadd.f32 %v6541, %v6618
        %6620 = vdwg.mxu0
        %v6621 = vand.u32 %v6218, 4294901760
        %6622 = vmatprep.subr.mxu0 %v6621
        %v6623 = vand.u32 %v6217, 4294901760
        %6624 = vmatpush1.msra.mxu0 %v6623
        %6625 = vmatprep.subr.mxu0 0.0
        %6626 = vmatpush1.msra.mxu0 0.0
        %6627 = vmatprep.subr.mxu0 0.0
        %6628 = vmatpush1.msra.mxu0 0.0
        %6629 = vmatprep.subr.mxu0 0.0
        %6630 = vmatpush1.msra.mxu0 0.0
        %6631 = vmatprep.subr.mxu0 0.0
        %6632 = vmatpush1.msra.mxu0 0.0
        %6633 = vmatprep.subr.mxu0 0.0
        %6634 = vmatpush1.msra.mxu0 0.0
        %6635 = vmatprep.subr.mxu0 0.0
        %6636 = vmatpush1.msra.mxu0 0.0
        %6637 = vmatprep.subr.mxu0 0.0
        %6638 = vmatpush1.msra.mxu0 0.0
        %6639 = vmatprep.subr.mxu0 0.0
        %6640 = vmatpush1.msra.mxu0 0.0
        %6641 = vmatprep.subr.mxu0 0.0
        %6642 = vmatpush1.msra.mxu0 0.0
        %6643 = vmatprep.subr.mxu0 0.0
        %6644 = vmatpush1.msra.mxu0 0.0
        %6645 = vmatprep.subr.mxu0 0.0
        %6646 = vmatpush1.msra.mxu0 0.0
        %6647 = vmatprep.subr.mxu0 0.0
        %6648 = vmatpush1.msra.mxu0 0.0
        %6649 = vmatprep.subr.mxu0 0.0
        %6650 = vmatpush1.msra.mxu0 0.0
        %6651 = vmatprep.subr.mxu0 0.0
        %6652 = vmatpush1.msra.mxu0 0.0
        %6653 = vmatprep.subr.mxu0 0.0
        %6654 = vmatpush1.msra.mxu0 0.0
        %6655 = vmatprep.subr.mxu0 0.0
        %6656 = vmatpush1.msra.mxu0 0.0
        %6657 = vmatprep.subr.mxu0 0.0
        %6658 = vmatpush1.msra.mxu0 0.0
        %6659 = vmatprep.subr.mxu0 0.0
        %6660 = vmatpush1.msra.mxu0 0.0
        %6661 = vmatprep.subr.mxu0 0.0
        %6662 = vmatpush1.msra.mxu0 0.0
        %6663 = vmatprep.subr.mxu0 0.0
        %6664 = vmatpush1.msra.mxu0 0.0
        %6665 = vmatprep.subr.mxu0 0.0
        %6666 = vmatpush1.msra.mxu0 0.0
        %6667 = vmatprep.subr.mxu0 0.0
        %6668 = vmatpush1.msra.mxu0 0.0
        %6669 = vmatprep.subr.mxu0 0.0
        %6670 = vmatpush1.msra.mxu0 0.0
        %6671 = vmatprep.subr.mxu0 0.0
        %6672 = vmatpush1.msra.mxu0 0.0
        %6673 = vmatprep.subr.mxu0 0.0
        %6674 = vmatpush1.msra.mxu0 0.0
        %6675 = vmatprep.subr.mxu0 0.0
        %6676 = vmatpush1.msra.mxu0 0.0
        %6677 = vmatprep.subr.mxu0 0.0
        %6678 = vmatpush1.msra.mxu0 0.0
        %6679 = vmatprep.subr.mxu0 0.0
        %6680 = vmatpush1.msra.mxu0 0.0
        %6681 = vmatprep.subr.mxu0 0.0
        %6682 = vmatpush1.msra.mxu0 0.0
        %6683 = vmatprep.subr.mxu0 0.0
        %6684 = vmatpush1.msra.mxu0 0.0
        %6685 = vmatprep.subr.mxu0 0.0
        %6686 = vmatpush1.msra.mxu0 0.0
        %6687 = vmatprep.mubr.f32.mxu0 0.0
        %v6688 = vand.u32 %v6228, 4294901760
        %6689 = vmatmul.mubr.f32.gmra.mrb[0].mxu0 %v6688
        %v6690 = vpop.f32.mrb[0].mxu0
        %v6691 = vadd.f32 %v6617, %v6690
        %v6692 = vpop.f32.mrb[0].mxu0
        %v6693 = vadd.f32 %v6619, %v6692
        %6694 = vdwg.mxu0
        %6696 = vset.pattern.permute.xlu0 0
        %6697 = vperm.xlu0 %6696, %v6210
        %v6698 = vpop.permute.xlu0 %6697
        %v6700 = vadd.f32 %v6698, %v6691
        %v6701 = vadd.f32 %v6698, %v6693
        %v6703 = vsel %vm1838, %v6207, 0
        %v6705 = vand.u32 %v6204, 4294901760
        %6706 = vmatprep.subr.mxu0 %v6705
        %v6707 = vand.u32 %v6203, 4294901760
        %6708 = vmatpush1.msra.mxu0 %v6707
        %6709 = vmatprep.subr.mxu0 0.0
        %6710 = vmatpush1.msra.mxu0 0.0
        %6711 = vmatprep.subr.mxu0 0.0
        %6712 = vmatpush1.msra.mxu0 0.0
        %6713 = vmatprep.subr.mxu0 0.0
        %6714 = vmatpush1.msra.mxu0 0.0
        %6715 = vmatprep.subr.mxu0 0.0
        %6716 = vmatpush1.msra.mxu0 0.0
        %6717 = vmatprep.subr.mxu0 0.0
        %6718 = vmatpush1.msra.mxu0 0.0
        %6719 = vmatprep.subr.mxu0 0.0
        %6720 = vmatpush1.msra.mxu0 0.0
        %6721 = vmatprep.subr.mxu0 0.0
        %6722 = vmatpush1.msra.mxu0 0.0
        %6723 = vmatprep.subr.mxu0 0.0
        %6724 = vmatpush1.msra.mxu0 0.0
        %6725 = vmatprep.subr.mxu0 0.0
        %6726 = vmatpush1.msra.mxu0 0.0
        %6727 = vmatprep.subr.mxu0 0.0
        %6728 = vmatpush1.msra.mxu0 0.0
        %6729 = vmatprep.subr.mxu0 0.0
        %6730 = vmatpush1.msra.mxu0 0.0
        %6731 = vmatprep.subr.mxu0 0.0
        %6732 = vmatpush1.msra.mxu0 0.0
        %6733 = vmatprep.subr.mxu0 0.0
        %6734 = vmatpush1.msra.mxu0 0.0
        %6735 = vmatprep.subr.mxu0 0.0
        %6736 = vmatpush1.msra.mxu0 0.0
        %6737 = vmatprep.subr.mxu0 0.0
        %6738 = vmatpush1.msra.mxu0 0.0
        %6739 = vmatprep.subr.mxu0 0.0
        %6740 = vmatpush1.msra.mxu0 0.0
        %6741 = vmatprep.subr.mxu0 0.0
        %6742 = vmatpush1.msra.mxu0 0.0
        %6743 = vmatprep.subr.mxu0 0.0
        %6744 = vmatpush1.msra.mxu0 0.0
        %6745 = vmatprep.subr.mxu0 0.0
        %6746 = vmatpush1.msra.mxu0 0.0
        %6747 = vmatprep.subr.mxu0 0.0
        %6748 = vmatpush1.msra.mxu0 0.0
        %6749 = vmatprep.subr.mxu0 0.0
        %6750 = vmatpush1.msra.mxu0 0.0
        %6751 = vmatprep.subr.mxu0 0.0
        %6752 = vmatpush1.msra.mxu0 0.0
        %6753 = vmatprep.subr.mxu0 0.0
        %6754 = vmatpush1.msra.mxu0 0.0
        %6755 = vmatprep.subr.mxu0 0.0
        %6756 = vmatpush1.msra.mxu0 0.0
        %6757 = vmatprep.subr.mxu0 0.0
        %6758 = vmatpush1.msra.mxu0 0.0
        %6759 = vmatprep.subr.mxu0 0.0
        %6760 = vmatpush1.msra.mxu0 0.0
        %6761 = vmatprep.subr.mxu0 0.0
        %6762 = vmatpush1.msra.mxu0 0.0
        %6763 = vmatprep.subr.mxu0 0.0
        %6764 = vmatpush1.msra.mxu0 0.0
        %6765 = vmatprep.subr.mxu0 0.0
        %6766 = vmatpush1.msra.mxu0 0.0
        %6767 = vmatprep.subr.mxu0 0.0
        %6768 = vmatpush1.msra.mxu0 0.0
        %6769 = vmatprep.subr.mxu0 0.0
        %6770 = vmatpush1.msra.mxu0 0.0
        %6771 = vmatprep.mubr.f32.mxu0 0.0
        %v6772 = vand.u32 %v6703, 4294901760
        %v6773 = vsub.f32 %v6703, %v6772
        %v6774 = vand.u32 %v6773, 4294901760
        %v6775 = vsub.f32 %v6773, %v6774
        %v6776 = vand.u32 %v6775, 4294901760
        %6777 = vmatmul.mubr.f32.gmra.mrb[0].mxu0 %v6776
        %v6778 = vpop.f32.mrb[0].mxu0
        %v6779 = vadd.f32 0.0, %v6778
        %v6780 = vpop.f32.mrb[0].mxu0
        %v6781 = vadd.f32 0.0, %v6780
        %6782 = vdwg.mxu0
        %v6783 = vand.u32 %v6204, 4294901760
        %v6784 = vsub.f32 %v6204, %v6783
        %v6785 = vand.u32 %v6784, 4294901760
        %v6786 = vsub.f32 %v6784, %v6785
        %v6787 = vand.u32 %v6786, 4294901760
        %6788 = vmatprep.subr.mxu0 %v6787
        %v6789 = vand.u32 %v6203, 4294901760
        %v6790 = vsub.f32 %v6203, %v6789
        %v6791 = vand.u32 %v6790, 4294901760
        %v6792 = vsub.f32 %v6790, %v6791
        %v6793 = vand.u32 %v6792, 4294901760
        %6794 = vmatpush1.msra.mxu0 %v6793
        %6795 = vmatprep.subr.mxu0 0.0
        %6796 = vmatpush1.msra.mxu0 0.0
        %6797 = vmatprep.subr.mxu0 0.0
        %6798 = vmatpush1.msra.mxu0 0.0
        %6799 = vmatprep.subr.mxu0 0.0
        %6800 = vmatpush1.msra.mxu0 0.0
        %6801 = vmatprep.subr.mxu0 0.0
        %6802 = vmatpush1.msra.mxu0 0.0
        %6803 = vmatprep.subr.mxu0 0.0
        %6804 = vmatpush1.msra.mxu0 0.0
        %6805 = vmatprep.subr.mxu0 0.0
        %6806 = vmatpush1.msra.mxu0 0.0
        %6807 = vmatprep.subr.mxu0 0.0
        %6808 = vmatpush1.msra.mxu0 0.0
        %6809 = vmatprep.subr.mxu0 0.0
        %6810 = vmatpush1.msra.mxu0 0.0
        %6811 = vmatprep.subr.mxu0 0.0
        %6812 = vmatpush1.msra.mxu0 0.0
        %6813 = vmatprep.subr.mxu0 0.0
        %6814 = vmatpush1.msra.mxu0 0.0
        %6815 = vmatprep.subr.mxu0 0.0
        %6816 = vmatpush1.msra.mxu0 0.0
        %6817 = vmatprep.subr.mxu0 0.0
        %6818 = vmatpush1.msra.mxu0 0.0
        %6819 = vmatprep.subr.mxu0 0.0
        %6820 = vmatpush1.msra.mxu0 0.0
        %6821 = vmatprep.subr.mxu0 0.0
        %6822 = vmatpush1.msra.mxu0 0.0
        %6823 = vmatprep.subr.mxu0 0.0
        %6824 = vmatpush1.msra.mxu0 0.0
        %6825 = vmatprep.subr.mxu0 0.0
        %6826 = vmatpush1.msra.mxu0 0.0
        %6827 = vmatprep.subr.mxu0 0.0
        %6828 = vmatpush1.msra.mxu0 0.0
        %6829 = vmatprep.subr.mxu0 0.0
        %6830 = vmatpush1.msra.mxu0 0.0
        %6831 = vmatprep.subr.mxu0 0.0
        %6832 = vmatpush1.msra.mxu0 0.0
        %6833 = vmatprep.subr.mxu0 0.0
        %6834 = vmatpush1.msra.mxu0 0.0
        %6835 = vmatprep.subr.mxu0 0.0
        %6836 = vmatpush1.msra.mxu0 0.0
        %6837 = vmatprep.subr.mxu0 0.0
        %6838 = vmatpush1.msra.mxu0 0.0
        %6839 = vmatprep.subr.mxu0 0.0
        %6840 = vmatpush1.msra.mxu0 0.0
        %6841 = vmatprep.subr.mxu0 0.0
        %6842 = vmatpush1.msra.mxu0 0.0
        %6843 = vmatprep.subr.mxu0 0.0
        %6844 = vmatpush1.msra.mxu0 0.0
        %6845 = vmatprep.subr.mxu0 0.0
        %6846 = vmatpush1.msra.mxu0 0.0
        %6847 = vmatprep.subr.mxu0 0.0
        %6848 = vmatpush1.msra.mxu0 0.0
        %6849 = vmatprep.subr.mxu0 0.0
        %6850 = vmatpush1.msra.mxu0 0.0
        %6851 = vmatprep.subr.mxu0 0.0
        %6852 = vmatpush1.msra.mxu0 0.0
        %6853 = vmatprep.subr.mxu0 0.0
        %6854 = vmatpush1.msra.mxu0 0.0
        %6855 = vmatprep.subr.mxu0 0.0
        %6856 = vmatpush1.msra.mxu0 0.0
        %6857 = vmatprep.mubr.f32.mxu0 0.0
        %v6858 = vand.u32 %v6703, 4294901760
        %6859 = vmatmul.mubr.f32.gmra.mrb[0].mxu0 %v6858
        %v6860 = vpop.f32.mrb[0].mxu0
        %v6861 = vadd.f32 %v6779, %v6860
        %v6862 = vpop.f32.mrb[0].mxu0
        %v6863 = vadd.f32 %v6781, %v6862
        %6864 = vdwg.mxu0
        %v6865 = vand.u32 %v6204, 4294901760
        %v6866 = vsub.f32 %v6204, %v6865
        %6867 = vmatprep.subr.mxu0 %v6866
        %v6868 = vand.u32 %v6203, 4294901760
        %v6869 = vsub.f32 %v6203, %v6868
        %6870 = vmatpush1.msra.mxu0 %v6869
        %6871 = vmatprep.subr.mxu0 0.0
        %6872 = vmatpush1.msra.mxu0 0.0
        %6873 = vmatprep.subr.mxu0 0.0
        %6874 = vmatpush1.msra.mxu0 0.0
        %6875 = vmatprep.subr.mxu0 0.0
        %6876 = vmatpush1.msra.mxu0 0.0
        %6877 = vmatprep.subr.mxu0 0.0
        %6878 = vmatpush1.msra.mxu0 0.0
        %6879 = vmatprep.subr.mxu0 0.0
        %6880 = vmatpush1.msra.mxu0 0.0
        %6881 = vmatprep.subr.mxu0 0.0
        %6882 = vmatpush1.msra.mxu0 0.0
        %6883 = vmatprep.subr.mxu0 0.0
        %6884 = vmatpush1.msra.mxu0 0.0
        %6885 = vmatprep.subr.mxu0 0.0
        %6886 = vmatpush1.msra.mxu0 0.0
        %6887 = vmatprep.subr.mxu0 0.0
        %6888 = vmatpush1.msra.mxu0 0.0
        %6889 = vmatprep.subr.mxu0 0.0
        %6890 = vmatpush1.msra.mxu0 0.0
        %6891 = vmatprep.subr.mxu0 0.0
        %6892 = vmatpush1.msra.mxu0 0.0
        %6893 = vmatprep.subr.mxu0 0.0
        %6894 = vmatpush1.msra.mxu0 0.0
        %6895 = vmatprep.subr.mxu0 0.0
        %6896 = vmatpush1.msra.mxu0 0.0
        %6897 = vmatprep.subr.mxu0 0.0
        %6898 = vmatpush1.msra.mxu0 0.0
        %6899 = vmatprep.subr.mxu0 0.0
        %6900 = vmatpush1.msra.mxu0 0.0
        %6901 = vmatprep.subr.mxu0 0.0
        %6902 = vmatpush1.msra.mxu0 0.0
        %6903 = vmatprep.subr.mxu0 0.0
        %6904 = vmatpush1.msra.mxu0 0.0
        %6905 = vmatprep.subr.mxu0 0.0
        %6906 = vmatpush1.msra.mxu0 0.0
        %6907 = vmatprep.subr.mxu0 0.0
        %6908 = vmatpush1.msra.mxu0 0.0
        %6909 = vmatprep.subr.mxu0 0.0
        %6910 = vmatpush1.msra.mxu0 0.0
        %6911 = vmatprep.subr.mxu0 0.0
        %6912 = vmatpush1.msra.mxu0 0.0
        %6913 = vmatprep.subr.mxu0 0.0
        %6914 = vmatpush1.msra.mxu0 0.0
        %6915 = vmatprep.subr.mxu0 0.0
        %6916 = vmatpush1.msra.mxu0 0.0
        %6917 = vmatprep.subr.mxu0 0.0
        %6918 = vmatpush1.msra.mxu0 0.0
        %6919 = vmatprep.subr.mxu0 0.0
        %6920 = vmatpush1.msra.mxu0 0.0
        %6921 = vmatprep.subr.mxu0 0.0
        %6922 = vmatpush1.msra.mxu0 0.0
        %6923 = vmatprep.subr.mxu0 0.0
        %6924 = vmatpush1.msra.mxu0 0.0
        %6925 = vmatprep.subr.mxu0 0.0
        %6926 = vmatpush1.msra.mxu0 0.0
        %6927 = vmatprep.subr.mxu0 0.0
        %6928 = vmatpush1.msra.mxu0 0.0
        %6929 = vmatprep.subr.mxu0 0.0
        %6930 = vmatpush1.msra.mxu0 0.0
        %6931 = vmatprep.subr.mxu0 0.0
        %6932 = vmatpush1.msra.mxu0 0.0
        %6933 = vmatprep.mubr.f32.mxu0 0.0
        %v6934 = vand.u32 %v6703, 4294901760
        %v6935 = vsub.f32 %v6703, %v6934
        %6936 = vmatmul.mubr.f32.gmra.mrb[0].mxu0 %v6935
        %v6937 = vpop.f32.mrb[0].mxu0
        %v6938 = vadd.f32 %v6861, %v6937
        %v6939 = vpop.f32.mrb[0].mxu0
        %v6940 = vadd.f32 %v6863, %v6939
        %6941 = vdwg.mxu0
        %v6942 = vand.u32 %v6204, 4294901760
        %6943 = vmatprep.subr.mxu0 %v6942
        %v6944 = vand.u32 %v6203, 4294901760
        %6945 = vmatpush1.msra.mxu0 %v6944
        %6946 = vmatprep.subr.mxu0 0.0
        %6947 = vmatpush1.msra.mxu0 0.0
        %6948 = vmatprep.subr.mxu0 0.0
        %6949 = vmatpush1.msra.mxu0 0.0
        %6950 = vmatprep.subr.mxu0 0.0
        %6951 = vmatpush1.msra.mxu0 0.0
        %6952 = vmatprep.subr.mxu0 0.0
        %6953 = vmatpush1.msra.mxu0 0.0
        %6954 = vmatprep.subr.mxu0 0.0
        %6955 = vmatpush1.msra.mxu0 0.0
        %6956 = vmatprep.subr.mxu0 0.0
        %6957 = vmatpush1.msra.mxu0 0.0
        %6958 = vmatprep.subr.mxu0 0.0
        %6959 = vmatpush1.msra.mxu0 0.0
        %6960 = vmatprep.subr.mxu0 0.0
        %6961 = vmatpush1.msra.mxu0 0.0
        %6962 = vmatprep.subr.mxu0 0.0
        %6963 = vmatpush1.msra.mxu0 0.0
        %6964 = vmatprep.subr.mxu0 0.0
        %6965 = vmatpush1.msra.mxu0 0.0
        %6966 = vmatprep.subr.mxu0 0.0
        %6967 = vmatpush1.msra.mxu0 0.0
        %6968 = vmatprep.subr.mxu0 0.0
        %6969 = vmatpush1.msra.mxu0 0.0
        %6970 = vmatprep.subr.mxu0 0.0
        %6971 = vmatpush1.msra.mxu0 0.0
        %6972 = vmatprep.subr.mxu0 0.0
        %6973 = vmatpush1.msra.mxu0 0.0
        %6974 = vmatprep.subr.mxu0 0.0
        %6975 = vmatpush1.msra.mxu0 0.0
        %6976 = vmatprep.subr.mxu0 0.0
        %6977 = vmatpush1.msra.mxu0 0.0
        %6978 = vmatprep.subr.mxu0 0.0
        %6979 = vmatpush1.msra.mxu0 0.0
        %6980 = vmatprep.subr.mxu0 0.0
        %6981 = vmatpush1.msra.mxu0 0.0
        %6982 = vmatprep.subr.mxu0 0.0
        %6983 = vmatpush1.msra.mxu0 0.0
        %6984 = vmatprep.subr.mxu0 0.0
        %6985 = vmatpush1.msra.mxu0 0.0
        %6986 = vmatprep.subr.mxu0 0.0
        %6987 = vmatpush1.msra.mxu0 0.0
        %6988 = vmatprep.subr.mxu0 0.0
        %6989 = vmatpush1.msra.mxu0 0.0
        %6990 = vmatprep.subr.mxu0 0.0
        %6991 = vmatpush1.msra.mxu0 0.0
        %6992 = vmatprep.subr.mxu0 0.0
        %6993 = vmatpush1.msra.mxu0 0.0
        %6994 = vmatprep.subr.mxu0 0.0
        %6995 = vmatpush1.msra.mxu0 0.0
        %6996 = vmatprep.subr.mxu0 0.0
        %6997 = vmatpush1.msra.mxu0 0.0
        %6998 = vmatprep.subr.mxu0 0.0
        %6999 = vmatpush1.msra.mxu0 0.0
        %7000 = vmatprep.subr.mxu0 0.0
        %7001 = vmatpush1.msra.mxu0 0.0
        %7002 = vmatprep.subr.mxu0 0.0
        %7003 = vmatpush1.msra.mxu0 0.0
        %7004 = vmatprep.subr.mxu0 0.0
        %7005 = vmatpush1.msra.mxu0 0.0
        %7006 = vmatprep.subr.mxu0 0.0
        %7007 = vmatpush1.msra.mxu0 0.0
        %7008 = vmatprep.mubr.f32.mxu0 0.0
        %v7009 = vand.u32 %v6703, 4294901760
        %v7010 = vsub.f32 %v6703, %v7009
        %v7011 = vand.u32 %v7010, 4294901760
        %7012 = vmatmul.mubr.f32.gmra.mrb[0].mxu0 %v7011
        %v7013 = vpop.f32.mrb[0].mxu0
        %v7014 = vadd.f32 %v6938, %v7013
        %v7015 = vpop.f32.mrb[0].mxu0
        %v7016 = vadd.f32 %v6940, %v7015
        %7017 = vdwg.mxu0
        %v7018 = vand.u32 %v6204, 4294901760
        %v7019 = vsub.f32 %v6204, %v7018
        %v7020 = vand.u32 %v7019, 4294901760
        %7021 = vmatprep.subr.mxu0 %v7020
        %v7022 = vand.u32 %v6203, 4294901760
        %v7023 = vsub.f32 %v6203, %v7022
        %v7024 = vand.u32 %v7023, 4294901760
        %7025 = vmatpush1.msra.mxu0 %v7024
        %7026 = vmatprep.subr.mxu0 0.0
        %7027 = vmatpush1.msra.mxu0 0.0
        %7028 = vmatprep.subr.mxu0 0.0
        %7029 = vmatpush1.msra.mxu0 0.0
        %7030 = vmatprep.subr.mxu0 0.0
        %7031 = vmatpush1.msra.mxu0 0.0
        %7032 = vmatprep.subr.mxu0 0.0
        %7033 = vmatpush1.msra.mxu0 0.0
        %7034 = vmatprep.subr.mxu0 0.0
        %7035 = vmatpush1.msra.mxu0 0.0
        %7036 = vmatprep.subr.mxu0 0.0
        %7037 = vmatpush1.msra.mxu0 0.0
        %7038 = vmatprep.subr.mxu0 0.0
        %7039 = vmatpush1.msra.mxu0 0.0
        %7040 = vmatprep.subr.mxu0 0.0
        %7041 = vmatpush1.msra.mxu0 0.0
        %7042 = vmatprep.subr.mxu0 0.0
        %7043 = vmatpush1.msra.mxu0 0.0
        %7044 = vmatprep.subr.mxu0 0.0
        %7045 = vmatpush1.msra.mxu0 0.0
        %7046 = vmatprep.subr.mxu0 0.0
        %7047 = vmatpush1.msra.mxu0 0.0
        %7048 = vmatprep.subr.mxu0 0.0
        %7049 = vmatpush1.msra.mxu0 0.0
        %7050 = vmatprep.subr.mxu0 0.0
        %7051 = vmatpush1.msra.mxu0 0.0
        %7052 = vmatprep.subr.mxu0 0.0
        %7053 = vmatpush1.msra.mxu0 0.0
        %7054 = vmatprep.subr.mxu0 0.0
        %7055 = vmatpush1.msra.mxu0 0.0
        %7056 = vmatprep.subr.mxu0 0.0
        %7057 = vmatpush1.msra.mxu0 0.0
        %7058 = vmatprep.subr.mxu0 0.0
        %7059 = vmatpush1.msra.mxu0 0.0
        %7060 = vmatprep.subr.mxu0 0.0
        %7061 = vmatpush1.msra.mxu0 0.0
        %7062 = vmatprep.subr.mxu0 0.0
        %7063 = vmatpush1.msra.mxu0 0.0
        %7064 = vmatprep.subr.mxu0 0.0
        %7065 = vmatpush1.msra.mxu0 0.0
        %7066 = vmatprep.subr.mxu0 0.0
        %7067 = vmatpush1.msra.mxu0 0.0
        %7068 = vmatprep.subr.mxu0 0.0
        %7069 = vmatpush1.msra.mxu0 0.0
        %7070 = vmatprep.subr.mxu0 0.0
        %7071 = vmatpush1.msra.mxu0 0.0
        %7072 = vmatprep.subr.mxu0 0.0
        %7073 = vmatpush1.msra.mxu0 0.0
        %7074 = vmatprep.subr.mxu0 0.0
        %7075 = vmatpush1.msra.mxu0 0.0
        %7076 = vmatprep.subr.mxu0 0.0
        %7077 = vmatpush1.msra.mxu0 0.0
        %7078 = vmatprep.subr.mxu0 0.0
        %7079 = vmatpush1.msra.mxu0 0.0
        %7080 = vmatprep.subr.mxu0 0.0
        %7081 = vmatpush1.msra.mxu0 0.0
        %7082 = vmatprep.subr.mxu0 0.0
        %7083 = vmatpush1.msra.mxu0 0.0
        %7084 = vmatprep.subr.mxu0 0.0
        %7085 = vmatpush1.msra.mxu0 0.0
        %7086 = vmatprep.subr.mxu0 0.0
        %7087 = vmatpush1.msra.mxu0 0.0
        %7088 = vmatprep.mubr.f32.mxu0 0.0
        %v7089 = vand.u32 %v6703, 4294901760
        %7090 = vmatmul.mubr.f32.gmra.mrb[0].mxu0 %v7089
        %v7091 = vpop.f32.mrb[0].mxu0
        %v7092 = vadd.f32 %v7014, %v7091
        %v7093 = vpop.f32.mrb[0].mxu0
        %v7094 = vadd.f32 %v7016, %v7093
        %7095 = vdwg.mxu0
        %v7096 = vand.u32 %v6204, 4294901760
        %7097 = vmatprep.subr.mxu0 %v7096
        %v7098 = vand.u32 %v6203, 4294901760
        %7099 = vmatpush1.msra.mxu0 %v7098
        %7100 = vmatprep.subr.mxu0 0.0
        %7101 = vmatpush1.msra.mxu0 0.0
        %7102 = vmatprep.subr.mxu0 0.0
        %7103 = vmatpush1.msra.mxu0 0.0
        %7104 = vmatprep.subr.mxu0 0.0
        %7105 = vmatpush1.msra.mxu0 0.0
        %7106 = vmatprep.subr.mxu0 0.0
        %7107 = vmatpush1.msra.mxu0 0.0
        %7108 = vmatprep.subr.mxu0 0.0
        %7109 = vmatpush1.msra.mxu0 0.0
        %7110 = vmatprep.subr.mxu0 0.0
        %7111 = vmatpush1.msra.mxu0 0.0
        %7112 = vmatprep.subr.mxu0 0.0
        %7113 = vmatpush1.msra.mxu0 0.0
        %7114 = vmatprep.subr.mxu0 0.0
        %7115 = vmatpush1.msra.mxu0 0.0
        %7116 = vmatprep.subr.mxu0 0.0
        %7117 = vmatpush1.msra.mxu0 0.0
        %7118 = vmatprep.subr.mxu0 0.0
        %7119 = vmatpush1.msra.mxu0 0.0
        %7120 = vmatprep.subr.mxu0 0.0
        %7121 = vmatpush1.msra.mxu0 0.0
        %7122 = vmatprep.subr.mxu0 0.0
        %7123 = vmatpush1.msra.mxu0 0.0
        %7124 = vmatprep.subr.mxu0 0.0
        %7125 = vmatpush1.msra.mxu0 0.0
        %7126 = vmatprep.subr.mxu0 0.0
        %7127 = vmatpush1.msra.mxu0 0.0
        %7128 = vmatprep.subr.mxu0 0.0
        %7129 = vmatpush1.msra.mxu0 0.0
        %7130 = vmatprep.subr.mxu0 0.0
        %7131 = vmatpush1.msra.mxu0 0.0
        %7132 = vmatprep.subr.mxu0 0.0
        %7133 = vmatpush1.msra.mxu0 0.0
        %7134 = vmatprep.subr.mxu0 0.0
        %7135 = vmatpush1.msra.mxu0 0.0
        %7136 = vmatprep.subr.mxu0 0.0
        %7137 = vmatpush1.msra.mxu0 0.0
        %7138 = vmatprep.subr.mxu0 0.0
        %7139 = vmatpush1.msra.mxu0 0.0
        %7140 = vmatprep.subr.mxu0 0.0
        %7141 = vmatpush1.msra.mxu0 0.0
        %7142 = vmatprep.subr.mxu0 0.0
        %7143 = vmatpush1.msra.mxu0 0.0
        %7144 = vmatprep.subr.mxu0 0.0
        %7145 = vmatpush1.msra.mxu0 0.0
        %7146 = vmatprep.subr.mxu0 0.0
        %7147 = vmatpush1.msra.mxu0 0.0
        %7148 = vmatprep.subr.mxu0 0.0
        %7149 = vmatpush1.msra.mxu0 0.0
        %7150 = vmatprep.subr.mxu0 0.0
        %7151 = vmatpush1.msra.mxu0 0.0
        %7152 = vmatprep.subr.mxu0 0.0
        %7153 = vmatpush1.msra.mxu0 0.0
        %7154 = vmatprep.subr.mxu0 0.0
        %7155 = vmatpush1.msra.mxu0 0.0
        %7156 = vmatprep.subr.mxu0 0.0
        %7157 = vmatpush1.msra.mxu0 0.0
        %7158 = vmatprep.subr.mxu0 0.0
        %7159 = vmatpush1.msra.mxu0 0.0
        %7160 = vmatprep.subr.mxu0 0.0
        %7161 = vmatpush1.msra.mxu0 0.0
        %7162 = vmatprep.mubr.f32.mxu0 0.0
        %v7163 = vand.u32 %v6703, 4294901760
        %7164 = vmatmul.mubr.f32.gmra.mrb[0].mxu0 %v7163
        %v7165 = vpop.f32.mrb[0].mxu0
        %v7166 = vadd.f32 %v7092, %v7165
        %v7167 = vpop.f32.mrb[0].mxu0
        %v7168 = vadd.f32 %v7094, %v7167
        %7169 = vdwg.mxu0
        %v7170 = vadd.f32 %v6700, %v7166
        %v7171 = vadd.f32 %v6701, %v7168
        %v7173 = vsel %vm1838, %v6208, 0
        %v7175 = vand.u32 %v6226, 4294901760
        %7176 = vmatprep.subr.mxu0 %v7175
        %v7177 = vand.u32 %v6225, 4294901760
        %7178 = vmatpush1.msra.mxu0 %v7177
        %7179 = vmatprep.subr.mxu0 0.0
        %7180 = vmatpush1.msra.mxu0 0.0
        %7181 = vmatprep.subr.mxu0 0.0
        %7182 = vmatpush1.msra.mxu0 0.0
        %7183 = vmatprep.subr.mxu0 0.0
        %7184 = vmatpush1.msra.mxu0 0.0
        %7185 = vmatprep.subr.mxu0 0.0
        %7186 = vmatpush1.msra.mxu0 0.0
        %7187 = vmatprep.subr.mxu0 0.0
        %7188 = vmatpush1.msra.mxu0 0.0
        %7189 = vmatprep.subr.mxu0 0.0
        %7190 = vmatpush1.msra.mxu0 0.0
        %7191 = vmatprep.subr.mxu0 0.0
        %7192 = vmatpush1.msra.mxu0 0.0
        %7193 = vmatprep.subr.mxu0 0.0
        %7194 = vmatpush1.msra.mxu0 0.0
        %7195 = vmatprep.subr.mxu0 0.0
        %7196 = vmatpush1.msra.mxu0 0.0
        %7197 = vmatprep.subr.mxu0 0.0
        %7198 = vmatpush1.msra.mxu0 0.0
        %7199 = vmatprep.subr.mxu0 0.0
        %7200 = vmatpush1.msra.mxu0 0.0
        %7201 = vmatprep.subr.mxu0 0.0
        %7202 = vmatpush1.msra.mxu0 0.0
        %7203 = vmatprep.subr.mxu0 0.0
        %7204 = vmatpush1.msra.mxu0 0.0
        %7205 = vmatprep.subr.mxu0 0.0
        %7206 = vmatpush1.msra.mxu0 0.0
        %7207 = vmatprep.subr.mxu0 0.0
        %7208 = vmatpush1.msra.mxu0 0.0
        %7209 = vmatprep.subr.mxu0 0.0
        %7210 = vmatpush1.msra.mxu0 0.0
        %7211 = vmatprep.subr.mxu0 0.0
        %7212 = vmatpush1.msra.mxu0 0.0
        %7213 = vmatprep.subr.mxu0 0.0
        %7214 = vmatpush1.msra.mxu0 0.0
        %7215 = vmatprep.subr.mxu0 0.0
        %7216 = vmatpush1.msra.mxu0 0.0
        %7217 = vmatprep.subr.mxu0 0.0
        %7218 = vmatpush1.msra.mxu0 0.0
        %7219 = vmatprep.subr.mxu0 0.0
        %7220 = vmatpush1.msra.mxu0 0.0
        %7221 = vmatprep.subr.mxu0 0.0
        %7222 = vmatpush1.msra.mxu0 0.0
        %7223 = vmatprep.subr.mxu0 0.0
        %7224 = vmatpush1.msra.mxu0 0.0
        %7225 = vmatprep.subr.mxu0 0.0
        %7226 = vmatpush1.msra.mxu0 0.0
        %7227 = vmatprep.subr.mxu0 0.0
        %7228 = vmatpush1.msra.mxu0 0.0
        %7229 = vmatprep.subr.mxu0 0.0
        %7230 = vmatpush1.msra.mxu0 0.0
        %7231 = vmatprep.subr.mxu0 0.0
        %7232 = vmatpush1.msra.mxu0 0.0
        %7233 = vmatprep.subr.mxu0 0.0
        %7234 = vmatpush1.msra.mxu0 0.0
        %7235 = vmatprep.subr.mxu0 0.0
        %7236 = vmatpush1.msra.mxu0 0.0
        %7237 = vmatprep.subr.mxu0 0.0
        %7238 = vmatpush1.msra.mxu0 0.0
        %7239 = vmatprep.subr.mxu0 0.0
        %7240 = vmatpush1.msra.mxu0 0.0
        %7241 = vmatprep.mubr.f32.mxu0 0.0
        %v7242 = vand.u32 %v7173, 4294901760
        %v7243 = vsub.f32 %v7173, %v7242
        %v7244 = vand.u32 %v7243, 4294901760
        %v7245 = vsub.f32 %v7243, %v7244
        %v7246 = vand.u32 %v7245, 4294901760
        %7247 = vmatmul.mubr.f32.gmra.mrb[0].mxu0 %v7246
        %v7248 = vpop.f32.mrb[0].mxu0
        %v7249 = vadd.f32 0.0, %v7248
        %v7250 = vpop.f32.mrb[0].mxu0
        %v7251 = vadd.f32 0.0, %v7250
        %7252 = vdwg.mxu0
        %v7253 = vand.u32 %v6226, 4294901760
        %v7254 = vsub.f32 %v6226, %v7253
        %v7255 = vand.u32 %v7254, 4294901760
        %v7256 = vsub.f32 %v7254, %v7255
        %v7257 = vand.u32 %v7256, 4294901760
        %7258 = vmatprep.subr.mxu0 %v7257
        %v7259 = vand.u32 %v6225, 4294901760
        %v7260 = vsub.f32 %v6225, %v7259
        %v7261 = vand.u32 %v7260, 4294901760
        %v7262 = vsub.f32 %v7260, %v7261
        %v7263 = vand.u32 %v7262, 4294901760
        %7264 = vmatpush1.msra.mxu0 %v7263
        %7265 = vmatprep.subr.mxu0 0.0
        %7266 = vmatpush1.msra.mxu0 0.0
        %7267 = vmatprep.subr.mxu0 0.0
        %7268 = vmatpush1.msra.mxu0 0.0
        %7269 = vmatprep.subr.mxu0 0.0
        %7270 = vmatpush1.msra.mxu0 0.0
        %7271 = vmatprep.subr.mxu0 0.0
        %7272 = vmatpush1.msra.mxu0 0.0
        %7273 = vmatprep.subr.mxu0 0.0
        %7274 = vmatpush1.msra.mxu0 0.0
        %7275 = vmatprep.subr.mxu0 0.0
        %7276 = vmatpush1.msra.mxu0 0.0
        %7277 = vmatprep.subr.mxu0 0.0
        %7278 = vmatpush1.msra.mxu0 0.0
        %7279 = vmatprep.subr.mxu0 0.0
        %7280 = vmatpush1.msra.mxu0 0.0
        %7281 = vmatprep.subr.mxu0 0.0
        %7282 = vmatpush1.msra.mxu0 0.0
        %7283 = vmatprep.subr.mxu0 0.0
        %7284 = vmatpush1.msra.mxu0 0.0
        %7285 = vmatprep.subr.mxu0 0.0
        %7286 = vmatpush1.msra.mxu0 0.0
        %7287 = vmatprep.subr.mxu0 0.0
        %7288 = vmatpush1.msra.mxu0 0.0
        %7289 = vmatprep.subr.mxu0 0.0
        %7290 = vmatpush1.msra.mxu0 0.0
        %7291 = vmatprep.subr.mxu0 0.0
        %7292 = vmatpush1.msra.mxu0 0.0
        %7293 = vmatprep.subr.mxu0 0.0
        %7294 = vmatpush1.msra.mxu0 0.0
        %7295 = vmatprep.subr.mxu0 0.0
        %7296 = vmatpush1.msra.mxu0 0.0
        %7297 = vmatprep.subr.mxu0 0.0
        %7298 = vmatpush1.msra.mxu0 0.0
        %7299 = vmatprep.subr.mxu0 0.0
        %7300 = vmatpush1.msra.mxu0 0.0
        %7301 = vmatprep.subr.mxu0 0.0
        %7302 = vmatpush1.msra.mxu0 0.0
        %7303 = vmatprep.subr.mxu0 0.0
        %7304 = vmatpush1.msra.mxu0 0.0
        %7305 = vmatprep.subr.mxu0 0.0
        %7306 = vmatpush1.msra.mxu0 0.0
        %7307 = vmatprep.subr.mxu0 0.0
        %7308 = vmatpush1.msra.mxu0 0.0
        %7309 = vmatprep.subr.mxu0 0.0
        %7310 = vmatpush1.msra.mxu0 0.0
        %7311 = vmatprep.subr.mxu0 0.0
        %7312 = vmatpush1.msra.mxu0 0.0
        %7313 = vmatprep.subr.mxu0 0.0
        %7314 = vmatpush1.msra.mxu0 0.0
        %7315 = vmatprep.subr.mxu0 0.0
        %7316 = vmatpush1.msra.mxu0 0.0
        %7317 = vmatprep.subr.mxu0 0.0
        %7318 = vmatpush1.msra.mxu0 0.0
        %7319 = vmatprep.subr.mxu0 0.0
        %7320 = vmatpush1.msra.mxu0 0.0
        %7321 = vmatprep.subr.mxu0 0.0
        %7322 = vmatpush1.msra.mxu0 0.0
        %7323 = vmatprep.subr.mxu0 0.0
        %7324 = vmatpush1.msra.mxu0 0.0
        %7325 = vmatprep.subr.mxu0 0.0
        %7326 = vmatpush1.msra.mxu0 0.0
        %7327 = vmatprep.mubr.f32.mxu0 0.0
        %v7328 = vand.u32 %v7173, 4294901760
        %7329 = vmatmul.mubr.f32.gmra.mrb[0].mxu0 %v7328
        %v7330 = vpop.f32.mrb[0].mxu0
        %v7331 = vadd.f32 %v7249, %v7330
        %v7332 = vpop.f32.mrb[0].mxu0
        %v7333 = vadd.f32 %v7251, %v7332
        %7334 = vdwg.mxu0
        %v7335 = vand.u32 %v6226, 4294901760
        %v7336 = vsub.f32 %v6226, %v7335
        %7337 = vmatprep.subr.mxu0 %v7336
        %v7338 = vand.u32 %v6225, 4294901760
        %v7339 = vsub.f32 %v6225, %v7338
        %7340 = vmatpush1.msra.mxu0 %v7339
        %7341 = vmatprep.subr.mxu0 0.0
        %7342 = vmatpush1.msra.mxu0 0.0
        %7343 = vmatprep.subr.mxu0 0.0
        %7344 = vmatpush1.msra.mxu0 0.0
        %7345 = vmatprep.subr.mxu0 0.0
        %7346 = vmatpush1.msra.mxu0 0.0
        %7347 = vmatprep.subr.mxu0 0.0
        %7348 = vmatpush1.msra.mxu0 0.0
        %7349 = vmatprep.subr.mxu0 0.0
        %7350 = vmatpush1.msra.mxu0 0.0
        %7351 = vmatprep.subr.mxu0 0.0
        %7352 = vmatpush1.msra.mxu0 0.0
        %7353 = vmatprep.subr.mxu0 0.0
        %7354 = vmatpush1.msra.mxu0 0.0
        %7355 = vmatprep.subr.mxu0 0.0
        %7356 = vmatpush1.msra.mxu0 0.0
        %7357 = vmatprep.subr.mxu0 0.0
        %7358 = vmatpush1.msra.mxu0 0.0
        %7359 = vmatprep.subr.mxu0 0.0
        %7360 = vmatpush1.msra.mxu0 0.0
        %7361 = vmatprep.subr.mxu0 0.0
        %7362 = vmatpush1.msra.mxu0 0.0
        %7363 = vmatprep.subr.mxu0 0.0
        %7364 = vmatpush1.msra.mxu0 0.0
        %7365 = vmatprep.subr.mxu0 0.0
        %7366 = vmatpush1.msra.mxu0 0.0
        %7367 = vmatprep.subr.mxu0 0.0
        %7368 = vmatpush1.msra.mxu0 0.0
        %7369 = vmatprep.subr.mxu0 0.0
        %7370 = vmatpush1.msra.mxu0 0.0
        %7371 = vmatprep.subr.mxu0 0.0
        %7372 = vmatpush1.msra.mxu0 0.0
        %7373 = vmatprep.subr.mxu0 0.0
        %7374 = vmatpush1.msra.mxu0 0.0
        %7375 = vmatprep.subr.mxu0 0.0
        %7376 = vmatpush1.msra.mxu0 0.0
        %7377 = vmatprep.subr.mxu0 0.0
        %7378 = vmatpush1.msra.mxu0 0.0
        %7379 = vmatprep.subr.mxu0 0.0
        %7380 = vmatpush1.msra.mxu0 0.0
        %7381 = vmatprep.subr.mxu0 0.0
        %7382 = vmatpush1.msra.mxu0 0.0
        %7383 = vmatprep.subr.mxu0 0.0
        %7384 = vmatpush1.msra.mxu0 0.0
        %7385 = vmatprep.subr.mxu0 0.0
        %7386 = vmatpush1.msra.mxu0 0.0
        %7387 = vmatprep.subr.mxu0 0.0
        %7388 = vmatpush1.msra.mxu0 0.0
        %7389 = vmatprep.subr.mxu0 0.0
        %7390 = vmatpush1.msra.mxu0 0.0
        %7391 = vmatprep.subr.mxu0 0.0
        %7392 = vmatpush1.msra.mxu0 0.0
        %7393 = vmatprep.subr.mxu0 0.0
        %7394 = vmatpush1.msra.mxu0 0.0
        %7395 = vmatprep.subr.mxu0 0.0
        %7396 = vmatpush1.msra.mxu0 0.0
        %7397 = vmatprep.subr.mxu0 0.0
        %7398 = vmatpush1.msra.mxu0 0.0
        %7399 = vmatprep.subr.mxu0 0.0
        %7400 = vmatpush1.msra.mxu0 0.0
        %7401 = vmatprep.subr.mxu0 0.0
        %7402 = vmatpush1.msra.mxu0 0.0
        %7403 = vmatprep.mubr.f32.mxu0 0.0
        %v7404 = vand.u32 %v7173, 4294901760
        %v7405 = vsub.f32 %v7173, %v7404
        %7406 = vmatmul.mubr.f32.gmra.mrb[0].mxu0 %v7405
        %v7407 = vpop.f32.mrb[0].mxu0
        %v7408 = vadd.f32 %v7331, %v7407
        %v7409 = vpop.f32.mrb[0].mxu0
        %v7410 = vadd.f32 %v7333, %v7409
        %7411 = vdwg.mxu0
        %v7412 = vand.u32 %v6226, 4294901760
        %7413 = vmatprep.subr.mxu0 %v7412
        %v7414 = vand.u32 %v6225, 4294901760
        %7415 = vmatpush1.msra.mxu0 %v7414
        %7416 = vmatprep.subr.mxu0 0.0
        %7417 = vmatpush1.msra.mxu0 0.0
        %7418 = vmatprep.subr.mxu0 0.0
        %7419 = vmatpush1.msra.mxu0 0.0
        %7420 = vmatprep.subr.mxu0 0.0
        %7421 = vmatpush1.msra.mxu0 0.0
        %7422 = vmatprep.subr.mxu0 0.0
        %7423 = vmatpush1.msra.mxu0 0.0
        %7424 = vmatprep.subr.mxu0 0.0
        %7425 = vmatpush1.msra.mxu0 0.0
        %7426 = vmatprep.subr.mxu0 0.0
        %7427 = vmatpush1.msra.mxu0 0.0
        %7428 = vmatprep.subr.mxu0 0.0
        %7429 = vmatpush1.msra.mxu0 0.0
        %7430 = vmatprep.subr.mxu0 0.0
        %7431 = vmatpush1.msra.mxu0 0.0
        %7432 = vmatprep.subr.mxu0 0.0
        %7433 = vmatpush1.msra.mxu0 0.0
        %7434 = vmatprep.subr.mxu0 0.0
        %7435 = vmatpush1.msra.mxu0 0.0
        %7436 = vmatprep.subr.mxu0 0.0
        %7437 = vmatpush1.msra.mxu0 0.0
        %7438 = vmatprep.subr.mxu0 0.0
        %7439 = vmatpush1.msra.mxu0 0.0
        %7440 = vmatprep.subr.mxu0 0.0
        %7441 = vmatpush1.msra.mxu0 0.0
        %7442 = vmatprep.subr.mxu0 0.0
        %7443 = vmatpush1.msra.mxu0 0.0
        %7444 = vmatprep.subr.mxu0 0.0
        %7445 = vmatpush1.msra.mxu0 0.0
        %7446 = vmatprep.subr.mxu0 0.0
        %7447 = vmatpush1.msra.mxu0 0.0
        %7448 = vmatprep.subr.mxu0 0.0
        %7449 = vmatpush1.msra.mxu0 0.0
        %7450 = vmatprep.subr.mxu0 0.0
        %7451 = vmatpush1.msra.mxu0 0.0
        %7452 = vmatprep.subr.mxu0 0.0
        %7453 = vmatpush1.msra.mxu0 0.0
        %7454 = vmatprep.subr.mxu0 0.0
        %7455 = vmatpush1.msra.mxu0 0.0
        %7456 = vmatprep.subr.mxu0 0.0
        %7457 = vmatpush1.msra.mxu0 0.0
        %7458 = vmatprep.subr.mxu0 0.0
        %7459 = vmatpush1.msra.mxu0 0.0
        %7460 = vmatprep.subr.mxu0 0.0
        %7461 = vmatpush1.msra.mxu0 0.0
        %7462 = vmatprep.subr.mxu0 0.0
        %7463 = vmatpush1.msra.mxu0 0.0
        %7464 = vmatprep.subr.mxu0 0.0
        %7465 = vmatpush1.msra.mxu0 0.0
        %7466 = vmatprep.subr.mxu0 0.0
        %7467 = vmatpush1.msra.mxu0 0.0
        %7468 = vmatprep.subr.mxu0 0.0
        %7469 = vmatpush1.msra.mxu0 0.0
        %7470 = vmatprep.subr.mxu0 0.0
        %7471 = vmatpush1.msra.mxu0 0.0
        %7472 = vmatprep.subr.mxu0 0.0
        %7473 = vmatpush1.msra.mxu0 0.0
        %7474 = vmatprep.subr.mxu0 0.0
        %7475 = vmatpush1.msra.mxu0 0.0
        %7476 = vmatprep.subr.mxu0 0.0
        %7477 = vmatpush1.msra.mxu0 0.0
        %7478 = vmatprep.mubr.f32.mxu0 0.0
        %v7479 = vand.u32 %v7173, 4294901760
        %v7480 = vsub.f32 %v7173, %v7479
        %v7481 = vand.u32 %v7480, 4294901760
        %7482 = vmatmul.mubr.f32.gmra.mrb[0].mxu0 %v7481
        %v7483 = vpop.f32.mrb[0].mxu0
        %v7484 = vadd.f32 %v7408, %v7483
        %v7485 = vpop.f32.mrb[0].mxu0
        %v7486 = vadd.f32 %v7410, %v7485
        %7487 = vdwg.mxu0
        %v7488 = vand.u32 %v6226, 4294901760
        %v7489 = vsub.f32 %v6226, %v7488
        %v7490 = vand.u32 %v7489, 4294901760
        %7491 = vmatprep.subr.mxu0 %v7490
        %v7492 = vand.u32 %v6225, 4294901760
        %v7493 = vsub.f32 %v6225, %v7492
        %v7494 = vand.u32 %v7493, 4294901760
        %7495 = vmatpush1.msra.mxu0 %v7494
        %7496 = vmatprep.subr.mxu0 0.0
        %7497 = vmatpush1.msra.mxu0 0.0
        %7498 = vmatprep.subr.mxu0 0.0
        %7499 = vmatpush1.msra.mxu0 0.0
        %7500 = vmatprep.subr.mxu0 0.0
        %7501 = vmatpush1.msra.mxu0 0.0
        %7502 = vmatprep.subr.mxu0 0.0
        %7503 = vmatpush1.msra.mxu0 0.0
        %7504 = vmatprep.subr.mxu0 0.0
        %7505 = vmatpush1.msra.mxu0 0.0
        %7506 = vmatprep.subr.mxu0 0.0
        %7507 = vmatpush1.msra.mxu0 0.0
        %7508 = vmatprep.subr.mxu0 0.0
        %7509 = vmatpush1.msra.mxu0 0.0
        %7510 = vmatprep.subr.mxu0 0.0
        %7511 = vmatpush1.msra.mxu0 0.0
        %7512 = vmatprep.subr.mxu0 0.0
        %7513 = vmatpush1.msra.mxu0 0.0
        %7514 = vmatprep.subr.mxu0 0.0
        %7515 = vmatpush1.msra.mxu0 0.0
        %7516 = vmatprep.subr.mxu0 0.0
        %7517 = vmatpush1.msra.mxu0 0.0
        %7518 = vmatprep.subr.mxu0 0.0
        %7519 = vmatpush1.msra.mxu0 0.0
        %7520 = vmatprep.subr.mxu0 0.0
        %7521 = vmatpush1.msra.mxu0 0.0
        %7522 = vmatprep.subr.mxu0 0.0
        %7523 = vmatpush1.msra.mxu0 0.0
        %7524 = vmatprep.subr.mxu0 0.0
        %7525 = vmatpush1.msra.mxu0 0.0
        %7526 = vmatprep.subr.mxu0 0.0
        %7527 = vmatpush1.msra.mxu0 0.0
        %7528 = vmatprep.subr.mxu0 0.0
        %7529 = vmatpush1.msra.mxu0 0.0
        %7530 = vmatprep.subr.mxu0 0.0
        %7531 = vmatpush1.msra.mxu0 0.0
        %7532 = vmatprep.subr.mxu0 0.0
        %7533 = vmatpush1.msra.mxu0 0.0
        %7534 = vmatprep.subr.mxu0 0.0
        %7535 = vmatpush1.msra.mxu0 0.0
        %7536 = vmatprep.subr.mxu0 0.0
        %7537 = vmatpush1.msra.mxu0 0.0
        %7538 = vmatprep.subr.mxu0 0.0
        %7539 = vmatpush1.msra.mxu0 0.0
        %7540 = vmatprep.subr.mxu0 0.0
        %7541 = vmatpush1.msra.mxu0 0.0
        %7542 = vmatprep.subr.mxu0 0.0
        %7543 = vmatpush1.msra.mxu0 0.0
        %7544 = vmatprep.subr.mxu0 0.0
        %7545 = vmatpush1.msra.mxu0 0.0
        %7546 = vmatprep.subr.mxu0 0.0
        %7547 = vmatpush1.msra.mxu0 0.0
        %7548 = vmatprep.subr.mxu0 0.0
        %7549 = vmatpush1.msra.mxu0 0.0
        %7550 = vmatprep.subr.mxu0 0.0
        %7551 = vmatpush1.msra.mxu0 0.0
        %7552 = vmatprep.subr.mxu0 0.0
        %7553 = vmatpush1.msra.mxu0 0.0
        %7554 = vmatprep.subr.mxu0 0.0
        %7555 = vmatpush1.msra.mxu0 0.0
        %7556 = vmatprep.subr.mxu0 0.0
        %7557 = vmatpush1.msra.mxu0 0.0
        %7558 = vmatprep.mubr.f32.mxu0 0.0
        %v7559 = vand.u32 %v7173, 4294901760
        %7560 = vmatmul.mubr.f32.gmra.mrb[0].mxu0 %v7559
        %v7561 = vpop.f32.mrb[0].mxu0
        %v7562 = vadd.f32 %v7484, %v7561
        %v7563 = vpop.f32.mrb[0].mxu0
        %v7564 = vadd.f32 %v7486, %v7563
        %7565 = vdwg.mxu0
        %v7566 = vand.u32 %v6226, 4294901760
        %7567 = vmatprep.subr.mxu0 %v7566
        %v7568 = vand.u32 %v6225, 4294901760
        %7569 = vmatpush1.msra.mxu0 %v7568
        %7570 = vmatprep.subr.mxu0 0.0
        %7571 = vmatpush1.msra.mxu0 0.0
        %7572 = vmatprep.subr.mxu0 0.0
        %7573 = vmatpush1.msra.mxu0 0.0
        %7574 = vmatprep.subr.mxu0 0.0
        %7575 = vmatpush1.msra.mxu0 0.0
        %7576 = vmatprep.subr.mxu0 0.0
        %7577 = vmatpush1.msra.mxu0 0.0
        %7578 = vmatprep.subr.mxu0 0.0
        %7579 = vmatpush1.msra.mxu0 0.0
        %7580 = vmatprep.subr.mxu0 0.0
        %7581 = vmatpush1.msra.mxu0 0.0
        %7582 = vmatprep.subr.mxu0 0.0
        %7583 = vmatpush1.msra.mxu0 0.0
        %7584 = vmatprep.subr.mxu0 0.0
        %7585 = vmatpush1.msra.mxu0 0.0
        %7586 = vmatprep.subr.mxu0 0.0
        %7587 = vmatpush1.msra.mxu0 0.0
        %7588 = vmatprep.subr.mxu0 0.0
        %7589 = vmatpush1.msra.mxu0 0.0
        %7590 = vmatprep.subr.mxu0 0.0
        %7591 = vmatpush1.msra.mxu0 0.0
        %7592 = vmatprep.subr.mxu0 0.0
        %7593 = vmatpush1.msra.mxu0 0.0
        %7594 = vmatprep.subr.mxu0 0.0
        %7595 = vmatpush1.msra.mxu0 0.0
        %7596 = vmatprep.subr.mxu0 0.0
        %7597 = vmatpush1.msra.mxu0 0.0
        %7598 = vmatprep.subr.mxu0 0.0
        %7599 = vmatpush1.msra.mxu0 0.0
        %7600 = vmatprep.subr.mxu0 0.0
        %7601 = vmatpush1.msra.mxu0 0.0
        %7602 = vmatprep.subr.mxu0 0.0
        %7603 = vmatpush1.msra.mxu0 0.0
        %7604 = vmatprep.subr.mxu0 0.0
        %7605 = vmatpush1.msra.mxu0 0.0
        %7606 = vmatprep.subr.mxu0 0.0
        %7607 = vmatpush1.msra.mxu0 0.0
        %7608 = vmatprep.subr.mxu0 0.0
        %7609 = vmatpush1.msra.mxu0 0.0
        %7610 = vmatprep.subr.mxu0 0.0
        %7611 = vmatpush1.msra.mxu0 0.0
        %7612 = vmatprep.subr.mxu0 0.0
        %7613 = vmatpush1.msra.mxu0 0.0
        %7614 = vmatprep.subr.mxu0 0.0
        %7615 = vmatpush1.msra.mxu0 0.0
        %7616 = vmatprep.subr.mxu0 0.0
        %7617 = vmatpush1.msra.mxu0 0.0
        %7618 = vmatprep.subr.mxu0 0.0
        %7619 = vmatpush1.msra.mxu0 0.0
        %7620 = vmatprep.subr.mxu0 0.0
        %7621 = vmatpush1.msra.mxu0 0.0
        %7622 = vmatprep.subr.mxu0 0.0
        %7623 = vmatpush1.msra.mxu0 0.0
        %7624 = vmatprep.subr.mxu0 0.0
        %7625 = vmatpush1.msra.mxu0 0.0
        %7626 = vmatprep.subr.mxu0 0.0
        %7627 = vmatpush1.msra.mxu0 0.0
        %7628 = vmatprep.subr.mxu0 0.0
        %7629 = vmatpush1.msra.mxu0 0.0
        %7630 = vmatprep.subr.mxu0 0.0
        %7631 = vmatpush1.msra.mxu0 0.0
        %7632 = vmatprep.mubr.f32.mxu0 0.0
        %v7633 = vand.u32 %v7173, 4294901760
        %7634 = vmatmul.mubr.f32.gmra.mrb[0].mxu0 %v7633
        %v7635 = vpop.f32.mrb[0].mxu0
        %v7636 = vadd.f32 %v7562, %v7635
        %v7637 = vpop.f32.mrb[0].mxu0
        %v7638 = vadd.f32 %v7564, %v7637
        %7639 = vdwg.mxu0
        %v7640 = vadd.f32 %v7170, %v7636
        %v7641 = vadd.f32 %v7171, %v7638
        %v7642 = vmax.f32 %v7640, 0.0
        %v7643 = vmax.f32 %v7641, 0.0
        %s7644 = smul.u32 %s4742, 12
        %s7645 = scalar_lea.vmem %s6, %s7644
        %v7646 = vld [vmem:[%s7645] sm:$0xf]
        %v7647 = vld [vmem:[%s7645 + $0x4] sm:$0xf]
        %v7648 = vld [vmem:[%s7645 + $0x8] sm:$0xf]
        %s7649 = smul.u32 %s4742, 4
        %s7650 = scalar_lea.vmem %s7, %s7649
        %v7651 = vld [vmem:[%s7650] sm:$0xf]
        %7652 = vrot.lane.b32.xlu0 %v7642, 1
        %v7653 = vpop.permute.xlu0 %7652
        %7654 = vrot.lane.b32.xlu0 %v7643, 1
        %v7655 = vpop.permute.xlu0 %7654
        %v7656 = vsel %vm330, %v7653, %v7655
        %v7657 = vsel %vm330, %v7655, %v7653
        %v7658 = vmul.f32 %v7657, %v347
        %v7659 = vmul.f32 %v7656, %v351
        %7660 = vrot.lane.b32.xlu0 %v7642, 127
        %v7661 = vpop.permute.xlu0 %7660
        %7662 = vrot.lane.b32.xlu0 %v7643, 127
        %v7663 = vpop.permute.xlu0 %7662
        %v7664 = vsel %vm358, %v7661, %v7663
        %v7665 = vsel %vm358, %v7663, %v7661
        %v7666 = vmul.f32 %v7664, %v374
        %v7667 = vmul.f32 %v7665, %v378
        %v7669 = vsel %vm1838, %v7646, 0
        %v7671 = vand.u32 %v7659, 4294901760
        %7672 = vmatprep.subr.mxu0 %v7671
        %v7673 = vand.u32 %v7658, 4294901760
        %7674 = vmatpush1.msra.mxu0 %v7673
        %7675 = vmatprep.subr.mxu0 0.0
        %7676 = vmatpush1.msra.mxu0 0.0
        %7677 = vmatprep.subr.mxu0 0.0
        %7678 = vmatpush1.msra.mxu0 0.0
        %7679 = vmatprep.subr.mxu0 0.0
        %7680 = vmatpush1.msra.mxu0 0.0
        %7681 = vmatprep.subr.mxu0 0.0
        %7682 = vmatpush1.msra.mxu0 0.0
        %7683 = vmatprep.subr.mxu0 0.0
        %7684 = vmatpush1.msra.mxu0 0.0
        %7685 = vmatprep.subr.mxu0 0.0
        %7686 = vmatpush1.msra.mxu0 0.0
        %7687 = vmatprep.subr.mxu0 0.0
        %7688 = vmatpush1.msra.mxu0 0.0
        %7689 = vmatprep.subr.mxu0 0.0
        %7690 = vmatpush1.msra.mxu0 0.0
        %7691 = vmatprep.subr.mxu0 0.0
        %7692 = vmatpush1.msra.mxu0 0.0
        %7693 = vmatprep.subr.mxu0 0.0
        %7694 = vmatpush1.msra.mxu0 0.0
        %7695 = vmatprep.subr.mxu0 0.0
        %7696 = vmatpush1.msra.mxu0 0.0
        %7697 = vmatprep.subr.mxu0 0.0
        %7698 = vmatpush1.msra.mxu0 0.0
        %7699 = vmatprep.subr.mxu0 0.0
        %7700 = vmatpush1.msra.mxu0 0.0
        %7701 = vmatprep.subr.mxu0 0.0
        %7702 = vmatpush1.msra.mxu0 0.0
        %7703 = vmatprep.subr.mxu0 0.0
        %7704 = vmatpush1.msra.mxu0 0.0
        %7705 = vmatprep.subr.mxu0 0.0
        %7706 = vmatpush1.msra.mxu0 0.0
        %7707 = vmatprep.subr.mxu0 0.0
        %7708 = vmatpush1.msra.mxu0 0.0
        %7709 = vmatprep.subr.mxu0 0.0
        %7710 = vmatpush1.msra.mxu0 0.0
        %7711 = vmatprep.subr.mxu0 0.0
        %7712 = vmatpush1.msra.mxu0 0.0
        %7713 = vmatprep.subr.mxu0 0.0
        %7714 = vmatpush1.msra.mxu0 0.0
        %7715 = vmatprep.subr.mxu0 0.0
        %7716 = vmatpush1.msra.mxu0 0.0
        %7717 = vmatprep.subr.mxu0 0.0
        %7718 = vmatpush1.msra.mxu0 0.0
        %7719 = vmatprep.subr.mxu0 0.0
        %7720 = vmatpush1.msra.mxu0 0.0
        %7721 = vmatprep.subr.mxu0 0.0
        %7722 = vmatpush1.msra.mxu0 0.0
        %7723 = vmatprep.subr.mxu0 0.0
        %7724 = vmatpush1.msra.mxu0 0.0
        %7725 = vmatprep.subr.mxu0 0.0
        %7726 = vmatpush1.msra.mxu0 0.0
        %7727 = vmatprep.subr.mxu0 0.0
        %7728 = vmatpush1.msra.mxu0 0.0
        %7729 = vmatprep.subr.mxu0 0.0
        %7730 = vmatpush1.msra.mxu0 0.0
        %7731 = vmatprep.subr.mxu0 0.0
        %7732 = vmatpush1.msra.mxu0 0.0
        %7733 = vmatprep.subr.mxu0 0.0
        %7734 = vmatpush1.msra.mxu0 0.0
        %7735 = vmatprep.subr.mxu0 0.0
        %7736 = vmatpush1.msra.mxu0 0.0
        %7737 = vmatprep.mubr.f32.mxu0 0.0
        %v7738 = vand.u32 %v7669, 4294901760
        %v7739 = vsub.f32 %v7669, %v7738
        %v7740 = vand.u32 %v7739, 4294901760
        %v7741 = vsub.f32 %v7739, %v7740
        %v7742 = vand.u32 %v7741, 4294901760
        %7743 = vmatmul.mubr.f32.gmra.mrb[0].mxu0 %v7742
        %v7744 = vpop.f32.mrb[0].mxu0
        %v7745 = vadd.f32 0.0, %v7744
        %v7746 = vpop.f32.mrb[0].mxu0
        %v7747 = vadd.f32 0.0, %v7746
        %7748 = vdwg.mxu0
        %v7749 = vand.u32 %v7659, 4294901760
        %v7750 = vsub.f32 %v7659, %v7749
        %v7751 = vand.u32 %v7750, 4294901760
        %v7752 = vsub.f32 %v7750, %v7751
        %v7753 = vand.u32 %v7752, 4294901760
        %7754 = vmatprep.subr.mxu0 %v7753
        %v7755 = vand.u32 %v7658, 4294901760
        %v7756 = vsub.f32 %v7658, %v7755
        %v7757 = vand.u32 %v7756, 4294901760
        %v7758 = vsub.f32 %v7756, %v7757
        %v7759 = vand.u32 %v7758, 4294901760
        %7760 = vmatpush1.msra.mxu0 %v7759
        %7761 = vmatprep.subr.mxu0 0.0
        %7762 = vmatpush1.msra.mxu0 0.0
        %7763 = vmatprep.subr.mxu0 0.0
        %7764 = vmatpush1.msra.mxu0 0.0
        %7765 = vmatprep.subr.mxu0 0.0
        %7766 = vmatpush1.msra.mxu0 0.0
        %7767 = vmatprep.subr.mxu0 0.0
        %7768 = vmatpush1.msra.mxu0 0.0
        %7769 = vmatprep.subr.mxu0 0.0
        %7770 = vmatpush1.msra.mxu0 0.0
        %7771 = vmatprep.subr.mxu0 0.0
        %7772 = vmatpush1.msra.mxu0 0.0
        %7773 = vmatprep.subr.mxu0 0.0
        %7774 = vmatpush1.msra.mxu0 0.0
        %7775 = vmatprep.subr.mxu0 0.0
        %7776 = vmatpush1.msra.mxu0 0.0
        %7777 = vmatprep.subr.mxu0 0.0
        %7778 = vmatpush1.msra.mxu0 0.0
        %7779 = vmatprep.subr.mxu0 0.0
        %7780 = vmatpush1.msra.mxu0 0.0
        %7781 = vmatprep.subr.mxu0 0.0
        %7782 = vmatpush1.msra.mxu0 0.0
        %7783 = vmatprep.subr.mxu0 0.0
        %7784 = vmatpush1.msra.mxu0 0.0
        %7785 = vmatprep.subr.mxu0 0.0
        %7786 = vmatpush1.msra.mxu0 0.0
        %7787 = vmatprep.subr.mxu0 0.0
        %7788 = vmatpush1.msra.mxu0 0.0
        %7789 = vmatprep.subr.mxu0 0.0
        %7790 = vmatpush1.msra.mxu0 0.0
        %7791 = vmatprep.subr.mxu0 0.0
        %7792 = vmatpush1.msra.mxu0 0.0
        %7793 = vmatprep.subr.mxu0 0.0
        %7794 = vmatpush1.msra.mxu0 0.0
        %7795 = vmatprep.subr.mxu0 0.0
        %7796 = vmatpush1.msra.mxu0 0.0
        %7797 = vmatprep.subr.mxu0 0.0
        %7798 = vmatpush1.msra.mxu0 0.0
        %7799 = vmatprep.subr.mxu0 0.0
        %7800 = vmatpush1.msra.mxu0 0.0
        %7801 = vmatprep.subr.mxu0 0.0
        %7802 = vmatpush1.msra.mxu0 0.0
        %7803 = vmatprep.subr.mxu0 0.0
        %7804 = vmatpush1.msra.mxu0 0.0
        %7805 = vmatprep.subr.mxu0 0.0
        %7806 = vmatpush1.msra.mxu0 0.0
        %7807 = vmatprep.subr.mxu0 0.0
        %7808 = vmatpush1.msra.mxu0 0.0
        %7809 = vmatprep.subr.mxu0 0.0
        %7810 = vmatpush1.msra.mxu0 0.0
        %7811 = vmatprep.subr.mxu0 0.0
        %7812 = vmatpush1.msra.mxu0 0.0
        %7813 = vmatprep.subr.mxu0 0.0
        %7814 = vmatpush1.msra.mxu0 0.0
        %7815 = vmatprep.subr.mxu0 0.0
        %7816 = vmatpush1.msra.mxu0 0.0
        %7817 = vmatprep.subr.mxu0 0.0
        %7818 = vmatpush1.msra.mxu0 0.0
        %7819 = vmatprep.subr.mxu0 0.0
        %7820 = vmatpush1.msra.mxu0 0.0
        %7821 = vmatprep.subr.mxu0 0.0
        %7822 = vmatpush1.msra.mxu0 0.0
        %7823 = vmatprep.mubr.f32.mxu0 0.0
        %v7824 = vand.u32 %v7669, 4294901760
        %7825 = vmatmul.mubr.f32.gmra.mrb[0].mxu0 %v7824
        %v7826 = vpop.f32.mrb[0].mxu0
        %v7827 = vadd.f32 %v7745, %v7826
        %v7828 = vpop.f32.mrb[0].mxu0
        %v7829 = vadd.f32 %v7747, %v7828
        %7830 = vdwg.mxu0
        %v7831 = vand.u32 %v7659, 4294901760
        %v7832 = vsub.f32 %v7659, %v7831
        %7833 = vmatprep.subr.mxu0 %v7832
        %v7834 = vand.u32 %v7658, 4294901760
        %v7835 = vsub.f32 %v7658, %v7834
        %7836 = vmatpush1.msra.mxu0 %v7835
        %7837 = vmatprep.subr.mxu0 0.0
        %7838 = vmatpush1.msra.mxu0 0.0
        %7839 = vmatprep.subr.mxu0 0.0
        %7840 = vmatpush1.msra.mxu0 0.0
        %7841 = vmatprep.subr.mxu0 0.0
        %7842 = vmatpush1.msra.mxu0 0.0
        %7843 = vmatprep.subr.mxu0 0.0
        %7844 = vmatpush1.msra.mxu0 0.0
        %7845 = vmatprep.subr.mxu0 0.0
        %7846 = vmatpush1.msra.mxu0 0.0
        %7847 = vmatprep.subr.mxu0 0.0
        %7848 = vmatpush1.msra.mxu0 0.0
        %7849 = vmatprep.subr.mxu0 0.0
        %7850 = vmatpush1.msra.mxu0 0.0
        %7851 = vmatprep.subr.mxu0 0.0
        %7852 = vmatpush1.msra.mxu0 0.0
        %7853 = vmatprep.subr.mxu0 0.0
        %7854 = vmatpush1.msra.mxu0 0.0
        %7855 = vmatprep.subr.mxu0 0.0
        %7856 = vmatpush1.msra.mxu0 0.0
        %7857 = vmatprep.subr.mxu0 0.0
        %7858 = vmatpush1.msra.mxu0 0.0
        %7859 = vmatprep.subr.mxu0 0.0
        %7860 = vmatpush1.msra.mxu0 0.0
        %7861 = vmatprep.subr.mxu0 0.0
        %7862 = vmatpush1.msra.mxu0 0.0
        %7863 = vmatprep.subr.mxu0 0.0
        %7864 = vmatpush1.msra.mxu0 0.0
        %7865 = vmatprep.subr.mxu0 0.0
        %7866 = vmatpush1.msra.mxu0 0.0
        %7867 = vmatprep.subr.mxu0 0.0
        %7868 = vmatpush1.msra.mxu0 0.0
        %7869 = vmatprep.subr.mxu0 0.0
        %7870 = vmatpush1.msra.mxu0 0.0
        %7871 = vmatprep.subr.mxu0 0.0
        %7872 = vmatpush1.msra.mxu0 0.0
        %7873 = vmatprep.subr.mxu0 0.0
        %7874 = vmatpush1.msra.mxu0 0.0
        %7875 = vmatprep.subr.mxu0 0.0
        %7876 = vmatpush1.msra.mxu0 0.0
        %7877 = vmatprep.subr.mxu0 0.0
        %7878 = vmatpush1.msra.mxu0 0.0
        %7879 = vmatprep.subr.mxu0 0.0
        %7880 = vmatpush1.msra.mxu0 0.0
        %7881 = vmatprep.subr.mxu0 0.0
        %7882 = vmatpush1.msra.mxu0 0.0
        %7883 = vmatprep.subr.mxu0 0.0
        %7884 = vmatpush1.msra.mxu0 0.0
        %7885 = vmatprep.subr.mxu0 0.0
        %7886 = vmatpush1.msra.mxu0 0.0
        %7887 = vmatprep.subr.mxu0 0.0
        %7888 = vmatpush1.msra.mxu0 0.0
        %7889 = vmatprep.subr.mxu0 0.0
        %7890 = vmatpush1.msra.mxu0 0.0
        %7891 = vmatprep.subr.mxu0 0.0
        %7892 = vmatpush1.msra.mxu0 0.0
        %7893 = vmatprep.subr.mxu0 0.0
        %7894 = vmatpush1.msra.mxu0 0.0
        %7895 = vmatprep.subr.mxu0 0.0
        %7896 = vmatpush1.msra.mxu0 0.0
        %7897 = vmatprep.subr.mxu0 0.0
        %7898 = vmatpush1.msra.mxu0 0.0
        %7899 = vmatprep.mubr.f32.mxu0 0.0
        %v7900 = vand.u32 %v7669, 4294901760
        %v7901 = vsub.f32 %v7669, %v7900
        %7902 = vmatmul.mubr.f32.gmra.mrb[0].mxu0 %v7901
        %v7903 = vpop.f32.mrb[0].mxu0
        %v7904 = vadd.f32 %v7827, %v7903
        %v7905 = vpop.f32.mrb[0].mxu0
        %v7906 = vadd.f32 %v7829, %v7905
        %7907 = vdwg.mxu0
        %v7908 = vand.u32 %v7659, 4294901760
        %7909 = vmatprep.subr.mxu0 %v7908
        %v7910 = vand.u32 %v7658, 4294901760
        %7911 = vmatpush1.msra.mxu0 %v7910
        %7912 = vmatprep.subr.mxu0 0.0
        %7913 = vmatpush1.msra.mxu0 0.0
        %7914 = vmatprep.subr.mxu0 0.0
        %7915 = vmatpush1.msra.mxu0 0.0
        %7916 = vmatprep.subr.mxu0 0.0
        %7917 = vmatpush1.msra.mxu0 0.0
        %7918 = vmatprep.subr.mxu0 0.0
        %7919 = vmatpush1.msra.mxu0 0.0
        %7920 = vmatprep.subr.mxu0 0.0
        %7921 = vmatpush1.msra.mxu0 0.0
        %7922 = vmatprep.subr.mxu0 0.0
        %7923 = vmatpush1.msra.mxu0 0.0
        %7924 = vmatprep.subr.mxu0 0.0
        %7925 = vmatpush1.msra.mxu0 0.0
        %7926 = vmatprep.subr.mxu0 0.0
        %7927 = vmatpush1.msra.mxu0 0.0
        %7928 = vmatprep.subr.mxu0 0.0
        %7929 = vmatpush1.msra.mxu0 0.0
        %7930 = vmatprep.subr.mxu0 0.0
        %7931 = vmatpush1.msra.mxu0 0.0
        %7932 = vmatprep.subr.mxu0 0.0
        %7933 = vmatpush1.msra.mxu0 0.0
        %7934 = vmatprep.subr.mxu0 0.0
        %7935 = vmatpush1.msra.mxu0 0.0
        %7936 = vmatprep.subr.mxu0 0.0
        %7937 = vmatpush1.msra.mxu0 0.0
        %7938 = vmatprep.subr.mxu0 0.0
        %7939 = vmatpush1.msra.mxu0 0.0
        %7940 = vmatprep.subr.mxu0 0.0
        %7941 = vmatpush1.msra.mxu0 0.0
        %7942 = vmatprep.subr.mxu0 0.0
        %7943 = vmatpush1.msra.mxu0 0.0
        %7944 = vmatprep.subr.mxu0 0.0
        %7945 = vmatpush1.msra.mxu0 0.0
        %7946 = vmatprep.subr.mxu0 0.0
        %7947 = vmatpush1.msra.mxu0 0.0
        %7948 = vmatprep.subr.mxu0 0.0
        %7949 = vmatpush1.msra.mxu0 0.0
        %7950 = vmatprep.subr.mxu0 0.0
        %7951 = vmatpush1.msra.mxu0 0.0
        %7952 = vmatprep.subr.mxu0 0.0
        %7953 = vmatpush1.msra.mxu0 0.0
        %7954 = vmatprep.subr.mxu0 0.0
        %7955 = vmatpush1.msra.mxu0 0.0
        %7956 = vmatprep.subr.mxu0 0.0
        %7957 = vmatpush1.msra.mxu0 0.0
        %7958 = vmatprep.subr.mxu0 0.0
        %7959 = vmatpush1.msra.mxu0 0.0
        %7960 = vmatprep.subr.mxu0 0.0
        %7961 = vmatpush1.msra.mxu0 0.0
        %7962 = vmatprep.subr.mxu0 0.0
        %7963 = vmatpush1.msra.mxu0 0.0
        %7964 = vmatprep.subr.mxu0 0.0
        %7965 = vmatpush1.msra.mxu0 0.0
        %7966 = vmatprep.subr.mxu0 0.0
        %7967 = vmatpush1.msra.mxu0 0.0
        %7968 = vmatprep.subr.mxu0 0.0
        %7969 = vmatpush1.msra.mxu0 0.0
        %7970 = vmatprep.subr.mxu0 0.0
        %7971 = vmatpush1.msra.mxu0 0.0
        %7972 = vmatprep.subr.mxu0 0.0
        %7973 = vmatpush1.msra.mxu0 0.0
        %7974 = vmatprep.mubr.f32.mxu0 0.0
        %v7975 = vand.u32 %v7669, 4294901760
        %v7976 = vsub.f32 %v7669, %v7975
        %v7977 = vand.u32 %v7976, 4294901760
        %7978 = vmatmul.mubr.f32.gmra.mrb[0].mxu0 %v7977
        %v7979 = vpop.f32.mrb[0].mxu0
        %v7980 = vadd.f32 %v7904, %v7979
        %v7981 = vpop.f32.mrb[0].mxu0
        %v7982 = vadd.f32 %v7906, %v7981
        %7983 = vdwg.mxu0
        %v7984 = vand.u32 %v7659, 4294901760
        %v7985 = vsub.f32 %v7659, %v7984
        %v7986 = vand.u32 %v7985, 4294901760
        %7987 = vmatprep.subr.mxu0 %v7986
        %v7988 = vand.u32 %v7658, 4294901760
        %v7989 = vsub.f32 %v7658, %v7988
        %v7990 = vand.u32 %v7989, 4294901760
        %7991 = vmatpush1.msra.mxu0 %v7990
        %7992 = vmatprep.subr.mxu0 0.0
        %7993 = vmatpush1.msra.mxu0 0.0
        %7994 = vmatprep.subr.mxu0 0.0
        %7995 = vmatpush1.msra.mxu0 0.0
        %7996 = vmatprep.subr.mxu0 0.0
        %7997 = vmatpush1.msra.mxu0 0.0
        %7998 = vmatprep.subr.mxu0 0.0
        %7999 = vmatpush1.msra.mxu0 0.0
        %8000 = vmatprep.subr.mxu0 0.0
        %8001 = vmatpush1.msra.mxu0 0.0
        %8002 = vmatprep.subr.mxu0 0.0
        %8003 = vmatpush1.msra.mxu0 0.0
        %8004 = vmatprep.subr.mxu0 0.0
        %8005 = vmatpush1.msra.mxu0 0.0
        %8006 = vmatprep.subr.mxu0 0.0
        %8007 = vmatpush1.msra.mxu0 0.0
        %8008 = vmatprep.subr.mxu0 0.0
        %8009 = vmatpush1.msra.mxu0 0.0
        %8010 = vmatprep.subr.mxu0 0.0
        %8011 = vmatpush1.msra.mxu0 0.0
        %8012 = vmatprep.subr.mxu0 0.0
        %8013 = vmatpush1.msra.mxu0 0.0
        %8014 = vmatprep.subr.mxu0 0.0
        %8015 = vmatpush1.msra.mxu0 0.0
        %8016 = vmatprep.subr.mxu0 0.0
        %8017 = vmatpush1.msra.mxu0 0.0
        %8018 = vmatprep.subr.mxu0 0.0
        %8019 = vmatpush1.msra.mxu0 0.0
        %8020 = vmatprep.subr.mxu0 0.0
        %8021 = vmatpush1.msra.mxu0 0.0
        %8022 = vmatprep.subr.mxu0 0.0
        %8023 = vmatpush1.msra.mxu0 0.0
        %8024 = vmatprep.subr.mxu0 0.0
        %8025 = vmatpush1.msra.mxu0 0.0
        %8026 = vmatprep.subr.mxu0 0.0
        %8027 = vmatpush1.msra.mxu0 0.0
        %8028 = vmatprep.subr.mxu0 0.0
        %8029 = vmatpush1.msra.mxu0 0.0
        %8030 = vmatprep.subr.mxu0 0.0
        %8031 = vmatpush1.msra.mxu0 0.0
        %8032 = vmatprep.subr.mxu0 0.0
        %8033 = vmatpush1.msra.mxu0 0.0
        %8034 = vmatprep.subr.mxu0 0.0
        %8035 = vmatpush1.msra.mxu0 0.0
        %8036 = vmatprep.subr.mxu0 0.0
        %8037 = vmatpush1.msra.mxu0 0.0
        %8038 = vmatprep.subr.mxu0 0.0
        %8039 = vmatpush1.msra.mxu0 0.0
        %8040 = vmatprep.subr.mxu0 0.0
        %8041 = vmatpush1.msra.mxu0 0.0
        %8042 = vmatprep.subr.mxu0 0.0
        %8043 = vmatpush1.msra.mxu0 0.0
        %8044 = vmatprep.subr.mxu0 0.0
        %8045 = vmatpush1.msra.mxu0 0.0
        %8046 = vmatprep.subr.mxu0 0.0
        %8047 = vmatpush1.msra.mxu0 0.0
        %8048 = vmatprep.subr.mxu0 0.0
        %8049 = vmatpush1.msra.mxu0 0.0
        %8050 = vmatprep.subr.mxu0 0.0
        %8051 = vmatpush1.msra.mxu0 0.0
        %8052 = vmatprep.subr.mxu0 0.0
        %8053 = vmatpush1.msra.mxu0 0.0
        %8054 = vmatprep.mubr.f32.mxu0 0.0
        %v8055 = vand.u32 %v7669, 4294901760
        %8056 = vmatmul.mubr.f32.gmra.mrb[0].mxu0 %v8055
        %v8057 = vpop.f32.mrb[0].mxu0
        %v8058 = vadd.f32 %v7980, %v8057
        %v8059 = vpop.f32.mrb[0].mxu0
        %v8060 = vadd.f32 %v7982, %v8059
        %8061 = vdwg.mxu0
        %v8062 = vand.u32 %v7659, 4294901760
        %8063 = vmatprep.subr.mxu0 %v8062
        %v8064 = vand.u32 %v7658, 4294901760
        %8065 = vmatpush1.msra.mxu0 %v8064
        %8066 = vmatprep.subr.mxu0 0.0
        %8067 = vmatpush1.msra.mxu0 0.0
        %8068 = vmatprep.subr.mxu0 0.0
        %8069 = vmatpush1.msra.mxu0 0.0
        %8070 = vmatprep.subr.mxu0 0.0
        %8071 = vmatpush1.msra.mxu0 0.0
        %8072 = vmatprep.subr.mxu0 0.0
        %8073 = vmatpush1.msra.mxu0 0.0
        %8074 = vmatprep.subr.mxu0 0.0
        %8075 = vmatpush1.msra.mxu0 0.0
        %8076 = vmatprep.subr.mxu0 0.0
        %8077 = vmatpush1.msra.mxu0 0.0
        %8078 = vmatprep.subr.mxu0 0.0
        %8079 = vmatpush1.msra.mxu0 0.0
        %8080 = vmatprep.subr.mxu0 0.0
        %8081 = vmatpush1.msra.mxu0 0.0
        %8082 = vmatprep.subr.mxu0 0.0
        %8083 = vmatpush1.msra.mxu0 0.0
        %8084 = vmatprep.subr.mxu0 0.0
        %8085 = vmatpush1.msra.mxu0 0.0
        %8086 = vmatprep.subr.mxu0 0.0
        %8087 = vmatpush1.msra.mxu0 0.0
        %8088 = vmatprep.subr.mxu0 0.0
        %8089 = vmatpush1.msra.mxu0 0.0
        %8090 = vmatprep.subr.mxu0 0.0
        %8091 = vmatpush1.msra.mxu0 0.0
        %8092 = vmatprep.subr.mxu0 0.0
        %8093 = vmatpush1.msra.mxu0 0.0
        %8094 = vmatprep.subr.mxu0 0.0
        %8095 = vmatpush1.msra.mxu0 0.0
        %8096 = vmatprep.subr.mxu0 0.0
        %8097 = vmatpush1.msra.mxu0 0.0
        %8098 = vmatprep.subr.mxu0 0.0
        %8099 = vmatpush1.msra.mxu0 0.0
        %8100 = vmatprep.subr.mxu0 0.0
        %8101 = vmatpush1.msra.mxu0 0.0
        %8102 = vmatprep.subr.mxu0 0.0
        %8103 = vmatpush1.msra.mxu0 0.0
        %8104 = vmatprep.subr.mxu0 0.0
        %8105 = vmatpush1.msra.mxu0 0.0
        %8106 = vmatprep.subr.mxu0 0.0
        %8107 = vmatpush1.msra.mxu0 0.0
        %8108 = vmatprep.subr.mxu0 0.0
        %8109 = vmatpush1.msra.mxu0 0.0
        %8110 = vmatprep.subr.mxu0 0.0
        %8111 = vmatpush1.msra.mxu0 0.0
        %8112 = vmatprep.subr.mxu0 0.0
        %8113 = vmatpush1.msra.mxu0 0.0
        %8114 = vmatprep.subr.mxu0 0.0
        %8115 = vmatpush1.msra.mxu0 0.0
        %8116 = vmatprep.subr.mxu0 0.0
        %8117 = vmatpush1.msra.mxu0 0.0
        %8118 = vmatprep.subr.mxu0 0.0
        %8119 = vmatpush1.msra.mxu0 0.0
        %8120 = vmatprep.subr.mxu0 0.0
        %8121 = vmatpush1.msra.mxu0 0.0
        %8122 = vmatprep.subr.mxu0 0.0
        %8123 = vmatpush1.msra.mxu0 0.0
        %8124 = vmatprep.subr.mxu0 0.0
        %8125 = vmatpush1.msra.mxu0 0.0
        %8126 = vmatprep.subr.mxu0 0.0
        %8127 = vmatpush1.msra.mxu0 0.0
        %8128 = vmatprep.mubr.f32.mxu0 0.0
        %v8129 = vand.u32 %v7669, 4294901760
        %8130 = vmatmul.mubr.f32.gmra.mrb[0].mxu0 %v8129
        %v8131 = vpop.f32.mrb[0].mxu0
        %v8132 = vadd.f32 %v8058, %v8131
        %v8133 = vpop.f32.mrb[0].mxu0
        %v8134 = vadd.f32 %v8060, %v8133
        %8135 = vdwg.mxu0
        %8137 = vset.pattern.permute.xlu0 0
        %8138 = vperm.xlu0 %8137, %v7651
        %v8139 = vpop.permute.xlu0 %8138
        %v8141 = vadd.f32 %v8139, %v8132
        %v8142 = vadd.f32 %v8139, %v8134
        %v8144 = vsel %vm1838, %v7647, 0
        %v8146 = vand.u32 %v7643, 4294901760
        %8147 = vmatprep.subr.mxu0 %v8146
        %v8148 = vand.u32 %v7642, 4294901760
        %8149 = vmatpush1.msra.mxu0 %v8148
        %8150 = vmatprep.subr.mxu0 0.0
        %8151 = vmatpush1.msra.mxu0 0.0
        %8152 = vmatprep.subr.mxu0 0.0
        %8153 = vmatpush1.msra.mxu0 0.0
        %8154 = vmatprep.subr.mxu0 0.0
        %8155 = vmatpush1.msra.mxu0 0.0
        %8156 = vmatprep.subr.mxu0 0.0
        %8157 = vmatpush1.msra.mxu0 0.0
        %8158 = vmatprep.subr.mxu0 0.0
        %8159 = vmatpush1.msra.mxu0 0.0
        %8160 = vmatprep.subr.mxu0 0.0
        %8161 = vmatpush1.msra.mxu0 0.0
        %8162 = vmatprep.subr.mxu0 0.0
        %8163 = vmatpush1.msra.mxu0 0.0
        %8164 = vmatprep.subr.mxu0 0.0
        %8165 = vmatpush1.msra.mxu0 0.0
        %8166 = vmatprep.subr.mxu0 0.0
        %8167 = vmatpush1.msra.mxu0 0.0
        %8168 = vmatprep.subr.mxu0 0.0
        %8169 = vmatpush1.msra.mxu0 0.0
        %8170 = vmatprep.subr.mxu0 0.0
        %8171 = vmatpush1.msra.mxu0 0.0
        %8172 = vmatprep.subr.mxu0 0.0
        %8173 = vmatpush1.msra.mxu0 0.0
        %8174 = vmatprep.subr.mxu0 0.0
        %8175 = vmatpush1.msra.mxu0 0.0
        %8176 = vmatprep.subr.mxu0 0.0
        %8177 = vmatpush1.msra.mxu0 0.0
        %8178 = vmatprep.subr.mxu0 0.0
        %8179 = vmatpush1.msra.mxu0 0.0
        %8180 = vmatprep.subr.mxu0 0.0
        %8181 = vmatpush1.msra.mxu0 0.0
        %8182 = vmatprep.subr.mxu0 0.0
        %8183 = vmatpush1.msra.mxu0 0.0
        %8184 = vmatprep.subr.mxu0 0.0
        %8185 = vmatpush1.msra.mxu0 0.0
        %8186 = vmatprep.subr.mxu0 0.0
        %8187 = vmatpush1.msra.mxu0 0.0
        %8188 = vmatprep.subr.mxu0 0.0
        %8189 = vmatpush1.msra.mxu0 0.0
        %8190 = vmatprep.subr.mxu0 0.0
        %8191 = vmatpush1.msra.mxu0 0.0
        %8192 = vmatprep.subr.mxu0 0.0
        %8193 = vmatpush1.msra.mxu0 0.0
        %8194 = vmatprep.subr.mxu0 0.0
        %8195 = vmatpush1.msra.mxu0 0.0
        %8196 = vmatprep.subr.mxu0 0.0
        %8197 = vmatpush1.msra.mxu0 0.0
        %8198 = vmatprep.subr.mxu0 0.0
        %8199 = vmatpush1.msra.mxu0 0.0
        %8200 = vmatprep.subr.mxu0 0.0
        %8201 = vmatpush1.msra.mxu0 0.0
        %8202 = vmatprep.subr.mxu0 0.0
        %8203 = vmatpush1.msra.mxu0 0.0
        %8204 = vmatprep.subr.mxu0 0.0
        %8205 = vmatpush1.msra.mxu0 0.0
        %8206 = vmatprep.subr.mxu0 0.0
        %8207 = vmatpush1.msra.mxu0 0.0
        %8208 = vmatprep.subr.mxu0 0.0
        %8209 = vmatpush1.msra.mxu0 0.0
        %8210 = vmatprep.subr.mxu0 0.0
        %8211 = vmatpush1.msra.mxu0 0.0
        %8212 = vmatprep.mubr.f32.mxu0 0.0
        %v8213 = vand.u32 %v8144, 4294901760
        %v8214 = vsub.f32 %v8144, %v8213
        %v8215 = vand.u32 %v8214, 4294901760
        %v8216 = vsub.f32 %v8214, %v8215
        %v8217 = vand.u32 %v8216, 4294901760
        %8218 = vmatmul.mubr.f32.gmra.mrb[0].mxu0 %v8217
        %v8219 = vpop.f32.mrb[0].mxu0
        %v8220 = vadd.f32 0.0, %v8219
        %v8221 = vpop.f32.mrb[0].mxu0
        %v8222 = vadd.f32 0.0, %v8221
        %8223 = vdwg.mxu0
        %v8224 = vand.u32 %v7643, 4294901760
        %v8225 = vsub.f32 %v7643, %v8224
        %v8226 = vand.u32 %v8225, 4294901760
        %v8227 = vsub.f32 %v8225, %v8226
        %v8228 = vand.u32 %v8227, 4294901760
        %8229 = vmatprep.subr.mxu0 %v8228
        %v8230 = vand.u32 %v7642, 4294901760
        %v8231 = vsub.f32 %v7642, %v8230
        %v8232 = vand.u32 %v8231, 4294901760
        %v8233 = vsub.f32 %v8231, %v8232
        %v8234 = vand.u32 %v8233, 4294901760
        %8235 = vmatpush1.msra.mxu0 %v8234
        %8236 = vmatprep.subr.mxu0 0.0
        %8237 = vmatpush1.msra.mxu0 0.0
        %8238 = vmatprep.subr.mxu0 0.0
        %8239 = vmatpush1.msra.mxu0 0.0
        %8240 = vmatprep.subr.mxu0 0.0
        %8241 = vmatpush1.msra.mxu0 0.0
        %8242 = vmatprep.subr.mxu0 0.0
        %8243 = vmatpush1.msra.mxu0 0.0
        %8244 = vmatprep.subr.mxu0 0.0
        %8245 = vmatpush1.msra.mxu0 0.0
        %8246 = vmatprep.subr.mxu0 0.0
        %8247 = vmatpush1.msra.mxu0 0.0
        %8248 = vmatprep.subr.mxu0 0.0
        %8249 = vmatpush1.msra.mxu0 0.0
        %8250 = vmatprep.subr.mxu0 0.0
        %8251 = vmatpush1.msra.mxu0 0.0
        %8252 = vmatprep.subr.mxu0 0.0
        %8253 = vmatpush1.msra.mxu0 0.0
        %8254 = vmatprep.subr.mxu0 0.0
        %8255 = vmatpush1.msra.mxu0 0.0
        %8256 = vmatprep.subr.mxu0 0.0
        %8257 = vmatpush1.msra.mxu0 0.0
        %8258 = vmatprep.subr.mxu0 0.0
        %8259 = vmatpush1.msra.mxu0 0.0
        %8260 = vmatprep.subr.mxu0 0.0
        %8261 = vmatpush1.msra.mxu0 0.0
        %8262 = vmatprep.subr.mxu0 0.0
        %8263 = vmatpush1.msra.mxu0 0.0
        %8264 = vmatprep.subr.mxu0 0.0
        %8265 = vmatpush1.msra.mxu0 0.0
        %8266 = vmatprep.subr.mxu0 0.0
        %8267 = vmatpush1.msra.mxu0 0.0
        %8268 = vmatprep.subr.mxu0 0.0
        %8269 = vmatpush1.msra.mxu0 0.0
        %8270 = vmatprep.subr.mxu0 0.0
        %8271 = vmatpush1.msra.mxu0 0.0
        %8272 = vmatprep.subr.mxu0 0.0
        %8273 = vmatpush1.msra.mxu0 0.0
        %8274 = vmatprep.subr.mxu0 0.0
        %8275 = vmatpush1.msra.mxu0 0.0
        %8276 = vmatprep.subr.mxu0 0.0
        %8277 = vmatpush1.msra.mxu0 0.0
        %8278 = vmatprep.subr.mxu0 0.0
        %8279 = vmatpush1.msra.mxu0 0.0
        %8280 = vmatprep.subr.mxu0 0.0
        %8281 = vmatpush1.msra.mxu0 0.0
        %8282 = vmatprep.subr.mxu0 0.0
        %8283 = vmatpush1.msra.mxu0 0.0
        %8284 = vmatprep.subr.mxu0 0.0
        %8285 = vmatpush1.msra.mxu0 0.0
        %8286 = vmatprep.subr.mxu0 0.0
        %8287 = vmatpush1.msra.mxu0 0.0
        %8288 = vmatprep.subr.mxu0 0.0
        %8289 = vmatpush1.msra.mxu0 0.0
        %8290 = vmatprep.subr.mxu0 0.0
        %8291 = vmatpush1.msra.mxu0 0.0
        %8292 = vmatprep.subr.mxu0 0.0
        %8293 = vmatpush1.msra.mxu0 0.0
        %8294 = vmatprep.subr.mxu0 0.0
        %8295 = vmatpush1.msra.mxu0 0.0
        %8296 = vmatprep.subr.mxu0 0.0
        %8297 = vmatpush1.msra.mxu0 0.0
        %8298 = vmatprep.mubr.f32.mxu0 0.0
        %v8299 = vand.u32 %v8144, 4294901760
        %8300 = vmatmul.mubr.f32.gmra.mrb[0].mxu0 %v8299
        %v8301 = vpop.f32.mrb[0].mxu0
        %v8302 = vadd.f32 %v8220, %v8301
        %v8303 = vpop.f32.mrb[0].mxu0
        %v8304 = vadd.f32 %v8222, %v8303
        %8305 = vdwg.mxu0
        %v8306 = vand.u32 %v7643, 4294901760
        %v8307 = vsub.f32 %v7643, %v8306
        %8308 = vmatprep.subr.mxu0 %v8307
        %v8309 = vand.u32 %v7642, 4294901760
        %v8310 = vsub.f32 %v7642, %v8309
        %8311 = vmatpush1.msra.mxu0 %v8310
        %8312 = vmatprep.subr.mxu0 0.0
        %8313 = vmatpush1.msra.mxu0 0.0
        %8314 = vmatprep.subr.mxu0 0.0
        %8315 = vmatpush1.msra.mxu0 0.0
        %8316 = vmatprep.subr.mxu0 0.0
        %8317 = vmatpush1.msra.mxu0 0.0
        %8318 = vmatprep.subr.mxu0 0.0
        %8319 = vmatpush1.msra.mxu0 0.0
        %8320 = vmatprep.subr.mxu0 0.0
        %8321 = vmatpush1.msra.mxu0 0.0
        %8322 = vmatprep.subr.mxu0 0.0
        %8323 = vmatpush1.msra.mxu0 0.0
        %8324 = vmatprep.subr.mxu0 0.0
        %8325 = vmatpush1.msra.mxu0 0.0
        %8326 = vmatprep.subr.mxu0 0.0
        %8327 = vmatpush1.msra.mxu0 0.0
        %8328 = vmatprep.subr.mxu0 0.0
        %8329 = vmatpush1.msra.mxu0 0.0
        %8330 = vmatprep.subr.mxu0 0.0
        %8331 = vmatpush1.msra.mxu0 0.0
        %8332 = vmatprep.subr.mxu0 0.0
        %8333 = vmatpush1.msra.mxu0 0.0
        %8334 = vmatprep.subr.mxu0 0.0
        %8335 = vmatpush1.msra.mxu0 0.0
        %8336 = vmatprep.subr.mxu0 0.0
        %8337 = vmatpush1.msra.mxu0 0.0
        %8338 = vmatprep.subr.mxu0 0.0
        %8339 = vmatpush1.msra.mxu0 0.0
        %8340 = vmatprep.subr.mxu0 0.0
        %8341 = vmatpush1.msra.mxu0 0.0
        %8342 = vmatprep.subr.mxu0 0.0
        %8343 = vmatpush1.msra.mxu0 0.0
        %8344 = vmatprep.subr.mxu0 0.0
        %8345 = vmatpush1.msra.mxu0 0.0
        %8346 = vmatprep.subr.mxu0 0.0
        %8347 = vmatpush1.msra.mxu0 0.0
        %8348 = vmatprep.subr.mxu0 0.0
        %8349 = vmatpush1.msra.mxu0 0.0
        %8350 = vmatprep.subr.mxu0 0.0
        %8351 = vmatpush1.msra.mxu0 0.0
        %8352 = vmatprep.subr.mxu0 0.0
        %8353 = vmatpush1.msra.mxu0 0.0
        %8354 = vmatprep.subr.mxu0 0.0
        %8355 = vmatpush1.msra.mxu0 0.0
        %8356 = vmatprep.subr.mxu0 0.0
        %8357 = vmatpush1.msra.mxu0 0.0
        %8358 = vmatprep.subr.mxu0 0.0
        %8359 = vmatpush1.msra.mxu0 0.0
        %8360 = vmatprep.subr.mxu0 0.0
        %8361 = vmatpush1.msra.mxu0 0.0
        %8362 = vmatprep.subr.mxu0 0.0
        %8363 = vmatpush1.msra.mxu0 0.0
        %8364 = vmatprep.subr.mxu0 0.0
        %8365 = vmatpush1.msra.mxu0 0.0
        %8366 = vmatprep.subr.mxu0 0.0
        %8367 = vmatpush1.msra.mxu0 0.0
        %8368 = vmatprep.subr.mxu0 0.0
        %8369 = vmatpush1.msra.mxu0 0.0
        %8370 = vmatprep.subr.mxu0 0.0
        %8371 = vmatpush1.msra.mxu0 0.0
        %8372 = vmatprep.subr.mxu0 0.0
        %8373 = vmatpush1.msra.mxu0 0.0
        %8374 = vmatprep.mubr.f32.mxu0 0.0
        %v8375 = vand.u32 %v8144, 4294901760
        %v8376 = vsub.f32 %v8144, %v8375
        %8377 = vmatmul.mubr.f32.gmra.mrb[0].mxu0 %v8376
        %v8378 = vpop.f32.mrb[0].mxu0
        %v8379 = vadd.f32 %v8302, %v8378
        %v8380 = vpop.f32.mrb[0].mxu0
        %v8381 = vadd.f32 %v8304, %v8380
        %8382 = vdwg.mxu0
        %v8383 = vand.u32 %v7643, 4294901760
        %8384 = vmatprep.subr.mxu0 %v8383
        %v8385 = vand.u32 %v7642, 4294901760
        %8386 = vmatpush1.msra.mxu0 %v8385
        %8387 = vmatprep.subr.mxu0 0.0
        %8388 = vmatpush1.msra.mxu0 0.0
        %8389 = vmatprep.subr.mxu0 0.0
        %8390 = vmatpush1.msra.mxu0 0.0
        %8391 = vmatprep.subr.mxu0 0.0
        %8392 = vmatpush1.msra.mxu0 0.0
        %8393 = vmatprep.subr.mxu0 0.0
        %8394 = vmatpush1.msra.mxu0 0.0
        %8395 = vmatprep.subr.mxu0 0.0
        %8396 = vmatpush1.msra.mxu0 0.0
        %8397 = vmatprep.subr.mxu0 0.0
        %8398 = vmatpush1.msra.mxu0 0.0
        %8399 = vmatprep.subr.mxu0 0.0
        %8400 = vmatpush1.msra.mxu0 0.0
        %8401 = vmatprep.subr.mxu0 0.0
        %8402 = vmatpush1.msra.mxu0 0.0
        %8403 = vmatprep.subr.mxu0 0.0
        %8404 = vmatpush1.msra.mxu0 0.0
        %8405 = vmatprep.subr.mxu0 0.0
        %8406 = vmatpush1.msra.mxu0 0.0
        %8407 = vmatprep.subr.mxu0 0.0
        %8408 = vmatpush1.msra.mxu0 0.0
        %8409 = vmatprep.subr.mxu0 0.0
        %8410 = vmatpush1.msra.mxu0 0.0
        %8411 = vmatprep.subr.mxu0 0.0
        %8412 = vmatpush1.msra.mxu0 0.0
        %8413 = vmatprep.subr.mxu0 0.0
        %8414 = vmatpush1.msra.mxu0 0.0
        %8415 = vmatprep.subr.mxu0 0.0
        %8416 = vmatpush1.msra.mxu0 0.0
        %8417 = vmatprep.subr.mxu0 0.0
        %8418 = vmatpush1.msra.mxu0 0.0
        %8419 = vmatprep.subr.mxu0 0.0
        %8420 = vmatpush1.msra.mxu0 0.0
        %8421 = vmatprep.subr.mxu0 0.0
        %8422 = vmatpush1.msra.mxu0 0.0
        %8423 = vmatprep.subr.mxu0 0.0
        %8424 = vmatpush1.msra.mxu0 0.0
        %8425 = vmatprep.subr.mxu0 0.0
        %8426 = vmatpush1.msra.mxu0 0.0
        %8427 = vmatprep.subr.mxu0 0.0
        %8428 = vmatpush1.msra.mxu0 0.0
        %8429 = vmatprep.subr.mxu0 0.0
        %8430 = vmatpush1.msra.mxu0 0.0
        %8431 = vmatprep.subr.mxu0 0.0
        %8432 = vmatpush1.msra.mxu0 0.0
        %8433 = vmatprep.subr.mxu0 0.0
        %8434 = vmatpush1.msra.mxu0 0.0
        %8435 = vmatprep.subr.mxu0 0.0
        %8436 = vmatpush1.msra.mxu0 0.0
        %8437 = vmatprep.subr.mxu0 0.0
        %8438 = vmatpush1.msra.mxu0 0.0
        %8439 = vmatprep.subr.mxu0 0.0
        %8440 = vmatpush1.msra.mxu0 0.0
        %8441 = vmatprep.subr.mxu0 0.0
        %8442 = vmatpush1.msra.mxu0 0.0
        %8443 = vmatprep.subr.mxu0 0.0
        %8444 = vmatpush1.msra.mxu0 0.0
        %8445 = vmatprep.subr.mxu0 0.0
        %8446 = vmatpush1.msra.mxu0 0.0
        %8447 = vmatprep.subr.mxu0 0.0
        %8448 = vmatpush1.msra.mxu0 0.0
        %8449 = vmatprep.mubr.f32.mxu0 0.0
        %v8450 = vand.u32 %v8144, 4294901760
        %v8451 = vsub.f32 %v8144, %v8450
        %v8452 = vand.u32 %v8451, 4294901760
        %8453 = vmatmul.mubr.f32.gmra.mrb[0].mxu0 %v8452
        %v8454 = vpop.f32.mrb[0].mxu0
        %v8455 = vadd.f32 %v8379, %v8454
        %v8456 = vpop.f32.mrb[0].mxu0
        %v8457 = vadd.f32 %v8381, %v8456
        %8458 = vdwg.mxu0
        %v8459 = vand.u32 %v7643, 4294901760
        %v8460 = vsub.f32 %v7643, %v8459
        %v8461 = vand.u32 %v8460, 4294901760
        %8462 = vmatprep.subr.mxu0 %v8461
        %v8463 = vand.u32 %v7642, 4294901760
        %v8464 = vsub.f32 %v7642, %v8463
        %v8465 = vand.u32 %v8464, 4294901760
        %8466 = vmatpush1.msra.mxu0 %v8465
        %8467 = vmatprep.subr.mxu0 0.0
        %8468 = vmatpush1.msra.mxu0 0.0
        %8469 = vmatprep.subr.mxu0 0.0
        %8470 = vmatpush1.msra.mxu0 0.0
        %8471 = vmatprep.subr.mxu0 0.0
        %8472 = vmatpush1.msra.mxu0 0.0
        %8473 = vmatprep.subr.mxu0 0.0
        %8474 = vmatpush1.msra.mxu0 0.0
        %8475 = vmatprep.subr.mxu0 0.0
        %8476 = vmatpush1.msra.mxu0 0.0
        %8477 = vmatprep.subr.mxu0 0.0
        %8478 = vmatpush1.msra.mxu0 0.0
        %8479 = vmatprep.subr.mxu0 0.0
        %8480 = vmatpush1.msra.mxu0 0.0
        %8481 = vmatprep.subr.mxu0 0.0
        %8482 = vmatpush1.msra.mxu0 0.0
        %8483 = vmatprep.subr.mxu0 0.0
        %8484 = vmatpush1.msra.mxu0 0.0
        %8485 = vmatprep.subr.mxu0 0.0
        %8486 = vmatpush1.msra.mxu0 0.0
        %8487 = vmatprep.subr.mxu0 0.0
        %8488 = vmatpush1.msra.mxu0 0.0
        %8489 = vmatprep.subr.mxu0 0.0
        %8490 = vmatpush1.msra.mxu0 0.0
        %8491 = vmatprep.subr.mxu0 0.0
        %8492 = vmatpush1.msra.mxu0 0.0
        %8493 = vmatprep.subr.mxu0 0.0
        %8494 = vmatpush1.msra.mxu0 0.0
        %8495 = vmatprep.subr.mxu0 0.0
        %8496 = vmatpush1.msra.mxu0 0.0
        %8497 = vmatprep.subr.mxu0 0.0
        %8498 = vmatpush1.msra.mxu0 0.0
        %8499 = vmatprep.subr.mxu0 0.0
        %8500 = vmatpush1.msra.mxu0 0.0
        %8501 = vmatprep.subr.mxu0 0.0
        %8502 = vmatpush1.msra.mxu0 0.0
        %8503 = vmatprep.subr.mxu0 0.0
        %8504 = vmatpush1.msra.mxu0 0.0
        %8505 = vmatprep.subr.mxu0 0.0
        %8506 = vmatpush1.msra.mxu0 0.0
        %8507 = vmatprep.subr.mxu0 0.0
        %8508 = vmatpush1.msra.mxu0 0.0
        %8509 = vmatprep.subr.mxu0 0.0
        %8510 = vmatpush1.msra.mxu0 0.0
        %8511 = vmatprep.subr.mxu0 0.0
        %8512 = vmatpush1.msra.mxu0 0.0
        %8513 = vmatprep.subr.mxu0 0.0
        %8514 = vmatpush1.msra.mxu0 0.0
        %8515 = vmatprep.subr.mxu0 0.0
        %8516 = vmatpush1.msra.mxu0 0.0
        %8517 = vmatprep.subr.mxu0 0.0
        %8518 = vmatpush1.msra.mxu0 0.0
        %8519 = vmatprep.subr.mxu0 0.0
        %8520 = vmatpush1.msra.mxu0 0.0
        %8521 = vmatprep.subr.mxu0 0.0
        %8522 = vmatpush1.msra.mxu0 0.0
        %8523 = vmatprep.subr.mxu0 0.0
        %8524 = vmatpush1.msra.mxu0 0.0
        %8525 = vmatprep.subr.mxu0 0.0
        %8526 = vmatpush1.msra.mxu0 0.0
        %8527 = vmatprep.subr.mxu0 0.0
        %8528 = vmatpush1.msra.mxu0 0.0
        %8529 = vmatprep.mubr.f32.mxu0 0.0
        %v8530 = vand.u32 %v8144, 4294901760
        %8531 = vmatmul.mubr.f32.gmra.mrb[0].mxu0 %v8530
        %v8532 = vpop.f32.mrb[0].mxu0
        %v8533 = vadd.f32 %v8455, %v8532
        %v8534 = vpop.f32.mrb[0].mxu0
        %v8535 = vadd.f32 %v8457, %v8534
        %8536 = vdwg.mxu0
        %v8537 = vand.u32 %v7643, 4294901760
        %8538 = vmatprep.subr.mxu0 %v8537
        %v8539 = vand.u32 %v7642, 4294901760
        %8540 = vmatpush1.msra.mxu0 %v8539
        %8541 = vmatprep.subr.mxu0 0.0
        %8542 = vmatpush1.msra.mxu0 0.0
        %8543 = vmatprep.subr.mxu0 0.0
        %8544 = vmatpush1.msra.mxu0 0.0
        %8545 = vmatprep.subr.mxu0 0.0
        %8546 = vmatpush1.msra.mxu0 0.0
        %8547 = vmatprep.subr.mxu0 0.0
        %8548 = vmatpush1.msra.mxu0 0.0
        %8549 = vmatprep.subr.mxu0 0.0
        %8550 = vmatpush1.msra.mxu0 0.0
        %8551 = vmatprep.subr.mxu0 0.0
        %8552 = vmatpush1.msra.mxu0 0.0
        %8553 = vmatprep.subr.mxu0 0.0
        %8554 = vmatpush1.msra.mxu0 0.0
        %8555 = vmatprep.subr.mxu0 0.0
        %8556 = vmatpush1.msra.mxu0 0.0
        %8557 = vmatprep.subr.mxu0 0.0
        %8558 = vmatpush1.msra.mxu0 0.0
        %8559 = vmatprep.subr.mxu0 0.0
        %8560 = vmatpush1.msra.mxu0 0.0
        %8561 = vmatprep.subr.mxu0 0.0
        %8562 = vmatpush1.msra.mxu0 0.0
        %8563 = vmatprep.subr.mxu0 0.0
        %8564 = vmatpush1.msra.mxu0 0.0
        %8565 = vmatprep.subr.mxu0 0.0
        %8566 = vmatpush1.msra.mxu0 0.0
        %8567 = vmatprep.subr.mxu0 0.0
        %8568 = vmatpush1.msra.mxu0 0.0
        %8569 = vmatprep.subr.mxu0 0.0
        %8570 = vmatpush1.msra.mxu0 0.0
        %8571 = vmatprep.subr.mxu0 0.0
        %8572 = vmatpush1.msra.mxu0 0.0
        %8573 = vmatprep.subr.mxu0 0.0
        %8574 = vmatpush1.msra.mxu0 0.0
        %8575 = vmatprep.subr.mxu0 0.0
        %8576 = vmatpush1.msra.mxu0 0.0
        %8577 = vmatprep.subr.mxu0 0.0
        %8578 = vmatpush1.msra.mxu0 0.0
        %8579 = vmatprep.subr.mxu0 0.0
        %8580 = vmatpush1.msra.mxu0 0.0
        %8581 = vmatprep.subr.mxu0 0.0
        %8582 = vmatpush1.msra.mxu0 0.0
        %8583 = vmatprep.subr.mxu0 0.0
        %8584 = vmatpush1.msra.mxu0 0.0
        %8585 = vmatprep.subr.mxu0 0.0
        %8586 = vmatpush1.msra.mxu0 0.0
        %8587 = vmatprep.subr.mxu0 0.0
        %8588 = vmatpush1.msra.mxu0 0.0
        %8589 = vmatprep.subr.mxu0 0.0
        %8590 = vmatpush1.msra.mxu0 0.0
        %8591 = vmatprep.subr.mxu0 0.0
        %8592 = vmatpush1.msra.mxu0 0.0
        %8593 = vmatprep.subr.mxu0 0.0
        %8594 = vmatpush1.msra.mxu0 0.0
        %8595 = vmatprep.subr.mxu0 0.0
        %8596 = vmatpush1.msra.mxu0 0.0
        %8597 = vmatprep.subr.mxu0 0.0
        %8598 = vmatpush1.msra.mxu0 0.0
        %8599 = vmatprep.subr.mxu0 0.0
        %8600 = vmatpush1.msra.mxu0 0.0
        %8601 = vmatprep.subr.mxu0 0.0
        %8602 = vmatpush1.msra.mxu0 0.0
        %8603 = vmatprep.mubr.f32.mxu0 0.0
        %v8604 = vand.u32 %v8144, 4294901760
        %8605 = vmatmul.mubr.f32.gmra.mrb[0].mxu0 %v8604
        %v8606 = vpop.f32.mrb[0].mxu0
        %v8607 = vadd.f32 %v8533, %v8606
        %v8608 = vpop.f32.mrb[0].mxu0
        %v8609 = vadd.f32 %v8535, %v8608
        %8610 = vdwg.mxu0
        %v8611 = vadd.f32 %v8141, %v8607
        %v8612 = vadd.f32 %v8142, %v8609
        %v8614 = vsel %vm1838, %v7648, 0
        %v8616 = vand.u32 %v7667, 4294901760
        %8617 = vmatprep.subr.mxu0 %v8616
        %v8618 = vand.u32 %v7666, 4294901760
        %8619 = vmatpush1.msra.mxu0 %v8618
        %8620 = vmatprep.subr.mxu0 0.0
        %8621 = vmatpush1.msra.mxu0 0.0
        %8622 = vmatprep.subr.mxu0 0.0
        %8623 = vmatpush1.msra.mxu0 0.0
        %8624 = vmatprep.subr.mxu0 0.0
        %8625 = vmatpush1.msra.mxu0 0.0
        %8626 = vmatprep.subr.mxu0 0.0
        %8627 = vmatpush1.msra.mxu0 0.0
        %8628 = vmatprep.subr.mxu0 0.0
        %8629 = vmatpush1.msra.mxu0 0.0
        %8630 = vmatprep.subr.mxu0 0.0
        %8631 = vmatpush1.msra.mxu0 0.0
        %8632 = vmatprep.subr.mxu0 0.0
        %8633 = vmatpush1.msra.mxu0 0.0
        %8634 = vmatprep.subr.mxu0 0.0
        %8635 = vmatpush1.msra.mxu0 0.0
        %8636 = vmatprep.subr.mxu0 0.0
        %8637 = vmatpush1.msra.mxu0 0.0
        %8638 = vmatprep.subr.mxu0 0.0
        %8639 = vmatpush1.msra.mxu0 0.0
        %8640 = vmatprep.subr.mxu0 0.0
        %8641 = vmatpush1.msra.mxu0 0.0
        %8642 = vmatprep.subr.mxu0 0.0
        %8643 = vmatpush1.msra.mxu0 0.0
        %8644 = vmatprep.subr.mxu0 0.0
        %8645 = vmatpush1.msra.mxu0 0.0
        %8646 = vmatprep.subr.mxu0 0.0
        %8647 = vmatpush1.msra.mxu0 0.0
        %8648 = vmatprep.subr.mxu0 0.0
        %8649 = vmatpush1.msra.mxu0 0.0
        %8650 = vmatprep.subr.mxu0 0.0
        %8651 = vmatpush1.msra.mxu0 0.0
        %8652 = vmatprep.subr.mxu0 0.0
        %8653 = vmatpush1.msra.mxu0 0.0
        %8654 = vmatprep.subr.mxu0 0.0
        %8655 = vmatpush1.msra.mxu0 0.0
        %8656 = vmatprep.subr.mxu0 0.0
        %8657 = vmatpush1.msra.mxu0 0.0
        %8658 = vmatprep.subr.mxu0 0.0
        %8659 = vmatpush1.msra.mxu0 0.0
        %8660 = vmatprep.subr.mxu0 0.0
        %8661 = vmatpush1.msra.mxu0 0.0
        %8662 = vmatprep.subr.mxu0 0.0
        %8663 = vmatpush1.msra.mxu0 0.0
        %8664 = vmatprep.subr.mxu0 0.0
        %8665 = vmatpush1.msra.mxu0 0.0
        %8666 = vmatprep.subr.mxu0 0.0
        %8667 = vmatpush1.msra.mxu0 0.0
        %8668 = vmatprep.subr.mxu0 0.0
        %8669 = vmatpush1.msra.mxu0 0.0
        %8670 = vmatprep.subr.mxu0 0.0
        %8671 = vmatpush1.msra.mxu0 0.0
        %8672 = vmatprep.subr.mxu0 0.0
        %8673 = vmatpush1.msra.mxu0 0.0
        %8674 = vmatprep.subr.mxu0 0.0
        %8675 = vmatpush1.msra.mxu0 0.0
        %8676 = vmatprep.subr.mxu0 0.0
        %8677 = vmatpush1.msra.mxu0 0.0
        %8678 = vmatprep.subr.mxu0 0.0
        %8679 = vmatpush1.msra.mxu0 0.0
        %8680 = vmatprep.subr.mxu0 0.0
        %8681 = vmatpush1.msra.mxu0 0.0
        %8682 = vmatprep.mubr.f32.mxu0 0.0
        %v8683 = vand.u32 %v8614, 4294901760
        %v8684 = vsub.f32 %v8614, %v8683
        %v8685 = vand.u32 %v8684, 4294901760
        %v8686 = vsub.f32 %v8684, %v8685
        %v8687 = vand.u32 %v8686, 4294901760
        %8688 = vmatmul.mubr.f32.gmra.mrb[0].mxu0 %v8687
        %v8689 = vpop.f32.mrb[0].mxu0
        %v8690 = vadd.f32 0.0, %v8689
        %v8691 = vpop.f32.mrb[0].mxu0
        %v8692 = vadd.f32 0.0, %v8691
        %8693 = vdwg.mxu0
        %v8694 = vand.u32 %v7667, 4294901760
        %v8695 = vsub.f32 %v7667, %v8694
        %v8696 = vand.u32 %v8695, 4294901760
        %v8697 = vsub.f32 %v8695, %v8696
        %v8698 = vand.u32 %v8697, 4294901760
        %8699 = vmatprep.subr.mxu0 %v8698
        %v8700 = vand.u32 %v7666, 4294901760
        %v8701 = vsub.f32 %v7666, %v8700
        %v8702 = vand.u32 %v8701, 4294901760
        %v8703 = vsub.f32 %v8701, %v8702
        %v8704 = vand.u32 %v8703, 4294901760
        %8705 = vmatpush1.msra.mxu0 %v8704
        %8706 = vmatprep.subr.mxu0 0.0
        %8707 = vmatpush1.msra.mxu0 0.0
        %8708 = vmatprep.subr.mxu0 0.0
        %8709 = vmatpush1.msra.mxu0 0.0
        %8710 = vmatprep.subr.mxu0 0.0
        %8711 = vmatpush1.msra.mxu0 0.0
        %8712 = vmatprep.subr.mxu0 0.0
        %8713 = vmatpush1.msra.mxu0 0.0
        %8714 = vmatprep.subr.mxu0 0.0
        %8715 = vmatpush1.msra.mxu0 0.0
        %8716 = vmatprep.subr.mxu0 0.0
        %8717 = vmatpush1.msra.mxu0 0.0
        %8718 = vmatprep.subr.mxu0 0.0
        %8719 = vmatpush1.msra.mxu0 0.0
        %8720 = vmatprep.subr.mxu0 0.0
        %8721 = vmatpush1.msra.mxu0 0.0
        %8722 = vmatprep.subr.mxu0 0.0
        %8723 = vmatpush1.msra.mxu0 0.0
        %8724 = vmatprep.subr.mxu0 0.0
        %8725 = vmatpush1.msra.mxu0 0.0
        %8726 = vmatprep.subr.mxu0 0.0
        %8727 = vmatpush1.msra.mxu0 0.0
        %8728 = vmatprep.subr.mxu0 0.0
        %8729 = vmatpush1.msra.mxu0 0.0
        %8730 = vmatprep.subr.mxu0 0.0
        %8731 = vmatpush1.msra.mxu0 0.0
        %8732 = vmatprep.subr.mxu0 0.0
        %8733 = vmatpush1.msra.mxu0 0.0
        %8734 = vmatprep.subr.mxu0 0.0
        %8735 = vmatpush1.msra.mxu0 0.0
        %8736 = vmatprep.subr.mxu0 0.0
        %8737 = vmatpush1.msra.mxu0 0.0
        %8738 = vmatprep.subr.mxu0 0.0
        %8739 = vmatpush1.msra.mxu0 0.0
        %8740 = vmatprep.subr.mxu0 0.0
        %8741 = vmatpush1.msra.mxu0 0.0
        %8742 = vmatprep.subr.mxu0 0.0
        %8743 = vmatpush1.msra.mxu0 0.0
        %8744 = vmatprep.subr.mxu0 0.0
        %8745 = vmatpush1.msra.mxu0 0.0
        %8746 = vmatprep.subr.mxu0 0.0
        %8747 = vmatpush1.msra.mxu0 0.0
        %8748 = vmatprep.subr.mxu0 0.0
        %8749 = vmatpush1.msra.mxu0 0.0
        %8750 = vmatprep.subr.mxu0 0.0
        %8751 = vmatpush1.msra.mxu0 0.0
        %8752 = vmatprep.subr.mxu0 0.0
        %8753 = vmatpush1.msra.mxu0 0.0
        %8754 = vmatprep.subr.mxu0 0.0
        %8755 = vmatpush1.msra.mxu0 0.0
        %8756 = vmatprep.subr.mxu0 0.0
        %8757 = vmatpush1.msra.mxu0 0.0
        %8758 = vmatprep.subr.mxu0 0.0
        %8759 = vmatpush1.msra.mxu0 0.0
        %8760 = vmatprep.subr.mxu0 0.0
        %8761 = vmatpush1.msra.mxu0 0.0
        %8762 = vmatprep.subr.mxu0 0.0
        %8763 = vmatpush1.msra.mxu0 0.0
        %8764 = vmatprep.subr.mxu0 0.0
        %8765 = vmatpush1.msra.mxu0 0.0
        %8766 = vmatprep.subr.mxu0 0.0
        %8767 = vmatpush1.msra.mxu0 0.0
        %8768 = vmatprep.mubr.f32.mxu0 0.0
        %v8769 = vand.u32 %v8614, 4294901760
        %8770 = vmatmul.mubr.f32.gmra.mrb[0].mxu0 %v8769
        %v8771 = vpop.f32.mrb[0].mxu0
        %v8772 = vadd.f32 %v8690, %v8771
        %v8773 = vpop.f32.mrb[0].mxu0
        %v8774 = vadd.f32 %v8692, %v8773
        %8775 = vdwg.mxu0
        %v8776 = vand.u32 %v7667, 4294901760
        %v8777 = vsub.f32 %v7667, %v8776
        %8778 = vmatprep.subr.mxu0 %v8777
        %v8779 = vand.u32 %v7666, 4294901760
        %v8780 = vsub.f32 %v7666, %v8779
        %8781 = vmatpush1.msra.mxu0 %v8780
        %8782 = vmatprep.subr.mxu0 0.0
        %8783 = vmatpush1.msra.mxu0 0.0
        %8784 = vmatprep.subr.mxu0 0.0
        %8785 = vmatpush1.msra.mxu0 0.0
        %8786 = vmatprep.subr.mxu0 0.0
        %8787 = vmatpush1.msra.mxu0 0.0
        %8788 = vmatprep.subr.mxu0 0.0
        %8789 = vmatpush1.msra.mxu0 0.0
        %8790 = vmatprep.subr.mxu0 0.0
        %8791 = vmatpush1.msra.mxu0 0.0
        %8792 = vmatprep.subr.mxu0 0.0
        %8793 = vmatpush1.msra.mxu0 0.0
        %8794 = vmatprep.subr.mxu0 0.0
        %8795 = vmatpush1.msra.mxu0 0.0
        %8796 = vmatprep.subr.mxu0 0.0
        %8797 = vmatpush1.msra.mxu0 0.0
        %8798 = vmatprep.subr.mxu0 0.0
        %8799 = vmatpush1.msra.mxu0 0.0
        %8800 = vmatprep.subr.mxu0 0.0
        %8801 = vmatpush1.msra.mxu0 0.0
        %8802 = vmatprep.subr.mxu0 0.0
        %8803 = vmatpush1.msra.mxu0 0.0
        %8804 = vmatprep.subr.mxu0 0.0
        %8805 = vmatpush1.msra.mxu0 0.0
        %8806 = vmatprep.subr.mxu0 0.0
        %8807 = vmatpush1.msra.mxu0 0.0
        %8808 = vmatprep.subr.mxu0 0.0
        %8809 = vmatpush1.msra.mxu0 0.0
        %8810 = vmatprep.subr.mxu0 0.0
        %8811 = vmatpush1.msra.mxu0 0.0
        %8812 = vmatprep.subr.mxu0 0.0
        %8813 = vmatpush1.msra.mxu0 0.0
        %8814 = vmatprep.subr.mxu0 0.0
        %8815 = vmatpush1.msra.mxu0 0.0
        %8816 = vmatprep.subr.mxu0 0.0
        %8817 = vmatpush1.msra.mxu0 0.0
        %8818 = vmatprep.subr.mxu0 0.0
        %8819 = vmatpush1.msra.mxu0 0.0
        %8820 = vmatprep.subr.mxu0 0.0
        %8821 = vmatpush1.msra.mxu0 0.0
        %8822 = vmatprep.subr.mxu0 0.0
        %8823 = vmatpush1.msra.mxu0 0.0
        %8824 = vmatprep.subr.mxu0 0.0
        %8825 = vmatpush1.msra.mxu0 0.0
        %8826 = vmatprep.subr.mxu0 0.0
        %8827 = vmatpush1.msra.mxu0 0.0
        %8828 = vmatprep.subr.mxu0 0.0
        %8829 = vmatpush1.msra.mxu0 0.0
        %8830 = vmatprep.subr.mxu0 0.0
        %8831 = vmatpush1.msra.mxu0 0.0
        %8832 = vmatprep.subr.mxu0 0.0
        %8833 = vmatpush1.msra.mxu0 0.0
        %8834 = vmatprep.subr.mxu0 0.0
        %8835 = vmatpush1.msra.mxu0 0.0
        %8836 = vmatprep.subr.mxu0 0.0
        %8837 = vmatpush1.msra.mxu0 0.0
        %8838 = vmatprep.subr.mxu0 0.0
        %8839 = vmatpush1.msra.mxu0 0.0
        %8840 = vmatprep.subr.mxu0 0.0
        %8841 = vmatpush1.msra.mxu0 0.0
        %8842 = vmatprep.subr.mxu0 0.0
        %8843 = vmatpush1.msra.mxu0 0.0
        %8844 = vmatprep.mubr.f32.mxu0 0.0
        %v8845 = vand.u32 %v8614, 4294901760
        %v8846 = vsub.f32 %v8614, %v8845
        %8847 = vmatmul.mubr.f32.gmra.mrb[0].mxu0 %v8846
        %v8848 = vpop.f32.mrb[0].mxu0
        %v8849 = vadd.f32 %v8772, %v8848
        %v8850 = vpop.f32.mrb[0].mxu0
        %v8851 = vadd.f32 %v8774, %v8850
        %8852 = vdwg.mxu0
        %v8853 = vand.u32 %v7667, 4294901760
        %8854 = vmatprep.subr.mxu0 %v8853
        %v8855 = vand.u32 %v7666, 4294901760
        %8856 = vmatpush1.msra.mxu0 %v8855
        %8857 = vmatprep.subr.mxu0 0.0
        %8858 = vmatpush1.msra.mxu0 0.0
        %8859 = vmatprep.subr.mxu0 0.0
        %8860 = vmatpush1.msra.mxu0 0.0
        %8861 = vmatprep.subr.mxu0 0.0
        %8862 = vmatpush1.msra.mxu0 0.0
        %8863 = vmatprep.subr.mxu0 0.0
        %8864 = vmatpush1.msra.mxu0 0.0
        %8865 = vmatprep.subr.mxu0 0.0
        %8866 = vmatpush1.msra.mxu0 0.0
        %8867 = vmatprep.subr.mxu0 0.0
        %8868 = vmatpush1.msra.mxu0 0.0
        %8869 = vmatprep.subr.mxu0 0.0
        %8870 = vmatpush1.msra.mxu0 0.0
        %8871 = vmatprep.subr.mxu0 0.0
        %8872 = vmatpush1.msra.mxu0 0.0
        %8873 = vmatprep.subr.mxu0 0.0
        %8874 = vmatpush1.msra.mxu0 0.0
        %8875 = vmatprep.subr.mxu0 0.0
        %8876 = vmatpush1.msra.mxu0 0.0
        %8877 = vmatprep.subr.mxu0 0.0
        %8878 = vmatpush1.msra.mxu0 0.0
        %8879 = vmatprep.subr.mxu0 0.0
        %8880 = vmatpush1.msra.mxu0 0.0
        %8881 = vmatprep.subr.mxu0 0.0
        %8882 = vmatpush1.msra.mxu0 0.0
        %8883 = vmatprep.subr.mxu0 0.0
        %8884 = vmatpush1.msra.mxu0 0.0
        %8885 = vmatprep.subr.mxu0 0.0
        %8886 = vmatpush1.msra.mxu0 0.0
        %8887 = vmatprep.subr.mxu0 0.0
        %8888 = vmatpush1.msra.mxu0 0.0
        %8889 = vmatprep.subr.mxu0 0.0
        %8890 = vmatpush1.msra.mxu0 0.0
        %8891 = vmatprep.subr.mxu0 0.0
        %8892 = vmatpush1.msra.mxu0 0.0
        %8893 = vmatprep.subr.mxu0 0.0
        %8894 = vmatpush1.msra.mxu0 0.0
        %8895 = vmatprep.subr.mxu0 0.0
        %8896 = vmatpush1.msra.mxu0 0.0
        %8897 = vmatprep.subr.mxu0 0.0
        %8898 = vmatpush1.msra.mxu0 0.0
        %8899 = vmatprep.subr.mxu0 0.0
        %8900 = vmatpush1.msra.mxu0 0.0
        %8901 = vmatprep.subr.mxu0 0.0
        %8902 = vmatpush1.msra.mxu0 0.0
        %8903 = vmatprep.subr.mxu0 0.0
        %8904 = vmatpush1.msra.mxu0 0.0
        %8905 = vmatprep.subr.mxu0 0.0
        %8906 = vmatpush1.msra.mxu0 0.0
        %8907 = vmatprep.subr.mxu0 0.0
        %8908 = vmatpush1.msra.mxu0 0.0
        %8909 = vmatprep.subr.mxu0 0.0
        %8910 = vmatpush1.msra.mxu0 0.0
        %8911 = vmatprep.subr.mxu0 0.0
        %8912 = vmatpush1.msra.mxu0 0.0
        %8913 = vmatprep.subr.mxu0 0.0
        %8914 = vmatpush1.msra.mxu0 0.0
        %8915 = vmatprep.subr.mxu0 0.0
        %8916 = vmatpush1.msra.mxu0 0.0
        %8917 = vmatprep.subr.mxu0 0.0
        %8918 = vmatpush1.msra.mxu0 0.0
        %8919 = vmatprep.mubr.f32.mxu0 0.0
        %v8920 = vand.u32 %v8614, 4294901760
        %v8921 = vsub.f32 %v8614, %v8920
        %v8922 = vand.u32 %v8921, 4294901760
        %8923 = vmatmul.mubr.f32.gmra.mrb[0].mxu0 %v8922
        %v8924 = vpop.f32.mrb[0].mxu0
        %v8925 = vadd.f32 %v8849, %v8924
        %v8926 = vpop.f32.mrb[0].mxu0
        %v8927 = vadd.f32 %v8851, %v8926
        %8928 = vdwg.mxu0
        %v8929 = vand.u32 %v7667, 4294901760
        %v8930 = vsub.f32 %v7667, %v8929
        %v8931 = vand.u32 %v8930, 4294901760
        %8932 = vmatprep.subr.mxu0 %v8931
        %v8933 = vand.u32 %v7666, 4294901760
        %v8934 = vsub.f32 %v7666, %v8933
        %v8935 = vand.u32 %v8934, 4294901760
        %8936 = vmatpush1.msra.mxu0 %v8935
        %8937 = vmatprep.subr.mxu0 0.0
        %8938 = vmatpush1.msra.mxu0 0.0
        %8939 = vmatprep.subr.mxu0 0.0
        %8940 = vmatpush1.msra.mxu0 0.0
        %8941 = vmatprep.subr.mxu0 0.0
        %8942 = vmatpush1.msra.mxu0 0.0
        %8943 = vmatprep.subr.mxu0 0.0
        %8944 = vmatpush1.msra.mxu0 0.0
        %8945 = vmatprep.subr.mxu0 0.0
        %8946 = vmatpush1.msra.mxu0 0.0
        %8947 = vmatprep.subr.mxu0 0.0
        %8948 = vmatpush1.msra.mxu0 0.0
        %8949 = vmatprep.subr.mxu0 0.0
        %8950 = vmatpush1.msra.mxu0 0.0
        %8951 = vmatprep.subr.mxu0 0.0
        %8952 = vmatpush1.msra.mxu0 0.0
        %8953 = vmatprep.subr.mxu0 0.0
        %8954 = vmatpush1.msra.mxu0 0.0
        %8955 = vmatprep.subr.mxu0 0.0
        %8956 = vmatpush1.msra.mxu0 0.0
        %8957 = vmatprep.subr.mxu0 0.0
        %8958 = vmatpush1.msra.mxu0 0.0
        %8959 = vmatprep.subr.mxu0 0.0
        %8960 = vmatpush1.msra.mxu0 0.0
        %8961 = vmatprep.subr.mxu0 0.0
        %8962 = vmatpush1.msra.mxu0 0.0
        %8963 = vmatprep.subr.mxu0 0.0
        %8964 = vmatpush1.msra.mxu0 0.0
        %8965 = vmatprep.subr.mxu0 0.0
        %8966 = vmatpush1.msra.mxu0 0.0
        %8967 = vmatprep.subr.mxu0 0.0
        %8968 = vmatpush1.msra.mxu0 0.0
        %8969 = vmatprep.subr.mxu0 0.0
        %8970 = vmatpush1.msra.mxu0 0.0
        %8971 = vmatprep.subr.mxu0 0.0
        %8972 = vmatpush1.msra.mxu0 0.0
        %8973 = vmatprep.subr.mxu0 0.0
        %8974 = vmatpush1.msra.mxu0 0.0
        %8975 = vmatprep.subr.mxu0 0.0
        %8976 = vmatpush1.msra.mxu0 0.0
        %8977 = vmatprep.subr.mxu0 0.0
        %8978 = vmatpush1.msra.mxu0 0.0
        %8979 = vmatprep.subr.mxu0 0.0
        %8980 = vmatpush1.msra.mxu0 0.0
        %8981 = vmatprep.subr.mxu0 0.0
        %8982 = vmatpush1.msra.mxu0 0.0
        %8983 = vmatprep.subr.mxu0 0.0
        %8984 = vmatpush1.msra.mxu0 0.0
        %8985 = vmatprep.subr.mxu0 0.0
        %8986 = vmatpush1.msra.mxu0 0.0
        %8987 = vmatprep.subr.mxu0 0.0
        %8988 = vmatpush1.msra.mxu0 0.0
        %8989 = vmatprep.subr.mxu0 0.0
        %8990 = vmatpush1.msra.mxu0 0.0
        %8991 = vmatprep.subr.mxu0 0.0
        %8992 = vmatpush1.msra.mxu0 0.0
        %8993 = vmatprep.subr.mxu0 0.0
        %8994 = vmatpush1.msra.mxu0 0.0
        %8995 = vmatprep.subr.mxu0 0.0
        %8996 = vmatpush1.msra.mxu0 0.0
        %8997 = vmatprep.subr.mxu0 0.0
        %8998 = vmatpush1.msra.mxu0 0.0
        %8999 = vmatprep.mubr.f32.mxu0 0.0
        %v9000 = vand.u32 %v8614, 4294901760
        %9001 = vmatmul.mubr.f32.gmra.mrb[0].mxu0 %v9000
        %v9002 = vpop.f32.mrb[0].mxu0
        %v9003 = vadd.f32 %v8925, %v9002
        %v9004 = vpop.f32.mrb[0].mxu0
        %v9005 = vadd.f32 %v8927, %v9004
        %9006 = vdwg.mxu0
        %v9007 = vand.u32 %v7667, 4294901760
        %9008 = vmatprep.subr.mxu0 %v9007
        %v9009 = vand.u32 %v7666, 4294901760
        %9010 = vmatpush1.msra.mxu0 %v9009
        %9011 = vmatprep.subr.mxu0 0.0
        %9012 = vmatpush1.msra.mxu0 0.0
        %9013 = vmatprep.subr.mxu0 0.0
        %9014 = vmatpush1.msra.mxu0 0.0
        %9015 = vmatprep.subr.mxu0 0.0
        %9016 = vmatpush1.msra.mxu0 0.0
        %9017 = vmatprep.subr.mxu0 0.0
        %9018 = vmatpush1.msra.mxu0 0.0
        %9019 = vmatprep.subr.mxu0 0.0
        %9020 = vmatpush1.msra.mxu0 0.0
        %9021 = vmatprep.subr.mxu0 0.0
        %9022 = vmatpush1.msra.mxu0 0.0
        %9023 = vmatprep.subr.mxu0 0.0
        %9024 = vmatpush1.msra.mxu0 0.0
        %9025 = vmatprep.subr.mxu0 0.0
        %9026 = vmatpush1.msra.mxu0 0.0
        %9027 = vmatprep.subr.mxu0 0.0
        %9028 = vmatpush1.msra.mxu0 0.0
        %9029 = vmatprep.subr.mxu0 0.0
        %9030 = vmatpush1.msra.mxu0 0.0
        %9031 = vmatprep.subr.mxu0 0.0
        %9032 = vmatpush1.msra.mxu0 0.0
        %9033 = vmatprep.subr.mxu0 0.0
        %9034 = vmatpush1.msra.mxu0 0.0
        %9035 = vmatprep.subr.mxu0 0.0
        %9036 = vmatpush1.msra.mxu0 0.0
        %9037 = vmatprep.subr.mxu0 0.0
        %9038 = vmatpush1.msra.mxu0 0.0
        %9039 = vmatprep.subr.mxu0 0.0
        %9040 = vmatpush1.msra.mxu0 0.0
        %9041 = vmatprep.subr.mxu0 0.0
        %9042 = vmatpush1.msra.mxu0 0.0
        %9043 = vmatprep.subr.mxu0 0.0
        %9044 = vmatpush1.msra.mxu0 0.0
        %9045 = vmatprep.subr.mxu0 0.0
        %9046 = vmatpush1.msra.mxu0 0.0
        %9047 = vmatprep.subr.mxu0 0.0
        %9048 = vmatpush1.msra.mxu0 0.0
        %9049 = vmatprep.subr.mxu0 0.0
        %9050 = vmatpush1.msra.mxu0 0.0
        %9051 = vmatprep.subr.mxu0 0.0
        %9052 = vmatpush1.msra.mxu0 0.0
        %9053 = vmatprep.subr.mxu0 0.0
        %9054 = vmatpush1.msra.mxu0 0.0
        %9055 = vmatprep.subr.mxu0 0.0
        %9056 = vmatpush1.msra.mxu0 0.0
        %9057 = vmatprep.subr.mxu0 0.0
        %9058 = vmatpush1.msra.mxu0 0.0
        %9059 = vmatprep.subr.mxu0 0.0
        %9060 = vmatpush1.msra.mxu0 0.0
        %9061 = vmatprep.subr.mxu0 0.0
        %9062 = vmatpush1.msra.mxu0 0.0
        %9063 = vmatprep.subr.mxu0 0.0
        %9064 = vmatpush1.msra.mxu0 0.0
        %9065 = vmatprep.subr.mxu0 0.0
        %9066 = vmatpush1.msra.mxu0 0.0
        %9067 = vmatprep.subr.mxu0 0.0
        %9068 = vmatpush1.msra.mxu0 0.0
        %9069 = vmatprep.subr.mxu0 0.0
        %9070 = vmatpush1.msra.mxu0 0.0
        %9071 = vmatprep.subr.mxu0 0.0
        %9072 = vmatpush1.msra.mxu0 0.0
        %9073 = vmatprep.mubr.f32.mxu0 0.0
        %v9074 = vand.u32 %v8614, 4294901760
        %9075 = vmatmul.mubr.f32.gmra.mrb[0].mxu0 %v9074
        %v9076 = vpop.f32.mrb[0].mxu0
        %v9077 = vadd.f32 %v9003, %v9076
        %v9078 = vpop.f32.mrb[0].mxu0
        %v9079 = vadd.f32 %v9005, %v9078
        %9080 = vdwg.mxu0
        %v9081 = vadd.f32 %v8611, %v9077
        %v9082 = vadd.f32 %v8612, %v9079
        %v9085 = vcombine.low %v9081, %v9082
        %v9087 = vmul.f32 %v4744, %v9085
        %v9089 = vcombine.high %v9087, %v9087
        %v9091 = vsel %vm4703, %v9087, 0.0
        %v9092 = vrot.slane %v9091, 4
        %v9093 = vadd.f32 %v9091, %v9092
        %v9094 = vrot.slane %v9093, 2
        %v9095 = vadd.f32 %v9093, %v9094
        %v9096 = vrot.slane %v9095, 1
        %v9097 = vadd.f32 %v9095, %v9096
        %v9098 = vsel %vm4703, %v9089, 0.0
        %v9099 = vrot.slane %v9098, 4
        %v9100 = vadd.f32 %v9098, %v9099
        %v9101 = vrot.slane %v9100, 2
        %v9102 = vadd.f32 %v9100, %v9101
        %v9103 = vrot.slane %v9102, 1
        %v9104 = vadd.f32 %v9102, %v9103
        %v9105 = vrot.slane %v9087, 2
        %v9106 = vrot.slane %v9089, 2
        %v9109 = vsel %vm4703, %v9105, 0.0
        %v9110 = vrot.slane %v9109, 4
        %v9111 = vadd.f32 %v9109, %v9110
        %v9112 = vrot.slane %v9111, 2
        %v9113 = vadd.f32 %v9111, %v9112
        %v9114 = vrot.slane %v9113, 1
        %v9115 = vadd.f32 %v9113, %v9114
        %v9116 = vsel %vm4703, %v9106, 0.0
        %v9117 = vrot.slane %v9116, 4
        %v9118 = vadd.f32 %v9116, %v9117
        %v9119 = vrot.slane %v9118, 2
        %v9120 = vadd.f32 %v9118, %v9119
        %v9121 = vrot.slane %v9120, 1
        %v9122 = vadd.f32 %v9120, %v9121
        %v9123 = vsel %vm4736, %v9097, %v9115
        %v9124 = vsel %vm4736, %v9104, %v9122
        %9125 = vst [vmem:[%s301 + $0x2] sm:$0x3] %v9123
        %9126 = vst [vmem:[%s4740 + $0x2] sm:$0x3] %v9124
        %s9127 = sand.u32 %s203, 1
        %s9128 = scalar_lea.sflag [#allocation3], %s9127
        %s9129 = sand.u32 %s203, 1
        %s9130 = smul.addr %s9129, 8
        %s9131 = scalar_lea.vmem [#allocation2], %s9130
        // Predicated region
        $region53: #{tpu_custom_call.1} parent=51 // pred_check
          %p9132 = pneg %p213
        $region54: #{tpu_custom_call.1} parent=51 // pred_check_branch
          %9134 = sbr.rel (%p9132) target = $region56
        $region55: #{tpu_custom_call.1} parent=51 // pred_region
          %s9135 = smul.u32 2, %s22
          %s9137 = ssub.s32 128, 128
          %9138 = vsyncadd %s9128, %s9137
          %s9139 = smul.addr %s9135, 32
          %s9140 = scalar_lea.hbm %s8, %s9139
          %s9141 = sshll.u32 %s9131, 4
          %s9142 = int_to_ptr.vmem [resolvable:$true] %s9141
          %9147 = dma.vmem_to_hbm [thread:$0]  %s9142, 128, %s9140, %s9128, 64, 128, 4
        $region56: #{tpu_custom_call.1} parent=51 // pred_fallthru
          _
      $region52: #{tpu_custom_call.1} parent=5 // pred_fallthru
        _
      %p9148 = scmp.le.s32.totalorder 2, %s17
      // Predicated region
      $region57: #{tpu_custom_call.1} parent=5 // pred_check
        %p9149 = pneg %p9148
      $region58: #{tpu_custom_call.1} parent=5 // pred_check_branch
        %9151 = sbr.rel (%p9149) target = $region60
      $region59: #{tpu_custom_call.1} parent=5 // pred_region
        %s9152 = ssub.s32 %s17, 2
        // Predicated region
        $region61: #{tpu_custom_call.1} parent=59 // pred_check
          %p9153 = pneg %p219
        $region62: #{tpu_custom_call.1} parent=59 // pred_check_branch
          %9155 = sbr.rel (%p9153) target = $region64
        $region63: #{tpu_custom_call.1} parent=59 // pred_region
          %s9156 = sand.u32 %s204, 1
          %s9157 = scalar_lea.sflag [#allocation3], %s9156
          %s9158 = sand.u32 %s204, 1
          %s9159 = smul.addr %s9158, 8
          %s9160 = scalar_lea.vmem [#allocation2], %s9159
          %9161 = dma.done %s9157, 128
        $region64: #{tpu_custom_call.1} parent=59 // pred_fallthru
          _
      $region60: #{tpu_custom_call.1} parent=5 // pred_fallthru
        _
    $region6: #{tpu_custom_call.1} parent=1 // loop_footer
      %s21 = sadd.s32 1, %s17
    $region7: #{tpu_custom_call.1} parent=1 // loop_footer_branch
      %16 = sbr.rel target = $region3
    $region8: #{tpu_custom_call.1} parent=1 // loop_exit
      _
    %9162 = vsyncpa [#allocation3], 1
    %s9163 = scalar_lea.sflag [#allocation3], 1
    %9164 = vsyncpa %s9163, 1

</llo_original>
